<compile_context>
chip_gen: v6e
topology: v6e:2x2x1
jax: 0.10.0
libtpu: 0.0.40
codegen_flags: <defaults>
</compile_context>

<pallas_src>
import functools
import math

import jax
import jax.numpy as jnp
from jax import lax
from jax.experimental import pallas as pl
from jax.experimental.pallas import tpu as pltpu


def _resize_conv_kernel(x_ref, m_ref, w_ref, b_ref, o_ref, *, taps, hw, pad, cout):
    """One batch element: all s*s output phases of nearest-upsample + conv3x3.

    x_ref : (1, HWp, Cin)     bf16  flat image rows, `pad` zero rows top & bottom
    m_ref : (2, HWp, 1)       bf16  column-border masks (rx = -1 / rx = +1)
    w_ref : (T, Cin, Cout)    bf16  packed per-(phase, offset) effective weights
    b_ref : (1, Cout)         f32   bias
    o_ref : (1, s*s, HW, Cout) f32  per-phase outputs at original resolution
    taps  : static per-phase list of (tap_index, flat_row_shift, rx)
    """
    bias = b_ref[...]                                   # (1, Cout) f32
    for p, phase_taps in enumerate(taps):               # static unroll: s*s phases
        acc = jnp.zeros((hw, cout), jnp.float32)
        for (t, d, rx) in phase_taps:                   # static unroll: few taps
            a = x_ref[0, pad + d: pad + d + hw, :]      # (HW, Cin) shifted window
            if rx != 0:                                 # zero wrapped border cols
                a = a * m_ref[0 if rx < 0 else 1, pad + d: pad + d + hw, :]
            acc = acc + jnp.dot(a, w_ref[t], preferred_element_type=jnp.float32)
        o_ref[0, p] = (acc + bias).astype(o_ref.dtype)


def resize_conv2d(x, w, b, scale):
    """Forward of ResizeConv2d: F.interpolate(scale, 'nearest') -> Conv2d(3x3, pad=1).

    x : (B, Cin, H, W)   float32  (NCHW, PyTorch layout)
    w : (Cout, Cin, 3, 3) float32 (PyTorch conv weight layout)
    b : (Cout,)          float32
    returns (B, Cout, H*scale, W*scale) float32 (NCHW)
    """
    B, Cin, H, W = x.shape
    Cout, Cin_w, kh, kw = w.shape
    assert Cin_w == Cin and kh == 3 and kw == 3, "only 3x3 / padding=1 (ResNet18Dec config)"
    s = int(scale)
    HW = H * W
    PAD = W + 1                        # zero rows so every shifted window is in bounds
    HWp = HW + 2 * PAD

    # ---- activations: NCHW -> flat rows (H*W, Cin), zero row-pad, bf16 for the MXU ----
    xf = jnp.transpose(x, (0, 2, 3, 1)).reshape(B, HW, Cin)
    xf = jnp.pad(xf, ((0, 0), (PAD, PAD), (0, 0))).astype(jnp.bfloat16)

    # ---- column-border masks: zero rows whose source pixel wrapped horizontally ----
    col = jnp.arange(HWp, dtype=jnp.int32) % W
    masks = jnp.stack([(col != 0), (col != 1)]).astype(jnp.bfloat16).reshape(2, HWp, 1)

    # ---- per-phase effective weights (sub-pixel decomposition, computed at trace time) ----
    w_hwio = jnp.transpose(w, (2, 3, 1, 0))                       # (3, 3, Cin, Cout)
    taps = []                                                     # static metadata
    w_packed = []
    for py in range(s):
        for px in range(s):
            groups = {}
            for dy in range(3):
                ry = (py + dy - 1) // s                           # source-row offset in {-1,0,1}
                for dx in range(3):
                    rx = (px + dx - 1) // s                       # source-col offset in {-1,0,1}
                    groups.setdefault((ry, rx), []).append((dy, dx))
            phase_taps = []
            for (ry, rx), dd in sorted(groups.items()):
                weff = sum(w_hwio[dy, dx] for (dy, dx) in dd)     # merge taps -> (Cin, Cout)
                phase_taps.append((len(w_packed), ry * W + rx, rx))
                w_packed.append(weff)
            taps.append(phase_taps)
    w_packed = jnp.stack(w_packed).astype(jnp.bfloat16)           # (T, Cin, Cout)
    bias = b.reshape(1, Cout).astype(jnp.float32)

    kernel = functools.partial(_resize_conv_kernel, taps=taps, hw=HW, pad=PAD, cout=Cout)
    out = pl.pallas_call(
        kernel,
        out_shape=jax.ShapeDtypeStruct((B, s * s, HW, Cout), jnp.float32),
        grid=(B,),
        in_specs=[
            pl.BlockSpec((1, HWp, Cin), lambda bb: (bb, 0, 0)),
            pl.BlockSpec((2, HWp, 1), lambda bb: (0, 0, 0)),
            pl.BlockSpec(tuple(w_packed.shape), lambda bb: (0, 0, 0)),
            pl.BlockSpec((1, Cout), lambda bb: (0, 0)),
        ],
        out_specs=pl.BlockSpec((1, s * s, HW, Cout), lambda bb: (bb, 0, 0, 0)),
        compiler_params=pltpu.CompilerParams(dimension_semantics=("parallel",)),
    )(xf, masks, w_packed, bias)

    # interleave phases: out[b, py*s+px, i*W+j, co] -> NCHW [b, co, s*i+py, s*j+px]
    out = out.reshape(B, s, s, H, W, Cout)
    out = jnp.transpose(out, (0, 5, 3, 1, 4, 2)).reshape(B, Cout, H * s, W * s)
    return out


def _reference(x, w, b, scale):
    """Pure-JAX reference: materialized nearest upsample + XLA conv (for validation only)."""
    up = jnp.repeat(jnp.repeat(x, scale, axis=2), scale, axis=3)
    out = lax.conv_general_dilated(
        up, w, window_strides=(1, 1), padding=((1, 1), (1, 1)),
        dimension_numbers=("NCHW", "OIHW", "NCHW"))
    return out + b.reshape(1, -1, 1, 1)


if __name__ == "__main__":
    B, CIN, COUT, H, W, SCALE = 2, 64, 32, 16, 16, 2
    k0, k1, k2 = jax.random.split(jax.random.PRNGKey(0), 3)
    x = jax.random.normal(k0, (B, CIN, H, W), jnp.float32)
    w = jax.random.normal(k1, (COUT, CIN, 3, 3), jnp.float32) / math.sqrt(9 * CIN)
    b = jax.random.normal(k2, (COUT,), jnp.float32) / math.sqrt(9 * CIN)

    fwd = jax.jit(functools.partial(resize_conv2d, scale=SCALE))
    out = jax.block_until_ready(fwd(x, w, b))

    assert out.shape == (B, COUT, H * SCALE, W * SCALE), out.shape
    assert bool(jnp.all(jnp.isfinite(out)))

    ref = _reference(x, w, b, SCALE)
    err = float(jnp.max(jnp.abs(out - ref)))
    assert err < 1e-1, f"max abs err vs reference = {err}"
    print("KERNEL_OK")
</pallas_src>

<mosaic_0001>
module attributes {stable_mosaic.version = 11 : i64} {
  func.func @_resize_conv_kernel(%arg0: i32, %arg1: memref<1x290x64xbf16, #tpu.memory_space<vmem>>, %arg2: memref<2x290x1xbf16, #tpu.memory_space<vmem>>, %arg3: memref<16x64x32xbf16, #tpu.memory_space<vmem>>, %arg4: memref<1x32xf32, #tpu.memory_space<vmem>>, %arg5: memref<1x4x256x32xf32, #tpu.memory_space<vmem>>) attributes {dimension_semantics = [#tpu.dimension_semantics<parallel>], iteration_bounds = array<i64: 2>, scalar_prefetch = 0 : i64, scratch_operands = 0 : i64, tpu.core_type = #tpu.core_type<tc>, window_params = [{transform_indices = @transform_0, window_bounds = array<i64: 1, 290, 64>}, {pipeline_mode = #tpu.pipeline_mode<synchronous>, transform_indices = @transform_1, window_bounds = array<i64: 2, 290, 1>}, {pipeline_mode = #tpu.pipeline_mode<synchronous>, transform_indices = @transform_2, window_bounds = array<i64: 16, 64, 32>}, {pipeline_mode = #tpu.pipeline_mode<synchronous>, transform_indices = @transform_3, window_bounds = array<i64: 1, 32>}, {transform_indices = @transform_4, window_bounds = array<i64: 1, 4, 256, 32>}]} {
    %c0 = arith.constant 0 : index
    %c0_0 = arith.constant 0 : index
    %0 = vector.load %arg4[%c0, %c0_0] : memref<1x32xf32, #tpu.memory_space<vmem>>, vector<1x32xf32>
    %cst = arith.constant 0.000000e+00 : f32
    %1 = vector.broadcast %cst : f32 to vector<256x32xf32>
    %c0_1 = arith.constant 0 : index
    %c0_2 = arith.constant 0 : index
    %c0_3 = arith.constant 0 : index
    %2 = vector.load %arg1[%c0_1, %c0_2, %c0_3] : memref<1x290x64xbf16, #tpu.memory_space<vmem>>, vector<1x256x64xbf16>
    %3 = vector.shape_cast %2 : vector<1x256x64xbf16> to vector<256x64xbf16>
    %c0_4 = arith.constant 0 : index
    %c0_5 = arith.constant 0 : index
    %c0_6 = arith.constant 0 : index
    %4 = vector.load %arg2[%c0_4, %c0_5, %c0_6] : memref<2x290x1xbf16, #tpu.memory_space<vmem>>, vector<1x256x1xbf16>
    %5 = vector.shape_cast %4 : vector<1x256x1xbf16> to vector<256x1xbf16>
    %6 = vector.broadcast %5 : vector<256x1xbf16> to vector<256x64xbf16>
    %7 = arith.mulf %3, %6 : vector<256x64xbf16>
    %c0_7 = arith.constant 0 : index
    %c0_8 = arith.constant 0 : index
    %c0_9 = arith.constant 0 : index
    %8 = vector.load %arg3[%c0_7, %c0_8, %c0_9] : memref<16x64x32xbf16, #tpu.memory_space<vmem>>, vector<1x64x32xbf16>
    %9 = vector.shape_cast %8 : vector<1x64x32xbf16> to vector<64x32xbf16>
    %cst_10 = arith.constant dense<0.000000e+00> : vector<256x32xf32>
    %10 = tpu.matmul %7, %9, %cst_10 {dimension_numbers = #tpu.dot_dimension_numbers<[1], [0], [0], [1], [0, 0, 1, 1], [], []>} : vector<256x64xbf16>, vector<64x32xbf16>, vector<256x32xf32> -> vector<256x32xf32>
    %11 = arith.addf %1, %10 : vector<256x32xf32>
    %c0_11 = arith.constant 0 : index
    %c1 = arith.constant 1 : index
    %c0_12 = arith.constant 0 : index
    %12 = vector.load %arg1[%c0_11, %c1, %c0_12] : memref<1x290x64xbf16, #tpu.memory_space<vmem>>, vector<1x256x64xbf16>
    %13 = vector.shape_cast %12 : vector<1x256x64xbf16> to vector<256x64xbf16>
    %c1_13 = arith.constant 1 : index
    %c0_14 = arith.constant 0 : index
    %c0_15 = arith.constant 0 : index
    %14 = vector.load %arg3[%c1_13, %c0_14, %c0_15] : memref<16x64x32xbf16, #tpu.memory_space<vmem>>, vector<1x64x32xbf16>
    %15 = vector.shape_cast %14 : vector<1x64x32xbf16> to vector<64x32xbf16>
    %cst_16 = arith.constant dense<0.000000e+00> : vector<256x32xf32>
    %16 = tpu.matmul %13, %15, %cst_16 {dimension_numbers = #tpu.dot_dimension_numbers<[1], [0], [0], [1], [0, 0, 1, 1], [], []>} : vector<256x64xbf16>, vector<64x32xbf16>, vector<256x32xf32> -> vector<256x32xf32>
    %17 = arith.addf %11, %16 : vector<256x32xf32>
    %c0_17 = arith.constant 0 : index
    %c16 = arith.constant 16 : index
    %c0_18 = arith.constant 0 : index
    %18 = vector.load %arg1[%c0_17, %c16, %c0_18] : memref<1x290x64xbf16, #tpu.memory_space<vmem>>, vector<1x256x64xbf16>
    %19 = vector.shape_cast %18 : vector<1x256x64xbf16> to vector<256x64xbf16>
    %c0_19 = arith.constant 0 : index
    %c16_20 = arith.constant 16 : index
    %c0_21 = arith.constant 0 : index
    %20 = vector.load %arg2[%c0_19, %c16_20, %c0_21] : memref<2x290x1xbf16, #tpu.memory_space<vmem>>, vector<1x256x1xbf16>
    %21 = vector.shape_cast %20 : vector<1x256x1xbf16> to vector<256x1xbf16>
    %22 = vector.broadcast %21 : vector<256x1xbf16> to vector<256x64xbf16>
    %23 = arith.mulf %19, %22 : vector<256x64xbf16>
    %c2 = arith.constant 2 : index
    %c0_22 = arith.constant 0 : index
    %c0_23 = arith.constant 0 : index
    %24 = vector.load %arg3[%c2, %c0_22, %c0_23] : memref<16x64x32xbf16, #tpu.memory_space<vmem>>, vector<1x64x32xbf16>
    %25 = vector.shape_cast %24 : vector<1x64x32xbf16> to vector<64x32xbf16>
    %cst_24 = arith.constant dense<0.000000e+00> : vector<256x32xf32>
    %26 = tpu.matmul %23, %25, %cst_24 {dimension_numbers = #tpu.dot_dimension_numbers<[1], [0], [0], [1], [0, 0, 1, 1], [], []>} : vector<256x64xbf16>, vector<64x32xbf16>, vector<256x32xf32> -> vector<256x32xf32>
    %27 = arith.addf %17, %26 : vector<256x32xf32>
    %c0_25 = arith.constant 0 : index
    %c17 = arith.constant 17 : index
    %c0_26 = arith.constant 0 : index
    %28 = vector.load %arg1[%c0_25, %c17, %c0_26] : memref<1x290x64xbf16, #tpu.memory_space<vmem>>, vector<1x256x64xbf16>
    %29 = vector.shape_cast %28 : vector<1x256x64xbf16> to vector<256x64xbf16>
    %c3 = arith.constant 3 : index
    %c0_27 = arith.constant 0 : index
    %c0_28 = arith.constant 0 : index
    %30 = vector.load %arg3[%c3, %c0_27, %c0_28] : memref<16x64x32xbf16, #tpu.memory_space<vmem>>, vector<1x64x32xbf16>
    %31 = vector.shape_cast %30 : vector<1x64x32xbf16> to vector<64x32xbf16>
    %cst_29 = arith.constant dense<0.000000e+00> : vector<256x32xf32>
    %32 = tpu.matmul %29, %31, %cst_29 {dimension_numbers = #tpu.dot_dimension_numbers<[1], [0], [0], [1], [0, 0, 1, 1], [], []>} : vector<256x64xbf16>, vector<64x32xbf16>, vector<256x32xf32> -> vector<256x32xf32>
    %33 = arith.addf %27, %32 : vector<256x32xf32>
    %34 = vector.broadcast %0 : vector<1x32xf32> to vector<256x32xf32>
    %35 = arith.addf %33, %34 : vector<256x32xf32>
    %c0_30 = arith.constant 0 : index
    %c0_31 = arith.constant 0 : index
    %c0_32 = arith.constant 0 : index
    %c0_33 = arith.constant 0 : index
    %36 = vector.load %arg5[%c0_30, %c0_31, %c0_32, %c0_33] : memref<1x4x256x32xf32, #tpu.memory_space<vmem>>, vector<1x1x256x32xf32>
    %37 = vector.shape_cast %36 : vector<1x1x256x32xf32> to vector<256x32xf32>
    %38 = vector.shape_cast %35 : vector<256x32xf32> to vector<1x1x256x32xf32>
    tpu.vector_store %arg5[%c0_30, %c0_31, %c0_32, %c0_33], %38 {strides = array<i32>} : memref<1x4x256x32xf32, #tpu.memory_space<vmem>>, vector<1x1x256x32xf32>,
    %cst_34 = arith.constant 0.000000e+00 : f32
    %39 = vector.broadcast %cst_34 : f32 to vector<256x32xf32>
    %c0_35 = arith.constant 0 : index
    %c1_36 = arith.constant 1 : index
    %c0_37 = arith.constant 0 : index
    %40 = vector.load %arg1[%c0_35, %c1_36, %c0_37] : memref<1x290x64xbf16, #tpu.memory_space<vmem>>, vector<1x256x64xbf16>
    %41 = vector.shape_cast %40 : vector<1x256x64xbf16> to vector<256x64xbf16>
    %c4 = arith.constant 4 : index
    %c0_38 = arith.constant 0 : index
    %c0_39 = arith.constant 0 : index
    %42 = vector.load %arg3[%c4, %c0_38, %c0_39] : memref<16x64x32xbf16, #tpu.memory_space<vmem>>, vector<1x64x32xbf16>
    %43 = vector.shape_cast %42 : vector<1x64x32xbf16> to vector<64x32xbf16>
    %cst_40 = arith.constant dense<0.000000e+00> : vector<256x32xf32>
    %44 = tpu.matmul %41, %43, %cst_40 {dimension_numbers = #tpu.dot_dimension_numbers<[1], [0], [0], [1], [0, 0, 1, 1], [], []>} : vector<256x64xbf16>, vector<64x32xbf16>, vector<256x32xf32> -> vector<256x32xf32>
    %45 = arith.addf %39, %44 : vector<256x32xf32>
    %c0_41 = arith.constant 0 : index
    %c2_42 = arith.constant 2 : index
    %c0_43 = arith.constant 0 : index
    %46 = vector.load %arg1[%c0_41, %c2_42, %c0_43] : memref<1x290x64xbf16, #tpu.memory_space<vmem>>, vector<1x256x64xbf16>
    %47 = vector.shape_cast %46 : vector<1x256x64xbf16> to vector<256x64xbf16>
    %c1_44 = arith.constant 1 : index
    %c2_45 = arith.constant 2 : index
    %c0_46 = arith.constant 0 : index
    %48 = vector.load %arg2[%c1_44, %c2_45, %c0_46] : memref<2x290x1xbf16, #tpu.memory_space<vmem>>, vector<1x256x1xbf16>
    %49 = vector.shape_cast %48 : vector<1x256x1xbf16> to vector<256x1xbf16>
    %50 = vector.broadcast %49 : vector<256x1xbf16> to vector<256x64xbf16>
    %51 = arith.mulf %47, %50 : vector<256x64xbf16>
    %c5 = arith.constant 5 : index
    %c0_47 = arith.constant 0 : index
    %c0_48 = arith.constant 0 : index
    %52 = vector.load %arg3[%c5, %c0_47, %c0_48] : memref<16x64x32xbf16, #tpu.memory_space<vmem>>, vector<1x64x32xbf16>
    %53 = vector.shape_cast %52 : vector<1x64x32xbf16> to vector<64x32xbf16>
    %cst_49 = arith.constant dense<0.000000e+00> : vector<256x32xf32>
    %54 = tpu.matmul %51, %53, %cst_49 {dimension_numbers = #tpu.dot_dimension_numbers<[1], [0], [0], [1], [0, 0, 1, 1], [], []>} : vector<256x64xbf16>, vector<64x32xbf16>, vector<256x32xf32> -> vector<256x32xf32>
    %55 = arith.addf %45, %54 : vector<256x32xf32>
    %c0_50 = arith.constant 0 : index
    %c17_51 = arith.constant 17 : index
    %c0_52 = arith.constant 0 : index
    %56 = vector.load %arg1[%c0_50, %c17_51, %c0_52] : memref<1x290x64xbf16, #tpu.memory_space<vmem>>, vector<1x256x64xbf16>
    %57 = vector.shape_cast %56 : vector<1x256x64xbf16> to vector<256x64xbf16>
    %c6 = arith.constant 6 : index
    %c0_53 = arith.constant 0 : index
    %c0_54 = arith.constant 0 : index
    %58 = vector.load %arg3[%c6, %c0_53, %c0_54] : memref<16x64x32xbf16, #tpu.memory_space<vmem>>, vector<1x64x32xbf16>
    %59 = vector.shape_cast %58 : vector<1x64x32xbf16> to vector<64x32xbf16>
    %cst_55 = arith.constant dense<0.000000e+00> : vector<256x32xf32>
    %60 = tpu.matmul %57, %59, %cst_55 {dimension_numbers = #tpu.dot_dimension_numbers<[1], [0], [0], [1], [0, 0, 1, 1], [], []>} : vector<256x64xbf16>, vector<64x32xbf16>, vector<256x32xf32> -> vector<256x32xf32>
    %61 = arith.addf %55, %60 : vector<256x32xf32>
    %c0_56 = arith.constant 0 : index
    %c18 = arith.constant 18 : index
    %c0_57 = arith.constant 0 : index
    %62 = vector.load %arg1[%c0_56, %c18, %c0_57] : memref<1x290x64xbf16, #tpu.memory_space<vmem>>, vector<1x256x64xbf16>
    %63 = vector.shape_cast %62 : vector<1x256x64xbf16> to vector<256x64xbf16>
    %c1_58 = arith.constant 1 : index
    %c18_59 = arith.constant 18 : index
    %c0_60 = arith.constant 0 : index
    %64 = vector.load %arg2[%c1_58, %c18_59, %c0_60] : memref<2x290x1xbf16, #tpu.memory_space<vmem>>, vector<1x256x1xbf16>
    %65 = vector.shape_cast %64 : vector<1x256x1xbf16> to vector<256x1xbf16>
    %66 = vector.broadcast %65 : vector<256x1xbf16> to vector<256x64xbf16>
    %67 = arith.mulf %63, %66 : vector<256x64xbf16>
    %c7 = arith.constant 7 : index
    %c0_61 = arith.constant 0 : index
    %c0_62 = arith.constant 0 : index
    %68 = vector.load %arg3[%c7, %c0_61, %c0_62] : memref<16x64x32xbf16, #tpu.memory_space<vmem>>, vector<1x64x32xbf16>
    %69 = vector.shape_cast %68 : vector<1x64x32xbf16> to vector<64x32xbf16>
    %cst_63 = arith.constant dense<0.000000e+00> : vector<256x32xf32>
    %70 = tpu.matmul %67, %69, %cst_63 {dimension_numbers = #tpu.dot_dimension_numbers<[1], [0], [0], [1], [0, 0, 1, 1], [], []>} : vector<256x64xbf16>, vector<64x32xbf16>, vector<256x32xf32> -> vector<256x32xf32>
    %71 = arith.addf %61, %70 : vector<256x32xf32>
    %72 = vector.broadcast %0 : vector<1x32xf32> to vector<256x32xf32>
    %73 = arith.addf %71, %72 : vector<256x32xf32>
    %c0_64 = arith.constant 0 : index
    %c1_65 = arith.constant 1 : index
    %c0_66 = arith.constant 0 : index
    %c0_67 = arith.constant 0 : index
    %74 = vector.load %arg5[%c0_64, %c1_65, %c0_66, %c0_67] : memref<1x4x256x32xf32, #tpu.memory_space<vmem>>, vector<1x1x256x32xf32>
    %75 = vector.shape_cast %74 : vector<1x1x256x32xf32> to vector<256x32xf32>
    %76 = vector.shape_cast %73 : vector<256x32xf32> to vector<1x1x256x32xf32>
    tpu.vector_store %arg5[%c0_64, %c1_65, %c0_66, %c0_67], %76 {strides = array<i32>} : memref<1x4x256x32xf32, #tpu.memory_space<vmem>>, vector<1x1x256x32xf32>,
    %cst_68 = arith.constant 0.000000e+00 : f32
    %77 = vector.broadcast %cst_68 : f32 to vector<256x32xf32>
    %c0_69 = arith.constant 0 : index
    %c16_70 = arith.constant 16 : index
    %c0_71 = arith.constant 0 : index
    %78 = vector.load %arg1[%c0_69, %c16_70, %c0_71] : memref<1x290x64xbf16, #tpu.memory_space<vmem>>, vector<1x256x64xbf16>
    %79 = vector.shape_cast %78 : vector<1x256x64xbf16> to vector<256x64xbf16>
    %c0_72 = arith.constant 0 : index
    %c16_73 = arith.constant 16 : index
    %c0_74 = arith.constant 0 : index
    %80 = vector.load %arg2[%c0_72, %c16_73, %c0_74] : memref<2x290x1xbf16, #tpu.memory_space<vmem>>, vector<1x256x1xbf16>
    %81 = vector.shape_cast %80 : vector<1x256x1xbf16> to vector<256x1xbf16>
    %82 = vector.broadcast %81 : vector<256x1xbf16> to vector<256x64xbf16>
    %83 = arith.mulf %79, %82 : vector<256x64xbf16>
    %c8 = arith.constant 8 : index
    %c0_75 = arith.constant 0 : index
    %c0_76 = arith.constant 0 : index
    %84 = vector.load %arg3[%c8, %c0_75, %c0_76] : memref<16x64x32xbf16, #tpu.memory_space<vmem>>, vector<1x64x32xbf16>
    %85 = vector.shape_cast %84 : vector<1x64x32xbf16> to vector<64x32xbf16>
    %cst_77 = arith.constant dense<0.000000e+00> : vector<256x32xf32>
    %86 = tpu.matmul %83, %85, %cst_77 {dimension_numbers = #tpu.dot_dimension_numbers<[1], [0], [0], [1], [0, 0, 1, 1], [], []>} : vector<256x64xbf16>, vector<64x32xbf16>, vector<256x32xf32> -> vector<256x32xf32>
    %87 = arith.addf %77, %86 : vector<256x32xf32>
    %c0_78 = arith.constant 0 : index
    %c17_79 = arith.constant 17 : index
    %c0_80 = arith.constant 0 : index
    %88 = vector.load %arg1[%c0_78, %c17_79, %c0_80] : memref<1x290x64xbf16, #tpu.memory_space<vmem>>, vector<1x256x64xbf16>
    %89 = vector.shape_cast %88 : vector<1x256x64xbf16> to vector<256x64xbf16>
    %c9 = arith.constant 9 : index
    %c0_81 = arith.constant 0 : index
    %c0_82 = arith.constant 0 : index
    %90 = vector.load %arg3[%c9, %c0_81, %c0_82] : memref<16x64x32xbf16, #tpu.memory_space<vmem>>, vector<1x64x32xbf16>
    %91 = vector.shape_cast %90 : vector<1x64x32xbf16> to vector<64x32xbf16>
    %cst_83 = arith.constant dense<0.000000e+00> : vector<256x32xf32>
    %92 = tpu.matmul %89, %91, %cst_83 {dimension_numbers = #tpu.dot_dimension_numbers<[1], [0], [0], [1], [0, 0, 1, 1], [], []>} : vector<256x64xbf16>, vector<64x32xbf16>, vector<256x32xf32> -> vector<256x32xf32>
    %93 = arith.addf %87, %92 : vector<256x32xf32>
    %c0_84 = arith.constant 0 : index
    %c32 = arith.constant 32 : index
    %c0_85 = arith.constant 0 : index
    %94 = vector.load %arg1[%c0_84, %c32, %c0_85] : memref<1x290x64xbf16, #tpu.memory_space<vmem>>, vector<1x256x64xbf16>
    %95 = vector.shape_cast %94 : vector<1x256x64xbf16> to vector<256x64xbf16>
    %c0_86 = arith.constant 0 : index
    %c32_87 = arith.constant 32 : index
    %c0_88 = arith.constant 0 : index
    %96 = vector.load %arg2[%c0_86, %c32_87, %c0_88] : memref<2x290x1xbf16, #tpu.memory_space<vmem>>, vector<1x256x1xbf16>
    %97 = vector.shape_cast %96 : vector<1x256x1xbf16> to vector<256x1xbf16>
    %98 = vector.broadcast %97 : vector<256x1xbf16> to vector<256x64xbf16>
    %99 = arith.mulf %95, %98 : vector<256x64xbf16>
    %c10 = arith.constant 10 : index
    %c0_89 = arith.constant 0 : index
    %c0_90 = arith.constant 0 : index
    %100 = vector.load %arg3[%c10, %c0_89, %c0_90] : memref<16x64x32xbf16, #tpu.memory_space<vmem>>, vector<1x64x32xbf16>
    %101 = vector.shape_cast %100 : vector<1x64x32xbf16> to vector<64x32xbf16>
    %cst_91 = arith.constant dense<0.000000e+00> : vector<256x32xf32>
    %102 = tpu.matmul %99, %101, %cst_91 {dimension_numbers = #tpu.dot_dimension_numbers<[1], [0], [0], [1], [0, 0, 1, 1], [], []>} : vector<256x64xbf16>, vector<64x32xbf16>, vector<256x32xf32> -> vector<256x32xf32>
    %103 = arith.addf %93, %102 : vector<256x32xf32>
    %c0_92 = arith.constant 0 : index
    %c33 = arith.constant 33 : index
    %c0_93 = arith.constant 0 : index
    %104 = vector.load %arg1[%c0_92, %c33, %c0_93] : memref<1x290x64xbf16, #tpu.memory_space<vmem>>, vector<1x256x64xbf16>
    %105 = vector.shape_cast %104 : vector<1x256x64xbf16> to vector<256x64xbf16>
    %c11 = arith.constant 11 : index
    %c0_94 = arith.constant 0 : index
    %c0_95 = arith.constant 0 : index
    %106 = vector.load %arg3[%c11, %c0_94, %c0_95] : memref<16x64x32xbf16, #tpu.memory_space<vmem>>, vector<1x64x32xbf16>
    %107 = vector.shape_cast %106 : vector<1x64x32xbf16> to vector<64x32xbf16>
    %cst_96 = arith.constant dense<0.000000e+00> : vector<256x32xf32>
    %108 = tpu.matmul %105, %107, %cst_96 {dimension_numbers = #tpu.dot_dimension_numbers<[1], [0], [0], [1], [0, 0, 1, 1], [], []>} : vector<256x64xbf16>, vector<64x32xbf16>, vector<256x32xf32> -> vector<256x32xf32>
    %109 = arith.addf %103, %108 : vector<256x32xf32>
    %110 = vector.broadcast %0 : vector<1x32xf32> to vector<256x32xf32>
    %111 = arith.addf %109, %110 : vector<256x32xf32>
    %c0_97 = arith.constant 0 : index
    %c2_98 = arith.constant 2 : index
    %c0_99 = arith.constant 0 : index
    %c0_100 = arith.constant 0 : index
    %112 = vector.load %arg5[%c0_97, %c2_98, %c0_99, %c0_100] : memref<1x4x256x32xf32, #tpu.memory_space<vmem>>, vector<1x1x256x32xf32>
    %113 = vector.shape_cast %112 : vector<1x1x256x32xf32> to vector<256x32xf32>
    %114 = vector.shape_cast %111 : vector<256x32xf32> to vector<1x1x256x32xf32>
    tpu.vector_store %arg5[%c0_97, %c2_98, %c0_99, %c0_100], %114 {strides = array<i32>} : memref<1x4x256x32xf32, #tpu.memory_space<vmem>>, vector<1x1x256x32xf32>,
    %cst_101 = arith.constant 0.000000e+00 : f32
    %115 = vector.broadcast %cst_101 : f32 to vector<256x32xf32>
    %c0_102 = arith.constant 0 : index
    %c17_103 = arith.constant 17 : index
    %c0_104 = arith.constant 0 : index
    %116 = vector.load %arg1[%c0_102, %c17_103, %c0_104] : memref<1x290x64xbf16, #tpu.memory_space<vmem>>, vector<1x256x64xbf16>
    %117 = vector.shape_cast %116 : vector<1x256x64xbf16> to vector<256x64xbf16>
    %c12 = arith.constant 12 : index
    %c0_105 = arith.constant 0 : index
    %c0_106 = arith.constant 0 : index
    %118 = vector.load %arg3[%c12, %c0_105, %c0_106] : memref<16x64x32xbf16, #tpu.memory_space<vmem>>, vector<1x64x32xbf16>
    %119 = vector.shape_cast %118 : vector<1x64x32xbf16> to vector<64x32xbf16>
    %cst_107 = arith.constant dense<0.000000e+00> : vector<256x32xf32>
    %120 = tpu.matmul %117, %119, %cst_107 {dimension_numbers = #tpu.dot_dimension_numbers<[1], [0], [0], [1], [0, 0, 1, 1], [], []>} : vector<256x64xbf16>, vector<64x32xbf16>, vector<256x32xf32> -> vector<256x32xf32>
    %121 = arith.addf %115, %120 : vector<256x32xf32>
    %c0_108 = arith.constant 0 : index
    %c18_109 = arith.constant 18 : index
    %c0_110 = arith.constant 0 : index
    %122 = vector.load %arg1[%c0_108, %c18_109, %c0_110] : memref<1x290x64xbf16, #tpu.memory_space<vmem>>, vector<1x256x64xbf16>
    %123 = vector.shape_cast %122 : vector<1x256x64xbf16> to vector<256x64xbf16>
    %c1_111 = arith.constant 1 : index
    %c18_112 = arith.constant 18 : index
    %c0_113 = arith.constant 0 : index
    %124 = vector.load %arg2[%c1_111, %c18_112, %c0_113] : memref<2x290x1xbf16, #tpu.memory_space<vmem>>, vector<1x256x1xbf16>
    %125 = vector.shape_cast %124 : vector<1x256x1xbf16> to vector<256x1xbf16>
    %126 = vector.broadcast %125 : vector<256x1xbf16> to vector<256x64xbf16>
    %127 = arith.mulf %123, %126 : vector<256x64xbf16>
    %c13 = arith.constant 13 : index
    %c0_114 = arith.constant 0 : index
    %c0_115 = arith.constant 0 : index
    %128 = vector.load %arg3[%c13, %c0_114, %c0_115] : memref<16x64x32xbf16, #tpu.memory_space<vmem>>, vector<1x64x32xbf16>
    %129 = vector.shape_cast %128 : vector<1x64x32xbf16> to vector<64x32xbf16>
    %cst_116 = arith.constant dense<0.000000e+00> : vector<256x32xf32>
    %130 = tpu.matmul %127, %129, %cst_116 {dimension_numbers = #tpu.dot_dimension_numbers<[1], [0], [0], [1], [0, 0, 1, 1], [], []>} : vector<256x64xbf16>, vector<64x32xbf16>, vector<256x32xf32> -> vector<256x32xf32>
    %131 = arith.addf %121, %130 : vector<256x32xf32>
    %c0_117 = arith.constant 0 : index
    %c33_118 = arith.constant 33 : index
    %c0_119 = arith.constant 0 : index
    %132 = vector.load %arg1[%c0_117, %c33_118, %c0_119] : memref<1x290x64xbf16, #tpu.memory_space<vmem>>, vector<1x256x64xbf16>
    %133 = vector.shape_cast %132 : vector<1x256x64xbf16> to vector<256x64xbf16>
    %c14 = arith.constant 14 : index
    %c0_120 = arith.constant 0 : index
    %c0_121 = arith.constant 0 : index
    %134 = vector.load %arg3[%c14, %c0_120, %c0_121] : memref<16x64x32xbf16, #tpu.memory_space<vmem>>, vector<1x64x32xbf16>
    %135 = vector.shape_cast %134 : vector<1x64x32xbf16> to vector<64x32xbf16>
    %cst_122 = arith.constant dense<0.000000e+00> : vector<256x32xf32>
    %136 = tpu.matmul %133, %135, %cst_122 {dimension_numbers = #tpu.dot_dimension_numbers<[1], [0], [0], [1], [0, 0, 1, 1], [], []>} : vector<256x64xbf16>, vector<64x32xbf16>, vector<256x32xf32> -> vector<256x32xf32>
    %137 = arith.addf %131, %136 : vector<256x32xf32>
    %c0_123 = arith.constant 0 : index
    %c34 = arith.constant 34 : index
    %c0_124 = arith.constant 0 : index
    %138 = vector.load %arg1[%c0_123, %c34, %c0_124] : memref<1x290x64xbf16, #tpu.memory_space<vmem>>, vector<1x256x64xbf16>
    %139 = vector.shape_cast %138 : vector<1x256x64xbf16> to vector<256x64xbf16>
    %c1_125 = arith.constant 1 : index
    %c34_126 = arith.constant 34 : index
    %c0_127 = arith.constant 0 : index
    %140 = vector.load %arg2[%c1_125, %c34_126, %c0_127] : memref<2x290x1xbf16, #tpu.memory_space<vmem>>, vector<1x256x1xbf16>
    %141 = vector.shape_cast %140 : vector<1x256x1xbf16> to vector<256x1xbf16>
    %142 = vector.broadcast %141 : vector<256x1xbf16> to vector<256x64xbf16>
    %143 = arith.mulf %139, %142 : vector<256x64xbf16>
    %c15 = arith.constant 15 : index
    %c0_128 = arith.constant 0 : index
    %c0_129 = arith.constant 0 : index
    %144 = vector.load %arg3[%c15, %c0_128, %c0_129] : memref<16x64x32xbf16, #tpu.memory_space<vmem>>, vector<1x64x32xbf16>
    %145 = vector.shape_cast %144 : vector<1x64x32xbf16> to vector<64x32xbf16>
    %cst_130 = arith.constant dense<0.000000e+00> : vector<256x32xf32>
    %146 = tpu.matmul %143, %145, %cst_130 {dimension_numbers = #tpu.dot_dimension_numbers<[1], [0], [0], [1], [0, 0, 1, 1], [], []>} : vector<256x64xbf16>, vector<64x32xbf16>, vector<256x32xf32> -> vector<256x32xf32>
    %147 = arith.addf %137, %146 : vector<256x32xf32>
    %148 = vector.broadcast %0 : vector<1x32xf32> to vector<256x32xf32>
    %149 = arith.addf %147, %148 : vector<256x32xf32>
    %c0_131 = arith.constant 0 : index
    %c3_132 = arith.constant 3 : index
    %c0_133 = arith.constant 0 : index
    %c0_134 = arith.constant 0 : index
    %150 = vector.load %arg5[%c0_131, %c3_132, %c0_133, %c0_134] : memref<1x4x256x32xf32, #tpu.memory_space<vmem>>, vector<1x1x256x32xf32>
    %151 = vector.shape_cast %150 : vector<1x1x256x32xf32> to vector<256x32xf32>
    %152 = vector.shape_cast %149 : vector<256x32xf32> to vector<1x1x256x32xf32>
    tpu.vector_store %arg5[%c0_131, %c3_132, %c0_133, %c0_134], %152 {strides = array<i32>} : memref<1x4x256x32xf32, #tpu.memory_space<vmem>>, vector<1x1x256x32xf32>,
    return
  }
  func.func @transform_0(%arg0: i32) -> (i32, i32, i32) {
    %c0_i32 = arith.constant 0 : i32
    %c0_i32_0 = arith.constant 0 : i32
    %c0_i32_1 = arith.constant 0 : i32
    return %arg0, %c0_i32, %c0_i32_0 : i32, i32, i32
  }
  func.func @transform_1(%arg0: i32) -> (i32, i32, i32) {
    %c0_i32 = arith.constant 0 : i32
    %c0_i32_0 = arith.constant 0 : i32
    %c0_i32_1 = arith.constant 0 : i32
    %c0_i32_2 = arith.constant 0 : i32
    return %c0_i32, %c0_i32_0, %c0_i32_1 : i32, i32, i32
  }
  func.func @transform_2(%arg0: i32) -> (i32, i32, i32) {
    %c0_i32 = arith.constant 0 : i32
    %c0_i32_0 = arith.constant 0 : i32
    %c0_i32_1 = arith.constant 0 : i32
    %c0_i32_2 = arith.constant 0 : i32
    return %c0_i32, %c0_i32_0, %c0_i32_1 : i32, i32, i32
  }
  func.func @transform_3(%arg0: i32) -> (i32, i32) {
    %c0_i32 = arith.constant 0 : i32
    %c0_i32_0 = arith.constant 0 : i32
    %c0_i32_1 = arith.constant 0 : i32
    return %c0_i32, %c0_i32_0 : i32, i32
  }
  func.func @transform_4(%arg0: i32) -> (i32, i32, i32, i32) {
    %c0_i32 = arith.constant 0 : i32
    %c0_i32_0 = arith.constant 0 : i32
    %c0_i32_1 = arith.constant 0 : i32
    %c0_i32_2 = arith.constant 0 : i32
    return %arg0, %c0_i32, %c0_i32_0, %c0_i32_1 : i32, i32, i32, i32
  }
}

</mosaic_0001>

<llo_original>
// kernel: resize_conv2d.1
$region0: #{resize_conv2d.1}
  #allocation0 [shape = 'u32[]', space=smem, size = 0x4, offset = 0x4, fixed_abs, tag = 'smem constant byte address 0x4 - core index']
  #allocation1 [shape = 'u32[144,128]{1,0:T(1,128)}', space=vmem, size = 0x12000, scoped, tag = 'internal scratch']
  %s0 = inlined_call_operand.vmem [shape: bf16[2,290,64], index: 0, kind: input, shape index: {}]
  %s1 = inlined_call_operand.vmem [shape: bf16[2,290,1], index: 1, kind: input, shape index: {}]
  %s2 = inlined_call_operand.vmem [shape: bf16[16,64,32], index: 2, kind: input, shape index: {}]
  %s3 = inlined_call_operand.vmem [shape: f32[1,32], index: 3, kind: input, shape index: {}]
  %s4 = inlined_call_operand.vmem [shape: f32[2,4,256,32], index: 4, kind: output, shape index: {}]
  %s5 = sld [smem:[#allocation0]]
  $region49: #{resize_conv2d.1} parent=0
    _
  %s7 = ssub.s32 1, %s5
  %s8 = scalar_select 0, %s7, %s5
  loop: start=0, step=1, limit=4
  $region2: #{resize_conv2d.1} parent=0 // loop_pre_header
    _
  $region3: #{resize_conv2d.1} parent=0 // loop_header
    %s10 = sphi 0, %s14
    %p11 = scmp.ge.s32.totalorder %s10, 4
    %s20 = sphi 0, %s22
    %s23 = sphi 0, %s20
    %s24 = sphi 0, %s23
    %s40 = sphi 0, %s24
    %s44 = sphi 0, %s44
    %s46 = sphi 0, %s44
    %s47 = sphi 0, %s46
    %s61 = sphi 0, %s47
    %s65 = sphi 0, %s65
    %s67 = sphi 0, %s65
    %s68 = sphi 0, %s67
    %s82 = sphi 0, %s68
    %s86 = sphi 0, %s86
    %s88 = sphi 0, %s86
    %s89 = sphi 0, %s88
    %s103 = sphi 0, %s89
    %s109 = sphi 0, %s111
    %s112 = sphi 0, %s109
    %s113 = sphi 0, %s112
    %s129 = sphi 0, %s113
  $region4: #{resize_conv2d.1} parent=0 // loop_header_branch
    %13 = sbr.rel (%p11) target = $region8
  $region5: #{resize_conv2d.1} parent=0 // loop_body
    %s15 = ssub.s32 %s10, 1
    %s16 = ssub.s32 %s10, 2
    %s17 = sadd.s32 %s10, 1
    %s18 = ssub.s32 %s10, %s17
    %p19 = scmp.eq.s32.totalorder %s18, 0
    %s21 = sadd.s32 %s20, 1
    %s22 = scalar_select %p19, %s20, %s21
    %p25 = pneg %p19
    %p26 = scmp.eq.s32.totalorder %s10, 1
    %p27 = por %p25, %p26
    %p28 = scmp.ne.s32.totalorder %s20, %s23
    %p29 = scmp.eq.s32.totalorder %s10, 0
    %p30 = por %p28, %p29
    %p31 = scmp.ne.s32.totalorder %s20, %s23
    %p32 = scmp.eq.s32.totalorder %s15, 1
    %p33 = por %p31, %p32
    %p34 = scmp.ne.s32.totalorder %s23, %s24
    %p35 = scmp.eq.s32.totalorder %s15, 0
    %p36 = por %p34, %p35
    %p37 = scmp.ne.s32.totalorder %s23, %s24
    %p38 = scmp.eq.s32.totalorder %s16, 1
    %p39 = por %p37, %p38
    %p41 = scmp.ne.s32.totalorder %s24, %s40
    %p42 = scmp.eq.s32.totalorder %s16, 0
    %p43 = por %p41, %p42
    %s45 = sadd.s32 %s44, 1
    %p48 = scmp.eq.s32.totalorder %s10, 1
    %p49 = scmp.ne.s32.totalorder %s44, %s46
    %p50 = scmp.eq.s32.totalorder %s10, 0
    %p51 = por %p49, %p50
    %p52 = scmp.ne.s32.totalorder %s44, %s46
    %p53 = scmp.eq.s32.totalorder %s15, 1
    %p54 = por %p52, %p53
    %p55 = scmp.ne.s32.totalorder %s46, %s47
    %p56 = scmp.eq.s32.totalorder %s15, 0
    %p57 = por %p55, %p56
    %p58 = scmp.ne.s32.totalorder %s46, %s47
    %p59 = scmp.eq.s32.totalorder %s16, 1
    %p60 = por %p58, %p59
    %p62 = scmp.ne.s32.totalorder %s47, %s61
    %p63 = scmp.eq.s32.totalorder %s16, 0
    %p64 = por %p62, %p63
    %s66 = sadd.s32 %s65, 1
    %p69 = scmp.eq.s32.totalorder %s10, 1
    %p70 = scmp.ne.s32.totalorder %s65, %s67
    %p71 = scmp.eq.s32.totalorder %s10, 0
    %p72 = por %p70, %p71
    %p73 = scmp.ne.s32.totalorder %s65, %s67
    %p74 = scmp.eq.s32.totalorder %s15, 1
    %p75 = por %p73, %p74
    %p76 = scmp.ne.s32.totalorder %s67, %s68
    %p77 = scmp.eq.s32.totalorder %s15, 0
    %p78 = por %p76, %p77
    %p79 = scmp.ne.s32.totalorder %s67, %s68
    %p80 = scmp.eq.s32.totalorder %s16, 1
    %p81 = por %p79, %p80
    %p83 = scmp.ne.s32.totalorder %s68, %s82
    %p84 = scmp.eq.s32.totalorder %s16, 0
    %p85 = por %p83, %p84
    %s87 = sadd.s32 %s86, 1
    %p90 = scmp.eq.s32.totalorder %s10, 1
    %p91 = scmp.ne.s32.totalorder %s86, %s88
    %p92 = scmp.eq.s32.totalorder %s10, 0
    %p93 = por %p91, %p92
    %p94 = scmp.ne.s32.totalorder %s86, %s88
    %p95 = scmp.eq.s32.totalorder %s15, 1
    %p96 = por %p94, %p95
    %p97 = scmp.ne.s32.totalorder %s88, %s89
    %p98 = scmp.eq.s32.totalorder %s15, 0
    %p99 = por %p97, %p98
    %p100 = scmp.ne.s32.totalorder %s88, %s89
    %p101 = scmp.eq.s32.totalorder %s16, 1
    %p102 = por %p100, %p101
    %p104 = scmp.ne.s32.totalorder %s89, %s103
    %p105 = scmp.eq.s32.totalorder %s16, 0
    %p106 = por %p104, %p105
    %s107 = ssub.s32 %s10, %s17
    %p108 = scmp.eq.s32.totalorder %s107, 0
    %s110 = sadd.s32 %s109, 1
    %s111 = scalar_select %p108, %s109, %s110
    %p114 = pneg %p108
    %p115 = scmp.eq.s32.totalorder %s10, 1
    %p116 = por %p114, %p115
    %p117 = scmp.ne.s32.totalorder %s109, %s112
    %p118 = scmp.eq.s32.totalorder %s10, 0
    %p119 = por %p117, %p118
    %p120 = scmp.ne.s32.totalorder %s109, %s112
    %p121 = scmp.eq.s32.totalorder %s15, 1
    %p122 = por %p120, %p121
    %p123 = scmp.ne.s32.totalorder %s112, %s113
    %p124 = scmp.eq.s32.totalorder %s15, 0
    %p125 = por %p123, %p124
    %p126 = scmp.ne.s32.totalorder %s112, %s113
    %p127 = scmp.eq.s32.totalorder %s16, 1
    %p128 = por %p126, %p127
    %p130 = scmp.ne.s32.totalorder %s113, %s129
    %p131 = scmp.eq.s32.totalorder %s16, 0
    %p132 = por %p130, %p131
    %p133 = scmp.le.s32.totalorder 1, %s10
    %p134 = scmp.lt.s32.totalorder %s10, 3
    %p135 = pnand %p133, %p134
    %p136 = pneg %p135
    // Predicated region
    $region9: #{resize_conv2d.1} parent=5 // pred_check
      _
    $region10: #{resize_conv2d.1} parent=5 // pred_check_branch
      %138 = sbr.rel (%p135) target = $region12
    $region11: #{resize_conv2d.1} parent=5 // pred_region
      %s139 = ssub.s32 %s10, 1
      // Predicated region
      $region13: #{resize_conv2d.1} parent=11 // pred_check
        %p140 = pneg %p57
      $region14: #{resize_conv2d.1} parent=11 // pred_check_branch
        %142 = sbr.rel (%p140) target = $region16
      $region15: #{resize_conv2d.1} parent=11 // pred_region
        _
      $region16: #{resize_conv2d.1} parent=11 // pred_fallthru
        _
      // Predicated region
      $region17: #{resize_conv2d.1} parent=11 // pred_check
        %p143 = pneg %p78
      $region18: #{resize_conv2d.1} parent=11 // pred_check_branch
        %145 = sbr.rel (%p143) target = $region20
      $region19: #{resize_conv2d.1} parent=11 // pred_region
        _
      $region20: #{resize_conv2d.1} parent=11 // pred_fallthru
        _
      // Predicated region
      $region21: #{resize_conv2d.1} parent=11 // pred_check
        %p146 = pneg %p99
      $region22: #{resize_conv2d.1} parent=11 // pred_check_branch
        %148 = sbr.rel (%p146) target = $region24
      $region23: #{resize_conv2d.1} parent=11 // pred_region
        _
      $region24: #{resize_conv2d.1} parent=11 // pred_fallthru
        _
    $region12: #{resize_conv2d.1} parent=5 // pred_fallthru
      _
    %p149 = scmp.lt.s32.totalorder %s10, 2
    // Predicated region
    $region25: #{resize_conv2d.1} parent=5 // pred_check
      %p150 = pneg %p149
    $region26: #{resize_conv2d.1} parent=5 // pred_check_branch
      %152 = sbr.rel (%p150) target = $region28
    $region27: #{resize_conv2d.1} parent=5 // pred_region
      // Predicated region
      $region29: #{resize_conv2d.1} parent=27 // pred_check
        %p153 = pneg %p30
      $region30: #{resize_conv2d.1} parent=27 // pred_check_branch
        %155 = sbr.rel (%p153) target = $region32
      $region31: #{resize_conv2d.1} parent=27 // pred_region
        %p156 = scmp.lt.s32.totalorder %s10, 1
        %s157 = scalar_select %p156, %s10, 1
        %s158 = smul.addr %s157, 37
        %s159 = smul.addr %s158, 4
        %s160 = scalar_lea.vmem %s0, %s159
      $region32: #{resize_conv2d.1} parent=27 // pred_fallthru
        _
    $region28: #{resize_conv2d.1} parent=5 // pred_fallthru
      _
    %p161 = scmp.le.s32.totalorder 1, %s10
    %p162 = scmp.lt.s32.totalorder %s10, 3
    %p163 = pnand %p161, %p162
    %p164 = pneg %p163
    // Predicated region
    $region33: #{resize_conv2d.1} parent=5 // pred_check
      _
    $region34: #{resize_conv2d.1} parent=5 // pred_check_branch
      %166 = sbr.rel (%p163) target = $region36
    $region35: #{resize_conv2d.1} parent=5 // pred_region
      %s167 = ssub.s32 %s10, 1
      %p168 = scmp.lt.s32.totalorder %s15, 1
      %s169 = scalar_select %p168, %s15, 1
      %s170 = smul.addr %s169, 37
      %s171 = smul.addr %s170, 4
      %s172 = scalar_lea.vmem %s0, %s171
      %p173 = pneg %p36
      %p174 = pneg %p33
      %p175 = pneg %p57
      %p176 = pneg %p54
      %p177 = pneg %p78
      %p178 = pneg %p75
      %p179 = pneg %p99
      %p180 = pneg %p96
      %p181 = pneg %p125
      %p182 = pneg %p122
      %p183 = scmp.lt.s32.totalorder %s15, 1
      %s184 = scalar_select %p183, %s15, 1
      %s185 = smul.addr %s184, 128
      %s186 = smul.addr %s185, 8
      %s187 = scalar_lea.vmem %s4, %s186
      %p188 = scmp.lt.s32.totalorder %s15, 1
      %s189 = scalar_select %p188, %s15, 1
      %s190 = smul.addr %s189, 37
      %s191 = smul.addr %s190, 4
      %s192 = scalar_lea.vmem %s0, %s191
      %p193 = scmp.lt.s32.totalorder %s15, 1
      %s194 = scalar_select %p193, %s15, 1
      %s195 = smul.addr %s194, 128
      %s196 = smul.addr %s195, 8
      %s197 = scalar_lea.vmem %s4, %s196
      %v199 = vld [vmem:[%s3] sm:$0x1]
      %v200 = vld [vmem:[%s192] sm:$0xf]
      %v201 = vld [vmem:[%s192 + $0x4] sm:$0xf]
      %v202 = vld [vmem:[%s192 + $0x8] sm:$0xf]
      %v203 = vld [vmem:[%s192 + $0xc] sm:$0xf]
      %v204 = vld [vmem:[%s192 + $0x10] sm:$0xf]
      %v205 = vld [vmem:[%s192 + $0x14] sm:$0xf]
      %v206 = vld [vmem:[%s192 + $0x18] sm:$0xf]
      %v207 = vld [vmem:[%s192 + $0x1c] sm:$0xf]
      %v208 = vld [vmem:[%s192 + $0x20] sm:$0xf]
      %v209 = vld [vmem:[%s192 + $0x24] sm:$0xf]
      %v210 = vld [vmem:[%s192 + $0x28] sm:$0xf]
      %v211 = vld [vmem:[%s192 + $0x2c] sm:$0xf]
      %v212 = vld [vmem:[%s192 + $0x30] sm:$0xf]
      %v213 = vld [vmem:[%s192 + $0x34] sm:$0xf]
      %v214 = vld [vmem:[%s192 + $0x38] sm:$0xf]
      %v215 = vld [vmem:[%s192 + $0x3c] sm:$0xf]
      %v216 = vld [vmem:[%s192 + $0x40] sm:$0xf]
      %v217 = vld [vmem:[%s192 + $0x44] sm:$0xf]
      %v218 = vld [vmem:[%s192 + $0x48] sm:$0xf]
      %v219 = vld [vmem:[%s192 + $0x4c] sm:$0xf]
      %v220 = vld [vmem:[%s192 + $0x50] sm:$0xf]
      %v221 = vld [vmem:[%s192 + $0x54] sm:$0xf]
      %v222 = vld [vmem:[%s192 + $0x58] sm:$0xf]
      %v223 = vld [vmem:[%s192 + $0x5c] sm:$0xf]
      %v224 = vld [vmem:[%s192 + $0x60] sm:$0xf]
      %v225 = vld [vmem:[%s192 + $0x64] sm:$0xf]
      %v226 = vld [vmem:[%s192 + $0x68] sm:$0xf]
      %v227 = vld [vmem:[%s192 + $0x6c] sm:$0xf]
      %v228 = vld [vmem:[%s192 + $0x70] sm:$0xf]
      %v229 = vld [vmem:[%s192 + $0x74] sm:$0xf]
      %v230 = vld [vmem:[%s192 + $0x78] sm:$0xf]
      %v231 = vld [vmem:[%s192 + $0x7c] sm:$0xf]
      %v232 = vld [vmem:[%s1] sm:$0xf]
      %v233 = vld [vmem:[%s1 + $0x4] sm:$0xf]
      %v234 = vld [vmem:[%s1 + $0x8] sm:$0xf]
      %v235 = vld [vmem:[%s1 + $0xc] sm:$0xf]
      %v236 = vld [vmem:[%s1 + $0x10] sm:$0xf]
      %v237 = vld [vmem:[%s1 + $0x14] sm:$0xf]
      %v238 = vld [vmem:[%s1 + $0x18] sm:$0xf]
      %v239 = vld [vmem:[%s1 + $0x1c] sm:$0xf]
      %v240 = vld [vmem:[%s1 + $0x20] sm:$0xf]
      %v241 = vld [vmem:[%s1 + $0x24] sm:$0xf]
      %v242 = vld [vmem:[%s1 + $0x28] sm:$0xf]
      %v243 = vld [vmem:[%s1 + $0x2c] sm:$0xf]
      %v244 = vld [vmem:[%s1 + $0x30] sm:$0xf]
      %v245 = vld [vmem:[%s1 + $0x34] sm:$0xf]
      %v246 = vld [vmem:[%s1 + $0x38] sm:$0xf]
      %v247 = vld [vmem:[%s1 + $0x3c] sm:$0xf]
      %v248 = vld [vmem:[%s1 + $0x40] sm:$0xf]
      %v249 = vld [vmem:[%s1 + $0x44] sm:$0xf]
      %v250 = vld [vmem:[%s1 + $0x48] sm:$0xf]
      %v251 = vld [vmem:[%s1 + $0x4c] sm:$0xf]
      %v252 = vld [vmem:[%s1 + $0x50] sm:$0xf]
      %v253 = vld [vmem:[%s1 + $0x54] sm:$0xf]
      %v254 = vld [vmem:[%s1 + $0x58] sm:$0xf]
      %v255 = vld [vmem:[%s1 + $0x5c] sm:$0xf]
      %v256 = vld [vmem:[%s1 + $0x60] sm:$0xf]
      %v257 = vld [vmem:[%s1 + $0x64] sm:$0xf]
      %v258 = vld [vmem:[%s1 + $0x68] sm:$0xf]
      %v259 = vld [vmem:[%s1 + $0x6c] sm:$0xf]
      %v260 = vld [vmem:[%s1 + $0x70] sm:$0xf]
      %v261 = vld [vmem:[%s1 + $0x74] sm:$0xf]
      %v262 = vld [vmem:[%s1 + $0x78] sm:$0xf]
      %v263 = vld [vmem:[%s1 + $0x7c] sm:$0xf]
      %265 = vset.pattern.permute.xlu0 0
      %266 = vperm.xlu0 %265, %v232
      %v267 = vpop.permute.xlu0 %266
      %v270 = vunpack.c.l.s4 839922192
      %v271 = vunpack.c.0.s8 %v270
      %v272 = vlaneseq
      %v273 = vshrl.u32 %v272, 7
      %v274 = vsub.s32 %v271, %v273
      %v275 = vrot.slane %v267, %v274
      %277 = vset.pattern.permute.xlu0 0
      %278 = vperm.xlu0 %277, %v233
      %v279 = vpop.permute.xlu0 %278
      %v282 = vunpack.c.l.s4 839922192
      %v283 = vunpack.c.0.s8 %v282
      %v284 = vlaneseq
      %v285 = vshrl.u32 %v284, 7
      %v286 = vsub.s32 %v283, %v285
      %v287 = vrot.slane %v279, %v286
      %289 = vset.pattern.permute.xlu0 0
      %290 = vperm.xlu0 %289, %v234
      %v291 = vpop.permute.xlu0 %290
      %v294 = vunpack.c.l.s4 839922192
      %v295 = vunpack.c.0.s8 %v294
      %v296 = vlaneseq
      %v297 = vshrl.u32 %v296, 7
      %v298 = vsub.s32 %v295, %v297
      %v299 = vrot.slane %v291, %v298
      %301 = vset.pattern.permute.xlu0 0
      %302 = vperm.xlu0 %301, %v235
      %v303 = vpop.permute.xlu0 %302
      %v306 = vunpack.c.l.s4 839922192
      %v307 = vunpack.c.0.s8 %v306
      %v308 = vlaneseq
      %v309 = vshrl.u32 %v308, 7
      %v310 = vsub.s32 %v307, %v309
      %v311 = vrot.slane %v303, %v310
      %313 = vset.pattern.permute.xlu0 0
      %314 = vperm.xlu0 %313, %v236
      %v315 = vpop.permute.xlu0 %314
      %v318 = vunpack.c.l.s4 839922192
      %v319 = vunpack.c.0.s8 %v318
      %v320 = vlaneseq
      %v321 = vshrl.u32 %v320, 7
      %v322 = vsub.s32 %v319, %v321
      %v323 = vrot.slane %v315, %v322
      %325 = vset.pattern.permute.xlu0 0
      %326 = vperm.xlu0 %325, %v237
      %v327 = vpop.permute.xlu0 %326
      %v330 = vunpack.c.l.s4 839922192
      %v331 = vunpack.c.0.s8 %v330
      %v332 = vlaneseq
      %v333 = vshrl.u32 %v332, 7
      %v334 = vsub.s32 %v331, %v333
      %v335 = vrot.slane %v327, %v334
      %337 = vset.pattern.permute.xlu0 0
      %338 = vperm.xlu0 %337, %v238
      %v339 = vpop.permute.xlu0 %338
      %v342 = vunpack.c.l.s4 839922192
      %v343 = vunpack.c.0.s8 %v342
      %v344 = vlaneseq
      %v345 = vshrl.u32 %v344, 7
      %v346 = vsub.s32 %v343, %v345
      %v347 = vrot.slane %v339, %v346
      %349 = vset.pattern.permute.xlu0 0
      %350 = vperm.xlu0 %349, %v239
      %v351 = vpop.permute.xlu0 %350
      %v354 = vunpack.c.l.s4 839922192
      %v355 = vunpack.c.0.s8 %v354
      %v356 = vlaneseq
      %v357 = vshrl.u32 %v356, 7
      %v358 = vsub.s32 %v355, %v357
      %v359 = vrot.slane %v351, %v358
      %361 = vset.pattern.permute.xlu0 0
      %362 = vperm.xlu0 %361, %v240
      %v363 = vpop.permute.xlu0 %362
      %v366 = vunpack.c.l.s4 839922192
      %v367 = vunpack.c.0.s8 %v366
      %v368 = vlaneseq
      %v369 = vshrl.u32 %v368, 7
      %v370 = vsub.s32 %v367, %v369
      %v371 = vrot.slane %v363, %v370
      %373 = vset.pattern.permute.xlu0 0
      %374 = vperm.xlu0 %373, %v241
      %v375 = vpop.permute.xlu0 %374
      %v378 = vunpack.c.l.s4 839922192
      %v379 = vunpack.c.0.s8 %v378
      %v380 = vlaneseq
      %v381 = vshrl.u32 %v380, 7
      %v382 = vsub.s32 %v379, %v381
      %v383 = vrot.slane %v375, %v382
      %385 = vset.pattern.permute.xlu0 0
      %386 = vperm.xlu0 %385, %v242
      %v387 = vpop.permute.xlu0 %386
      %v390 = vunpack.c.l.s4 839922192
      %v391 = vunpack.c.0.s8 %v390
      %v392 = vlaneseq
      %v393 = vshrl.u32 %v392, 7
      %v394 = vsub.s32 %v391, %v393
      %v395 = vrot.slane %v387, %v394
      %397 = vset.pattern.permute.xlu0 0
      %398 = vperm.xlu0 %397, %v243
      %v399 = vpop.permute.xlu0 %398
      %v402 = vunpack.c.l.s4 839922192
      %v403 = vunpack.c.0.s8 %v402
      %v404 = vlaneseq
      %v405 = vshrl.u32 %v404, 7
      %v406 = vsub.s32 %v403, %v405
      %v407 = vrot.slane %v399, %v406
      %409 = vset.pattern.permute.xlu0 0
      %410 = vperm.xlu0 %409, %v244
      %v411 = vpop.permute.xlu0 %410
      %v414 = vunpack.c.l.s4 839922192
      %v415 = vunpack.c.0.s8 %v414
      %v416 = vlaneseq
      %v417 = vshrl.u32 %v416, 7
      %v418 = vsub.s32 %v415, %v417
      %v419 = vrot.slane %v411, %v418
      %421 = vset.pattern.permute.xlu0 0
      %422 = vperm.xlu0 %421, %v245
      %v423 = vpop.permute.xlu0 %422
      %v426 = vunpack.c.l.s4 839922192
      %v427 = vunpack.c.0.s8 %v426
      %v428 = vlaneseq
      %v429 = vshrl.u32 %v428, 7
      %v430 = vsub.s32 %v427, %v429
      %v431 = vrot.slane %v423, %v430
      %433 = vset.pattern.permute.xlu0 0
      %434 = vperm.xlu0 %433, %v246
      %v435 = vpop.permute.xlu0 %434
      %v438 = vunpack.c.l.s4 839922192
      %v439 = vunpack.c.0.s8 %v438
      %v440 = vlaneseq
      %v441 = vshrl.u32 %v440, 7
      %v442 = vsub.s32 %v439, %v441
      %v443 = vrot.slane %v435, %v442
      %445 = vset.pattern.permute.xlu0 0
      %446 = vperm.xlu0 %445, %v247
      %v447 = vpop.permute.xlu0 %446
      %v450 = vunpack.c.l.s4 839922192
      %v451 = vunpack.c.0.s8 %v450
      %v452 = vlaneseq
      %v453 = vshrl.u32 %v452, 7
      %v454 = vsub.s32 %v451, %v453
      %v455 = vrot.slane %v447, %v454
      %457 = vset.pattern.permute.xlu0 0
      %458 = vperm.xlu0 %457, %v248
      %v459 = vpop.permute.xlu0 %458
      %v462 = vunpack.c.l.s4 839922192
      %v463 = vunpack.c.0.s8 %v462
      %v464 = vlaneseq
      %v465 = vshrl.u32 %v464, 7
      %v466 = vsub.s32 %v463, %v465
      %v467 = vrot.slane %v459, %v466
      %469 = vset.pattern.permute.xlu0 0
      %470 = vperm.xlu0 %469, %v249
      %v471 = vpop.permute.xlu0 %470
      %v474 = vunpack.c.l.s4 839922192
      %v475 = vunpack.c.0.s8 %v474
      %v476 = vlaneseq
      %v477 = vshrl.u32 %v476, 7
      %v478 = vsub.s32 %v475, %v477
      %v479 = vrot.slane %v471, %v478
      %481 = vset.pattern.permute.xlu0 0
      %482 = vperm.xlu0 %481, %v250
      %v483 = vpop.permute.xlu0 %482
      %v486 = vunpack.c.l.s4 839922192
      %v487 = vunpack.c.0.s8 %v486
      %v488 = vlaneseq
      %v489 = vshrl.u32 %v488, 7
      %v490 = vsub.s32 %v487, %v489
      %v491 = vrot.slane %v483, %v490
      %493 = vset.pattern.permute.xlu0 0
      %494 = vperm.xlu0 %493, %v251
      %v495 = vpop.permute.xlu0 %494
      %v498 = vunpack.c.l.s4 839922192
      %v499 = vunpack.c.0.s8 %v498
      %v500 = vlaneseq
      %v501 = vshrl.u32 %v500, 7
      %v502 = vsub.s32 %v499, %v501
      %v503 = vrot.slane %v495, %v502
      %505 = vset.pattern.permute.xlu0 0
      %506 = vperm.xlu0 %505, %v252
      %v507 = vpop.permute.xlu0 %506
      %v510 = vunpack.c.l.s4 839922192
      %v511 = vunpack.c.0.s8 %v510
      %v512 = vlaneseq
      %v513 = vshrl.u32 %v512, 7
      %v514 = vsub.s32 %v511, %v513
      %v515 = vrot.slane %v507, %v514
      %517 = vset.pattern.permute.xlu0 0
      %518 = vperm.xlu0 %517, %v253
      %v519 = vpop.permute.xlu0 %518
      %v522 = vunpack.c.l.s4 839922192
      %v523 = vunpack.c.0.s8 %v522
      %v524 = vlaneseq
      %v525 = vshrl.u32 %v524, 7
      %v526 = vsub.s32 %v523, %v525
      %v527 = vrot.slane %v519, %v526
      %529 = vset.pattern.permute.xlu0 0
      %530 = vperm.xlu0 %529, %v254
      %v531 = vpop.permute.xlu0 %530
      %v534 = vunpack.c.l.s4 839922192
      %v535 = vunpack.c.0.s8 %v534
      %v536 = vlaneseq
      %v537 = vshrl.u32 %v536, 7
      %v538 = vsub.s32 %v535, %v537
      %v539 = vrot.slane %v531, %v538
      %541 = vset.pattern.permute.xlu0 0
      %542 = vperm.xlu0 %541, %v255
      %v543 = vpop.permute.xlu0 %542
      %v546 = vunpack.c.l.s4 839922192
      %v547 = vunpack.c.0.s8 %v546
      %v548 = vlaneseq
      %v549 = vshrl.u32 %v548, 7
      %v550 = vsub.s32 %v547, %v549
      %v551 = vrot.slane %v543, %v550
      %553 = vset.pattern.permute.xlu0 0
      %554 = vperm.xlu0 %553, %v256
      %v555 = vpop.permute.xlu0 %554
      %v558 = vunpack.c.l.s4 839922192
      %v559 = vunpack.c.0.s8 %v558
      %v560 = vlaneseq
      %v561 = vshrl.u32 %v560, 7
      %v562 = vsub.s32 %v559, %v561
      %v563 = vrot.slane %v555, %v562
      %565 = vset.pattern.permute.xlu0 0
      %566 = vperm.xlu0 %565, %v257
      %v567 = vpop.permute.xlu0 %566
      %v570 = vunpack.c.l.s4 839922192
      %v571 = vunpack.c.0.s8 %v570
      %v572 = vlaneseq
      %v573 = vshrl.u32 %v572, 7
      %v574 = vsub.s32 %v571, %v573
      %v575 = vrot.slane %v567, %v574
      %577 = vset.pattern.permute.xlu0 0
      %578 = vperm.xlu0 %577, %v258
      %v579 = vpop.permute.xlu0 %578
      %v582 = vunpack.c.l.s4 839922192
      %v583 = vunpack.c.0.s8 %v582
      %v584 = vlaneseq
      %v585 = vshrl.u32 %v584, 7
      %v586 = vsub.s32 %v583, %v585
      %v587 = vrot.slane %v579, %v586
      %589 = vset.pattern.permute.xlu0 0
      %590 = vperm.xlu0 %589, %v259
      %v591 = vpop.permute.xlu0 %590
      %v594 = vunpack.c.l.s4 839922192
      %v595 = vunpack.c.0.s8 %v594
      %v596 = vlaneseq
      %v597 = vshrl.u32 %v596, 7
      %v598 = vsub.s32 %v595, %v597
      %v599 = vrot.slane %v591, %v598
      %601 = vset.pattern.permute.xlu0 0
      %602 = vperm.xlu0 %601, %v260
      %v603 = vpop.permute.xlu0 %602
      %v606 = vunpack.c.l.s4 839922192
      %v607 = vunpack.c.0.s8 %v606
      %v608 = vlaneseq
      %v609 = vshrl.u32 %v608, 7
      %v610 = vsub.s32 %v607, %v609
      %v611 = vrot.slane %v603, %v610
      %613 = vset.pattern.permute.xlu0 0
      %614 = vperm.xlu0 %613, %v261
      %v615 = vpop.permute.xlu0 %614
      %v618 = vunpack.c.l.s4 839922192
      %v619 = vunpack.c.0.s8 %v618
      %v620 = vlaneseq
      %v621 = vshrl.u32 %v620, 7
      %v622 = vsub.s32 %v619, %v621
      %v623 = vrot.slane %v615, %v622
      %625 = vset.pattern.permute.xlu0 0
      %626 = vperm.xlu0 %625, %v262
      %v627 = vpop.permute.xlu0 %626
      %v630 = vunpack.c.l.s4 839922192
      %v631 = vunpack.c.0.s8 %v630
      %v632 = vlaneseq
      %v633 = vshrl.u32 %v632, 7
      %v634 = vsub.s32 %v631, %v633
      %v635 = vrot.slane %v627, %v634
      %637 = vset.pattern.permute.xlu0 0
      %638 = vperm.xlu0 %637, %v263
      %v639 = vpop.permute.xlu0 %638
      %v642 = vunpack.c.l.s4 839922192
      %v643 = vunpack.c.0.s8 %v642
      %v644 = vlaneseq
      %v645 = vshrl.u32 %v644, 7
      %v646 = vsub.s32 %v643, %v645
      %v647 = vrot.slane %v639, %v646
      %v648 = vmul.bf16 %v200, %v275
      %v649 = vmul.bf16 %v201, %v287
      %v650 = vmul.bf16 %v202, %v299
      %v651 = vmul.bf16 %v203, %v311
      %v652 = vmul.bf16 %v204, %v323
      %v653 = vmul.bf16 %v205, %v335
      %v654 = vmul.bf16 %v206, %v347
      %v655 = vmul.bf16 %v207, %v359
      %v656 = vmul.bf16 %v208, %v371
      %v657 = vmul.bf16 %v209, %v383
      %v658 = vmul.bf16 %v210, %v395
      %v659 = vmul.bf16 %v211, %v407
      %v660 = vmul.bf16 %v212, %v419
      %v661 = vmul.bf16 %v213, %v431
      %v662 = vmul.bf16 %v214, %v443
      %v663 = vmul.bf16 %v215, %v455
      %v664 = vmul.bf16 %v216, %v467
      %v665 = vmul.bf16 %v217, %v479
      %v666 = vmul.bf16 %v218, %v491
      %v667 = vmul.bf16 %v219, %v503
      %v668 = vmul.bf16 %v220, %v515
      %v669 = vmul.bf16 %v221, %v527
      %v670 = vmul.bf16 %v222, %v539
      %v671 = vmul.bf16 %v223, %v551
      %v672 = vmul.bf16 %v224, %v563
      %v673 = vmul.bf16 %v225, %v575
      %v674 = vmul.bf16 %v226, %v587
      %v675 = vmul.bf16 %v227, %v599
      %v676 = vmul.bf16 %v228, %v611
      %v677 = vmul.bf16 %v229, %v623
      %v678 = vmul.bf16 %v230, %v635
      %v679 = vmul.bf16 %v231, %v647
      %v680 = vld [vmem:[%s2] sm:$0xf]
      %v681 = vld [vmem:[%s2 + $0x4] sm:$0xf]
      %v682 = vld [vmem:[%s2 + $0x8] sm:$0xf]
      %v683 = vld [vmem:[%s2 + $0xc] sm:$0xf]
      %v684 = vld [vmem:[%s2 + $0x10] sm:$0xf]
      %v685 = vld [vmem:[%s2 + $0x14] sm:$0xf]
      %v686 = vld [vmem:[%s2 + $0x18] sm:$0xf]
      %v687 = vld [vmem:[%s2 + $0x1c] sm:$0xf]
      %v688 = vld [vmem:[%s192] sm:$0xf]
      %v689 = vld [vmem:[%s192 + $0x4] sm:$0xf]
      %v690 = vld [vmem:[%s192 + $0x8] sm:$0xf]
      %v691 = vld [vmem:[%s192 + $0xc] sm:$0xf]
      %v692 = vld [vmem:[%s192 + $0x10] sm:$0xf]
      %v693 = vld [vmem:[%s192 + $0x14] sm:$0xf]
      %v694 = vld [vmem:[%s192 + $0x18] sm:$0xf]
      %v695 = vld [vmem:[%s192 + $0x1c] sm:$0xf]
      %v696 = vld [vmem:[%s192 + $0x20] sm:$0xf]
      %v697 = vld [vmem:[%s192 + $0x24] sm:$0xf]
      %v698 = vld [vmem:[%s192 + $0x28] sm:$0xf]
      %v699 = vld [vmem:[%s192 + $0x2c] sm:$0xf]
      %v700 = vld [vmem:[%s192 + $0x30] sm:$0xf]
      %v701 = vld [vmem:[%s192 + $0x34] sm:$0xf]
      %v702 = vld [vmem:[%s192 + $0x38] sm:$0xf]
      %v703 = vld [vmem:[%s192 + $0x3c] sm:$0xf]
      %v704 = vld [vmem:[%s192 + $0x40] sm:$0xf]
      %v705 = vld [vmem:[%s192 + $0x44] sm:$0xf]
      %v706 = vld [vmem:[%s192 + $0x48] sm:$0xf]
      %v707 = vld [vmem:[%s192 + $0x4c] sm:$0xf]
      %v708 = vld [vmem:[%s192 + $0x50] sm:$0xf]
      %v709 = vld [vmem:[%s192 + $0x54] sm:$0xf]
      %v710 = vld [vmem:[%s192 + $0x58] sm:$0xf]
      %v711 = vld [vmem:[%s192 + $0x5c] sm:$0xf]
      %v712 = vld [vmem:[%s192 + $0x60] sm:$0xf]
      %v713 = vld [vmem:[%s192 + $0x64] sm:$0xf]
      %v714 = vld [vmem:[%s192 + $0x68] sm:$0xf]
      %v715 = vld [vmem:[%s192 + $0x6c] sm:$0xf]
      %v716 = vld [vmem:[%s192 + $0x70] sm:$0xf]
      %v717 = vld [vmem:[%s192 + $0x74] sm:$0xf]
      %v718 = vld [vmem:[%s192 + $0x78] sm:$0xf]
      %v719 = vld [vmem:[%s192 + $0x7c] sm:$0xf]
      %v720 = vld [vmem:[%s192 + $0x80] sm:$0x1]
      %s721 = scalar_lea.vmem %s2, 32
      %v722 = vld [vmem:[%s721] sm:$0xf]
      %v723 = vld [vmem:[%s721 + $0x4] sm:$0xf]
      %v724 = vld [vmem:[%s721 + $0x8] sm:$0xf]
      %v725 = vld [vmem:[%s721 + $0xc] sm:$0xf]
      %v726 = vld [vmem:[%s721 + $0x10] sm:$0xf]
      %v727 = vld [vmem:[%s721 + $0x14] sm:$0xf]
      %v728 = vld [vmem:[%s721 + $0x18] sm:$0xf]
      %v729 = vld [vmem:[%s721 + $0x1c] sm:$0xf]
      %v763 = vunpack.c.l.b16 %v688
      %v764 = vunpack.c.l.b16 %v689
      %v765 = vunpack.c.l.b16 %v690
      %v766 = vunpack.c.l.b16 %v691
      %v767 = vunpack.c.l.b16 %v692
      %v768 = vunpack.c.l.b16 %v693
      %v769 = vunpack.c.l.b16 %v694
      %v770 = vunpack.c.l.b16 %v695
      %v771 = vunpack.c.l.b16 %v696
      %v772 = vunpack.c.l.b16 %v697
      %v773 = vunpack.c.l.b16 %v698
      %v774 = vunpack.c.l.b16 %v699
      %v775 = vunpack.c.l.b16 %v700
      %v776 = vunpack.c.l.b16 %v701
      %v777 = vunpack.c.l.b16 %v702
      %v778 = vunpack.c.l.b16 %v703
      %v779 = vunpack.c.l.b16 %v704
      %v780 = vunpack.c.l.b16 %v705
      %v781 = vunpack.c.l.b16 %v706
      %v782 = vunpack.c.l.b16 %v707
      %v783 = vunpack.c.l.b16 %v708
      %v784 = vunpack.c.l.b16 %v709
      %v785 = vunpack.c.l.b16 %v710
      %v786 = vunpack.c.l.b16 %v711
      %v787 = vunpack.c.l.b16 %v712
      %v788 = vunpack.c.l.b16 %v713
      %v789 = vunpack.c.l.b16 %v714
      %v790 = vunpack.c.l.b16 %v715
      %v791 = vunpack.c.l.b16 %v716
      %v792 = vunpack.c.l.b16 %v717
      %v793 = vunpack.c.l.b16 %v718
      %v794 = vunpack.c.l.b16 %v719
      %v795 = vunpack.c.l.b16 %v720
      %v796 = vpack.c.b16 %v764, %v763
      %v797 = vpack.c.b16 %v766, %v765
      %v798 = vpack.c.b16 %v768, %v767
      %v799 = vpack.c.b16 %v770, %v769
      %v800 = vpack.c.b16 %v772, %v771
      %v801 = vpack.c.b16 %v774, %v773
      %v802 = vpack.c.b16 %v776, %v775
      %v803 = vpack.c.b16 %v778, %v777
      %v804 = vpack.c.b16 %v780, %v779
      %v805 = vpack.c.b16 %v782, %v781
      %v806 = vpack.c.b16 %v784, %v783
      %v807 = vpack.c.b16 %v786, %v785
      %v808 = vpack.c.b16 %v788, %v787
      %v809 = vpack.c.b16 %v790, %v789
      %v810 = vpack.c.b16 %v792, %v791
      %v811 = vpack.c.b16 %v794, %v793
      %v812 = vpack.c.b16 %v795, %v795
      %vm813 = vsmask.f32 7424
      %v815 = vshrl.u32 %v796, 16
      %v817 = vshll.u32 %v796, 16
      %v819 = vrot.slane %v817, 1
      %v820 = vor.u32 %v815, %v819
      %v822 = vshll.u32 %v797, 16
      %v824 = vrot.slane %v822, 1
      %v825 = vsel %vm813, %v820, %v824
      %v826 = vshrl.u32 %v797, 16
      %v828 = vor.u32 %v826, %v824
      %v830 = vshll.u32 %v798, 16
      %v832 = vrot.slane %v830, 1
      %v833 = vsel %vm813, %v828, %v832
      %v834 = vshrl.u32 %v798, 16
      %v836 = vor.u32 %v834, %v832
      %v838 = vshll.u32 %v799, 16
      %v840 = vrot.slane %v838, 1
      %v841 = vsel %vm813, %v836, %v840
      %v842 = vshrl.u32 %v799, 16
      %v844 = vor.u32 %v842, %v840
      %v846 = vshll.u32 %v800, 16
      %v848 = vrot.slane %v846, 1
      %v849 = vsel %vm813, %v844, %v848
      %v850 = vshrl.u32 %v800, 16
      %v852 = vor.u32 %v850, %v848
      %v854 = vshll.u32 %v801, 16
      %v856 = vrot.slane %v854, 1
      %v857 = vsel %vm813, %v852, %v856
      %v858 = vshrl.u32 %v801, 16
      %v860 = vor.u32 %v858, %v856
      %v862 = vshll.u32 %v802, 16
      %v864 = vrot.slane %v862, 1
      %v865 = vsel %vm813, %v860, %v864
      %v866 = vshrl.u32 %v802, 16
      %v868 = vor.u32 %v866, %v864
      %v870 = vshll.u32 %v803, 16
      %v872 = vrot.slane %v870, 1
      %v873 = vsel %vm813, %v868, %v872
      %v874 = vshrl.u32 %v803, 16
      %v876 = vor.u32 %v874, %v872
      %v878 = vshll.u32 %v804, 16
      %v880 = vrot.slane %v878, 1
      %v881 = vsel %vm813, %v876, %v880
      %v882 = vshrl.u32 %v804, 16
      %v884 = vor.u32 %v882, %v880
      %v886 = vshll.u32 %v805, 16
      %v888 = vrot.slane %v886, 1
      %v889 = vsel %vm813, %v884, %v888
      %v890 = vshrl.u32 %v805, 16
      %v892 = vor.u32 %v890, %v888
      %v894 = vshll.u32 %v806, 16
      %v896 = vrot.slane %v894, 1
      %v897 = vsel %vm813, %v892, %v896
      %v898 = vshrl.u32 %v806, 16
      %v900 = vor.u32 %v898, %v896
      %v902 = vshll.u32 %v807, 16
      %v904 = vrot.slane %v902, 1
      %v905 = vsel %vm813, %v900, %v904
      %v906 = vshrl.u32 %v807, 16
      %v908 = vor.u32 %v906, %v904
      %v910 = vshll.u32 %v808, 16
      %v912 = vrot.slane %v910, 1
      %v913 = vsel %vm813, %v908, %v912
      %v914 = vshrl.u32 %v808, 16
      %v916 = vor.u32 %v914, %v912
      %v918 = vshll.u32 %v809, 16
      %v920 = vrot.slane %v918, 1
      %v921 = vsel %vm813, %v916, %v920
      %v922 = vshrl.u32 %v809, 16
      %v924 = vor.u32 %v922, %v920
      %v926 = vshll.u32 %v810, 16
      %v928 = vrot.slane %v926, 1
      %v929 = vsel %vm813, %v924, %v928
      %v930 = vshrl.u32 %v810, 16
      %v932 = vor.u32 %v930, %v928
      %v934 = vshll.u32 %v811, 16
      %v936 = vrot.slane %v934, 1
      %v937 = vsel %vm813, %v932, %v936
      %v938 = vshrl.u32 %v811, 16
      %v940 = vor.u32 %v938, %v936
      %v942 = vshll.u32 %v812, 16
      %v944 = vrot.slane %v942, 1
      %v945 = vsel %vm813, %v940, %v944
      %v954 = vunpack.c.l.b16 %v722
      %v955 = vunpack.c.l.b16 %v723
      %v956 = vunpack.c.l.b16 %v724
      %v957 = vunpack.c.l.b16 %v725
      %v958 = vunpack.c.l.b16 %v726
      %v959 = vunpack.c.l.b16 %v727
      %v960 = vunpack.c.l.b16 %v728
      %v961 = vunpack.c.l.b16 %v729
      %v962 = vpack.c.b16 %v955, %v954
      %v963 = vpack.c.b16 %v957, %v956
      %v964 = vpack.c.b16 %v959, %v958
      %v965 = vpack.c.b16 %v961, %v960
      %vm970 = vcmask 523264
      %v972 = vsel %vm970, %v825, 0
      %v975 = vsel %vm970, %v833, 0
      %v978 = vsel %vm970, %v841, 0
      %v981 = vsel %vm970, %v849, 0
      %v984 = vsel %vm970, %v857, 0
      %v987 = vsel %vm970, %v865, 0
      %v990 = vsel %vm970, %v873, 0
      %v993 = vsel %vm970, %v881, 0
      %v996 = vsel %vm970, %v889, 0
      %v999 = vsel %vm970, %v897, 0
      %v1002 = vsel %vm970, %v905, 0
      %v1005 = vsel %vm970, %v913, 0
      %v1008 = vsel %vm970, %v921, 0
      %v1011 = vsel %vm970, %v929, 0
      %v1014 = vsel %vm970, %v937, 0
      %v1017 = vsel %vm970, %v945, 0
      %1019 = vmatprep.subr.bf16.mxu0 0
      %1020 = vmatpush1.bf16.msra.mxu0 0
      %1021 = vmatprep.subr.bf16.mxu0 0
      %1022 = vmatpush1.bf16.msra.mxu0 0
      %1023 = vmatprep.subr.bf16.mxu0 0
      %1024 = vmatpush1.bf16.msra.mxu0 0
      %1025 = vmatprep.subr.bf16.mxu0 0
      %1026 = vmatpush1.bf16.msra.mxu0 0
      %1027 = vmatprep.subr.bf16.mxu0 0
      %1028 = vmatpush1.bf16.msra.mxu0 %v965
      %1029 = vmatprep.subr.bf16.mxu0 0
      %1030 = vmatpush1.bf16.msra.mxu0 %v964
      %1031 = vmatprep.subr.bf16.mxu0 0
      %1032 = vmatpush1.bf16.msra.mxu0 %v963
      %1033 = vmatprep.subr.bf16.mxu0 0
      %1034 = vmatpush1.bf16.msra.mxu0 %v962
      %1035 = vmatprep.subr.bf16.mxu0 0
      %1036 = vmatpush2.bf16.msra.mxu0 0
      %1037 = vmatprep.subr.bf16.mxu0 0
      %1038 = vmatpush2.bf16.msra.mxu0 0
      %1039 = vmatprep.subr.bf16.mxu0 0
      %1040 = vmatpush2.bf16.msra.mxu0 0
      %1041 = vmatprep.subr.bf16.mxu0 0
      %1042 = vmatpush2.bf16.msra.mxu0 0
      %1043 = vmatprep.subr.bf16.mxu0 0
      %1044 = vmatpush2.bf16.msra.mxu0 0
      %1045 = vmatprep.subr.bf16.mxu0 0
      %1046 = vmatpush2.bf16.msra.mxu0 0
      %1047 = vmatprep.subr.bf16.mxu0 0
      %1048 = vmatpush2.bf16.msra.mxu0 0
      %1049 = vmatprep.subr.bf16.mxu0 0
      %1050 = vmatpush2.bf16.msra.mxu0 0
      %1051 = vmatprep.mubr.bf16.mxu0 0
      %1052 = vmatmul.mubr.bf16.gmra.mxu0 %v972
      %v1053 = vpop.f32.mrf.mxu0
      %v1054 = vadd.f32 0.0, %v1053
      %v1055 = vpop.f32.mrf.mxu0
      %v1056 = vpop.f32.mrf.mxu0
      %v1057 = vadd.f32 0.0, %v1056
      %v1058 = vpop.f32.mrf.mxu0
      %1059 = vmatprep.mubr.bf16.mxu0 0
      %1060 = vmatmul.mubr.bf16.gmra.mxu0 %v975
      %v1061 = vpop.f32.mrf.mxu0
      %v1062 = vadd.f32 0.0, %v1061
      %v1063 = vpop.f32.mrf.mxu0
      %v1064 = vpop.f32.mrf.mxu0
      %v1065 = vadd.f32 0.0, %v1064
      %v1066 = vpop.f32.mrf.mxu0
      %1067 = vmatprep.mubr.bf16.mxu0 0
      %1068 = vmatmul.mubr.bf16.gmra.mxu0 %v978
      %v1069 = vpop.f32.mrf.mxu0
      %v1070 = vadd.f32 0.0, %v1069
      %v1071 = vpop.f32.mrf.mxu0
      %v1072 = vpop.f32.mrf.mxu0
      %v1073 = vadd.f32 0.0, %v1072
      %v1074 = vpop.f32.mrf.mxu0
      %1075 = vmatprep.mubr.bf16.mxu0 0
      %1076 = vmatmul.mubr.bf16.gmra.mxu0 %v981
      %v1077 = vpop.f32.mrf.mxu0
      %v1078 = vadd.f32 0.0, %v1077
      %v1079 = vpop.f32.mrf.mxu0
      %v1080 = vpop.f32.mrf.mxu0
      %v1081 = vadd.f32 0.0, %v1080
      %v1082 = vpop.f32.mrf.mxu0
      %1083 = vmatprep.mubr.bf16.mxu0 0
      %1084 = vmatmul.mubr.bf16.gmra.mxu0 %v984
      %v1085 = vpop.f32.mrf.mxu0
      %v1086 = vadd.f32 0.0, %v1085
      %v1087 = vpop.f32.mrf.mxu0
      %v1088 = vpop.f32.mrf.mxu0
      %v1089 = vadd.f32 0.0, %v1088
      %v1090 = vpop.f32.mrf.mxu0
      %1091 = vmatprep.mubr.bf16.mxu0 0
      %1092 = vmatmul.mubr.bf16.gmra.mxu0 %v987
      %v1093 = vpop.f32.mrf.mxu0
      %v1094 = vadd.f32 0.0, %v1093
      %v1095 = vpop.f32.mrf.mxu0
      %v1096 = vpop.f32.mrf.mxu0
      %v1097 = vadd.f32 0.0, %v1096
      %v1098 = vpop.f32.mrf.mxu0
      %1099 = vmatprep.mubr.bf16.mxu0 0
      %1100 = vmatmul.mubr.bf16.gmra.mxu0 %v990
      %v1101 = vpop.f32.mrf.mxu0
      %v1102 = vadd.f32 0.0, %v1101
      %v1103 = vpop.f32.mrf.mxu0
      %v1104 = vpop.f32.mrf.mxu0
      %v1105 = vadd.f32 0.0, %v1104
      %v1106 = vpop.f32.mrf.mxu0
      %1107 = vmatprep.mubr.bf16.mxu0 0
      %1108 = vmatmul.mubr.bf16.gmra.mxu0 %v993
      %v1109 = vpop.f32.mrf.mxu0
      %v1110 = vadd.f32 0.0, %v1109
      %v1111 = vpop.f32.mrf.mxu0
      %v1112 = vpop.f32.mrf.mxu0
      %v1113 = vadd.f32 0.0, %v1112
      %v1114 = vpop.f32.mrf.mxu0
      %1115 = vmatprep.mubr.bf16.mxu0 0
      %1116 = vmatmul.mubr.bf16.gmra.mxu0 %v996
      %v1117 = vpop.f32.mrf.mxu0
      %v1118 = vadd.f32 0.0, %v1117
      %v1119 = vpop.f32.mrf.mxu0
      %v1120 = vpop.f32.mrf.mxu0
      %v1121 = vadd.f32 0.0, %v1120
      %v1122 = vpop.f32.mrf.mxu0
      %1123 = vmatprep.mubr.bf16.mxu0 0
      %1124 = vmatmul.mubr.bf16.gmra.mxu0 %v999
      %v1125 = vpop.f32.mrf.mxu0
      %v1126 = vadd.f32 0.0, %v1125
      %v1127 = vpop.f32.mrf.mxu0
      %v1128 = vpop.f32.mrf.mxu0
      %v1129 = vadd.f32 0.0, %v1128
      %v1130 = vpop.f32.mrf.mxu0
      %1131 = vmatprep.mubr.bf16.mxu0 0
      %1132 = vmatmul.mubr.bf16.gmra.mxu0 %v1002
      %v1133 = vpop.f32.mrf.mxu0
      %v1134 = vadd.f32 0.0, %v1133
      %v1135 = vpop.f32.mrf.mxu0
      %v1136 = vpop.f32.mrf.mxu0
      %v1137 = vadd.f32 0.0, %v1136
      %v1138 = vpop.f32.mrf.mxu0
      %1139 = vmatprep.mubr.bf16.mxu0 0
      %1140 = vmatmul.mubr.bf16.gmra.mxu0 %v1005
      %v1141 = vpop.f32.mrf.mxu0
      %v1142 = vadd.f32 0.0, %v1141
      %v1143 = vpop.f32.mrf.mxu0
      %v1144 = vpop.f32.mrf.mxu0
      %v1145 = vadd.f32 0.0, %v1144
      %v1146 = vpop.f32.mrf.mxu0
      %1147 = vmatprep.mubr.bf16.mxu0 0
      %1148 = vmatmul.mubr.bf16.gmra.mxu0 %v1008
      %v1149 = vpop.f32.mrf.mxu0
      %v1150 = vadd.f32 0.0, %v1149
      %v1151 = vpop.f32.mrf.mxu0
      %v1152 = vpop.f32.mrf.mxu0
      %v1153 = vadd.f32 0.0, %v1152
      %v1154 = vpop.f32.mrf.mxu0
      %1155 = vmatprep.mubr.bf16.mxu0 0
      %1156 = vmatmul.mubr.bf16.gmra.mxu0 %v1011
      %v1157 = vpop.f32.mrf.mxu0
      %v1158 = vadd.f32 0.0, %v1157
      %v1159 = vpop.f32.mrf.mxu0
      %v1160 = vpop.f32.mrf.mxu0
      %v1161 = vadd.f32 0.0, %v1160
      %v1162 = vpop.f32.mrf.mxu0
      %1163 = vmatprep.mubr.bf16.mxu0 0
      %1164 = vmatmul.mubr.bf16.gmra.mxu0 %v1014
      %v1165 = vpop.f32.mrf.mxu0
      %v1166 = vadd.f32 0.0, %v1165
      %v1167 = vpop.f32.mrf.mxu0
      %v1168 = vpop.f32.mrf.mxu0
      %v1169 = vadd.f32 0.0, %v1168
      %v1170 = vpop.f32.mrf.mxu0
      %1171 = vmatprep.mubr.bf16.mxu0 0
      %1172 = vmatmul.mubr.bf16.gmra.mxu0 %v1017
      %v1173 = vpop.f32.mrf.mxu0
      %v1174 = vadd.f32 0.0, %v1173
      %v1175 = vpop.f32.mrf.mxu0
      %v1176 = vpop.f32.mrf.mxu0
      %v1177 = vadd.f32 0.0, %v1176
      %v1178 = vpop.f32.mrf.mxu0
      %1179 = vdwg.mxu0
      %v1212 = vunpack.c.l.b16 %v648
      %v1213 = vunpack.c.l.b16 %v649
      %v1214 = vunpack.c.l.b16 %v650
      %v1215 = vunpack.c.l.b16 %v651
      %v1216 = vunpack.c.l.b16 %v652
      %v1217 = vunpack.c.l.b16 %v653
      %v1218 = vunpack.c.l.b16 %v654
      %v1219 = vunpack.c.l.b16 %v655
      %v1220 = vunpack.c.l.b16 %v656
      %v1221 = vunpack.c.l.b16 %v657
      %v1222 = vunpack.c.l.b16 %v658
      %v1223 = vunpack.c.l.b16 %v659
      %v1224 = vunpack.c.l.b16 %v660
      %v1225 = vunpack.c.l.b16 %v661
      %v1226 = vunpack.c.l.b16 %v662
      %v1227 = vunpack.c.l.b16 %v663
      %v1228 = vunpack.c.l.b16 %v664
      %v1229 = vunpack.c.l.b16 %v665
      %v1230 = vunpack.c.l.b16 %v666
      %v1231 = vunpack.c.l.b16 %v667
      %v1232 = vunpack.c.l.b16 %v668
      %v1233 = vunpack.c.l.b16 %v669
      %v1234 = vunpack.c.l.b16 %v670
      %v1235 = vunpack.c.l.b16 %v671
      %v1236 = vunpack.c.l.b16 %v672
      %v1237 = vunpack.c.l.b16 %v673
      %v1238 = vunpack.c.l.b16 %v674
      %v1239 = vunpack.c.l.b16 %v675
      %v1240 = vunpack.c.l.b16 %v676
      %v1241 = vunpack.c.l.b16 %v677
      %v1242 = vunpack.c.l.b16 %v678
      %v1243 = vunpack.c.l.b16 %v679
      %v1244 = vpack.c.b16 %v1213, %v1212
      %v1245 = vpack.c.b16 %v1215, %v1214
      %v1246 = vpack.c.b16 %v1217, %v1216
      %v1247 = vpack.c.b16 %v1219, %v1218
      %v1248 = vpack.c.b16 %v1221, %v1220
      %v1249 = vpack.c.b16 %v1223, %v1222
      %v1250 = vpack.c.b16 %v1225, %v1224
      %v1251 = vpack.c.b16 %v1227, %v1226
      %v1252 = vpack.c.b16 %v1229, %v1228
      %v1253 = vpack.c.b16 %v1231, %v1230
      %v1254 = vpack.c.b16 %v1233, %v1232
      %v1255 = vpack.c.b16 %v1235, %v1234
      %v1256 = vpack.c.b16 %v1237, %v1236
      %v1257 = vpack.c.b16 %v1239, %v1238
      %v1258 = vpack.c.b16 %v1241, %v1240
      %v1259 = vpack.c.b16 %v1243, %v1242
      %v1268 = vunpack.c.l.b16 %v680
      %v1269 = vunpack.c.l.b16 %v681
      %v1270 = vunpack.c.l.b16 %v682
      %v1271 = vunpack.c.l.b16 %v683
      %v1272 = vunpack.c.l.b16 %v684
      %v1273 = vunpack.c.l.b16 %v685
      %v1274 = vunpack.c.l.b16 %v686
      %v1275 = vunpack.c.l.b16 %v687
      %v1276 = vpack.c.b16 %v1269, %v1268
      %v1277 = vpack.c.b16 %v1271, %v1270
      %v1278 = vpack.c.b16 %v1273, %v1272
      %v1279 = vpack.c.b16 %v1275, %v1274
      %v1285 = vsel %vm970, %v1244, 0
      %v1288 = vsel %vm970, %v1245, 0
      %v1291 = vsel %vm970, %v1246, 0
      %v1294 = vsel %vm970, %v1247, 0
      %v1297 = vsel %vm970, %v1248, 0
      %v1300 = vsel %vm970, %v1249, 0
      %v1303 = vsel %vm970, %v1250, 0
      %v1306 = vsel %vm970, %v1251, 0
      %v1309 = vsel %vm970, %v1252, 0
      %v1312 = vsel %vm970, %v1253, 0
      %v1315 = vsel %vm970, %v1254, 0
      %v1318 = vsel %vm970, %v1255, 0
      %v1321 = vsel %vm970, %v1256, 0
      %v1324 = vsel %vm970, %v1257, 0
      %v1327 = vsel %vm970, %v1258, 0
      %v1330 = vsel %vm970, %v1259, 0
      %1332 = vmatprep.subr.bf16.mxu0 0
      %1333 = vmatpush1.bf16.msra.mxu0 0
      %1334 = vmatprep.subr.bf16.mxu0 0
      %1335 = vmatpush1.bf16.msra.mxu0 0
      %1336 = vmatprep.subr.bf16.mxu0 0
      %1337 = vmatpush1.bf16.msra.mxu0 0
      %1338 = vmatprep.subr.bf16.mxu0 0
      %1339 = vmatpush1.bf16.msra.mxu0 0
      %1340 = vmatprep.subr.bf16.mxu0 0
      %1341 = vmatpush1.bf16.msra.mxu0 %v1279
      %1342 = vmatprep.subr.bf16.mxu0 0
      %1343 = vmatpush1.bf16.msra.mxu0 %v1278
      %1344 = vmatprep.subr.bf16.mxu0 0
      %1345 = vmatpush1.bf16.msra.mxu0 %v1277
      %1346 = vmatprep.subr.bf16.mxu0 0
      %1347 = vmatpush1.bf16.msra.mxu0 %v1276
      %1348 = vmatprep.subr.bf16.mxu0 0
      %1349 = vmatpush2.bf16.msra.mxu0 0
      %1350 = vmatprep.subr.bf16.mxu0 0
      %1351 = vmatpush2.bf16.msra.mxu0 0
      %1352 = vmatprep.subr.bf16.mxu0 0
      %1353 = vmatpush2.bf16.msra.mxu0 0
      %1354 = vmatprep.subr.bf16.mxu0 0
      %1355 = vmatpush2.bf16.msra.mxu0 0
      %1356 = vmatprep.subr.bf16.mxu0 0
      %1357 = vmatpush2.bf16.msra.mxu0 0
      %1358 = vmatprep.subr.bf16.mxu0 0
      %1359 = vmatpush2.bf16.msra.mxu0 0
      %1360 = vmatprep.subr.bf16.mxu0 0
      %1361 = vmatpush2.bf16.msra.mxu0 0
      %1362 = vmatprep.subr.bf16.mxu0 0
      %1363 = vmatpush2.bf16.msra.mxu0 0
      %1364 = vmatprep.mubr.bf16.mxu0 0
      %1365 = vmatmul.mubr.bf16.gmra.mxu0 %v1285
      %v1366 = vpop.f32.mrf.mxu0
      %v1367 = vadd.f32 %v1054, %v1366
      %v1368 = vpop.f32.mrf.mxu0
      %v1369 = vpop.f32.mrf.mxu0
      %v1370 = vadd.f32 %v1057, %v1369
      %v1371 = vpop.f32.mrf.mxu0
      %1372 = vmatprep.mubr.bf16.mxu0 0
      %1373 = vmatmul.mubr.bf16.gmra.mxu0 %v1288
      %v1374 = vpop.f32.mrf.mxu0
      %v1375 = vadd.f32 %v1062, %v1374
      %v1376 = vpop.f32.mrf.mxu0
      %v1377 = vpop.f32.mrf.mxu0
      %v1378 = vadd.f32 %v1065, %v1377
      %v1379 = vpop.f32.mrf.mxu0
      %1380 = vmatprep.mubr.bf16.mxu0 0
      %1381 = vmatmul.mubr.bf16.gmra.mxu0 %v1291
      %v1382 = vpop.f32.mrf.mxu0
      %v1383 = vadd.f32 %v1070, %v1382
      %v1384 = vpop.f32.mrf.mxu0
      %v1385 = vpop.f32.mrf.mxu0
      %v1386 = vadd.f32 %v1073, %v1385
      %v1387 = vpop.f32.mrf.mxu0
      %1388 = vmatprep.mubr.bf16.mxu0 0
      %1389 = vmatmul.mubr.bf16.gmra.mxu0 %v1294
      %v1390 = vpop.f32.mrf.mxu0
      %v1391 = vadd.f32 %v1078, %v1390
      %v1392 = vpop.f32.mrf.mxu0
      %v1393 = vpop.f32.mrf.mxu0
      %v1394 = vadd.f32 %v1081, %v1393
      %v1395 = vpop.f32.mrf.mxu0
      %1396 = vmatprep.mubr.bf16.mxu0 0
      %1397 = vmatmul.mubr.bf16.gmra.mxu0 %v1297
      %v1398 = vpop.f32.mrf.mxu0
      %v1399 = vadd.f32 %v1086, %v1398
      %v1400 = vpop.f32.mrf.mxu0
      %v1401 = vpop.f32.mrf.mxu0
      %v1402 = vadd.f32 %v1089, %v1401
      %v1403 = vpop.f32.mrf.mxu0
      %1404 = vmatprep.mubr.bf16.mxu0 0
      %1405 = vmatmul.mubr.bf16.gmra.mxu0 %v1300
      %v1406 = vpop.f32.mrf.mxu0
      %v1407 = vadd.f32 %v1094, %v1406
      %v1408 = vpop.f32.mrf.mxu0
      %v1409 = vpop.f32.mrf.mxu0
      %v1410 = vadd.f32 %v1097, %v1409
      %v1411 = vpop.f32.mrf.mxu0
      %1412 = vmatprep.mubr.bf16.mxu0 0
      %1413 = vmatmul.mubr.bf16.gmra.mxu0 %v1303
      %v1414 = vpop.f32.mrf.mxu0
      %v1415 = vadd.f32 %v1102, %v1414
      %v1416 = vpop.f32.mrf.mxu0
      %v1417 = vpop.f32.mrf.mxu0
      %v1418 = vadd.f32 %v1105, %v1417
      %v1419 = vpop.f32.mrf.mxu0
      %1420 = vmatprep.mubr.bf16.mxu0 0
      %1421 = vmatmul.mubr.bf16.gmra.mxu0 %v1306
      %v1422 = vpop.f32.mrf.mxu0
      %v1423 = vadd.f32 %v1110, %v1422
      %v1424 = vpop.f32.mrf.mxu0
      %v1425 = vpop.f32.mrf.mxu0
      %v1426 = vadd.f32 %v1113, %v1425
      %v1427 = vpop.f32.mrf.mxu0
      %1428 = vmatprep.mubr.bf16.mxu0 0
      %1429 = vmatmul.mubr.bf16.gmra.mxu0 %v1309
      %v1430 = vpop.f32.mrf.mxu0
      %v1431 = vadd.f32 %v1118, %v1430
      %v1432 = vpop.f32.mrf.mxu0
      %v1433 = vpop.f32.mrf.mxu0
      %v1434 = vadd.f32 %v1121, %v1433
      %v1435 = vpop.f32.mrf.mxu0
      %1436 = vmatprep.mubr.bf16.mxu0 0
      %1437 = vmatmul.mubr.bf16.gmra.mxu0 %v1312
      %v1438 = vpop.f32.mrf.mxu0
      %v1439 = vadd.f32 %v1126, %v1438
      %v1440 = vpop.f32.mrf.mxu0
      %v1441 = vpop.f32.mrf.mxu0
      %v1442 = vadd.f32 %v1129, %v1441
      %v1443 = vpop.f32.mrf.mxu0
      %1444 = vmatprep.mubr.bf16.mxu0 0
      %1445 = vmatmul.mubr.bf16.gmra.mxu0 %v1315
      %v1446 = vpop.f32.mrf.mxu0
      %v1447 = vadd.f32 %v1134, %v1446
      %v1448 = vpop.f32.mrf.mxu0
      %v1449 = vpop.f32.mrf.mxu0
      %v1450 = vadd.f32 %v1137, %v1449
      %v1451 = vpop.f32.mrf.mxu0
      %1452 = vmatprep.mubr.bf16.mxu0 0
      %1453 = vmatmul.mubr.bf16.gmra.mxu0 %v1318
      %v1454 = vpop.f32.mrf.mxu0
      %v1455 = vadd.f32 %v1142, %v1454
      %v1456 = vpop.f32.mrf.mxu0
      %v1457 = vpop.f32.mrf.mxu0
      %v1458 = vadd.f32 %v1145, %v1457
      %v1459 = vpop.f32.mrf.mxu0
      %1460 = vmatprep.mubr.bf16.mxu0 0
      %1461 = vmatmul.mubr.bf16.gmra.mxu0 %v1321
      %v1462 = vpop.f32.mrf.mxu0
      %v1463 = vadd.f32 %v1150, %v1462
      %v1464 = vpop.f32.mrf.mxu0
      %v1465 = vpop.f32.mrf.mxu0
      %v1466 = vadd.f32 %v1153, %v1465
      %v1467 = vpop.f32.mrf.mxu0
      %1468 = vmatprep.mubr.bf16.mxu0 0
      %1469 = vmatmul.mubr.bf16.gmra.mxu0 %v1324
      %v1470 = vpop.f32.mrf.mxu0
      %v1471 = vadd.f32 %v1158, %v1470
      %v1472 = vpop.f32.mrf.mxu0
      %v1473 = vpop.f32.mrf.mxu0
      %v1474 = vadd.f32 %v1161, %v1473
      %v1475 = vpop.f32.mrf.mxu0
      %1476 = vmatprep.mubr.bf16.mxu0 0
      %1477 = vmatmul.mubr.bf16.gmra.mxu0 %v1327
      %v1478 = vpop.f32.mrf.mxu0
      %v1479 = vadd.f32 %v1166, %v1478
      %v1480 = vpop.f32.mrf.mxu0
      %v1481 = vpop.f32.mrf.mxu0
      %v1482 = vadd.f32 %v1169, %v1481
      %v1483 = vpop.f32.mrf.mxu0
      %1484 = vmatprep.mubr.bf16.mxu0 0
      %1485 = vmatmul.mubr.bf16.gmra.mxu0 %v1330
      %v1486 = vpop.f32.mrf.mxu0
      %v1487 = vadd.f32 %v1174, %v1486
      %v1488 = vpop.f32.mrf.mxu0
      %v1489 = vpop.f32.mrf.mxu0
      %v1490 = vadd.f32 %v1177, %v1489
      %v1491 = vpop.f32.mrf.mxu0
      %1492 = vdwg.mxu0
      %v1493 = vld [vmem:[%s192 + $0x8] sm:$0xf]
      %v1494 = vld [vmem:[%s192 + $0xc] sm:$0xf]
      %v1495 = vld [vmem:[%s192 + $0x10] sm:$0xf]
      %v1496 = vld [vmem:[%s192 + $0x14] sm:$0xf]
      %v1497 = vld [vmem:[%s192 + $0x18] sm:$0xf]
      %v1498 = vld [vmem:[%s192 + $0x1c] sm:$0xf]
      %v1499 = vld [vmem:[%s192 + $0x20] sm:$0xf]
      %v1500 = vld [vmem:[%s192 + $0x24] sm:$0xf]
      %v1501 = vld [vmem:[%s192 + $0x28] sm:$0xf]
      %v1502 = vld [vmem:[%s192 + $0x2c] sm:$0xf]
      %v1503 = vld [vmem:[%s192 + $0x30] sm:$0xf]
      %v1504 = vld [vmem:[%s192 + $0x34] sm:$0xf]
      %v1505 = vld [vmem:[%s192 + $0x38] sm:$0xf]
      %v1506 = vld [vmem:[%s192 + $0x3c] sm:$0xf]
      %v1507 = vld [vmem:[%s192 + $0x40] sm:$0xf]
      %v1508 = vld [vmem:[%s192 + $0x44] sm:$0xf]
      %v1509 = vld [vmem:[%s192 + $0x48] sm:$0xf]
      %v1510 = vld [vmem:[%s192 + $0x4c] sm:$0xf]
      %v1511 = vld [vmem:[%s192 + $0x50] sm:$0xf]
      %v1512 = vld [vmem:[%s192 + $0x54] sm:$0xf]
      %v1513 = vld [vmem:[%s192 + $0x58] sm:$0xf]
      %v1514 = vld [vmem:[%s192 + $0x5c] sm:$0xf]
      %v1515 = vld [vmem:[%s192 + $0x60] sm:$0xf]
      %v1516 = vld [vmem:[%s192 + $0x64] sm:$0xf]
      %v1517 = vld [vmem:[%s192 + $0x68] sm:$0xf]
      %v1518 = vld [vmem:[%s192 + $0x6c] sm:$0xf]
      %v1519 = vld [vmem:[%s192 + $0x70] sm:$0xf]
      %v1520 = vld [vmem:[%s192 + $0x74] sm:$0xf]
      %v1521 = vld [vmem:[%s192 + $0x78] sm:$0xf]
      %v1522 = vld [vmem:[%s192 + $0x7c] sm:$0xf]
      %v1523 = vld [vmem:[%s192 + $0x80] sm:$0xf]
      %v1524 = vld [vmem:[%s192 + $0x84] sm:$0xf]
      %v1525 = vld [vmem:[%s1 + $0x8] sm:$0xf]
      %v1526 = vld [vmem:[%s1 + $0xc] sm:$0xf]
      %v1527 = vld [vmem:[%s1 + $0x10] sm:$0xf]
      %v1528 = vld [vmem:[%s1 + $0x14] sm:$0xf]
      %v1529 = vld [vmem:[%s1 + $0x18] sm:$0xf]
      %v1530 = vld [vmem:[%s1 + $0x1c] sm:$0xf]
      %v1531 = vld [vmem:[%s1 + $0x20] sm:$0xf]
      %v1532 = vld [vmem:[%s1 + $0x24] sm:$0xf]
      %v1533 = vld [vmem:[%s1 + $0x28] sm:$0xf]
      %v1534 = vld [vmem:[%s1 + $0x2c] sm:$0xf]
      %v1535 = vld [vmem:[%s1 + $0x30] sm:$0xf]
      %v1536 = vld [vmem:[%s1 + $0x34] sm:$0xf]
      %v1537 = vld [vmem:[%s1 + $0x38] sm:$0xf]
      %v1538 = vld [vmem:[%s1 + $0x3c] sm:$0xf]
      %v1539 = vld [vmem:[%s1 + $0x40] sm:$0xf]
      %v1540 = vld [vmem:[%s1 + $0x44] sm:$0xf]
      %v1541 = vld [vmem:[%s1 + $0x48] sm:$0xf]
      %v1542 = vld [vmem:[%s1 + $0x4c] sm:$0xf]
      %v1543 = vld [vmem:[%s1 + $0x50] sm:$0xf]
      %v1544 = vld [vmem:[%s1 + $0x54] sm:$0xf]
      %v1545 = vld [vmem:[%s1 + $0x58] sm:$0xf]
      %v1546 = vld [vmem:[%s1 + $0x5c] sm:$0xf]
      %v1547 = vld [vmem:[%s1 + $0x60] sm:$0xf]
      %v1548 = vld [vmem:[%s1 + $0x64] sm:$0xf]
      %v1549 = vld [vmem:[%s1 + $0x68] sm:$0xf]
      %v1550 = vld [vmem:[%s1 + $0x6c] sm:$0xf]
      %v1551 = vld [vmem:[%s1 + $0x70] sm:$0xf]
      %v1552 = vld [vmem:[%s1 + $0x74] sm:$0xf]
      %v1553 = vld [vmem:[%s1 + $0x78] sm:$0xf]
      %v1554 = vld [vmem:[%s1 + $0x7c] sm:$0xf]
      %v1555 = vld [vmem:[%s1 + $0x80] sm:$0xf]
      %v1556 = vld [vmem:[%s1 + $0x84] sm:$0xf]
      %1558 = vset.pattern.permute.xlu0 0
      %1559 = vperm.xlu0 %1558, %v1525
      %v1560 = vpop.permute.xlu0 %1559
      %v1563 = vunpack.c.l.s4 839922192
      %v1564 = vunpack.c.0.s8 %v1563
      %v1565 = vlaneseq
      %v1566 = vshrl.u32 %v1565, 7
      %v1567 = vsub.s32 %v1564, %v1566
      %v1568 = vrot.slane %v1560, %v1567
      %1570 = vset.pattern.permute.xlu0 0
      %1571 = vperm.xlu0 %1570, %v1526
      %v1572 = vpop.permute.xlu0 %1571
      %v1575 = vunpack.c.l.s4 839922192
      %v1576 = vunpack.c.0.s8 %v1575
      %v1577 = vlaneseq
      %v1578 = vshrl.u32 %v1577, 7
      %v1579 = vsub.s32 %v1576, %v1578
      %v1580 = vrot.slane %v1572, %v1579
      %1582 = vset.pattern.permute.xlu0 0
      %1583 = vperm.xlu0 %1582, %v1527
      %v1584 = vpop.permute.xlu0 %1583
      %v1587 = vunpack.c.l.s4 839922192
      %v1588 = vunpack.c.0.s8 %v1587
      %v1589 = vlaneseq
      %v1590 = vshrl.u32 %v1589, 7
      %v1591 = vsub.s32 %v1588, %v1590
      %v1592 = vrot.slane %v1584, %v1591
      %1594 = vset.pattern.permute.xlu0 0
      %1595 = vperm.xlu0 %1594, %v1528
      %v1596 = vpop.permute.xlu0 %1595
      %v1599 = vunpack.c.l.s4 839922192
      %v1600 = vunpack.c.0.s8 %v1599
      %v1601 = vlaneseq
      %v1602 = vshrl.u32 %v1601, 7
      %v1603 = vsub.s32 %v1600, %v1602
      %v1604 = vrot.slane %v1596, %v1603
      %1606 = vset.pattern.permute.xlu0 0
      %1607 = vperm.xlu0 %1606, %v1529
      %v1608 = vpop.permute.xlu0 %1607
      %v1611 = vunpack.c.l.s4 839922192
      %v1612 = vunpack.c.0.s8 %v1611
      %v1613 = vlaneseq
      %v1614 = vshrl.u32 %v1613, 7
      %v1615 = vsub.s32 %v1612, %v1614
      %v1616 = vrot.slane %v1608, %v1615
      %1618 = vset.pattern.permute.xlu0 0
      %1619 = vperm.xlu0 %1618, %v1530
      %v1620 = vpop.permute.xlu0 %1619
      %v1623 = vunpack.c.l.s4 839922192
      %v1624 = vunpack.c.0.s8 %v1623
      %v1625 = vlaneseq
      %v1626 = vshrl.u32 %v1625, 7
      %v1627 = vsub.s32 %v1624, %v1626
      %v1628 = vrot.slane %v1620, %v1627
      %1630 = vset.pattern.permute.xlu0 0
      %1631 = vperm.xlu0 %1630, %v1531
      %v1632 = vpop.permute.xlu0 %1631
      %v1635 = vunpack.c.l.s4 839922192
      %v1636 = vunpack.c.0.s8 %v1635
      %v1637 = vlaneseq
      %v1638 = vshrl.u32 %v1637, 7
      %v1639 = vsub.s32 %v1636, %v1638
      %v1640 = vrot.slane %v1632, %v1639
      %1642 = vset.pattern.permute.xlu0 0
      %1643 = vperm.xlu0 %1642, %v1532
      %v1644 = vpop.permute.xlu0 %1643
      %v1647 = vunpack.c.l.s4 839922192
      %v1648 = vunpack.c.0.s8 %v1647
      %v1649 = vlaneseq
      %v1650 = vshrl.u32 %v1649, 7
      %v1651 = vsub.s32 %v1648, %v1650
      %v1652 = vrot.slane %v1644, %v1651
      %1654 = vset.pattern.permute.xlu0 0
      %1655 = vperm.xlu0 %1654, %v1533
      %v1656 = vpop.permute.xlu0 %1655
      %v1659 = vunpack.c.l.s4 839922192
      %v1660 = vunpack.c.0.s8 %v1659
      %v1661 = vlaneseq
      %v1662 = vshrl.u32 %v1661, 7
      %v1663 = vsub.s32 %v1660, %v1662
      %v1664 = vrot.slane %v1656, %v1663
      %1666 = vset.pattern.permute.xlu0 0
      %1667 = vperm.xlu0 %1666, %v1534
      %v1668 = vpop.permute.xlu0 %1667
      %v1671 = vunpack.c.l.s4 839922192
      %v1672 = vunpack.c.0.s8 %v1671
      %v1673 = vlaneseq
      %v1674 = vshrl.u32 %v1673, 7
      %v1675 = vsub.s32 %v1672, %v1674
      %v1676 = vrot.slane %v1668, %v1675
      %1678 = vset.pattern.permute.xlu0 0
      %1679 = vperm.xlu0 %1678, %v1535
      %v1680 = vpop.permute.xlu0 %1679
      %v1683 = vunpack.c.l.s4 839922192
      %v1684 = vunpack.c.0.s8 %v1683
      %v1685 = vlaneseq
      %v1686 = vshrl.u32 %v1685, 7
      %v1687 = vsub.s32 %v1684, %v1686
      %v1688 = vrot.slane %v1680, %v1687
      %1690 = vset.pattern.permute.xlu0 0
      %1691 = vperm.xlu0 %1690, %v1536
      %v1692 = vpop.permute.xlu0 %1691
      %v1695 = vunpack.c.l.s4 839922192
      %v1696 = vunpack.c.0.s8 %v1695
      %v1697 = vlaneseq
      %v1698 = vshrl.u32 %v1697, 7
      %v1699 = vsub.s32 %v1696, %v1698
      %v1700 = vrot.slane %v1692, %v1699
      %1702 = vset.pattern.permute.xlu0 0
      %1703 = vperm.xlu0 %1702, %v1537
      %v1704 = vpop.permute.xlu0 %1703
      %v1707 = vunpack.c.l.s4 839922192
      %v1708 = vunpack.c.0.s8 %v1707
      %v1709 = vlaneseq
      %v1710 = vshrl.u32 %v1709, 7
      %v1711 = vsub.s32 %v1708, %v1710
      %v1712 = vrot.slane %v1704, %v1711
      %1714 = vset.pattern.permute.xlu0 0
      %1715 = vperm.xlu0 %1714, %v1538
      %v1716 = vpop.permute.xlu0 %1715
      %v1719 = vunpack.c.l.s4 839922192
      %v1720 = vunpack.c.0.s8 %v1719
      %v1721 = vlaneseq
      %v1722 = vshrl.u32 %v1721, 7
      %v1723 = vsub.s32 %v1720, %v1722
      %v1724 = vrot.slane %v1716, %v1723
      %1726 = vset.pattern.permute.xlu0 0
      %1727 = vperm.xlu0 %1726, %v1539
      %v1728 = vpop.permute.xlu0 %1727
      %v1731 = vunpack.c.l.s4 839922192
      %v1732 = vunpack.c.0.s8 %v1731
      %v1733 = vlaneseq
      %v1734 = vshrl.u32 %v1733, 7
      %v1735 = vsub.s32 %v1732, %v1734
      %v1736 = vrot.slane %v1728, %v1735
      %1738 = vset.pattern.permute.xlu0 0
      %1739 = vperm.xlu0 %1738, %v1540
      %v1740 = vpop.permute.xlu0 %1739
      %v1743 = vunpack.c.l.s4 839922192
      %v1744 = vunpack.c.0.s8 %v1743
      %v1745 = vlaneseq
      %v1746 = vshrl.u32 %v1745, 7
      %v1747 = vsub.s32 %v1744, %v1746
      %v1748 = vrot.slane %v1740, %v1747
      %1750 = vset.pattern.permute.xlu0 0
      %1751 = vperm.xlu0 %1750, %v1541
      %v1752 = vpop.permute.xlu0 %1751
      %v1755 = vunpack.c.l.s4 839922192
      %v1756 = vunpack.c.0.s8 %v1755
      %v1757 = vlaneseq
      %v1758 = vshrl.u32 %v1757, 7
      %v1759 = vsub.s32 %v1756, %v1758
      %v1760 = vrot.slane %v1752, %v1759
      %1762 = vset.pattern.permute.xlu0 0
      %1763 = vperm.xlu0 %1762, %v1542
      %v1764 = vpop.permute.xlu0 %1763
      %v1767 = vunpack.c.l.s4 839922192
      %v1768 = vunpack.c.0.s8 %v1767
      %v1769 = vlaneseq
      %v1770 = vshrl.u32 %v1769, 7
      %v1771 = vsub.s32 %v1768, %v1770
      %v1772 = vrot.slane %v1764, %v1771
      %1774 = vset.pattern.permute.xlu0 0
      %1775 = vperm.xlu0 %1774, %v1543
      %v1776 = vpop.permute.xlu0 %1775
      %v1779 = vunpack.c.l.s4 839922192
      %v1780 = vunpack.c.0.s8 %v1779
      %v1781 = vlaneseq
      %v1782 = vshrl.u32 %v1781, 7
      %v1783 = vsub.s32 %v1780, %v1782
      %v1784 = vrot.slane %v1776, %v1783
      %1786 = vset.pattern.permute.xlu0 0
      %1787 = vperm.xlu0 %1786, %v1544
      %v1788 = vpop.permute.xlu0 %1787
      %v1791 = vunpack.c.l.s4 839922192
      %v1792 = vunpack.c.0.s8 %v1791
      %v1793 = vlaneseq
      %v1794 = vshrl.u32 %v1793, 7
      %v1795 = vsub.s32 %v1792, %v1794
      %v1796 = vrot.slane %v1788, %v1795
      %1798 = vset.pattern.permute.xlu0 0
      %1799 = vperm.xlu0 %1798, %v1545
      %v1800 = vpop.permute.xlu0 %1799
      %v1803 = vunpack.c.l.s4 839922192
      %v1804 = vunpack.c.0.s8 %v1803
      %v1805 = vlaneseq
      %v1806 = vshrl.u32 %v1805, 7
      %v1807 = vsub.s32 %v1804, %v1806
      %v1808 = vrot.slane %v1800, %v1807
      %1810 = vset.pattern.permute.xlu0 0
      %1811 = vperm.xlu0 %1810, %v1546
      %v1812 = vpop.permute.xlu0 %1811
      %v1815 = vunpack.c.l.s4 839922192
      %v1816 = vunpack.c.0.s8 %v1815
      %v1817 = vlaneseq
      %v1818 = vshrl.u32 %v1817, 7
      %v1819 = vsub.s32 %v1816, %v1818
      %v1820 = vrot.slane %v1812, %v1819
      %1822 = vset.pattern.permute.xlu0 0
      %1823 = vperm.xlu0 %1822, %v1547
      %v1824 = vpop.permute.xlu0 %1823
      %v1827 = vunpack.c.l.s4 839922192
      %v1828 = vunpack.c.0.s8 %v1827
      %v1829 = vlaneseq
      %v1830 = vshrl.u32 %v1829, 7
      %v1831 = vsub.s32 %v1828, %v1830
      %v1832 = vrot.slane %v1824, %v1831
      %1834 = vset.pattern.permute.xlu0 0
      %1835 = vperm.xlu0 %1834, %v1548
      %v1836 = vpop.permute.xlu0 %1835
      %v1839 = vunpack.c.l.s4 839922192
      %v1840 = vunpack.c.0.s8 %v1839
      %v1841 = vlaneseq
      %v1842 = vshrl.u32 %v1841, 7
      %v1843 = vsub.s32 %v1840, %v1842
      %v1844 = vrot.slane %v1836, %v1843
      %1846 = vset.pattern.permute.xlu0 0
      %1847 = vperm.xlu0 %1846, %v1549
      %v1848 = vpop.permute.xlu0 %1847
      %v1851 = vunpack.c.l.s4 839922192
      %v1852 = vunpack.c.0.s8 %v1851
      %v1853 = vlaneseq
      %v1854 = vshrl.u32 %v1853, 7
      %v1855 = vsub.s32 %v1852, %v1854
      %v1856 = vrot.slane %v1848, %v1855
      %1858 = vset.pattern.permute.xlu0 0
      %1859 = vperm.xlu0 %1858, %v1550
      %v1860 = vpop.permute.xlu0 %1859
      %v1863 = vunpack.c.l.s4 839922192
      %v1864 = vunpack.c.0.s8 %v1863
      %v1865 = vlaneseq
      %v1866 = vshrl.u32 %v1865, 7
      %v1867 = vsub.s32 %v1864, %v1866
      %v1868 = vrot.slane %v1860, %v1867
      %1870 = vset.pattern.permute.xlu0 0
      %1871 = vperm.xlu0 %1870, %v1551
      %v1872 = vpop.permute.xlu0 %1871
      %v1875 = vunpack.c.l.s4 839922192
      %v1876 = vunpack.c.0.s8 %v1875
      %v1877 = vlaneseq
      %v1878 = vshrl.u32 %v1877, 7
      %v1879 = vsub.s32 %v1876, %v1878
      %v1880 = vrot.slane %v1872, %v1879
      %1882 = vset.pattern.permute.xlu0 0
      %1883 = vperm.xlu0 %1882, %v1552
      %v1884 = vpop.permute.xlu0 %1883
      %v1887 = vunpack.c.l.s4 839922192
      %v1888 = vunpack.c.0.s8 %v1887
      %v1889 = vlaneseq
      %v1890 = vshrl.u32 %v1889, 7
      %v1891 = vsub.s32 %v1888, %v1890
      %v1892 = vrot.slane %v1884, %v1891
      %1894 = vset.pattern.permute.xlu0 0
      %1895 = vperm.xlu0 %1894, %v1553
      %v1896 = vpop.permute.xlu0 %1895
      %v1899 = vunpack.c.l.s4 839922192
      %v1900 = vunpack.c.0.s8 %v1899
      %v1901 = vlaneseq
      %v1902 = vshrl.u32 %v1901, 7
      %v1903 = vsub.s32 %v1900, %v1902
      %v1904 = vrot.slane %v1896, %v1903
      %1906 = vset.pattern.permute.xlu0 0
      %1907 = vperm.xlu0 %1906, %v1554
      %v1908 = vpop.permute.xlu0 %1907
      %v1911 = vunpack.c.l.s4 839922192
      %v1912 = vunpack.c.0.s8 %v1911
      %v1913 = vlaneseq
      %v1914 = vshrl.u32 %v1913, 7
      %v1915 = vsub.s32 %v1912, %v1914
      %v1916 = vrot.slane %v1908, %v1915
      %1918 = vset.pattern.permute.xlu0 0
      %1919 = vperm.xlu0 %1918, %v1555
      %v1920 = vpop.permute.xlu0 %1919
      %v1923 = vunpack.c.l.s4 839922192
      %v1924 = vunpack.c.0.s8 %v1923
      %v1925 = vlaneseq
      %v1926 = vshrl.u32 %v1925, 7
      %v1927 = vsub.s32 %v1924, %v1926
      %v1928 = vrot.slane %v1920, %v1927
      %1930 = vset.pattern.permute.xlu0 0
      %1931 = vperm.xlu0 %1930, %v1556
      %v1932 = vpop.permute.xlu0 %1931
      %v1935 = vunpack.c.l.s4 839922192
      %v1936 = vunpack.c.0.s8 %v1935
      %v1937 = vlaneseq
      %v1938 = vshrl.u32 %v1937, 7
      %v1939 = vsub.s32 %v1936, %v1938
      %v1940 = vrot.slane %v1932, %v1939
      %v1941 = vmul.bf16 %v1493, %v1568
      %v1942 = vmul.bf16 %v1494, %v1580
      %v1943 = vmul.bf16 %v1495, %v1592
      %v1944 = vmul.bf16 %v1496, %v1604
      %v1945 = vmul.bf16 %v1497, %v1616
      %v1946 = vmul.bf16 %v1498, %v1628
      %v1947 = vmul.bf16 %v1499, %v1640
      %v1948 = vmul.bf16 %v1500, %v1652
      %v1949 = vmul.bf16 %v1501, %v1664
      %v1950 = vmul.bf16 %v1502, %v1676
      %v1951 = vmul.bf16 %v1503, %v1688
      %v1952 = vmul.bf16 %v1504, %v1700
      %v1953 = vmul.bf16 %v1505, %v1712
      %v1954 = vmul.bf16 %v1506, %v1724
      %v1955 = vmul.bf16 %v1507, %v1736
      %v1956 = vmul.bf16 %v1508, %v1748
      %v1957 = vmul.bf16 %v1509, %v1760
      %v1958 = vmul.bf16 %v1510, %v1772
      %v1959 = vmul.bf16 %v1511, %v1784
      %v1960 = vmul.bf16 %v1512, %v1796
      %v1961 = vmul.bf16 %v1513, %v1808
      %v1962 = vmul.bf16 %v1514, %v1820
      %v1963 = vmul.bf16 %v1515, %v1832
      %v1964 = vmul.bf16 %v1516, %v1844
      %v1965 = vmul.bf16 %v1517, %v1856
      %v1966 = vmul.bf16 %v1518, %v1868
      %v1967 = vmul.bf16 %v1519, %v1880
      %v1968 = vmul.bf16 %v1520, %v1892
      %v1969 = vmul.bf16 %v1521, %v1904
      %v1970 = vmul.bf16 %v1522, %v1916
      %v1971 = vmul.bf16 %v1523, %v1928
      %v1972 = vmul.bf16 %v1524, %v1940
      %s1973 = scalar_lea.vmem %s2, 64
      %v1974 = vld [vmem:[%s1973] sm:$0xf]
      %v1975 = vld [vmem:[%s1973 + $0x4] sm:$0xf]
      %v1976 = vld [vmem:[%s1973 + $0x8] sm:$0xf]
      %v1977 = vld [vmem:[%s1973 + $0xc] sm:$0xf]
      %v1978 = vld [vmem:[%s1973 + $0x10] sm:$0xf]
      %v1979 = vld [vmem:[%s1973 + $0x14] sm:$0xf]
      %v1980 = vld [vmem:[%s1973 + $0x18] sm:$0xf]
      %v1981 = vld [vmem:[%s1973 + $0x1c] sm:$0xf]
      %v2014 = vunpack.c.l.b16 %v1941
      %v2015 = vunpack.c.l.b16 %v1942
      %v2016 = vunpack.c.l.b16 %v1943
      %v2017 = vunpack.c.l.b16 %v1944
      %v2018 = vunpack.c.l.b16 %v1945
      %v2019 = vunpack.c.l.b16 %v1946
      %v2020 = vunpack.c.l.b16 %v1947
      %v2021 = vunpack.c.l.b16 %v1948
      %v2022 = vunpack.c.l.b16 %v1949
      %v2023 = vunpack.c.l.b16 %v1950
      %v2024 = vunpack.c.l.b16 %v1951
      %v2025 = vunpack.c.l.b16 %v1952
      %v2026 = vunpack.c.l.b16 %v1953
      %v2027 = vunpack.c.l.b16 %v1954
      %v2028 = vunpack.c.l.b16 %v1955
      %v2029 = vunpack.c.l.b16 %v1956
      %v2030 = vunpack.c.l.b16 %v1957
      %v2031 = vunpack.c.l.b16 %v1958
      %v2032 = vunpack.c.l.b16 %v1959
      %v2033 = vunpack.c.l.b16 %v1960
      %v2034 = vunpack.c.l.b16 %v1961
      %v2035 = vunpack.c.l.b16 %v1962
      %v2036 = vunpack.c.l.b16 %v1963
      %v2037 = vunpack.c.l.b16 %v1964
      %v2038 = vunpack.c.l.b16 %v1965
      %v2039 = vunpack.c.l.b16 %v1966
      %v2040 = vunpack.c.l.b16 %v1967
      %v2041 = vunpack.c.l.b16 %v1968
      %v2042 = vunpack.c.l.b16 %v1969
      %v2043 = vunpack.c.l.b16 %v1970
      %v2044 = vunpack.c.l.b16 %v1971
      %v2045 = vunpack.c.l.b16 %v1972
      %v2046 = vpack.c.b16 %v2015, %v2014
      %v2047 = vpack.c.b16 %v2017, %v2016
      %v2048 = vpack.c.b16 %v2019, %v2018
      %v2049 = vpack.c.b16 %v2021, %v2020
      %v2050 = vpack.c.b16 %v2023, %v2022
      %v2051 = vpack.c.b16 %v2025, %v2024
      %v2052 = vpack.c.b16 %v2027, %v2026
      %v2053 = vpack.c.b16 %v2029, %v2028
      %v2054 = vpack.c.b16 %v2031, %v2030
      %v2055 = vpack.c.b16 %v2033, %v2032
      %v2056 = vpack.c.b16 %v2035, %v2034
      %v2057 = vpack.c.b16 %v2037, %v2036
      %v2058 = vpack.c.b16 %v2039, %v2038
      %v2059 = vpack.c.b16 %v2041, %v2040
      %v2060 = vpack.c.b16 %v2043, %v2042
      %v2061 = vpack.c.b16 %v2045, %v2044
      %v2070 = vunpack.c.l.b16 %v1974
      %v2071 = vunpack.c.l.b16 %v1975
      %v2072 = vunpack.c.l.b16 %v1976
      %v2073 = vunpack.c.l.b16 %v1977
      %v2074 = vunpack.c.l.b16 %v1978
      %v2075 = vunpack.c.l.b16 %v1979
      %v2076 = vunpack.c.l.b16 %v1980
      %v2077 = vunpack.c.l.b16 %v1981
      %v2078 = vpack.c.b16 %v2071, %v2070
      %v2079 = vpack.c.b16 %v2073, %v2072
      %v2080 = vpack.c.b16 %v2075, %v2074
      %v2081 = vpack.c.b16 %v2077, %v2076
      %v2087 = vsel %vm970, %v2046, 0
      %v2090 = vsel %vm970, %v2047, 0
      %v2093 = vsel %vm970, %v2048, 0
      %v2096 = vsel %vm970, %v2049, 0
      %v2099 = vsel %vm970, %v2050, 0
      %v2102 = vsel %vm970, %v2051, 0
      %v2105 = vsel %vm970, %v2052, 0
      %v2108 = vsel %vm970, %v2053, 0
      %v2111 = vsel %vm970, %v2054, 0
      %v2114 = vsel %vm970, %v2055, 0
      %v2117 = vsel %vm970, %v2056, 0
      %v2120 = vsel %vm970, %v2057, 0
      %v2123 = vsel %vm970, %v2058, 0
      %v2126 = vsel %vm970, %v2059, 0
      %v2129 = vsel %vm970, %v2060, 0
      %v2132 = vsel %vm970, %v2061, 0
      %2134 = vmatprep.subr.bf16.mxu0 0
      %2135 = vmatpush1.bf16.msra.mxu0 0
      %2136 = vmatprep.subr.bf16.mxu0 0
      %2137 = vmatpush1.bf16.msra.mxu0 0
      %2138 = vmatprep.subr.bf16.mxu0 0
      %2139 = vmatpush1.bf16.msra.mxu0 0
      %2140 = vmatprep.subr.bf16.mxu0 0
      %2141 = vmatpush1.bf16.msra.mxu0 0
      %2142 = vmatprep.subr.bf16.mxu0 0
      %2143 = vmatpush1.bf16.msra.mxu0 %v2081
      %2144 = vmatprep.subr.bf16.mxu0 0
      %2145 = vmatpush1.bf16.msra.mxu0 %v2080
      %2146 = vmatprep.subr.bf16.mxu0 0
      %2147 = vmatpush1.bf16.msra.mxu0 %v2079
      %2148 = vmatprep.subr.bf16.mxu0 0
      %2149 = vmatpush1.bf16.msra.mxu0 %v2078
      %2150 = vmatprep.subr.bf16.mxu0 0
      %2151 = vmatpush2.bf16.msra.mxu0 0
      %2152 = vmatprep.subr.bf16.mxu0 0
      %2153 = vmatpush2.bf16.msra.mxu0 0
      %2154 = vmatprep.subr.bf16.mxu0 0
      %2155 = vmatpush2.bf16.msra.mxu0 0
      %2156 = vmatprep.subr.bf16.mxu0 0
      %2157 = vmatpush2.bf16.msra.mxu0 0
      %2158 = vmatprep.subr.bf16.mxu0 0
      %2159 = vmatpush2.bf16.msra.mxu0 0
      %2160 = vmatprep.subr.bf16.mxu0 0
      %2161 = vmatpush2.bf16.msra.mxu0 0
      %2162 = vmatprep.subr.bf16.mxu0 0
      %2163 = vmatpush2.bf16.msra.mxu0 0
      %2164 = vmatprep.subr.bf16.mxu0 0
      %2165 = vmatpush2.bf16.msra.mxu0 0
      %2166 = vmatprep.mubr.bf16.mxu0 0
      %2167 = vmatmul.mubr.bf16.gmra.mxu0 %v2087
      %v2168 = vpop.f32.mrf.mxu0
      %v2169 = vadd.f32 0.0, %v2168
      %v2170 = vpop.f32.mrf.mxu0
      %v2171 = vpop.f32.mrf.mxu0
      %v2172 = vadd.f32 0.0, %v2171
      %v2173 = vpop.f32.mrf.mxu0
      %2174 = vmatprep.mubr.bf16.mxu0 0
      %2175 = vmatmul.mubr.bf16.gmra.mxu0 %v2090
      %v2176 = vpop.f32.mrf.mxu0
      %v2177 = vadd.f32 0.0, %v2176
      %v2178 = vpop.f32.mrf.mxu0
      %v2179 = vpop.f32.mrf.mxu0
      %v2180 = vadd.f32 0.0, %v2179
      %v2181 = vpop.f32.mrf.mxu0
      %2182 = vmatprep.mubr.bf16.mxu0 0
      %2183 = vmatmul.mubr.bf16.gmra.mxu0 %v2093
      %v2184 = vpop.f32.mrf.mxu0
      %v2185 = vadd.f32 0.0, %v2184
      %v2186 = vpop.f32.mrf.mxu0
      %v2187 = vpop.f32.mrf.mxu0
      %v2188 = vadd.f32 0.0, %v2187
      %v2189 = vpop.f32.mrf.mxu0
      %2190 = vmatprep.mubr.bf16.mxu0 0
      %2191 = vmatmul.mubr.bf16.gmra.mxu0 %v2096
      %v2192 = vpop.f32.mrf.mxu0
      %v2193 = vadd.f32 0.0, %v2192
      %v2194 = vpop.f32.mrf.mxu0
      %v2195 = vpop.f32.mrf.mxu0
      %v2196 = vadd.f32 0.0, %v2195
      %v2197 = vpop.f32.mrf.mxu0
      %2198 = vmatprep.mubr.bf16.mxu0 0
      %2199 = vmatmul.mubr.bf16.gmra.mxu0 %v2099
      %v2200 = vpop.f32.mrf.mxu0
      %v2201 = vadd.f32 0.0, %v2200
      %v2202 = vpop.f32.mrf.mxu0
      %v2203 = vpop.f32.mrf.mxu0
      %v2204 = vadd.f32 0.0, %v2203
      %v2205 = vpop.f32.mrf.mxu0
      %2206 = vmatprep.mubr.bf16.mxu0 0
      %2207 = vmatmul.mubr.bf16.gmra.mxu0 %v2102
      %v2208 = vpop.f32.mrf.mxu0
      %v2209 = vadd.f32 0.0, %v2208
      %v2210 = vpop.f32.mrf.mxu0
      %v2211 = vpop.f32.mrf.mxu0
      %v2212 = vadd.f32 0.0, %v2211
      %v2213 = vpop.f32.mrf.mxu0
      %2214 = vmatprep.mubr.bf16.mxu0 0
      %2215 = vmatmul.mubr.bf16.gmra.mxu0 %v2105
      %v2216 = vpop.f32.mrf.mxu0
      %v2217 = vadd.f32 0.0, %v2216
      %v2218 = vpop.f32.mrf.mxu0
      %v2219 = vpop.f32.mrf.mxu0
      %v2220 = vadd.f32 0.0, %v2219
      %v2221 = vpop.f32.mrf.mxu0
      %2222 = vmatprep.mubr.bf16.mxu0 0
      %2223 = vmatmul.mubr.bf16.gmra.mxu0 %v2108
      %v2224 = vpop.f32.mrf.mxu0
      %v2225 = vadd.f32 0.0, %v2224
      %v2226 = vpop.f32.mrf.mxu0
      %v2227 = vpop.f32.mrf.mxu0
      %v2228 = vadd.f32 0.0, %v2227
      %v2229 = vpop.f32.mrf.mxu0
      %2230 = vmatprep.mubr.bf16.mxu0 0
      %2231 = vmatmul.mubr.bf16.gmra.mxu0 %v2111
      %v2232 = vpop.f32.mrf.mxu0
      %v2233 = vadd.f32 0.0, %v2232
      %v2234 = vpop.f32.mrf.mxu0
      %v2235 = vpop.f32.mrf.mxu0
      %v2236 = vadd.f32 0.0, %v2235
      %v2237 = vpop.f32.mrf.mxu0
      %2238 = vmatprep.mubr.bf16.mxu0 0
      %2239 = vmatmul.mubr.bf16.gmra.mxu0 %v2114
      %v2240 = vpop.f32.mrf.mxu0
      %v2241 = vadd.f32 0.0, %v2240
      %v2242 = vpop.f32.mrf.mxu0
      %v2243 = vpop.f32.mrf.mxu0
      %v2244 = vadd.f32 0.0, %v2243
      %v2245 = vpop.f32.mrf.mxu0
      %2246 = vmatprep.mubr.bf16.mxu0 0
      %2247 = vmatmul.mubr.bf16.gmra.mxu0 %v2117
      %v2248 = vpop.f32.mrf.mxu0
      %v2249 = vadd.f32 0.0, %v2248
      %v2250 = vpop.f32.mrf.mxu0
      %v2251 = vpop.f32.mrf.mxu0
      %v2252 = vadd.f32 0.0, %v2251
      %v2253 = vpop.f32.mrf.mxu0
      %2254 = vmatprep.mubr.bf16.mxu0 0
      %2255 = vmatmul.mubr.bf16.gmra.mxu0 %v2120
      %v2256 = vpop.f32.mrf.mxu0
      %v2257 = vadd.f32 0.0, %v2256
      %v2258 = vpop.f32.mrf.mxu0
      %v2259 = vpop.f32.mrf.mxu0
      %v2260 = vadd.f32 0.0, %v2259
      %v2261 = vpop.f32.mrf.mxu0
      %2262 = vmatprep.mubr.bf16.mxu0 0
      %2263 = vmatmul.mubr.bf16.gmra.mxu0 %v2123
      %v2264 = vpop.f32.mrf.mxu0
      %v2265 = vadd.f32 0.0, %v2264
      %v2266 = vpop.f32.mrf.mxu0
      %v2267 = vpop.f32.mrf.mxu0
      %v2268 = vadd.f32 0.0, %v2267
      %v2269 = vpop.f32.mrf.mxu0
      %2270 = vmatprep.mubr.bf16.mxu0 0
      %2271 = vmatmul.mubr.bf16.gmra.mxu0 %v2126
      %v2272 = vpop.f32.mrf.mxu0
      %v2273 = vadd.f32 0.0, %v2272
      %v2274 = vpop.f32.mrf.mxu0
      %v2275 = vpop.f32.mrf.mxu0
      %v2276 = vadd.f32 0.0, %v2275
      %v2277 = vpop.f32.mrf.mxu0
      %2278 = vmatprep.mubr.bf16.mxu0 0
      %2279 = vmatmul.mubr.bf16.gmra.mxu0 %v2129
      %v2280 = vpop.f32.mrf.mxu0
      %v2281 = vadd.f32 0.0, %v2280
      %v2282 = vpop.f32.mrf.mxu0
      %v2283 = vpop.f32.mrf.mxu0
      %v2284 = vadd.f32 0.0, %v2283
      %v2285 = vpop.f32.mrf.mxu0
      %2286 = vmatprep.mubr.bf16.mxu0 0
      %2287 = vmatmul.mubr.bf16.gmra.mxu0 %v2132
      %v2288 = vpop.f32.mrf.mxu0
      %v2289 = vadd.f32 0.0, %v2288
      %v2290 = vpop.f32.mrf.mxu0
      %v2291 = vpop.f32.mrf.mxu0
      %v2292 = vadd.f32 0.0, %v2291
      %v2293 = vpop.f32.mrf.mxu0
      %2294 = vdwg.mxu0
      %v2295 = vadd.f32 %v1367, %v2169
      %v2296 = vadd.f32 %v1370, %v2172
      %v2297 = vadd.f32 %v1375, %v2177
      %v2298 = vadd.f32 %v1378, %v2180
      %v2299 = vadd.f32 %v1383, %v2185
      %v2300 = vadd.f32 %v1386, %v2188
      %v2301 = vadd.f32 %v1391, %v2193
      %v2302 = vadd.f32 %v1394, %v2196
      %v2303 = vadd.f32 %v1399, %v2201
      %v2304 = vadd.f32 %v1402, %v2204
      %v2305 = vadd.f32 %v1407, %v2209
      %v2306 = vadd.f32 %v1410, %v2212
      %v2307 = vadd.f32 %v1415, %v2217
      %v2308 = vadd.f32 %v1418, %v2220
      %v2309 = vadd.f32 %v1423, %v2225
      %v2310 = vadd.f32 %v1426, %v2228
      %v2311 = vadd.f32 %v1431, %v2233
      %v2312 = vadd.f32 %v1434, %v2236
      %v2313 = vadd.f32 %v1439, %v2241
      %v2314 = vadd.f32 %v1442, %v2244
      %v2315 = vadd.f32 %v1447, %v2249
      %v2316 = vadd.f32 %v1450, %v2252
      %v2317 = vadd.f32 %v1455, %v2257
      %v2318 = vadd.f32 %v1458, %v2260
      %v2319 = vadd.f32 %v1463, %v2265
      %v2320 = vadd.f32 %v1466, %v2268
      %v2321 = vadd.f32 %v1471, %v2273
      %v2322 = vadd.f32 %v1474, %v2276
      %v2323 = vadd.f32 %v1479, %v2281
      %v2324 = vadd.f32 %v1482, %v2284
      %v2325 = vadd.f32 %v1487, %v2289
      %v2326 = vadd.f32 %v1490, %v2292
      %v2327 = vld [vmem:[%s192 + $0x8] sm:$0xf]
      %v2328 = vld [vmem:[%s192 + $0xc] sm:$0xf]
      %v2329 = vld [vmem:[%s192 + $0x10] sm:$0xf]
      %v2330 = vld [vmem:[%s192 + $0x14] sm:$0xf]
      %v2331 = vld [vmem:[%s192 + $0x18] sm:$0xf]
      %v2332 = vld [vmem:[%s192 + $0x1c] sm:$0xf]
      %v2333 = vld [vmem:[%s192 + $0x20] sm:$0xf]
      %v2334 = vld [vmem:[%s192 + $0x24] sm:$0xf]
      %v2335 = vld [vmem:[%s192 + $0x28] sm:$0xf]
      %v2336 = vld [vmem:[%s192 + $0x2c] sm:$0xf]
      %v2337 = vld [vmem:[%s192 + $0x30] sm:$0xf]
      %v2338 = vld [vmem:[%s192 + $0x34] sm:$0xf]
      %v2339 = vld [vmem:[%s192 + $0x38] sm:$0xf]
      %v2340 = vld [vmem:[%s192 + $0x3c] sm:$0xf]
      %v2341 = vld [vmem:[%s192 + $0x40] sm:$0xf]
      %v2342 = vld [vmem:[%s192 + $0x44] sm:$0xf]
      %v2343 = vld [vmem:[%s192 + $0x48] sm:$0xf]
      %v2344 = vld [vmem:[%s192 + $0x4c] sm:$0xf]
      %v2345 = vld [vmem:[%s192 + $0x50] sm:$0xf]
      %v2346 = vld [vmem:[%s192 + $0x54] sm:$0xf]
      %v2347 = vld [vmem:[%s192 + $0x58] sm:$0xf]
      %v2348 = vld [vmem:[%s192 + $0x5c] sm:$0xf]
      %v2349 = vld [vmem:[%s192 + $0x60] sm:$0xf]
      %v2350 = vld [vmem:[%s192 + $0x64] sm:$0xf]
      %v2351 = vld [vmem:[%s192 + $0x68] sm:$0xf]
      %v2352 = vld [vmem:[%s192 + $0x6c] sm:$0xf]
      %v2353 = vld [vmem:[%s192 + $0x70] sm:$0xf]
      %v2354 = vld [vmem:[%s192 + $0x74] sm:$0xf]
      %v2355 = vld [vmem:[%s192 + $0x78] sm:$0xf]
      %v2356 = vld [vmem:[%s192 + $0x7c] sm:$0xf]
      %v2357 = vld [vmem:[%s192 + $0x80] sm:$0xf]
      %v2358 = vld [vmem:[%s192 + $0x84] sm:$0xf]
      %v2359 = vld [vmem:[%s192 + $0x88] sm:$0x1]
      %s2360 = scalar_lea.vmem %s2, 96
      %v2361 = vld [vmem:[%s2360] sm:$0xf]
      %v2362 = vld [vmem:[%s2360 + $0x4] sm:$0xf]
      %v2363 = vld [vmem:[%s2360 + $0x8] sm:$0xf]
      %v2364 = vld [vmem:[%s2360 + $0xc] sm:$0xf]
      %v2365 = vld [vmem:[%s2360 + $0x10] sm:$0xf]
      %v2366 = vld [vmem:[%s2360 + $0x14] sm:$0xf]
      %v2367 = vld [vmem:[%s2360 + $0x18] sm:$0xf]
      %v2368 = vld [vmem:[%s2360 + $0x1c] sm:$0xf]
      %v2402 = vunpack.c.l.b16 %v2327
      %v2403 = vunpack.c.l.b16 %v2328
      %v2404 = vunpack.c.l.b16 %v2329
      %v2405 = vunpack.c.l.b16 %v2330
      %v2406 = vunpack.c.l.b16 %v2331
      %v2407 = vunpack.c.l.b16 %v2332
      %v2408 = vunpack.c.l.b16 %v2333
      %v2409 = vunpack.c.l.b16 %v2334
      %v2410 = vunpack.c.l.b16 %v2335
      %v2411 = vunpack.c.l.b16 %v2336
      %v2412 = vunpack.c.l.b16 %v2337
      %v2413 = vunpack.c.l.b16 %v2338
      %v2414 = vunpack.c.l.b16 %v2339
      %v2415 = vunpack.c.l.b16 %v2340
      %v2416 = vunpack.c.l.b16 %v2341
      %v2417 = vunpack.c.l.b16 %v2342
      %v2418 = vunpack.c.l.b16 %v2343
      %v2419 = vunpack.c.l.b16 %v2344
      %v2420 = vunpack.c.l.b16 %v2345
      %v2421 = vunpack.c.l.b16 %v2346
      %v2422 = vunpack.c.l.b16 %v2347
      %v2423 = vunpack.c.l.b16 %v2348
      %v2424 = vunpack.c.l.b16 %v2349
      %v2425 = vunpack.c.l.b16 %v2350
      %v2426 = vunpack.c.l.b16 %v2351
      %v2427 = vunpack.c.l.b16 %v2352
      %v2428 = vunpack.c.l.b16 %v2353
      %v2429 = vunpack.c.l.b16 %v2354
      %v2430 = vunpack.c.l.b16 %v2355
      %v2431 = vunpack.c.l.b16 %v2356
      %v2432 = vunpack.c.l.b16 %v2357
      %v2433 = vunpack.c.l.b16 %v2358
      %v2434 = vunpack.c.l.b16 %v2359
      %v2435 = vpack.c.b16 %v2403, %v2402
      %v2436 = vpack.c.b16 %v2405, %v2404
      %v2437 = vpack.c.b16 %v2407, %v2406
      %v2438 = vpack.c.b16 %v2409, %v2408
      %v2439 = vpack.c.b16 %v2411, %v2410
      %v2440 = vpack.c.b16 %v2413, %v2412
      %v2441 = vpack.c.b16 %v2415, %v2414
      %v2442 = vpack.c.b16 %v2417, %v2416
      %v2443 = vpack.c.b16 %v2419, %v2418
      %v2444 = vpack.c.b16 %v2421, %v2420
      %v2445 = vpack.c.b16 %v2423, %v2422
      %v2446 = vpack.c.b16 %v2425, %v2424
      %v2447 = vpack.c.b16 %v2427, %v2426
      %v2448 = vpack.c.b16 %v2429, %v2428
      %v2449 = vpack.c.b16 %v2431, %v2430
      %v2450 = vpack.c.b16 %v2433, %v2432
      %v2451 = vpack.c.b16 %v2434, %v2434
      %v2453 = vshrl.u32 %v2435, 16
      %v2455 = vshll.u32 %v2435, 16
      %v2457 = vrot.slane %v2455, 1
      %v2458 = vor.u32 %v2453, %v2457
      %v2460 = vshll.u32 %v2436, 16
      %v2462 = vrot.slane %v2460, 1
      %v2463 = vsel %vm813, %v2458, %v2462
      %v2464 = vshrl.u32 %v2436, 16
      %v2466 = vor.u32 %v2464, %v2462
      %v2468 = vshll.u32 %v2437, 16
      %v2470 = vrot.slane %v2468, 1
      %v2471 = vsel %vm813, %v2466, %v2470
      %v2472 = vshrl.u32 %v2437, 16
      %v2474 = vor.u32 %v2472, %v2470
      %v2476 = vshll.u32 %v2438, 16
      %v2478 = vrot.slane %v2476, 1
      %v2479 = vsel %vm813, %v2474, %v2478
      %v2480 = vshrl.u32 %v2438, 16
      %v2482 = vor.u32 %v2480, %v2478
      %v2484 = vshll.u32 %v2439, 16
      %v2486 = vrot.slane %v2484, 1
      %v2487 = vsel %vm813, %v2482, %v2486
      %v2488 = vshrl.u32 %v2439, 16
      %v2490 = vor.u32 %v2488, %v2486
      %v2492 = vshll.u32 %v2440, 16
      %v2494 = vrot.slane %v2492, 1
      %v2495 = vsel %vm813, %v2490, %v2494
      %v2496 = vshrl.u32 %v2440, 16
      %v2498 = vor.u32 %v2496, %v2494
      %v2500 = vshll.u32 %v2441, 16
      %v2502 = vrot.slane %v2500, 1
      %v2503 = vsel %vm813, %v2498, %v2502
      %v2504 = vshrl.u32 %v2441, 16
      %v2506 = vor.u32 %v2504, %v2502
      %v2508 = vshll.u32 %v2442, 16
      %v2510 = vrot.slane %v2508, 1
      %v2511 = vsel %vm813, %v2506, %v2510
      %v2512 = vshrl.u32 %v2442, 16
      %v2514 = vor.u32 %v2512, %v2510
      %v2516 = vshll.u32 %v2443, 16
      %v2518 = vrot.slane %v2516, 1
      %v2519 = vsel %vm813, %v2514, %v2518
      %v2520 = vshrl.u32 %v2443, 16
      %v2522 = vor.u32 %v2520, %v2518
      %v2524 = vshll.u32 %v2444, 16
      %v2526 = vrot.slane %v2524, 1
      %v2527 = vsel %vm813, %v2522, %v2526
      %v2528 = vshrl.u32 %v2444, 16
      %v2530 = vor.u32 %v2528, %v2526
      %v2532 = vshll.u32 %v2445, 16
      %v2534 = vrot.slane %v2532, 1
      %v2535 = vsel %vm813, %v2530, %v2534
      %v2536 = vshrl.u32 %v2445, 16
      %v2538 = vor.u32 %v2536, %v2534
      %v2540 = vshll.u32 %v2446, 16
      %v2542 = vrot.slane %v2540, 1
      %v2543 = vsel %vm813, %v2538, %v2542
      %v2544 = vshrl.u32 %v2446, 16
      %v2546 = vor.u32 %v2544, %v2542
      %v2548 = vshll.u32 %v2447, 16
      %v2550 = vrot.slane %v2548, 1
      %v2551 = vsel %vm813, %v2546, %v2550
      %v2552 = vshrl.u32 %v2447, 16
      %v2554 = vor.u32 %v2552, %v2550
      %v2556 = vshll.u32 %v2448, 16
      %v2558 = vrot.slane %v2556, 1
      %v2559 = vsel %vm813, %v2554, %v2558
      %v2560 = vshrl.u32 %v2448, 16
      %v2562 = vor.u32 %v2560, %v2558
      %v2564 = vshll.u32 %v2449, 16
      %v2566 = vrot.slane %v2564, 1
      %v2567 = vsel %vm813, %v2562, %v2566
      %v2568 = vshrl.u32 %v2449, 16
      %v2570 = vor.u32 %v2568, %v2566
      %v2572 = vshll.u32 %v2450, 16
      %v2574 = vrot.slane %v2572, 1
      %v2575 = vsel %vm813, %v2570, %v2574
      %v2576 = vshrl.u32 %v2450, 16
      %v2578 = vor.u32 %v2576, %v2574
      %v2580 = vshll.u32 %v2451, 16
      %v2582 = vrot.slane %v2580, 1
      %v2583 = vsel %vm813, %v2578, %v2582
      %v2592 = vunpack.c.l.b16 %v2361
      %v2593 = vunpack.c.l.b16 %v2362
      %v2594 = vunpack.c.l.b16 %v2363
      %v2595 = vunpack.c.l.b16 %v2364
      %v2596 = vunpack.c.l.b16 %v2365
      %v2597 = vunpack.c.l.b16 %v2366
      %v2598 = vunpack.c.l.b16 %v2367
      %v2599 = vunpack.c.l.b16 %v2368
      %v2600 = vpack.c.b16 %v2593, %v2592
      %v2601 = vpack.c.b16 %v2595, %v2594
      %v2602 = vpack.c.b16 %v2597, %v2596
      %v2603 = vpack.c.b16 %v2599, %v2598
      %v2609 = vsel %vm970, %v2463, 0
      %v2612 = vsel %vm970, %v2471, 0
      %v2615 = vsel %vm970, %v2479, 0
      %v2618 = vsel %vm970, %v2487, 0
      %v2621 = vsel %vm970, %v2495, 0
      %v2624 = vsel %vm970, %v2503, 0
      %v2627 = vsel %vm970, %v2511, 0
      %v2630 = vsel %vm970, %v2519, 0
      %v2633 = vsel %vm970, %v2527, 0
      %v2636 = vsel %vm970, %v2535, 0
      %v2639 = vsel %vm970, %v2543, 0
      %v2642 = vsel %vm970, %v2551, 0
      %v2645 = vsel %vm970, %v2559, 0
      %v2648 = vsel %vm970, %v2567, 0
      %v2651 = vsel %vm970, %v2575, 0
      %v2654 = vsel %vm970, %v2583, 0
      %2656 = vmatprep.subr.bf16.mxu0 0
      %2657 = vmatpush1.bf16.msra.mxu0 0
      %2658 = vmatprep.subr.bf16.mxu0 0
      %2659 = vmatpush1.bf16.msra.mxu0 0
      %2660 = vmatprep.subr.bf16.mxu0 0
      %2661 = vmatpush1.bf16.msra.mxu0 0
      %2662 = vmatprep.subr.bf16.mxu0 0
      %2663 = vmatpush1.bf16.msra.mxu0 0
      %2664 = vmatprep.subr.bf16.mxu0 0
      %2665 = vmatpush1.bf16.msra.mxu0 %v2603
      %2666 = vmatprep.subr.bf16.mxu0 0
      %2667 = vmatpush1.bf16.msra.mxu0 %v2602
      %2668 = vmatprep.subr.bf16.mxu0 0
      %2669 = vmatpush1.bf16.msra.mxu0 %v2601
      %2670 = vmatprep.subr.bf16.mxu0 0
      %2671 = vmatpush1.bf16.msra.mxu0 %v2600
      %2672 = vmatprep.subr.bf16.mxu0 0
      %2673 = vmatpush2.bf16.msra.mxu0 0
      %2674 = vmatprep.subr.bf16.mxu0 0
      %2675 = vmatpush2.bf16.msra.mxu0 0
      %2676 = vmatprep.subr.bf16.mxu0 0
      %2677 = vmatpush2.bf16.msra.mxu0 0
      %2678 = vmatprep.subr.bf16.mxu0 0
      %2679 = vmatpush2.bf16.msra.mxu0 0
      %2680 = vmatprep.subr.bf16.mxu0 0
      %2681 = vmatpush2.bf16.msra.mxu0 0
      %2682 = vmatprep.subr.bf16.mxu0 0
      %2683 = vmatpush2.bf16.msra.mxu0 0
      %2684 = vmatprep.subr.bf16.mxu0 0
      %2685 = vmatpush2.bf16.msra.mxu0 0
      %2686 = vmatprep.subr.bf16.mxu0 0
      %2687 = vmatpush2.bf16.msra.mxu0 0
      %2688 = vmatprep.mubr.bf16.mxu0 0
      %2689 = vmatmul.mubr.bf16.gmra.mxu0 %v2609
      %v2690 = vpop.f32.mrf.mxu0
      %v2691 = vadd.f32 0.0, %v2690
      %v2692 = vpop.f32.mrf.mxu0
      %v2693 = vpop.f32.mrf.mxu0
      %v2694 = vadd.f32 0.0, %v2693
      %v2695 = vpop.f32.mrf.mxu0
      %2696 = vmatprep.mubr.bf16.mxu0 0
      %2697 = vmatmul.mubr.bf16.gmra.mxu0 %v2612
      %v2698 = vpop.f32.mrf.mxu0
      %v2699 = vadd.f32 0.0, %v2698
      %v2700 = vpop.f32.mrf.mxu0
      %v2701 = vpop.f32.mrf.mxu0
      %v2702 = vadd.f32 0.0, %v2701
      %v2703 = vpop.f32.mrf.mxu0
      %2704 = vmatprep.mubr.bf16.mxu0 0
      %2705 = vmatmul.mubr.bf16.gmra.mxu0 %v2615
      %v2706 = vpop.f32.mrf.mxu0
      %v2707 = vadd.f32 0.0, %v2706
      %v2708 = vpop.f32.mrf.mxu0
      %v2709 = vpop.f32.mrf.mxu0
      %v2710 = vadd.f32 0.0, %v2709
      %v2711 = vpop.f32.mrf.mxu0
      %2712 = vmatprep.mubr.bf16.mxu0 0
      %2713 = vmatmul.mubr.bf16.gmra.mxu0 %v2618
      %v2714 = vpop.f32.mrf.mxu0
      %v2715 = vadd.f32 0.0, %v2714
      %v2716 = vpop.f32.mrf.mxu0
      %v2717 = vpop.f32.mrf.mxu0
      %v2718 = vadd.f32 0.0, %v2717
      %v2719 = vpop.f32.mrf.mxu0
      %2720 = vmatprep.mubr.bf16.mxu0 0
      %2721 = vmatmul.mubr.bf16.gmra.mxu0 %v2621
      %v2722 = vpop.f32.mrf.mxu0
      %v2723 = vadd.f32 0.0, %v2722
      %v2724 = vpop.f32.mrf.mxu0
      %v2725 = vpop.f32.mrf.mxu0
      %v2726 = vadd.f32 0.0, %v2725
      %v2727 = vpop.f32.mrf.mxu0
      %2728 = vmatprep.mubr.bf16.mxu0 0
      %2729 = vmatmul.mubr.bf16.gmra.mxu0 %v2624
      %v2730 = vpop.f32.mrf.mxu0
      %v2731 = vadd.f32 0.0, %v2730
      %v2732 = vpop.f32.mrf.mxu0
      %v2733 = vpop.f32.mrf.mxu0
      %v2734 = vadd.f32 0.0, %v2733
      %v2735 = vpop.f32.mrf.mxu0
      %2736 = vmatprep.mubr.bf16.mxu0 0
      %2737 = vmatmul.mubr.bf16.gmra.mxu0 %v2627
      %v2738 = vpop.f32.mrf.mxu0
      %v2739 = vadd.f32 0.0, %v2738
      %v2740 = vpop.f32.mrf.mxu0
      %v2741 = vpop.f32.mrf.mxu0
      %v2742 = vadd.f32 0.0, %v2741
      %v2743 = vpop.f32.mrf.mxu0
      %2744 = vmatprep.mubr.bf16.mxu0 0
      %2745 = vmatmul.mubr.bf16.gmra.mxu0 %v2630
      %v2746 = vpop.f32.mrf.mxu0
      %v2747 = vadd.f32 0.0, %v2746
      %v2748 = vpop.f32.mrf.mxu0
      %v2749 = vpop.f32.mrf.mxu0
      %v2750 = vadd.f32 0.0, %v2749
      %v2751 = vpop.f32.mrf.mxu0
      %2752 = vmatprep.mubr.bf16.mxu0 0
      %2753 = vmatmul.mubr.bf16.gmra.mxu0 %v2633
      %v2754 = vpop.f32.mrf.mxu0
      %v2755 = vadd.f32 0.0, %v2754
      %v2756 = vpop.f32.mrf.mxu0
      %v2757 = vpop.f32.mrf.mxu0
      %v2758 = vadd.f32 0.0, %v2757
      %v2759 = vpop.f32.mrf.mxu0
      %2760 = vmatprep.mubr.bf16.mxu0 0
      %2761 = vmatmul.mubr.bf16.gmra.mxu0 %v2636
      %v2762 = vpop.f32.mrf.mxu0
      %v2763 = vadd.f32 0.0, %v2762
      %v2764 = vpop.f32.mrf.mxu0
      %v2765 = vpop.f32.mrf.mxu0
      %v2766 = vadd.f32 0.0, %v2765
      %v2767 = vpop.f32.mrf.mxu0
      %2768 = vmatprep.mubr.bf16.mxu0 0
      %2769 = vmatmul.mubr.bf16.gmra.mxu0 %v2639
      %v2770 = vpop.f32.mrf.mxu0
      %v2771 = vadd.f32 0.0, %v2770
      %v2772 = vpop.f32.mrf.mxu0
      %v2773 = vpop.f32.mrf.mxu0
      %v2774 = vadd.f32 0.0, %v2773
      %v2775 = vpop.f32.mrf.mxu0
      %2776 = vmatprep.mubr.bf16.mxu0 0
      %2777 = vmatmul.mubr.bf16.gmra.mxu0 %v2642
      %v2778 = vpop.f32.mrf.mxu0
      %v2779 = vadd.f32 0.0, %v2778
      %v2780 = vpop.f32.mrf.mxu0
      %v2781 = vpop.f32.mrf.mxu0
      %v2782 = vadd.f32 0.0, %v2781
      %v2783 = vpop.f32.mrf.mxu0
      %2784 = vmatprep.mubr.bf16.mxu0 0
      %2785 = vmatmul.mubr.bf16.gmra.mxu0 %v2645
      %v2786 = vpop.f32.mrf.mxu0
      %v2787 = vadd.f32 0.0, %v2786
      %v2788 = vpop.f32.mrf.mxu0
      %v2789 = vpop.f32.mrf.mxu0
      %v2790 = vadd.f32 0.0, %v2789
      %v2791 = vpop.f32.mrf.mxu0
      %2792 = vmatprep.mubr.bf16.mxu0 0
      %2793 = vmatmul.mubr.bf16.gmra.mxu0 %v2648
      %v2794 = vpop.f32.mrf.mxu0
      %v2795 = vadd.f32 0.0, %v2794
      %v2796 = vpop.f32.mrf.mxu0
      %v2797 = vpop.f32.mrf.mxu0
      %v2798 = vadd.f32 0.0, %v2797
      %v2799 = vpop.f32.mrf.mxu0
      %2800 = vmatprep.mubr.bf16.mxu0 0
      %2801 = vmatmul.mubr.bf16.gmra.mxu0 %v2651
      %v2802 = vpop.f32.mrf.mxu0
      %v2803 = vadd.f32 0.0, %v2802
      %v2804 = vpop.f32.mrf.mxu0
      %v2805 = vpop.f32.mrf.mxu0
      %v2806 = vadd.f32 0.0, %v2805
      %v2807 = vpop.f32.mrf.mxu0
      %2808 = vmatprep.mubr.bf16.mxu0 0
      %2809 = vmatmul.mubr.bf16.gmra.mxu0 %v2654
      %v2810 = vpop.f32.mrf.mxu0
      %v2811 = vadd.f32 0.0, %v2810
      %v2812 = vpop.f32.mrf.mxu0
      %v2813 = vpop.f32.mrf.mxu0
      %v2814 = vadd.f32 0.0, %v2813
      %v2815 = vpop.f32.mrf.mxu0
      %2816 = vdwg.mxu0
      %v2817 = vadd.f32 %v2295, %v2691
      %v2818 = vadd.f32 %v2296, %v2694
      %v2819 = vadd.f32 %v2297, %v2699
      %v2820 = vadd.f32 %v2298, %v2702
      %v2821 = vadd.f32 %v2299, %v2707
      %v2822 = vadd.f32 %v2300, %v2710
      %v2823 = vadd.f32 %v2301, %v2715
      %v2824 = vadd.f32 %v2302, %v2718
      %v2825 = vadd.f32 %v2303, %v2723
      %v2826 = vadd.f32 %v2304, %v2726
      %v2827 = vadd.f32 %v2305, %v2731
      %v2828 = vadd.f32 %v2306, %v2734
      %v2829 = vadd.f32 %v2307, %v2739
      %v2830 = vadd.f32 %v2308, %v2742
      %v2831 = vadd.f32 %v2309, %v2747
      %v2832 = vadd.f32 %v2310, %v2750
      %v2833 = vadd.f32 %v2311, %v2755
      %v2834 = vadd.f32 %v2312, %v2758
      %v2835 = vadd.f32 %v2313, %v2763
      %v2836 = vadd.f32 %v2314, %v2766
      %v2837 = vadd.f32 %v2315, %v2771
      %v2838 = vadd.f32 %v2316, %v2774
      %v2839 = vadd.f32 %v2317, %v2779
      %v2840 = vadd.f32 %v2318, %v2782
      %v2841 = vadd.f32 %v2319, %v2787
      %v2842 = vadd.f32 %v2320, %v2790
      %v2843 = vadd.f32 %v2321, %v2795
      %v2844 = vadd.f32 %v2322, %v2798
      %v2845 = vadd.f32 %v2323, %v2803
      %v2846 = vadd.f32 %v2324, %v2806
      %v2847 = vadd.f32 %v2325, %v2811
      %v2848 = vadd.f32 %v2326, %v2814
      %v2850 = vlaneseq
      %v2851 = vshrl.u32 %v2850, 7
      %v2852 = vsub.s32 0, %v2851
      %v2853 = vrot.slane %v199, %v2852
      %v2855 = vadd.f32 %v2817, %v2853
      %v2856 = vadd.f32 %v2818, %v2853
      %v2857 = vadd.f32 %v2819, %v2853
      %v2858 = vadd.f32 %v2820, %v2853
      %v2859 = vadd.f32 %v2821, %v2853
      %v2860 = vadd.f32 %v2822, %v2853
      %v2861 = vadd.f32 %v2823, %v2853
      %v2862 = vadd.f32 %v2824, %v2853
      %v2863 = vadd.f32 %v2825, %v2853
      %v2864 = vadd.f32 %v2826, %v2853
      %v2865 = vadd.f32 %v2827, %v2853
      %v2866 = vadd.f32 %v2828, %v2853
      %v2867 = vadd.f32 %v2829, %v2853
      %v2868 = vadd.f32 %v2830, %v2853
      %v2869 = vadd.f32 %v2831, %v2853
      %v2870 = vadd.f32 %v2832, %v2853
      %v2871 = vadd.f32 %v2833, %v2853
      %v2872 = vadd.f32 %v2834, %v2853
      %v2873 = vadd.f32 %v2835, %v2853
      %v2874 = vadd.f32 %v2836, %v2853
      %v2875 = vadd.f32 %v2837, %v2853
      %v2876 = vadd.f32 %v2838, %v2853
      %v2877 = vadd.f32 %v2839, %v2853
      %v2878 = vadd.f32 %v2840, %v2853
      %v2879 = vadd.f32 %v2841, %v2853
      %v2880 = vadd.f32 %v2842, %v2853
      %v2881 = vadd.f32 %v2843, %v2853
      %v2882 = vadd.f32 %v2844, %v2853
      %v2883 = vadd.f32 %v2845, %v2853
      %v2884 = vadd.f32 %v2846, %v2853
      %v2885 = vadd.f32 %v2847, %v2853
      %v2886 = vadd.f32 %v2848, %v2853
      %vm2887 = vcmask 261120
      %2888 = vst.msk [vmem:[%s197] sm:$0xff] %vm2887, %v2855
      %2889 = vst.msk [vmem:[%s197 + $0x8] sm:$0xff] %vm2887, %v2856
      %2890 = vst.msk [vmem:[%s197 + $0x10] sm:$0xff] %vm2887, %v2857
      %2891 = vst.msk [vmem:[%s197 + $0x18] sm:$0xff] %vm2887, %v2858
      %2892 = vst.msk [vmem:[%s197 + $0x20] sm:$0xff] %vm2887, %v2859
      %2893 = vst.msk [vmem:[%s197 + $0x28] sm:$0xff] %vm2887, %v2860
      %2894 = vst.msk [vmem:[%s197 + $0x30] sm:$0xff] %vm2887, %v2861
      %2895 = vst.msk [vmem:[%s197 + $0x38] sm:$0xff] %vm2887, %v2862
      %2896 = vst.msk [vmem:[%s197 + $0x40] sm:$0xff] %vm2887, %v2863
      %2897 = vst.msk [vmem:[%s197 + $0x48] sm:$0xff] %vm2887, %v2864
      %2898 = vst.msk [vmem:[%s197 + $0x50] sm:$0xff] %vm2887, %v2865
      %2899 = vst.msk [vmem:[%s197 + $0x58] sm:$0xff] %vm2887, %v2866
      %2900 = vst.msk [vmem:[%s197 + $0x60] sm:$0xff] %vm2887, %v2867
      %2901 = vst.msk [vmem:[%s197 + $0x68] sm:$0xff] %vm2887, %v2868
      %2902 = vst.msk [vmem:[%s197 + $0x70] sm:$0xff] %vm2887, %v2869
      %2903 = vst.msk [vmem:[%s197 + $0x78] sm:$0xff] %vm2887, %v2870
      %2904 = vst.msk [vmem:[%s197 + $0x80] sm:$0xff] %vm2887, %v2871
      %2905 = vst.msk [vmem:[%s197 + $0x88] sm:$0xff] %vm2887, %v2872
      %2906 = vst.msk [vmem:[%s197 + $0x90] sm:$0xff] %vm2887, %v2873
      %2907 = vst.msk [vmem:[%s197 + $0x98] sm:$0xff] %vm2887, %v2874
      %2908 = vst.msk [vmem:[%s197 + $0xa0] sm:$0xff] %vm2887, %v2875
      %2909 = vst.msk [vmem:[%s197 + $0xa8] sm:$0xff] %vm2887, %v2876
      %2910 = vst.msk [vmem:[%s197 + $0xb0] sm:$0xff] %vm2887, %v2877
      %2911 = vst.msk [vmem:[%s197 + $0xb8] sm:$0xff] %vm2887, %v2878
      %2912 = vst.msk [vmem:[%s197 + $0xc0] sm:$0xff] %vm2887, %v2879
      %2913 = vst.msk [vmem:[%s197 + $0xc8] sm:$0xff] %vm2887, %v2880
      %2914 = vst.msk [vmem:[%s197 + $0xd0] sm:$0xff] %vm2887, %v2881
      %2915 = vst.msk [vmem:[%s197 + $0xd8] sm:$0xff] %vm2887, %v2882
      %2916 = vst.msk [vmem:[%s197 + $0xe0] sm:$0xff] %vm2887, %v2883
      %2917 = vst.msk [vmem:[%s197 + $0xe8] sm:$0xff] %vm2887, %v2884
      %2918 = vst.msk [vmem:[%s197 + $0xf0] sm:$0xff] %vm2887, %v2885
      %2919 = vst.msk [vmem:[%s197 + $0xf8] sm:$0xff] %vm2887, %v2886
      %v2920 = vld [vmem:[%s192] sm:$0xf]
      %v2921 = vld [vmem:[%s192 + $0x4] sm:$0xf]
      %v2922 = vld [vmem:[%s192 + $0x8] sm:$0xf]
      %v2923 = vld [vmem:[%s192 + $0xc] sm:$0xf]
      %v2924 = vld [vmem:[%s192 + $0x10] sm:$0xf]
      %v2925 = vld [vmem:[%s192 + $0x14] sm:$0xf]
      %v2926 = vld [vmem:[%s192 + $0x18] sm:$0xf]
      %v2927 = vld [vmem:[%s192 + $0x1c] sm:$0xf]
      %v2928 = vld [vmem:[%s192 + $0x20] sm:$0xf]
      %v2929 = vld [vmem:[%s192 + $0x24] sm:$0xf]
      %v2930 = vld [vmem:[%s192 + $0x28] sm:$0xf]
      %v2931 = vld [vmem:[%s192 + $0x2c] sm:$0xf]
      %v2932 = vld [vmem:[%s192 + $0x30] sm:$0xf]
      %v2933 = vld [vmem:[%s192 + $0x34] sm:$0xf]
      %v2934 = vld [vmem:[%s192 + $0x38] sm:$0xf]
      %v2935 = vld [vmem:[%s192 + $0x3c] sm:$0xf]
      %v2936 = vld [vmem:[%s192 + $0x40] sm:$0xf]
      %v2937 = vld [vmem:[%s192 + $0x44] sm:$0xf]
      %v2938 = vld [vmem:[%s192 + $0x48] sm:$0xf]
      %v2939 = vld [vmem:[%s192 + $0x4c] sm:$0xf]
      %v2940 = vld [vmem:[%s192 + $0x50] sm:$0xf]
      %v2941 = vld [vmem:[%s192 + $0x54] sm:$0xf]
      %v2942 = vld [vmem:[%s192 + $0x58] sm:$0xf]
      %v2943 = vld [vmem:[%s192 + $0x5c] sm:$0xf]
      %v2944 = vld [vmem:[%s192 + $0x60] sm:$0xf]
      %v2945 = vld [vmem:[%s192 + $0x64] sm:$0xf]
      %v2946 = vld [vmem:[%s192 + $0x68] sm:$0xf]
      %v2947 = vld [vmem:[%s192 + $0x6c] sm:$0xf]
      %v2948 = vld [vmem:[%s192 + $0x70] sm:$0xf]
      %v2949 = vld [vmem:[%s192 + $0x74] sm:$0xf]
      %v2950 = vld [vmem:[%s192 + $0x78] sm:$0xf]
      %v2951 = vld [vmem:[%s192 + $0x7c] sm:$0xf]
      %v2952 = vld [vmem:[%s192 + $0x80] sm:$0x1]
      %s2953 = scalar_lea.vmem %s2, 128
      %v2954 = vld [vmem:[%s2953] sm:$0xf]
      %v2955 = vld [vmem:[%s2953 + $0x4] sm:$0xf]
      %v2956 = vld [vmem:[%s2953 + $0x8] sm:$0xf]
      %v2957 = vld [vmem:[%s2953 + $0xc] sm:$0xf]
      %v2958 = vld [vmem:[%s2953 + $0x10] sm:$0xf]
      %v2959 = vld [vmem:[%s2953 + $0x14] sm:$0xf]
      %v2960 = vld [vmem:[%s2953 + $0x18] sm:$0xf]
      %v2961 = vld [vmem:[%s2953 + $0x1c] sm:$0xf]
      %v2962 = vld [vmem:[%s192] sm:$0xe]
      %s2963 = scalar_lea.vmem %s1, 148
      %v2964 = vld [vmem:[%s2963] sm:$0xe]
      %v2965 = vld [vmem:[%s2963 + $0x4] sm:$0xf]
      %v2966 = vld [vmem:[%s2963 + $0x8] sm:$0xf]
      %v2967 = vld [vmem:[%s2963 + $0xc] sm:$0xf]
      %v2968 = vld [vmem:[%s2963 + $0x10] sm:$0xf]
      %v2969 = vld [vmem:[%s2963 + $0x14] sm:$0xf]
      %v2970 = vld [vmem:[%s2963 + $0x18] sm:$0xf]
      %v2971 = vld [vmem:[%s2963 + $0x1c] sm:$0xf]
      %v2972 = vld [vmem:[%s2963 + $0x20] sm:$0xf]
      %v2973 = vld [vmem:[%s2963 + $0x24] sm:$0xf]
      %v2974 = vld [vmem:[%s2963 + $0x28] sm:$0xf]
      %v2975 = vld [vmem:[%s2963 + $0x2c] sm:$0xf]
      %v2976 = vld [vmem:[%s2963 + $0x30] sm:$0xf]
      %v2977 = vld [vmem:[%s2963 + $0x34] sm:$0xf]
      %v2978 = vld [vmem:[%s2963 + $0x38] sm:$0xf]
      %v2979 = vld [vmem:[%s2963 + $0x3c] sm:$0xf]
      %v2980 = vld [vmem:[%s2963 + $0x40] sm:$0xf]
      %v2981 = vld [vmem:[%s2963 + $0x44] sm:$0xf]
      %v2982 = vld [vmem:[%s2963 + $0x48] sm:$0xf]
      %v2983 = vld [vmem:[%s2963 + $0x4c] sm:$0xf]
      %v2984 = vld [vmem:[%s2963 + $0x50] sm:$0xf]
      %v2985 = vld [vmem:[%s2963 + $0x54] sm:$0xf]
      %v2986 = vld [vmem:[%s2963 + $0x58] sm:$0xf]
      %v2987 = vld [vmem:[%s2963 + $0x5c] sm:$0xf]
      %v2988 = vld [vmem:[%s2963 + $0x60] sm:$0xf]
      %v2989 = vld [vmem:[%s2963 + $0x64] sm:$0xf]
      %v2990 = vld [vmem:[%s2963 + $0x68] sm:$0xf]
      %v2991 = vld [vmem:[%s2963 + $0x6c] sm:$0xf]
      %v2992 = vld [vmem:[%s2963 + $0x70] sm:$0xf]
      %v2993 = vld [vmem:[%s2963 + $0x74] sm:$0xf]
      %v2994 = vld [vmem:[%s2963 + $0x78] sm:$0xf]
      %v2995 = vld [vmem:[%s2963 + $0x7c] sm:$0xf]
      %v2996 = vld [vmem:[%s2963 + $0x80] sm:$0x1]
      %2998 = vset.pattern.permute.xlu0 0
      %2999 = vperm.xlu0 %2998, %v2964
      %v3000 = vpop.permute.xlu0 %2999
      %v3003 = vunpack.c.l.s4 839922192
      %v3004 = vunpack.c.0.s8 %v3003
      %v3005 = vlaneseq
      %v3006 = vshrl.u32 %v3005, 7
      %v3007 = vsub.s32 %v3004, %v3006
      %v3008 = vrot.slane %v3000, %v3007
      %3010 = vset.pattern.permute.xlu0 0
      %3011 = vperm.xlu0 %3010, %v2965
      %v3012 = vpop.permute.xlu0 %3011
      %v3015 = vunpack.c.l.s4 839922192
      %v3016 = vunpack.c.0.s8 %v3015
      %v3017 = vlaneseq
      %v3018 = vshrl.u32 %v3017, 7
      %v3019 = vsub.s32 %v3016, %v3018
      %v3020 = vrot.slane %v3012, %v3019
      %3022 = vset.pattern.permute.xlu0 0
      %3023 = vperm.xlu0 %3022, %v2966
      %v3024 = vpop.permute.xlu0 %3023
      %v3027 = vunpack.c.l.s4 839922192
      %v3028 = vunpack.c.0.s8 %v3027
      %v3029 = vlaneseq
      %v3030 = vshrl.u32 %v3029, 7
      %v3031 = vsub.s32 %v3028, %v3030
      %v3032 = vrot.slane %v3024, %v3031
      %3034 = vset.pattern.permute.xlu0 0
      %3035 = vperm.xlu0 %3034, %v2967
      %v3036 = vpop.permute.xlu0 %3035
      %v3039 = vunpack.c.l.s4 839922192
      %v3040 = vunpack.c.0.s8 %v3039
      %v3041 = vlaneseq
      %v3042 = vshrl.u32 %v3041, 7
      %v3043 = vsub.s32 %v3040, %v3042
      %v3044 = vrot.slane %v3036, %v3043
      %3046 = vset.pattern.permute.xlu0 0
      %3047 = vperm.xlu0 %3046, %v2968
      %v3048 = vpop.permute.xlu0 %3047
      %v3051 = vunpack.c.l.s4 839922192
      %v3052 = vunpack.c.0.s8 %v3051
      %v3053 = vlaneseq
      %v3054 = vshrl.u32 %v3053, 7
      %v3055 = vsub.s32 %v3052, %v3054
      %v3056 = vrot.slane %v3048, %v3055
      %3058 = vset.pattern.permute.xlu0 0
      %3059 = vperm.xlu0 %3058, %v2969
      %v3060 = vpop.permute.xlu0 %3059
      %v3063 = vunpack.c.l.s4 839922192
      %v3064 = vunpack.c.0.s8 %v3063
      %v3065 = vlaneseq
      %v3066 = vshrl.u32 %v3065, 7
      %v3067 = vsub.s32 %v3064, %v3066
      %v3068 = vrot.slane %v3060, %v3067
      %3070 = vset.pattern.permute.xlu0 0
      %3071 = vperm.xlu0 %3070, %v2970
      %v3072 = vpop.permute.xlu0 %3071
      %v3075 = vunpack.c.l.s4 839922192
      %v3076 = vunpack.c.0.s8 %v3075
      %v3077 = vlaneseq
      %v3078 = vshrl.u32 %v3077, 7
      %v3079 = vsub.s32 %v3076, %v3078
      %v3080 = vrot.slane %v3072, %v3079
      %3082 = vset.pattern.permute.xlu0 0
      %3083 = vperm.xlu0 %3082, %v2971
      %v3084 = vpop.permute.xlu0 %3083
      %v3087 = vunpack.c.l.s4 839922192
      %v3088 = vunpack.c.0.s8 %v3087
      %v3089 = vlaneseq
      %v3090 = vshrl.u32 %v3089, 7
      %v3091 = vsub.s32 %v3088, %v3090
      %v3092 = vrot.slane %v3084, %v3091
      %3094 = vset.pattern.permute.xlu0 0
      %3095 = vperm.xlu0 %3094, %v2972
      %v3096 = vpop.permute.xlu0 %3095
      %v3099 = vunpack.c.l.s4 839922192
      %v3100 = vunpack.c.0.s8 %v3099
      %v3101 = vlaneseq
      %v3102 = vshrl.u32 %v3101, 7
      %v3103 = vsub.s32 %v3100, %v3102
      %v3104 = vrot.slane %v3096, %v3103
      %3106 = vset.pattern.permute.xlu0 0
      %3107 = vperm.xlu0 %3106, %v2973
      %v3108 = vpop.permute.xlu0 %3107
      %v3111 = vunpack.c.l.s4 839922192
      %v3112 = vunpack.c.0.s8 %v3111
      %v3113 = vlaneseq
      %v3114 = vshrl.u32 %v3113, 7
      %v3115 = vsub.s32 %v3112, %v3114
      %v3116 = vrot.slane %v3108, %v3115
      %3118 = vset.pattern.permute.xlu0 0
      %3119 = vperm.xlu0 %3118, %v2974
      %v3120 = vpop.permute.xlu0 %3119
      %v3123 = vunpack.c.l.s4 839922192
      %v3124 = vunpack.c.0.s8 %v3123
      %v3125 = vlaneseq
      %v3126 = vshrl.u32 %v3125, 7
      %v3127 = vsub.s32 %v3124, %v3126
      %v3128 = vrot.slane %v3120, %v3127
      %3130 = vset.pattern.permute.xlu0 0
      %3131 = vperm.xlu0 %3130, %v2975
      %v3132 = vpop.permute.xlu0 %3131
      %v3135 = vunpack.c.l.s4 839922192
      %v3136 = vunpack.c.0.s8 %v3135
      %v3137 = vlaneseq
      %v3138 = vshrl.u32 %v3137, 7
      %v3139 = vsub.s32 %v3136, %v3138
      %v3140 = vrot.slane %v3132, %v3139
      %3142 = vset.pattern.permute.xlu0 0
      %3143 = vperm.xlu0 %3142, %v2976
      %v3144 = vpop.permute.xlu0 %3143
      %v3147 = vunpack.c.l.s4 839922192
      %v3148 = vunpack.c.0.s8 %v3147
      %v3149 = vlaneseq
      %v3150 = vshrl.u32 %v3149, 7
      %v3151 = vsub.s32 %v3148, %v3150
      %v3152 = vrot.slane %v3144, %v3151
      %3154 = vset.pattern.permute.xlu0 0
      %3155 = vperm.xlu0 %3154, %v2977
      %v3156 = vpop.permute.xlu0 %3155
      %v3159 = vunpack.c.l.s4 839922192
      %v3160 = vunpack.c.0.s8 %v3159
      %v3161 = vlaneseq
      %v3162 = vshrl.u32 %v3161, 7
      %v3163 = vsub.s32 %v3160, %v3162
      %v3164 = vrot.slane %v3156, %v3163
      %3166 = vset.pattern.permute.xlu0 0
      %3167 = vperm.xlu0 %3166, %v2978
      %v3168 = vpop.permute.xlu0 %3167
      %v3171 = vunpack.c.l.s4 839922192
      %v3172 = vunpack.c.0.s8 %v3171
      %v3173 = vlaneseq
      %v3174 = vshrl.u32 %v3173, 7
      %v3175 = vsub.s32 %v3172, %v3174
      %v3176 = vrot.slane %v3168, %v3175
      %3178 = vset.pattern.permute.xlu0 0
      %3179 = vperm.xlu0 %3178, %v2979
      %v3180 = vpop.permute.xlu0 %3179
      %v3183 = vunpack.c.l.s4 839922192
      %v3184 = vunpack.c.0.s8 %v3183
      %v3185 = vlaneseq
      %v3186 = vshrl.u32 %v3185, 7
      %v3187 = vsub.s32 %v3184, %v3186
      %v3188 = vrot.slane %v3180, %v3187
      %3190 = vset.pattern.permute.xlu0 0
      %3191 = vperm.xlu0 %3190, %v2980
      %v3192 = vpop.permute.xlu0 %3191
      %v3195 = vunpack.c.l.s4 839922192
      %v3196 = vunpack.c.0.s8 %v3195
      %v3197 = vlaneseq
      %v3198 = vshrl.u32 %v3197, 7
      %v3199 = vsub.s32 %v3196, %v3198
      %v3200 = vrot.slane %v3192, %v3199
      %3202 = vset.pattern.permute.xlu0 0
      %3203 = vperm.xlu0 %3202, %v2981
      %v3204 = vpop.permute.xlu0 %3203
      %v3207 = vunpack.c.l.s4 839922192
      %v3208 = vunpack.c.0.s8 %v3207
      %v3209 = vlaneseq
      %v3210 = vshrl.u32 %v3209, 7
      %v3211 = vsub.s32 %v3208, %v3210
      %v3212 = vrot.slane %v3204, %v3211
      %3214 = vset.pattern.permute.xlu0 0
      %3215 = vperm.xlu0 %3214, %v2982
      %v3216 = vpop.permute.xlu0 %3215
      %v3219 = vunpack.c.l.s4 839922192
      %v3220 = vunpack.c.0.s8 %v3219
      %v3221 = vlaneseq
      %v3222 = vshrl.u32 %v3221, 7
      %v3223 = vsub.s32 %v3220, %v3222
      %v3224 = vrot.slane %v3216, %v3223
      %3226 = vset.pattern.permute.xlu0 0
      %3227 = vperm.xlu0 %3226, %v2983
      %v3228 = vpop.permute.xlu0 %3227
      %v3231 = vunpack.c.l.s4 839922192
      %v3232 = vunpack.c.0.s8 %v3231
      %v3233 = vlaneseq
      %v3234 = vshrl.u32 %v3233, 7
      %v3235 = vsub.s32 %v3232, %v3234
      %v3236 = vrot.slane %v3228, %v3235
      %3238 = vset.pattern.permute.xlu0 0
      %3239 = vperm.xlu0 %3238, %v2984
      %v3240 = vpop.permute.xlu0 %3239
      %v3243 = vunpack.c.l.s4 839922192
      %v3244 = vunpack.c.0.s8 %v3243
      %v3245 = vlaneseq
      %v3246 = vshrl.u32 %v3245, 7
      %v3247 = vsub.s32 %v3244, %v3246
      %v3248 = vrot.slane %v3240, %v3247
      %3250 = vset.pattern.permute.xlu0 0
      %3251 = vperm.xlu0 %3250, %v2985
      %v3252 = vpop.permute.xlu0 %3251
      %v3255 = vunpack.c.l.s4 839922192
      %v3256 = vunpack.c.0.s8 %v3255
      %v3257 = vlaneseq
      %v3258 = vshrl.u32 %v3257, 7
      %v3259 = vsub.s32 %v3256, %v3258
      %v3260 = vrot.slane %v3252, %v3259
      %3262 = vset.pattern.permute.xlu0 0
      %3263 = vperm.xlu0 %3262, %v2986
      %v3264 = vpop.permute.xlu0 %3263
      %v3267 = vunpack.c.l.s4 839922192
      %v3268 = vunpack.c.0.s8 %v3267
      %v3269 = vlaneseq
      %v3270 = vshrl.u32 %v3269, 7
      %v3271 = vsub.s32 %v3268, %v3270
      %v3272 = vrot.slane %v3264, %v3271
      %3274 = vset.pattern.permute.xlu0 0
      %3275 = vperm.xlu0 %3274, %v2987
      %v3276 = vpop.permute.xlu0 %3275
      %v3279 = vunpack.c.l.s4 839922192
      %v3280 = vunpack.c.0.s8 %v3279
      %v3281 = vlaneseq
      %v3282 = vshrl.u32 %v3281, 7
      %v3283 = vsub.s32 %v3280, %v3282
      %v3284 = vrot.slane %v3276, %v3283
      %3286 = vset.pattern.permute.xlu0 0
      %3287 = vperm.xlu0 %3286, %v2988
      %v3288 = vpop.permute.xlu0 %3287
      %v3291 = vunpack.c.l.s4 839922192
      %v3292 = vunpack.c.0.s8 %v3291
      %v3293 = vlaneseq
      %v3294 = vshrl.u32 %v3293, 7
      %v3295 = vsub.s32 %v3292, %v3294
      %v3296 = vrot.slane %v3288, %v3295
      %3298 = vset.pattern.permute.xlu0 0
      %3299 = vperm.xlu0 %3298, %v2989
      %v3300 = vpop.permute.xlu0 %3299
      %v3303 = vunpack.c.l.s4 839922192
      %v3304 = vunpack.c.0.s8 %v3303
      %v3305 = vlaneseq
      %v3306 = vshrl.u32 %v3305, 7
      %v3307 = vsub.s32 %v3304, %v3306
      %v3308 = vrot.slane %v3300, %v3307
      %3310 = vset.pattern.permute.xlu0 0
      %3311 = vperm.xlu0 %3310, %v2990
      %v3312 = vpop.permute.xlu0 %3311
      %v3315 = vunpack.c.l.s4 839922192
      %v3316 = vunpack.c.0.s8 %v3315
      %v3317 = vlaneseq
      %v3318 = vshrl.u32 %v3317, 7
      %v3319 = vsub.s32 %v3316, %v3318
      %v3320 = vrot.slane %v3312, %v3319
      %3322 = vset.pattern.permute.xlu0 0
      %3323 = vperm.xlu0 %3322, %v2991
      %v3324 = vpop.permute.xlu0 %3323
      %v3327 = vunpack.c.l.s4 839922192
      %v3328 = vunpack.c.0.s8 %v3327
      %v3329 = vlaneseq
      %v3330 = vshrl.u32 %v3329, 7
      %v3331 = vsub.s32 %v3328, %v3330
      %v3332 = vrot.slane %v3324, %v3331
      %3334 = vset.pattern.permute.xlu0 0
      %3335 = vperm.xlu0 %3334, %v2992
      %v3336 = vpop.permute.xlu0 %3335
      %v3339 = vunpack.c.l.s4 839922192
      %v3340 = vunpack.c.0.s8 %v3339
      %v3341 = vlaneseq
      %v3342 = vshrl.u32 %v3341, 7
      %v3343 = vsub.s32 %v3340, %v3342
      %v3344 = vrot.slane %v3336, %v3343
      %3346 = vset.pattern.permute.xlu0 0
      %3347 = vperm.xlu0 %3346, %v2993
      %v3348 = vpop.permute.xlu0 %3347
      %v3351 = vunpack.c.l.s4 839922192
      %v3352 = vunpack.c.0.s8 %v3351
      %v3353 = vlaneseq
      %v3354 = vshrl.u32 %v3353, 7
      %v3355 = vsub.s32 %v3352, %v3354
      %v3356 = vrot.slane %v3348, %v3355
      %3358 = vset.pattern.permute.xlu0 0
      %3359 = vperm.xlu0 %3358, %v2994
      %v3360 = vpop.permute.xlu0 %3359
      %v3363 = vunpack.c.l.s4 839922192
      %v3364 = vunpack.c.0.s8 %v3363
      %v3365 = vlaneseq
      %v3366 = vshrl.u32 %v3365, 7
      %v3367 = vsub.s32 %v3364, %v3366
      %v3368 = vrot.slane %v3360, %v3367
      %3370 = vset.pattern.permute.xlu0 0
      %3371 = vperm.xlu0 %3370, %v2995
      %v3372 = vpop.permute.xlu0 %3371
      %v3375 = vunpack.c.l.s4 839922192
      %v3376 = vunpack.c.0.s8 %v3375
      %v3377 = vlaneseq
      %v3378 = vshrl.u32 %v3377, 7
      %v3379 = vsub.s32 %v3376, %v3378
      %v3380 = vrot.slane %v3372, %v3379
      %3382 = vset.pattern.permute.xlu0 0
      %3383 = vperm.xlu0 %3382, %v2996
      %v3384 = vpop.permute.xlu0 %3383
      %v3387 = vunpack.c.l.s4 839922192
      %v3388 = vunpack.c.0.s8 %v3387
      %v3389 = vlaneseq
      %v3390 = vshrl.u32 %v3389, 7
      %v3391 = vsub.s32 %v3388, %v3390
      %v3392 = vrot.slane %v3384, %v3391
      %v3393 = vmul.bf16 %v2962, %v3008
      %v3394 = vmul.bf16 %v2921, %v3020
      %v3395 = vmul.bf16 %v2922, %v3032
      %v3396 = vmul.bf16 %v2923, %v3044
      %v3397 = vmul.bf16 %v2924, %v3056
      %v3398 = vmul.bf16 %v2925, %v3068
      %v3399 = vmul.bf16 %v2926, %v3080
      %v3400 = vmul.bf16 %v2927, %v3092
      %v3401 = vmul.bf16 %v2928, %v3104
      %v3402 = vmul.bf16 %v2929, %v3116
      %v3403 = vmul.bf16 %v2930, %v3128
      %v3404 = vmul.bf16 %v2931, %v3140
      %v3405 = vmul.bf16 %v2932, %v3152
      %v3406 = vmul.bf16 %v2933, %v3164
      %v3407 = vmul.bf16 %v2934, %v3176
      %v3408 = vmul.bf16 %v2935, %v3188
      %v3409 = vmul.bf16 %v2936, %v3200
      %v3410 = vmul.bf16 %v2937, %v3212
      %v3411 = vmul.bf16 %v2938, %v3224
      %v3412 = vmul.bf16 %v2939, %v3236
      %v3413 = vmul.bf16 %v2940, %v3248
      %v3414 = vmul.bf16 %v2941, %v3260
      %v3415 = vmul.bf16 %v2942, %v3272
      %v3416 = vmul.bf16 %v2943, %v3284
      %v3417 = vmul.bf16 %v2944, %v3296
      %v3418 = vmul.bf16 %v2945, %v3308
      %v3419 = vmul.bf16 %v2946, %v3320
      %v3420 = vmul.bf16 %v2947, %v3332
      %v3421 = vmul.bf16 %v2948, %v3344
      %v3422 = vmul.bf16 %v2949, %v3356
      %v3423 = vmul.bf16 %v2950, %v3368
      %v3424 = vmul.bf16 %v2951, %v3380
      %v3425 = vmul.bf16 %v2952, %v3392
      %s3426 = scalar_lea.vmem %s2, 160
      %v3427 = vld [vmem:[%s3426] sm:$0xf]
      %v3428 = vld [vmem:[%s3426 + $0x4] sm:$0xf]
      %v3429 = vld [vmem:[%s3426 + $0x8] sm:$0xf]
      %v3430 = vld [vmem:[%s3426 + $0xc] sm:$0xf]
      %v3431 = vld [vmem:[%s3426 + $0x10] sm:$0xf]
      %v3432 = vld [vmem:[%s3426 + $0x14] sm:$0xf]
      %v3433 = vld [vmem:[%s3426 + $0x18] sm:$0xf]
      %v3434 = vld [vmem:[%s3426 + $0x1c] sm:$0xf]
      %v3468 = vunpack.c.l.b16 %v3393
      %v3469 = vunpack.c.l.b16 %v3394
      %v3470 = vunpack.c.l.b16 %v3395
      %v3471 = vunpack.c.l.b16 %v3396
      %v3472 = vunpack.c.l.b16 %v3397
      %v3473 = vunpack.c.l.b16 %v3398
      %v3474 = vunpack.c.l.b16 %v3399
      %v3475 = vunpack.c.l.b16 %v3400
      %v3476 = vunpack.c.l.b16 %v3401
      %v3477 = vunpack.c.l.b16 %v3402
      %v3478 = vunpack.c.l.b16 %v3403
      %v3479 = vunpack.c.l.b16 %v3404
      %v3480 = vunpack.c.l.b16 %v3405
      %v3481 = vunpack.c.l.b16 %v3406
      %v3482 = vunpack.c.l.b16 %v3407
      %v3483 = vunpack.c.l.b16 %v3408
      %v3484 = vunpack.c.l.b16 %v3409
      %v3485 = vunpack.c.l.b16 %v3410
      %v3486 = vunpack.c.l.b16 %v3411
      %v3487 = vunpack.c.l.b16 %v3412
      %v3488 = vunpack.c.l.b16 %v3413
      %v3489 = vunpack.c.l.b16 %v3414
      %v3490 = vunpack.c.l.b16 %v3415
      %v3491 = vunpack.c.l.b16 %v3416
      %v3492 = vunpack.c.l.b16 %v3417
      %v3493 = vunpack.c.l.b16 %v3418
      %v3494 = vunpack.c.l.b16 %v3419
      %v3495 = vunpack.c.l.b16 %v3420
      %v3496 = vunpack.c.l.b16 %v3421
      %v3497 = vunpack.c.l.b16 %v3422
      %v3498 = vunpack.c.l.b16 %v3423
      %v3499 = vunpack.c.l.b16 %v3424
      %v3500 = vunpack.c.l.b16 %v3425
      %v3501 = vpack.c.b16 %v3469, %v3468
      %v3502 = vpack.c.b16 %v3471, %v3470
      %v3503 = vpack.c.b16 %v3473, %v3472
      %v3504 = vpack.c.b16 %v3475, %v3474
      %v3505 = vpack.c.b16 %v3477, %v3476
      %v3506 = vpack.c.b16 %v3479, %v3478
      %v3507 = vpack.c.b16 %v3481, %v3480
      %v3508 = vpack.c.b16 %v3483, %v3482
      %v3509 = vpack.c.b16 %v3485, %v3484
      %v3510 = vpack.c.b16 %v3487, %v3486
      %v3511 = vpack.c.b16 %v3489, %v3488
      %v3512 = vpack.c.b16 %v3491, %v3490
      %v3513 = vpack.c.b16 %v3493, %v3492
      %v3514 = vpack.c.b16 %v3495, %v3494
      %v3515 = vpack.c.b16 %v3497, %v3496
      %v3516 = vpack.c.b16 %v3499, %v3498
      %v3517 = vpack.c.b16 %v3500, %v3500
      %vm3518 = vcmask 1046528
      %v3519 = vrot.slane %v3501, 1
      %v3520 = vrot.slane %v3502, 1
      %v3521 = vsel %vm3518, %v3519, %v3520
      %v3522 = vrot.slane %v3503, 1
      %v3523 = vsel %vm3518, %v3520, %v3522
      %v3524 = vrot.slane %v3504, 1
      %v3525 = vsel %vm3518, %v3522, %v3524
      %v3526 = vrot.slane %v3505, 1
      %v3527 = vsel %vm3518, %v3524, %v3526
      %v3528 = vrot.slane %v3506, 1
      %v3529 = vsel %vm3518, %v3526, %v3528
      %v3530 = vrot.slane %v3507, 1
      %v3531 = vsel %vm3518, %v3528, %v3530
      %v3532 = vrot.slane %v3508, 1
      %v3533 = vsel %vm3518, %v3530, %v3532
      %v3534 = vrot.slane %v3509, 1
      %v3535 = vsel %vm3518, %v3532, %v3534
      %v3536 = vrot.slane %v3510, 1
      %v3537 = vsel %vm3518, %v3534, %v3536
      %v3538 = vrot.slane %v3511, 1
      %v3539 = vsel %vm3518, %v3536, %v3538
      %v3540 = vrot.slane %v3512, 1
      %v3541 = vsel %vm3518, %v3538, %v3540
      %v3542 = vrot.slane %v3513, 1
      %v3543 = vsel %vm3518, %v3540, %v3542
      %v3544 = vrot.slane %v3514, 1
      %v3545 = vsel %vm3518, %v3542, %v3544
      %v3546 = vrot.slane %v3515, 1
      %v3547 = vsel %vm3518, %v3544, %v3546
      %v3548 = vrot.slane %v3516, 1
      %v3549 = vsel %vm3518, %v3546, %v3548
      %v3550 = vrot.slane %v3517, 1
      %v3551 = vsel %vm3518, %v3548, %v3550
      %v3560 = vunpack.c.l.b16 %v3427
      %v3561 = vunpack.c.l.b16 %v3428
      %v3562 = vunpack.c.l.b16 %v3429
      %v3563 = vunpack.c.l.b16 %v3430
      %v3564 = vunpack.c.l.b16 %v3431
      %v3565 = vunpack.c.l.b16 %v3432
      %v3566 = vunpack.c.l.b16 %v3433
      %v3567 = vunpack.c.l.b16 %v3434
      %v3568 = vpack.c.b16 %v3561, %v3560
      %v3569 = vpack.c.b16 %v3563, %v3562
      %v3570 = vpack.c.b16 %v3565, %v3564
      %v3571 = vpack.c.b16 %v3567, %v3566
      %v3577 = vsel %vm970, %v3521, 0
      %v3580 = vsel %vm970, %v3523, 0
      %v3583 = vsel %vm970, %v3525, 0
      %v3586 = vsel %vm970, %v3527, 0
      %v3589 = vsel %vm970, %v3529, 0
      %v3592 = vsel %vm970, %v3531, 0
      %v3595 = vsel %vm970, %v3533, 0
      %v3598 = vsel %vm970, %v3535, 0
      %v3601 = vsel %vm970, %v3537, 0
      %v3604 = vsel %vm970, %v3539, 0
      %v3607 = vsel %vm970, %v3541, 0
      %v3610 = vsel %vm970, %v3543, 0
      %v3613 = vsel %vm970, %v3545, 0
      %v3616 = vsel %vm970, %v3547, 0
      %v3619 = vsel %vm970, %v3549, 0
      %v3622 = vsel %vm970, %v3551, 0
      %3624 = vmatprep.subr.bf16.mxu0 0
      %3625 = vmatpush1.bf16.msra.mxu0 0
      %3626 = vmatprep.subr.bf16.mxu0 0
      %3627 = vmatpush1.bf16.msra.mxu0 0
      %3628 = vmatprep.subr.bf16.mxu0 0
      %3629 = vmatpush1.bf16.msra.mxu0 0
      %3630 = vmatprep.subr.bf16.mxu0 0
      %3631 = vmatpush1.bf16.msra.mxu0 0
      %3632 = vmatprep.subr.bf16.mxu0 0
      %3633 = vmatpush1.bf16.msra.mxu0 %v3571
      %3634 = vmatprep.subr.bf16.mxu0 0
      %3635 = vmatpush1.bf16.msra.mxu0 %v3570
      %3636 = vmatprep.subr.bf16.mxu0 0
      %3637 = vmatpush1.bf16.msra.mxu0 %v3569
      %3638 = vmatprep.subr.bf16.mxu0 0
      %3639 = vmatpush1.bf16.msra.mxu0 %v3568
      %3640 = vmatprep.subr.bf16.mxu0 0
      %3641 = vmatpush2.bf16.msra.mxu0 0
      %3642 = vmatprep.subr.bf16.mxu0 0
      %3643 = vmatpush2.bf16.msra.mxu0 0
      %3644 = vmatprep.subr.bf16.mxu0 0
      %3645 = vmatpush2.bf16.msra.mxu0 0
      %3646 = vmatprep.subr.bf16.mxu0 0
      %3647 = vmatpush2.bf16.msra.mxu0 0
      %3648 = vmatprep.subr.bf16.mxu0 0
      %3649 = vmatpush2.bf16.msra.mxu0 0
      %3650 = vmatprep.subr.bf16.mxu0 0
      %3651 = vmatpush2.bf16.msra.mxu0 0
      %3652 = vmatprep.subr.bf16.mxu0 0
      %3653 = vmatpush2.bf16.msra.mxu0 0
      %3654 = vmatprep.subr.bf16.mxu0 0
      %3655 = vmatpush2.bf16.msra.mxu0 0
      %3656 = vmatprep.mubr.bf16.mxu0 0
      %3657 = vmatmul.mubr.bf16.gmra.mxu0 %v3577
      %v3658 = vpop.f32.mrf.mxu0
      %v3659 = vadd.f32 0.0, %v3658
      %v3660 = vpop.f32.mrf.mxu0
      %v3661 = vpop.f32.mrf.mxu0
      %v3662 = vadd.f32 0.0, %v3661
      %v3663 = vpop.f32.mrf.mxu0
      %3664 = vmatprep.mubr.bf16.mxu0 0
      %3665 = vmatmul.mubr.bf16.gmra.mxu0 %v3580
      %v3666 = vpop.f32.mrf.mxu0
      %v3667 = vadd.f32 0.0, %v3666
      %v3668 = vpop.f32.mrf.mxu0
      %v3669 = vpop.f32.mrf.mxu0
      %v3670 = vadd.f32 0.0, %v3669
      %v3671 = vpop.f32.mrf.mxu0
      %3672 = vmatprep.mubr.bf16.mxu0 0
      %3673 = vmatmul.mubr.bf16.gmra.mxu0 %v3583
      %v3674 = vpop.f32.mrf.mxu0
      %v3675 = vadd.f32 0.0, %v3674
      %v3676 = vpop.f32.mrf.mxu0
      %v3677 = vpop.f32.mrf.mxu0
      %v3678 = vadd.f32 0.0, %v3677
      %v3679 = vpop.f32.mrf.mxu0
      %3680 = vmatprep.mubr.bf16.mxu0 0
      %3681 = vmatmul.mubr.bf16.gmra.mxu0 %v3586
      %v3682 = vpop.f32.mrf.mxu0
      %v3683 = vadd.f32 0.0, %v3682
      %v3684 = vpop.f32.mrf.mxu0
      %v3685 = vpop.f32.mrf.mxu0
      %v3686 = vadd.f32 0.0, %v3685
      %v3687 = vpop.f32.mrf.mxu0
      %3688 = vmatprep.mubr.bf16.mxu0 0
      %3689 = vmatmul.mubr.bf16.gmra.mxu0 %v3589
      %v3690 = vpop.f32.mrf.mxu0
      %v3691 = vadd.f32 0.0, %v3690
      %v3692 = vpop.f32.mrf.mxu0
      %v3693 = vpop.f32.mrf.mxu0
      %v3694 = vadd.f32 0.0, %v3693
      %v3695 = vpop.f32.mrf.mxu0
      %3696 = vmatprep.mubr.bf16.mxu0 0
      %3697 = vmatmul.mubr.bf16.gmra.mxu0 %v3592
      %v3698 = vpop.f32.mrf.mxu0
      %v3699 = vadd.f32 0.0, %v3698
      %v3700 = vpop.f32.mrf.mxu0
      %v3701 = vpop.f32.mrf.mxu0
      %v3702 = vadd.f32 0.0, %v3701
      %v3703 = vpop.f32.mrf.mxu0
      %3704 = vmatprep.mubr.bf16.mxu0 0
      %3705 = vmatmul.mubr.bf16.gmra.mxu0 %v3595
      %v3706 = vpop.f32.mrf.mxu0
      %v3707 = vadd.f32 0.0, %v3706
      %v3708 = vpop.f32.mrf.mxu0
      %v3709 = vpop.f32.mrf.mxu0
      %v3710 = vadd.f32 0.0, %v3709
      %v3711 = vpop.f32.mrf.mxu0
      %3712 = vmatprep.mubr.bf16.mxu0 0
      %3713 = vmatmul.mubr.bf16.gmra.mxu0 %v3598
      %v3714 = vpop.f32.mrf.mxu0
      %v3715 = vadd.f32 0.0, %v3714
      %v3716 = vpop.f32.mrf.mxu0
      %v3717 = vpop.f32.mrf.mxu0
      %v3718 = vadd.f32 0.0, %v3717
      %v3719 = vpop.f32.mrf.mxu0
      %3720 = vmatprep.mubr.bf16.mxu0 0
      %3721 = vmatmul.mubr.bf16.gmra.mxu0 %v3601
      %v3722 = vpop.f32.mrf.mxu0
      %v3723 = vadd.f32 0.0, %v3722
      %v3724 = vpop.f32.mrf.mxu0
      %v3725 = vpop.f32.mrf.mxu0
      %v3726 = vadd.f32 0.0, %v3725
      %v3727 = vpop.f32.mrf.mxu0
      %3728 = vmatprep.mubr.bf16.mxu0 0
      %3729 = vmatmul.mubr.bf16.gmra.mxu0 %v3604
      %v3730 = vpop.f32.mrf.mxu0
      %v3731 = vadd.f32 0.0, %v3730
      %v3732 = vpop.f32.mrf.mxu0
      %v3733 = vpop.f32.mrf.mxu0
      %v3734 = vadd.f32 0.0, %v3733
      %v3735 = vpop.f32.mrf.mxu0
      %3736 = vmatprep.mubr.bf16.mxu0 0
      %3737 = vmatmul.mubr.bf16.gmra.mxu0 %v3607
      %v3738 = vpop.f32.mrf.mxu0
      %v3739 = vadd.f32 0.0, %v3738
      %v3740 = vpop.f32.mrf.mxu0
      %v3741 = vpop.f32.mrf.mxu0
      %v3742 = vadd.f32 0.0, %v3741
      %v3743 = vpop.f32.mrf.mxu0
      %3744 = vmatprep.mubr.bf16.mxu0 0
      %3745 = vmatmul.mubr.bf16.gmra.mxu0 %v3610
      %v3746 = vpop.f32.mrf.mxu0
      %v3747 = vadd.f32 0.0, %v3746
      %v3748 = vpop.f32.mrf.mxu0
      %v3749 = vpop.f32.mrf.mxu0
      %v3750 = vadd.f32 0.0, %v3749
      %v3751 = vpop.f32.mrf.mxu0
      %3752 = vmatprep.mubr.bf16.mxu0 0
      %3753 = vmatmul.mubr.bf16.gmra.mxu0 %v3613
      %v3754 = vpop.f32.mrf.mxu0
      %v3755 = vadd.f32 0.0, %v3754
      %v3756 = vpop.f32.mrf.mxu0
      %v3757 = vpop.f32.mrf.mxu0
      %v3758 = vadd.f32 0.0, %v3757
      %v3759 = vpop.f32.mrf.mxu0
      %3760 = vmatprep.mubr.bf16.mxu0 0
      %3761 = vmatmul.mubr.bf16.gmra.mxu0 %v3616
      %v3762 = vpop.f32.mrf.mxu0
      %v3763 = vadd.f32 0.0, %v3762
      %v3764 = vpop.f32.mrf.mxu0
      %v3765 = vpop.f32.mrf.mxu0
      %v3766 = vadd.f32 0.0, %v3765
      %v3767 = vpop.f32.mrf.mxu0
      %3768 = vmatprep.mubr.bf16.mxu0 0
      %3769 = vmatmul.mubr.bf16.gmra.mxu0 %v3619
      %v3770 = vpop.f32.mrf.mxu0
      %v3771 = vadd.f32 0.0, %v3770
      %v3772 = vpop.f32.mrf.mxu0
      %v3773 = vpop.f32.mrf.mxu0
      %v3774 = vadd.f32 0.0, %v3773
      %v3775 = vpop.f32.mrf.mxu0
      %3776 = vmatprep.mubr.bf16.mxu0 0
      %3777 = vmatmul.mubr.bf16.gmra.mxu0 %v3622
      %v3778 = vpop.f32.mrf.mxu0
      %v3779 = vadd.f32 0.0, %v3778
      %v3780 = vpop.f32.mrf.mxu0
      %v3781 = vpop.f32.mrf.mxu0
      %v3782 = vadd.f32 0.0, %v3781
      %v3783 = vpop.f32.mrf.mxu0
      %3784 = vdwg.mxu0
      %v3818 = vunpack.c.l.b16 %v2920
      %v3819 = vunpack.c.l.b16 %v2921
      %v3820 = vunpack.c.l.b16 %v2922
      %v3821 = vunpack.c.l.b16 %v2923
      %v3822 = vunpack.c.l.b16 %v2924
      %v3823 = vunpack.c.l.b16 %v2925
      %v3824 = vunpack.c.l.b16 %v2926
      %v3825 = vunpack.c.l.b16 %v2927
      %v3826 = vunpack.c.l.b16 %v2928
      %v3827 = vunpack.c.l.b16 %v2929
      %v3828 = vunpack.c.l.b16 %v2930
      %v3829 = vunpack.c.l.b16 %v2931
      %v3830 = vunpack.c.l.b16 %v2932
      %v3831 = vunpack.c.l.b16 %v2933
      %v3832 = vunpack.c.l.b16 %v2934
      %v3833 = vunpack.c.l.b16 %v2935
      %v3834 = vunpack.c.l.b16 %v2936
      %v3835 = vunpack.c.l.b16 %v2937
      %v3836 = vunpack.c.l.b16 %v2938
      %v3837 = vunpack.c.l.b16 %v2939
      %v3838 = vunpack.c.l.b16 %v2940
      %v3839 = vunpack.c.l.b16 %v2941
      %v3840 = vunpack.c.l.b16 %v2942
      %v3841 = vunpack.c.l.b16 %v2943
      %v3842 = vunpack.c.l.b16 %v2944
      %v3843 = vunpack.c.l.b16 %v2945
      %v3844 = vunpack.c.l.b16 %v2946
      %v3845 = vunpack.c.l.b16 %v2947
      %v3846 = vunpack.c.l.b16 %v2948
      %v3847 = vunpack.c.l.b16 %v2949
      %v3848 = vunpack.c.l.b16 %v2950
      %v3849 = vunpack.c.l.b16 %v2951
      %v3850 = vunpack.c.l.b16 %v2952
      %v3851 = vpack.c.b16 %v3819, %v3818
      %v3852 = vpack.c.b16 %v3821, %v3820
      %v3853 = vpack.c.b16 %v3823, %v3822
      %v3854 = vpack.c.b16 %v3825, %v3824
      %v3855 = vpack.c.b16 %v3827, %v3826
      %v3856 = vpack.c.b16 %v3829, %v3828
      %v3857 = vpack.c.b16 %v3831, %v3830
      %v3858 = vpack.c.b16 %v3833, %v3832
      %v3859 = vpack.c.b16 %v3835, %v3834
      %v3860 = vpack.c.b16 %v3837, %v3836
      %v3861 = vpack.c.b16 %v3839, %v3838
      %v3862 = vpack.c.b16 %v3841, %v3840
      %v3863 = vpack.c.b16 %v3843, %v3842
      %v3864 = vpack.c.b16 %v3845, %v3844
      %v3865 = vpack.c.b16 %v3847, %v3846
      %v3866 = vpack.c.b16 %v3849, %v3848
      %v3867 = vpack.c.b16 %v3850, %v3850
      %v3869 = vshrl.u32 %v3851, 16
      %v3871 = vshll.u32 %v3851, 16
      %v3873 = vrot.slane %v3871, 1
      %v3874 = vor.u32 %v3869, %v3873
      %v3876 = vshll.u32 %v3852, 16
      %v3878 = vrot.slane %v3876, 1
      %v3879 = vsel %vm813, %v3874, %v3878
      %v3880 = vshrl.u32 %v3852, 16
      %v3882 = vor.u32 %v3880, %v3878
      %v3884 = vshll.u32 %v3853, 16
      %v3886 = vrot.slane %v3884, 1
      %v3887 = vsel %vm813, %v3882, %v3886
      %v3888 = vshrl.u32 %v3853, 16
      %v3890 = vor.u32 %v3888, %v3886
      %v3892 = vshll.u32 %v3854, 16
      %v3894 = vrot.slane %v3892, 1
      %v3895 = vsel %vm813, %v3890, %v3894
      %v3896 = vshrl.u32 %v3854, 16
      %v3898 = vor.u32 %v3896, %v3894
      %v3900 = vshll.u32 %v3855, 16
      %v3902 = vrot.slane %v3900, 1
      %v3903 = vsel %vm813, %v3898, %v3902
      %v3904 = vshrl.u32 %v3855, 16
      %v3906 = vor.u32 %v3904, %v3902
      %v3908 = vshll.u32 %v3856, 16
      %v3910 = vrot.slane %v3908, 1
      %v3911 = vsel %vm813, %v3906, %v3910
      %v3912 = vshrl.u32 %v3856, 16
      %v3914 = vor.u32 %v3912, %v3910
      %v3916 = vshll.u32 %v3857, 16
      %v3918 = vrot.slane %v3916, 1
      %v3919 = vsel %vm813, %v3914, %v3918
      %v3920 = vshrl.u32 %v3857, 16
      %v3922 = vor.u32 %v3920, %v3918
      %v3924 = vshll.u32 %v3858, 16
      %v3926 = vrot.slane %v3924, 1
      %v3927 = vsel %vm813, %v3922, %v3926
      %v3928 = vshrl.u32 %v3858, 16
      %v3930 = vor.u32 %v3928, %v3926
      %v3932 = vshll.u32 %v3859, 16
      %v3934 = vrot.slane %v3932, 1
      %v3935 = vsel %vm813, %v3930, %v3934
      %v3936 = vshrl.u32 %v3859, 16
      %v3938 = vor.u32 %v3936, %v3934
      %v3940 = vshll.u32 %v3860, 16
      %v3942 = vrot.slane %v3940, 1
      %v3943 = vsel %vm813, %v3938, %v3942
      %v3944 = vshrl.u32 %v3860, 16
      %v3946 = vor.u32 %v3944, %v3942
      %v3948 = vshll.u32 %v3861, 16
      %v3950 = vrot.slane %v3948, 1
      %v3951 = vsel %vm813, %v3946, %v3950
      %v3952 = vshrl.u32 %v3861, 16
      %v3954 = vor.u32 %v3952, %v3950
      %v3956 = vshll.u32 %v3862, 16
      %v3958 = vrot.slane %v3956, 1
      %v3959 = vsel %vm813, %v3954, %v3958
      %v3960 = vshrl.u32 %v3862, 16
      %v3962 = vor.u32 %v3960, %v3958
      %v3964 = vshll.u32 %v3863, 16
      %v3966 = vrot.slane %v3964, 1
      %v3967 = vsel %vm813, %v3962, %v3966
      %v3968 = vshrl.u32 %v3863, 16
      %v3970 = vor.u32 %v3968, %v3966
      %v3972 = vshll.u32 %v3864, 16
      %v3974 = vrot.slane %v3972, 1
      %v3975 = vsel %vm813, %v3970, %v3974
      %v3976 = vshrl.u32 %v3864, 16
      %v3978 = vor.u32 %v3976, %v3974
      %v3980 = vshll.u32 %v3865, 16
      %v3982 = vrot.slane %v3980, 1
      %v3983 = vsel %vm813, %v3978, %v3982
      %v3984 = vshrl.u32 %v3865, 16
      %v3986 = vor.u32 %v3984, %v3982
      %v3988 = vshll.u32 %v3866, 16
      %v3990 = vrot.slane %v3988, 1
      %v3991 = vsel %vm813, %v3986, %v3990
      %v3992 = vshrl.u32 %v3866, 16
      %v3994 = vor.u32 %v3992, %v3990
      %v3996 = vshll.u32 %v3867, 16
      %v3998 = vrot.slane %v3996, 1
      %v3999 = vsel %vm813, %v3994, %v3998
      %v4008 = vunpack.c.l.b16 %v2954
      %v4009 = vunpack.c.l.b16 %v2955
      %v4010 = vunpack.c.l.b16 %v2956
      %v4011 = vunpack.c.l.b16 %v2957
      %v4012 = vunpack.c.l.b16 %v2958
      %v4013 = vunpack.c.l.b16 %v2959
      %v4014 = vunpack.c.l.b16 %v2960
      %v4015 = vunpack.c.l.b16 %v2961
      %v4016 = vpack.c.b16 %v4009, %v4008
      %v4017 = vpack.c.b16 %v4011, %v4010
      %v4018 = vpack.c.b16 %v4013, %v4012
      %v4019 = vpack.c.b16 %v4015, %v4014
      %v4025 = vsel %vm970, %v3879, 0
      %v4028 = vsel %vm970, %v3887, 0
      %v4031 = vsel %vm970, %v3895, 0
      %v4034 = vsel %vm970, %v3903, 0
      %v4037 = vsel %vm970, %v3911, 0
      %v4040 = vsel %vm970, %v3919, 0
      %v4043 = vsel %vm970, %v3927, 0
      %v4046 = vsel %vm970, %v3935, 0
      %v4049 = vsel %vm970, %v3943, 0
      %v4052 = vsel %vm970, %v3951, 0
      %v4055 = vsel %vm970, %v3959, 0
      %v4058 = vsel %vm970, %v3967, 0
      %v4061 = vsel %vm970, %v3975, 0
      %v4064 = vsel %vm970, %v3983, 0
      %v4067 = vsel %vm970, %v3991, 0
      %v4070 = vsel %vm970, %v3999, 0
      %4072 = vmatprep.subr.bf16.mxu0 0
      %4073 = vmatpush1.bf16.msra.mxu0 0
      %4074 = vmatprep.subr.bf16.mxu0 0
      %4075 = vmatpush1.bf16.msra.mxu0 0
      %4076 = vmatprep.subr.bf16.mxu0 0
      %4077 = vmatpush1.bf16.msra.mxu0 0
      %4078 = vmatprep.subr.bf16.mxu0 0
      %4079 = vmatpush1.bf16.msra.mxu0 0
      %4080 = vmatprep.subr.bf16.mxu0 0
      %4081 = vmatpush1.bf16.msra.mxu0 %v4019
      %4082 = vmatprep.subr.bf16.mxu0 0
      %4083 = vmatpush1.bf16.msra.mxu0 %v4018
      %4084 = vmatprep.subr.bf16.mxu0 0
      %4085 = vmatpush1.bf16.msra.mxu0 %v4017
      %4086 = vmatprep.subr.bf16.mxu0 0
      %4087 = vmatpush1.bf16.msra.mxu0 %v4016
      %4088 = vmatprep.subr.bf16.mxu0 0
      %4089 = vmatpush2.bf16.msra.mxu0 0
      %4090 = vmatprep.subr.bf16.mxu0 0
      %4091 = vmatpush2.bf16.msra.mxu0 0
      %4092 = vmatprep.subr.bf16.mxu0 0
      %4093 = vmatpush2.bf16.msra.mxu0 0
      %4094 = vmatprep.subr.bf16.mxu0 0
      %4095 = vmatpush2.bf16.msra.mxu0 0
      %4096 = vmatprep.subr.bf16.mxu0 0
      %4097 = vmatpush2.bf16.msra.mxu0 0
      %4098 = vmatprep.subr.bf16.mxu0 0
      %4099 = vmatpush2.bf16.msra.mxu0 0
      %4100 = vmatprep.subr.bf16.mxu0 0
      %4101 = vmatpush2.bf16.msra.mxu0 0
      %4102 = vmatprep.subr.bf16.mxu0 0
      %4103 = vmatpush2.bf16.msra.mxu0 0
      %4104 = vmatprep.mubr.bf16.mxu0 0
      %4105 = vmatmul.mubr.bf16.gmra.mxu0 %v4025
      %v4106 = vpop.f32.mrf.mxu0
      %v4107 = vadd.f32 %v3659, %v4106
      %v4108 = vpop.f32.mrf.mxu0
      %v4109 = vpop.f32.mrf.mxu0
      %v4110 = vadd.f32 %v3662, %v4109
      %v4111 = vpop.f32.mrf.mxu0
      %4112 = vmatprep.mubr.bf16.mxu0 0
      %4113 = vmatmul.mubr.bf16.gmra.mxu0 %v4028
      %v4114 = vpop.f32.mrf.mxu0
      %v4115 = vadd.f32 %v3667, %v4114
      %v4116 = vpop.f32.mrf.mxu0
      %v4117 = vpop.f32.mrf.mxu0
      %v4118 = vadd.f32 %v3670, %v4117
      %v4119 = vpop.f32.mrf.mxu0
      %4120 = vmatprep.mubr.bf16.mxu0 0
      %4121 = vmatmul.mubr.bf16.gmra.mxu0 %v4031
      %v4122 = vpop.f32.mrf.mxu0
      %v4123 = vadd.f32 %v3675, %v4122
      %v4124 = vpop.f32.mrf.mxu0
      %v4125 = vpop.f32.mrf.mxu0
      %v4126 = vadd.f32 %v3678, %v4125
      %v4127 = vpop.f32.mrf.mxu0
      %4128 = vmatprep.mubr.bf16.mxu0 0
      %4129 = vmatmul.mubr.bf16.gmra.mxu0 %v4034
      %v4130 = vpop.f32.mrf.mxu0
      %v4131 = vadd.f32 %v3683, %v4130
      %v4132 = vpop.f32.mrf.mxu0
      %v4133 = vpop.f32.mrf.mxu0
      %v4134 = vadd.f32 %v3686, %v4133
      %v4135 = vpop.f32.mrf.mxu0
      %4136 = vmatprep.mubr.bf16.mxu0 0
      %4137 = vmatmul.mubr.bf16.gmra.mxu0 %v4037
      %v4138 = vpop.f32.mrf.mxu0
      %v4139 = vadd.f32 %v3691, %v4138
      %v4140 = vpop.f32.mrf.mxu0
      %v4141 = vpop.f32.mrf.mxu0
      %v4142 = vadd.f32 %v3694, %v4141
      %v4143 = vpop.f32.mrf.mxu0
      %4144 = vmatprep.mubr.bf16.mxu0 0
      %4145 = vmatmul.mubr.bf16.gmra.mxu0 %v4040
      %v4146 = vpop.f32.mrf.mxu0
      %v4147 = vadd.f32 %v3699, %v4146
      %v4148 = vpop.f32.mrf.mxu0
      %v4149 = vpop.f32.mrf.mxu0
      %v4150 = vadd.f32 %v3702, %v4149
      %v4151 = vpop.f32.mrf.mxu0
      %4152 = vmatprep.mubr.bf16.mxu0 0
      %4153 = vmatmul.mubr.bf16.gmra.mxu0 %v4043
      %v4154 = vpop.f32.mrf.mxu0
      %v4155 = vadd.f32 %v3707, %v4154
      %v4156 = vpop.f32.mrf.mxu0
      %v4157 = vpop.f32.mrf.mxu0
      %v4158 = vadd.f32 %v3710, %v4157
      %v4159 = vpop.f32.mrf.mxu0
      %4160 = vmatprep.mubr.bf16.mxu0 0
      %4161 = vmatmul.mubr.bf16.gmra.mxu0 %v4046
      %v4162 = vpop.f32.mrf.mxu0
      %v4163 = vadd.f32 %v3715, %v4162
      %v4164 = vpop.f32.mrf.mxu0
      %v4165 = vpop.f32.mrf.mxu0
      %v4166 = vadd.f32 %v3718, %v4165
      %v4167 = vpop.f32.mrf.mxu0
      %4168 = vmatprep.mubr.bf16.mxu0 0
      %4169 = vmatmul.mubr.bf16.gmra.mxu0 %v4049
      %v4170 = vpop.f32.mrf.mxu0
      %v4171 = vadd.f32 %v3723, %v4170
      %v4172 = vpop.f32.mrf.mxu0
      %v4173 = vpop.f32.mrf.mxu0
      %v4174 = vadd.f32 %v3726, %v4173
      %v4175 = vpop.f32.mrf.mxu0
      %4176 = vmatprep.mubr.bf16.mxu0 0
      %4177 = vmatmul.mubr.bf16.gmra.mxu0 %v4052
      %v4178 = vpop.f32.mrf.mxu0
      %v4179 = vadd.f32 %v3731, %v4178
      %v4180 = vpop.f32.mrf.mxu0
      %v4181 = vpop.f32.mrf.mxu0
      %v4182 = vadd.f32 %v3734, %v4181
      %v4183 = vpop.f32.mrf.mxu0
      %4184 = vmatprep.mubr.bf16.mxu0 0
      %4185 = vmatmul.mubr.bf16.gmra.mxu0 %v4055
      %v4186 = vpop.f32.mrf.mxu0
      %v4187 = vadd.f32 %v3739, %v4186
      %v4188 = vpop.f32.mrf.mxu0
      %v4189 = vpop.f32.mrf.mxu0
      %v4190 = vadd.f32 %v3742, %v4189
      %v4191 = vpop.f32.mrf.mxu0
      %4192 = vmatprep.mubr.bf16.mxu0 0
      %4193 = vmatmul.mubr.bf16.gmra.mxu0 %v4058
      %v4194 = vpop.f32.mrf.mxu0
      %v4195 = vadd.f32 %v3747, %v4194
      %v4196 = vpop.f32.mrf.mxu0
      %v4197 = vpop.f32.mrf.mxu0
      %v4198 = vadd.f32 %v3750, %v4197
      %v4199 = vpop.f32.mrf.mxu0
      %4200 = vmatprep.mubr.bf16.mxu0 0
      %4201 = vmatmul.mubr.bf16.gmra.mxu0 %v4061
      %v4202 = vpop.f32.mrf.mxu0
      %v4203 = vadd.f32 %v3755, %v4202
      %v4204 = vpop.f32.mrf.mxu0
      %v4205 = vpop.f32.mrf.mxu0
      %v4206 = vadd.f32 %v3758, %v4205
      %v4207 = vpop.f32.mrf.mxu0
      %4208 = vmatprep.mubr.bf16.mxu0 0
      %4209 = vmatmul.mubr.bf16.gmra.mxu0 %v4064
      %v4210 = vpop.f32.mrf.mxu0
      %v4211 = vadd.f32 %v3763, %v4210
      %v4212 = vpop.f32.mrf.mxu0
      %v4213 = vpop.f32.mrf.mxu0
      %v4214 = vadd.f32 %v3766, %v4213
      %v4215 = vpop.f32.mrf.mxu0
      %4216 = vmatprep.mubr.bf16.mxu0 0
      %4217 = vmatmul.mubr.bf16.gmra.mxu0 %v4067
      %v4218 = vpop.f32.mrf.mxu0
      %v4219 = vadd.f32 %v3771, %v4218
      %v4220 = vpop.f32.mrf.mxu0
      %v4221 = vpop.f32.mrf.mxu0
      %v4222 = vadd.f32 %v3774, %v4221
      %v4223 = vpop.f32.mrf.mxu0
      %4224 = vmatprep.mubr.bf16.mxu0 0
      %4225 = vmatmul.mubr.bf16.gmra.mxu0 %v4070
      %v4226 = vpop.f32.mrf.mxu0
      %v4227 = vadd.f32 %v3779, %v4226
      %v4228 = vpop.f32.mrf.mxu0
      %v4229 = vpop.f32.mrf.mxu0
      %v4230 = vadd.f32 %v3782, %v4229
      %v4231 = vpop.f32.mrf.mxu0
      %4232 = vdwg.mxu0
      %v4233 = vld [vmem:[%s192 + $0x8] sm:$0xf]
      %v4234 = vld [vmem:[%s192 + $0xc] sm:$0xf]
      %v4235 = vld [vmem:[%s192 + $0x10] sm:$0xf]
      %v4236 = vld [vmem:[%s192 + $0x14] sm:$0xf]
      %v4237 = vld [vmem:[%s192 + $0x18] sm:$0xf]
      %v4238 = vld [vmem:[%s192 + $0x1c] sm:$0xf]
      %v4239 = vld [vmem:[%s192 + $0x20] sm:$0xf]
      %v4240 = vld [vmem:[%s192 + $0x24] sm:$0xf]
      %v4241 = vld [vmem:[%s192 + $0x28] sm:$0xf]
      %v4242 = vld [vmem:[%s192 + $0x2c] sm:$0xf]
      %v4243 = vld [vmem:[%s192 + $0x30] sm:$0xf]
      %v4244 = vld [vmem:[%s192 + $0x34] sm:$0xf]
      %v4245 = vld [vmem:[%s192 + $0x38] sm:$0xf]
      %v4246 = vld [vmem:[%s192 + $0x3c] sm:$0xf]
      %v4247 = vld [vmem:[%s192 + $0x40] sm:$0xf]
      %v4248 = vld [vmem:[%s192 + $0x44] sm:$0xf]
      %v4249 = vld [vmem:[%s192 + $0x48] sm:$0xf]
      %v4250 = vld [vmem:[%s192 + $0x4c] sm:$0xf]
      %v4251 = vld [vmem:[%s192 + $0x50] sm:$0xf]
      %v4252 = vld [vmem:[%s192 + $0x54] sm:$0xf]
      %v4253 = vld [vmem:[%s192 + $0x58] sm:$0xf]
      %v4254 = vld [vmem:[%s192 + $0x5c] sm:$0xf]
      %v4255 = vld [vmem:[%s192 + $0x60] sm:$0xf]
      %v4256 = vld [vmem:[%s192 + $0x64] sm:$0xf]
      %v4257 = vld [vmem:[%s192 + $0x68] sm:$0xf]
      %v4258 = vld [vmem:[%s192 + $0x6c] sm:$0xf]
      %v4259 = vld [vmem:[%s192 + $0x70] sm:$0xf]
      %v4260 = vld [vmem:[%s192 + $0x74] sm:$0xf]
      %v4261 = vld [vmem:[%s192 + $0x78] sm:$0xf]
      %v4262 = vld [vmem:[%s192 + $0x7c] sm:$0xf]
      %v4263 = vld [vmem:[%s192 + $0x80] sm:$0xf]
      %v4264 = vld [vmem:[%s192 + $0x84] sm:$0xf]
      %v4265 = vld [vmem:[%s192 + $0x88] sm:$0x1]
      %s4266 = scalar_lea.vmem %s2, 192
      %v4267 = vld [vmem:[%s4266] sm:$0xf]
      %v4268 = vld [vmem:[%s4266 + $0x4] sm:$0xf]
      %v4269 = vld [vmem:[%s4266 + $0x8] sm:$0xf]
      %v4270 = vld [vmem:[%s4266 + $0xc] sm:$0xf]
      %v4271 = vld [vmem:[%s4266 + $0x10] sm:$0xf]
      %v4272 = vld [vmem:[%s4266 + $0x14] sm:$0xf]
      %v4273 = vld [vmem:[%s4266 + $0x18] sm:$0xf]
      %v4274 = vld [vmem:[%s4266 + $0x1c] sm:$0xf]
      %v4308 = vunpack.c.l.b16 %v4233
      %v4309 = vunpack.c.l.b16 %v4234
      %v4310 = vunpack.c.l.b16 %v4235
      %v4311 = vunpack.c.l.b16 %v4236
      %v4312 = vunpack.c.l.b16 %v4237
      %v4313 = vunpack.c.l.b16 %v4238
      %v4314 = vunpack.c.l.b16 %v4239
      %v4315 = vunpack.c.l.b16 %v4240
      %v4316 = vunpack.c.l.b16 %v4241
      %v4317 = vunpack.c.l.b16 %v4242
      %v4318 = vunpack.c.l.b16 %v4243
      %v4319 = vunpack.c.l.b16 %v4244
      %v4320 = vunpack.c.l.b16 %v4245
      %v4321 = vunpack.c.l.b16 %v4246
      %v4322 = vunpack.c.l.b16 %v4247
      %v4323 = vunpack.c.l.b16 %v4248
      %v4324 = vunpack.c.l.b16 %v4249
      %v4325 = vunpack.c.l.b16 %v4250
      %v4326 = vunpack.c.l.b16 %v4251
      %v4327 = vunpack.c.l.b16 %v4252
      %v4328 = vunpack.c.l.b16 %v4253
      %v4329 = vunpack.c.l.b16 %v4254
      %v4330 = vunpack.c.l.b16 %v4255
      %v4331 = vunpack.c.l.b16 %v4256
      %v4332 = vunpack.c.l.b16 %v4257
      %v4333 = vunpack.c.l.b16 %v4258
      %v4334 = vunpack.c.l.b16 %v4259
      %v4335 = vunpack.c.l.b16 %v4260
      %v4336 = vunpack.c.l.b16 %v4261
      %v4337 = vunpack.c.l.b16 %v4262
      %v4338 = vunpack.c.l.b16 %v4263
      %v4339 = vunpack.c.l.b16 %v4264
      %v4340 = vunpack.c.l.b16 %v4265
      %v4341 = vpack.c.b16 %v4309, %v4308
      %v4342 = vpack.c.b16 %v4311, %v4310
      %v4343 = vpack.c.b16 %v4313, %v4312
      %v4344 = vpack.c.b16 %v4315, %v4314
      %v4345 = vpack.c.b16 %v4317, %v4316
      %v4346 = vpack.c.b16 %v4319, %v4318
      %v4347 = vpack.c.b16 %v4321, %v4320
      %v4348 = vpack.c.b16 %v4323, %v4322
      %v4349 = vpack.c.b16 %v4325, %v4324
      %v4350 = vpack.c.b16 %v4327, %v4326
      %v4351 = vpack.c.b16 %v4329, %v4328
      %v4352 = vpack.c.b16 %v4331, %v4330
      %v4353 = vpack.c.b16 %v4333, %v4332
      %v4354 = vpack.c.b16 %v4335, %v4334
      %v4355 = vpack.c.b16 %v4337, %v4336
      %v4356 = vpack.c.b16 %v4339, %v4338
      %v4357 = vpack.c.b16 %v4340, %v4340
      %v4359 = vshrl.u32 %v4341, 16
      %v4361 = vshll.u32 %v4341, 16
      %v4363 = vrot.slane %v4361, 1
      %v4364 = vor.u32 %v4359, %v4363
      %v4366 = vshll.u32 %v4342, 16
      %v4368 = vrot.slane %v4366, 1
      %v4369 = vsel %vm813, %v4364, %v4368
      %v4370 = vshrl.u32 %v4342, 16
      %v4372 = vor.u32 %v4370, %v4368
      %v4374 = vshll.u32 %v4343, 16
      %v4376 = vrot.slane %v4374, 1
      %v4377 = vsel %vm813, %v4372, %v4376
      %v4378 = vshrl.u32 %v4343, 16
      %v4380 = vor.u32 %v4378, %v4376
      %v4382 = vshll.u32 %v4344, 16
      %v4384 = vrot.slane %v4382, 1
      %v4385 = vsel %vm813, %v4380, %v4384
      %v4386 = vshrl.u32 %v4344, 16
      %v4388 = vor.u32 %v4386, %v4384
      %v4390 = vshll.u32 %v4345, 16
      %v4392 = vrot.slane %v4390, 1
      %v4393 = vsel %vm813, %v4388, %v4392
      %v4394 = vshrl.u32 %v4345, 16
      %v4396 = vor.u32 %v4394, %v4392
      %v4398 = vshll.u32 %v4346, 16
      %v4400 = vrot.slane %v4398, 1
      %v4401 = vsel %vm813, %v4396, %v4400
      %v4402 = vshrl.u32 %v4346, 16
      %v4404 = vor.u32 %v4402, %v4400
      %v4406 = vshll.u32 %v4347, 16
      %v4408 = vrot.slane %v4406, 1
      %v4409 = vsel %vm813, %v4404, %v4408
      %v4410 = vshrl.u32 %v4347, 16
      %v4412 = vor.u32 %v4410, %v4408
      %v4414 = vshll.u32 %v4348, 16
      %v4416 = vrot.slane %v4414, 1
      %v4417 = vsel %vm813, %v4412, %v4416
      %v4418 = vshrl.u32 %v4348, 16
      %v4420 = vor.u32 %v4418, %v4416
      %v4422 = vshll.u32 %v4349, 16
      %v4424 = vrot.slane %v4422, 1
      %v4425 = vsel %vm813, %v4420, %v4424
      %v4426 = vshrl.u32 %v4349, 16
      %v4428 = vor.u32 %v4426, %v4424
      %v4430 = vshll.u32 %v4350, 16
      %v4432 = vrot.slane %v4430, 1
      %v4433 = vsel %vm813, %v4428, %v4432
      %v4434 = vshrl.u32 %v4350, 16
      %v4436 = vor.u32 %v4434, %v4432
      %v4438 = vshll.u32 %v4351, 16
      %v4440 = vrot.slane %v4438, 1
      %v4441 = vsel %vm813, %v4436, %v4440
      %v4442 = vshrl.u32 %v4351, 16
      %v4444 = vor.u32 %v4442, %v4440
      %v4446 = vshll.u32 %v4352, 16
      %v4448 = vrot.slane %v4446, 1
      %v4449 = vsel %vm813, %v4444, %v4448
      %v4450 = vshrl.u32 %v4352, 16
      %v4452 = vor.u32 %v4450, %v4448
      %v4454 = vshll.u32 %v4353, 16
      %v4456 = vrot.slane %v4454, 1
      %v4457 = vsel %vm813, %v4452, %v4456
      %v4458 = vshrl.u32 %v4353, 16
      %v4460 = vor.u32 %v4458, %v4456
      %v4462 = vshll.u32 %v4354, 16
      %v4464 = vrot.slane %v4462, 1
      %v4465 = vsel %vm813, %v4460, %v4464
      %v4466 = vshrl.u32 %v4354, 16
      %v4468 = vor.u32 %v4466, %v4464
      %v4470 = vshll.u32 %v4355, 16
      %v4472 = vrot.slane %v4470, 1
      %v4473 = vsel %vm813, %v4468, %v4472
      %v4474 = vshrl.u32 %v4355, 16
      %v4476 = vor.u32 %v4474, %v4472
      %v4478 = vshll.u32 %v4356, 16
      %v4480 = vrot.slane %v4478, 1
      %v4481 = vsel %vm813, %v4476, %v4480
      %v4482 = vshrl.u32 %v4356, 16
      %v4484 = vor.u32 %v4482, %v4480
      %v4486 = vshll.u32 %v4357, 16
      %v4488 = vrot.slane %v4486, 1
      %v4489 = vsel %vm813, %v4484, %v4488
      %v4498 = vunpack.c.l.b16 %v4267
      %v4499 = vunpack.c.l.b16 %v4268
      %v4500 = vunpack.c.l.b16 %v4269
      %v4501 = vunpack.c.l.b16 %v4270
      %v4502 = vunpack.c.l.b16 %v4271
      %v4503 = vunpack.c.l.b16 %v4272
      %v4504 = vunpack.c.l.b16 %v4273
      %v4505 = vunpack.c.l.b16 %v4274
      %v4506 = vpack.c.b16 %v4499, %v4498
      %v4507 = vpack.c.b16 %v4501, %v4500
      %v4508 = vpack.c.b16 %v4503, %v4502
      %v4509 = vpack.c.b16 %v4505, %v4504
      %v4515 = vsel %vm970, %v4369, 0
      %v4518 = vsel %vm970, %v4377, 0
      %v4521 = vsel %vm970, %v4385, 0
      %v4524 = vsel %vm970, %v4393, 0
      %v4527 = vsel %vm970, %v4401, 0
      %v4530 = vsel %vm970, %v4409, 0
      %v4533 = vsel %vm970, %v4417, 0
      %v4536 = vsel %vm970, %v4425, 0
      %v4539 = vsel %vm970, %v4433, 0
      %v4542 = vsel %vm970, %v4441, 0
      %v4545 = vsel %vm970, %v4449, 0
      %v4548 = vsel %vm970, %v4457, 0
      %v4551 = vsel %vm970, %v4465, 0
      %v4554 = vsel %vm970, %v4473, 0
      %v4557 = vsel %vm970, %v4481, 0
      %v4560 = vsel %vm970, %v4489, 0
      %4562 = vmatprep.subr.bf16.mxu0 0
      %4563 = vmatpush1.bf16.msra.mxu0 0
      %4564 = vmatprep.subr.bf16.mxu0 0
      %4565 = vmatpush1.bf16.msra.mxu0 0
      %4566 = vmatprep.subr.bf16.mxu0 0
      %4567 = vmatpush1.bf16.msra.mxu0 0
      %4568 = vmatprep.subr.bf16.mxu0 0
      %4569 = vmatpush1.bf16.msra.mxu0 0
      %4570 = vmatprep.subr.bf16.mxu0 0
      %4571 = vmatpush1.bf16.msra.mxu0 %v4509
      %4572 = vmatprep.subr.bf16.mxu0 0
      %4573 = vmatpush1.bf16.msra.mxu0 %v4508
      %4574 = vmatprep.subr.bf16.mxu0 0
      %4575 = vmatpush1.bf16.msra.mxu0 %v4507
      %4576 = vmatprep.subr.bf16.mxu0 0
      %4577 = vmatpush1.bf16.msra.mxu0 %v4506
      %4578 = vmatprep.subr.bf16.mxu0 0
      %4579 = vmatpush2.bf16.msra.mxu0 0
      %4580 = vmatprep.subr.bf16.mxu0 0
      %4581 = vmatpush2.bf16.msra.mxu0 0
      %4582 = vmatprep.subr.bf16.mxu0 0
      %4583 = vmatpush2.bf16.msra.mxu0 0
      %4584 = vmatprep.subr.bf16.mxu0 0
      %4585 = vmatpush2.bf16.msra.mxu0 0
      %4586 = vmatprep.subr.bf16.mxu0 0
      %4587 = vmatpush2.bf16.msra.mxu0 0
      %4588 = vmatprep.subr.bf16.mxu0 0
      %4589 = vmatpush2.bf16.msra.mxu0 0
      %4590 = vmatprep.subr.bf16.mxu0 0
      %4591 = vmatpush2.bf16.msra.mxu0 0
      %4592 = vmatprep.subr.bf16.mxu0 0
      %4593 = vmatpush2.bf16.msra.mxu0 0
      %4594 = vmatprep.mubr.bf16.mxu0 0
      %4595 = vmatmul.mubr.bf16.gmra.mxu0 %v4515
      %v4596 = vpop.f32.mrf.mxu0
      %v4597 = vadd.f32 0.0, %v4596
      %v4598 = vpop.f32.mrf.mxu0
      %v4599 = vpop.f32.mrf.mxu0
      %v4600 = vadd.f32 0.0, %v4599
      %v4601 = vpop.f32.mrf.mxu0
      %4602 = vmatprep.mubr.bf16.mxu0 0
      %4603 = vmatmul.mubr.bf16.gmra.mxu0 %v4518
      %v4604 = vpop.f32.mrf.mxu0
      %v4605 = vadd.f32 0.0, %v4604
      %v4606 = vpop.f32.mrf.mxu0
      %v4607 = vpop.f32.mrf.mxu0
      %v4608 = vadd.f32 0.0, %v4607
      %v4609 = vpop.f32.mrf.mxu0
      %4610 = vmatprep.mubr.bf16.mxu0 0
      %4611 = vmatmul.mubr.bf16.gmra.mxu0 %v4521
      %v4612 = vpop.f32.mrf.mxu0
      %v4613 = vadd.f32 0.0, %v4612
      %v4614 = vpop.f32.mrf.mxu0
      %v4615 = vpop.f32.mrf.mxu0
      %v4616 = vadd.f32 0.0, %v4615
      %v4617 = vpop.f32.mrf.mxu0
      %4618 = vmatprep.mubr.bf16.mxu0 0
      %4619 = vmatmul.mubr.bf16.gmra.mxu0 %v4524
      %v4620 = vpop.f32.mrf.mxu0
      %v4621 = vadd.f32 0.0, %v4620
      %v4622 = vpop.f32.mrf.mxu0
      %v4623 = vpop.f32.mrf.mxu0
      %v4624 = vadd.f32 0.0, %v4623
      %v4625 = vpop.f32.mrf.mxu0
      %4626 = vmatprep.mubr.bf16.mxu0 0
      %4627 = vmatmul.mubr.bf16.gmra.mxu0 %v4527
      %v4628 = vpop.f32.mrf.mxu0
      %v4629 = vadd.f32 0.0, %v4628
      %v4630 = vpop.f32.mrf.mxu0
      %v4631 = vpop.f32.mrf.mxu0
      %v4632 = vadd.f32 0.0, %v4631
      %v4633 = vpop.f32.mrf.mxu0
      %4634 = vmatprep.mubr.bf16.mxu0 0
      %4635 = vmatmul.mubr.bf16.gmra.mxu0 %v4530
      %v4636 = vpop.f32.mrf.mxu0
      %v4637 = vadd.f32 0.0, %v4636
      %v4638 = vpop.f32.mrf.mxu0
      %v4639 = vpop.f32.mrf.mxu0
      %v4640 = vadd.f32 0.0, %v4639
      %v4641 = vpop.f32.mrf.mxu0
      %4642 = vmatprep.mubr.bf16.mxu0 0
      %4643 = vmatmul.mubr.bf16.gmra.mxu0 %v4533
      %v4644 = vpop.f32.mrf.mxu0
      %v4645 = vadd.f32 0.0, %v4644
      %v4646 = vpop.f32.mrf.mxu0
      %v4647 = vpop.f32.mrf.mxu0
      %v4648 = vadd.f32 0.0, %v4647
      %v4649 = vpop.f32.mrf.mxu0
      %4650 = vmatprep.mubr.bf16.mxu0 0
      %4651 = vmatmul.mubr.bf16.gmra.mxu0 %v4536
      %v4652 = vpop.f32.mrf.mxu0
      %v4653 = vadd.f32 0.0, %v4652
      %v4654 = vpop.f32.mrf.mxu0
      %v4655 = vpop.f32.mrf.mxu0
      %v4656 = vadd.f32 0.0, %v4655
      %v4657 = vpop.f32.mrf.mxu0
      %4658 = vmatprep.mubr.bf16.mxu0 0
      %4659 = vmatmul.mubr.bf16.gmra.mxu0 %v4539
      %v4660 = vpop.f32.mrf.mxu0
      %v4661 = vadd.f32 0.0, %v4660
      %v4662 = vpop.f32.mrf.mxu0
      %v4663 = vpop.f32.mrf.mxu0
      %v4664 = vadd.f32 0.0, %v4663
      %v4665 = vpop.f32.mrf.mxu0
      %4666 = vmatprep.mubr.bf16.mxu0 0
      %4667 = vmatmul.mubr.bf16.gmra.mxu0 %v4542
      %v4668 = vpop.f32.mrf.mxu0
      %v4669 = vadd.f32 0.0, %v4668
      %v4670 = vpop.f32.mrf.mxu0
      %v4671 = vpop.f32.mrf.mxu0
      %v4672 = vadd.f32 0.0, %v4671
      %v4673 = vpop.f32.mrf.mxu0
      %4674 = vmatprep.mubr.bf16.mxu0 0
      %4675 = vmatmul.mubr.bf16.gmra.mxu0 %v4545
      %v4676 = vpop.f32.mrf.mxu0
      %v4677 = vadd.f32 0.0, %v4676
      %v4678 = vpop.f32.mrf.mxu0
      %v4679 = vpop.f32.mrf.mxu0
      %v4680 = vadd.f32 0.0, %v4679
      %v4681 = vpop.f32.mrf.mxu0
      %4682 = vmatprep.mubr.bf16.mxu0 0
      %4683 = vmatmul.mubr.bf16.gmra.mxu0 %v4548
      %v4684 = vpop.f32.mrf.mxu0
      %v4685 = vadd.f32 0.0, %v4684
      %v4686 = vpop.f32.mrf.mxu0
      %v4687 = vpop.f32.mrf.mxu0
      %v4688 = vadd.f32 0.0, %v4687
      %v4689 = vpop.f32.mrf.mxu0
      %4690 = vmatprep.mubr.bf16.mxu0 0
      %4691 = vmatmul.mubr.bf16.gmra.mxu0 %v4551
      %v4692 = vpop.f32.mrf.mxu0
      %v4693 = vadd.f32 0.0, %v4692
      %v4694 = vpop.f32.mrf.mxu0
      %v4695 = vpop.f32.mrf.mxu0
      %v4696 = vadd.f32 0.0, %v4695
      %v4697 = vpop.f32.mrf.mxu0
      %4698 = vmatprep.mubr.bf16.mxu0 0
      %4699 = vmatmul.mubr.bf16.gmra.mxu0 %v4554
      %v4700 = vpop.f32.mrf.mxu0
      %v4701 = vadd.f32 0.0, %v4700
      %v4702 = vpop.f32.mrf.mxu0
      %v4703 = vpop.f32.mrf.mxu0
      %v4704 = vadd.f32 0.0, %v4703
      %v4705 = vpop.f32.mrf.mxu0
      %4706 = vmatprep.mubr.bf16.mxu0 0
      %4707 = vmatmul.mubr.bf16.gmra.mxu0 %v4557
      %v4708 = vpop.f32.mrf.mxu0
      %v4709 = vadd.f32 0.0, %v4708
      %v4710 = vpop.f32.mrf.mxu0
      %v4711 = vpop.f32.mrf.mxu0
      %v4712 = vadd.f32 0.0, %v4711
      %v4713 = vpop.f32.mrf.mxu0
      %4714 = vmatprep.mubr.bf16.mxu0 0
      %4715 = vmatmul.mubr.bf16.gmra.mxu0 %v4560
      %v4716 = vpop.f32.mrf.mxu0
      %v4717 = vadd.f32 0.0, %v4716
      %v4718 = vpop.f32.mrf.mxu0
      %v4719 = vpop.f32.mrf.mxu0
      %v4720 = vadd.f32 0.0, %v4719
      %v4721 = vpop.f32.mrf.mxu0
      %4722 = vdwg.mxu0
      %v4723 = vadd.f32 %v4107, %v4597
      %v4724 = vadd.f32 %v4110, %v4600
      %v4725 = vadd.f32 %v4115, %v4605
      %v4726 = vadd.f32 %v4118, %v4608
      %v4727 = vadd.f32 %v4123, %v4613
      %v4728 = vadd.f32 %v4126, %v4616
      %v4729 = vadd.f32 %v4131, %v4621
      %v4730 = vadd.f32 %v4134, %v4624
      %v4731 = vadd.f32 %v4139, %v4629
      %v4732 = vadd.f32 %v4142, %v4632
      %v4733 = vadd.f32 %v4147, %v4637
      %v4734 = vadd.f32 %v4150, %v4640
      %v4735 = vadd.f32 %v4155, %v4645
      %v4736 = vadd.f32 %v4158, %v4648
      %v4737 = vadd.f32 %v4163, %v4653
      %v4738 = vadd.f32 %v4166, %v4656
      %v4739 = vadd.f32 %v4171, %v4661
      %v4740 = vadd.f32 %v4174, %v4664
      %v4741 = vadd.f32 %v4179, %v4669
      %v4742 = vadd.f32 %v4182, %v4672
      %v4743 = vadd.f32 %v4187, %v4677
      %v4744 = vadd.f32 %v4190, %v4680
      %v4745 = vadd.f32 %v4195, %v4685
      %v4746 = vadd.f32 %v4198, %v4688
      %v4747 = vadd.f32 %v4203, %v4693
      %v4748 = vadd.f32 %v4206, %v4696
      %v4749 = vadd.f32 %v4211, %v4701
      %v4750 = vadd.f32 %v4214, %v4704
      %v4751 = vadd.f32 %v4219, %v4709
      %v4752 = vadd.f32 %v4222, %v4712
      %v4753 = vadd.f32 %v4227, %v4717
      %v4754 = vadd.f32 %v4230, %v4720
      %v4755 = vld [vmem:[%s192 + $0x8] sm:$0xe]
      %v4756 = vld [vmem:[%s2963 + $0x8] sm:$0xe]
      %v4757 = vld [vmem:[%s2963 + $0xc] sm:$0xf]
      %v4758 = vld [vmem:[%s2963 + $0x10] sm:$0xf]
      %v4759 = vld [vmem:[%s2963 + $0x14] sm:$0xf]
      %v4760 = vld [vmem:[%s2963 + $0x18] sm:$0xf]
      %v4761 = vld [vmem:[%s2963 + $0x1c] sm:$0xf]
      %v4762 = vld [vmem:[%s2963 + $0x20] sm:$0xf]
      %v4763 = vld [vmem:[%s2963 + $0x24] sm:$0xf]
      %v4764 = vld [vmem:[%s2963 + $0x28] sm:$0xf]
      %v4765 = vld [vmem:[%s2963 + $0x2c] sm:$0xf]
      %v4766 = vld [vmem:[%s2963 + $0x30] sm:$0xf]
      %v4767 = vld [vmem:[%s2963 + $0x34] sm:$0xf]
      %v4768 = vld [vmem:[%s2963 + $0x38] sm:$0xf]
      %v4769 = vld [vmem:[%s2963 + $0x3c] sm:$0xf]
      %v4770 = vld [vmem:[%s2963 + $0x40] sm:$0xf]
      %v4771 = vld [vmem:[%s2963 + $0x44] sm:$0xf]
      %v4772 = vld [vmem:[%s2963 + $0x48] sm:$0xf]
      %v4773 = vld [vmem:[%s2963 + $0x4c] sm:$0xf]
      %v4774 = vld [vmem:[%s2963 + $0x50] sm:$0xf]
      %v4775 = vld [vmem:[%s2963 + $0x54] sm:$0xf]
      %v4776 = vld [vmem:[%s2963 + $0x58] sm:$0xf]
      %v4777 = vld [vmem:[%s2963 + $0x5c] sm:$0xf]
      %v4778 = vld [vmem:[%s2963 + $0x60] sm:$0xf]
      %v4779 = vld [vmem:[%s2963 + $0x64] sm:$0xf]
      %v4780 = vld [vmem:[%s2963 + $0x68] sm:$0xf]
      %v4781 = vld [vmem:[%s2963 + $0x6c] sm:$0xf]
      %v4782 = vld [vmem:[%s2963 + $0x70] sm:$0xf]
      %v4783 = vld [vmem:[%s2963 + $0x74] sm:$0xf]
      %v4784 = vld [vmem:[%s2963 + $0x78] sm:$0xf]
      %v4785 = vld [vmem:[%s2963 + $0x7c] sm:$0xf]
      %v4786 = vld [vmem:[%s2963 + $0x80] sm:$0xf]
      %v4787 = vld [vmem:[%s2963 + $0x84] sm:$0xf]
      %v4788 = vld [vmem:[%s2963 + $0x88] sm:$0x1]
      %4790 = vset.pattern.permute.xlu0 0
      %4791 = vperm.xlu0 %4790, %v4756
      %v4792 = vpop.permute.xlu0 %4791
      %v4795 = vunpack.c.l.s4 839922192
      %v4796 = vunpack.c.0.s8 %v4795
      %v4797 = vlaneseq
      %v4798 = vshrl.u32 %v4797, 7
      %v4799 = vsub.s32 %v4796, %v4798
      %v4800 = vrot.slane %v4792, %v4799
      %4802 = vset.pattern.permute.xlu0 0
      %4803 = vperm.xlu0 %4802, %v4757
      %v4804 = vpop.permute.xlu0 %4803
      %v4807 = vunpack.c.l.s4 839922192
      %v4808 = vunpack.c.0.s8 %v4807
      %v4809 = vlaneseq
      %v4810 = vshrl.u32 %v4809, 7
      %v4811 = vsub.s32 %v4808, %v4810
      %v4812 = vrot.slane %v4804, %v4811
      %4814 = vset.pattern.permute.xlu0 0
      %4815 = vperm.xlu0 %4814, %v4758
      %v4816 = vpop.permute.xlu0 %4815
      %v4819 = vunpack.c.l.s4 839922192
      %v4820 = vunpack.c.0.s8 %v4819
      %v4821 = vlaneseq
      %v4822 = vshrl.u32 %v4821, 7
      %v4823 = vsub.s32 %v4820, %v4822
      %v4824 = vrot.slane %v4816, %v4823
      %4826 = vset.pattern.permute.xlu0 0
      %4827 = vperm.xlu0 %4826, %v4759
      %v4828 = vpop.permute.xlu0 %4827
      %v4831 = vunpack.c.l.s4 839922192
      %v4832 = vunpack.c.0.s8 %v4831
      %v4833 = vlaneseq
      %v4834 = vshrl.u32 %v4833, 7
      %v4835 = vsub.s32 %v4832, %v4834
      %v4836 = vrot.slane %v4828, %v4835
      %4838 = vset.pattern.permute.xlu0 0
      %4839 = vperm.xlu0 %4838, %v4760
      %v4840 = vpop.permute.xlu0 %4839
      %v4843 = vunpack.c.l.s4 839922192
      %v4844 = vunpack.c.0.s8 %v4843
      %v4845 = vlaneseq
      %v4846 = vshrl.u32 %v4845, 7
      %v4847 = vsub.s32 %v4844, %v4846
      %v4848 = vrot.slane %v4840, %v4847
      %4850 = vset.pattern.permute.xlu0 0
      %4851 = vperm.xlu0 %4850, %v4761
      %v4852 = vpop.permute.xlu0 %4851
      %v4855 = vunpack.c.l.s4 839922192
      %v4856 = vunpack.c.0.s8 %v4855
      %v4857 = vlaneseq
      %v4858 = vshrl.u32 %v4857, 7
      %v4859 = vsub.s32 %v4856, %v4858
      %v4860 = vrot.slane %v4852, %v4859
      %4862 = vset.pattern.permute.xlu0 0
      %4863 = vperm.xlu0 %4862, %v4762
      %v4864 = vpop.permute.xlu0 %4863
      %v4867 = vunpack.c.l.s4 839922192
      %v4868 = vunpack.c.0.s8 %v4867
      %v4869 = vlaneseq
      %v4870 = vshrl.u32 %v4869, 7
      %v4871 = vsub.s32 %v4868, %v4870
      %v4872 = vrot.slane %v4864, %v4871
      %4874 = vset.pattern.permute.xlu0 0
      %4875 = vperm.xlu0 %4874, %v4763
      %v4876 = vpop.permute.xlu0 %4875
      %v4879 = vunpack.c.l.s4 839922192
      %v4880 = vunpack.c.0.s8 %v4879
      %v4881 = vlaneseq
      %v4882 = vshrl.u32 %v4881, 7
      %v4883 = vsub.s32 %v4880, %v4882
      %v4884 = vrot.slane %v4876, %v4883
      %4886 = vset.pattern.permute.xlu0 0
      %4887 = vperm.xlu0 %4886, %v4764
      %v4888 = vpop.permute.xlu0 %4887
      %v4891 = vunpack.c.l.s4 839922192
      %v4892 = vunpack.c.0.s8 %v4891
      %v4893 = vlaneseq
      %v4894 = vshrl.u32 %v4893, 7
      %v4895 = vsub.s32 %v4892, %v4894
      %v4896 = vrot.slane %v4888, %v4895
      %4898 = vset.pattern.permute.xlu0 0
      %4899 = vperm.xlu0 %4898, %v4765
      %v4900 = vpop.permute.xlu0 %4899
      %v4903 = vunpack.c.l.s4 839922192
      %v4904 = vunpack.c.0.s8 %v4903
      %v4905 = vlaneseq
      %v4906 = vshrl.u32 %v4905, 7
      %v4907 = vsub.s32 %v4904, %v4906
      %v4908 = vrot.slane %v4900, %v4907
      %4910 = vset.pattern.permute.xlu0 0
      %4911 = vperm.xlu0 %4910, %v4766
      %v4912 = vpop.permute.xlu0 %4911
      %v4915 = vunpack.c.l.s4 839922192
      %v4916 = vunpack.c.0.s8 %v4915
      %v4917 = vlaneseq
      %v4918 = vshrl.u32 %v4917, 7
      %v4919 = vsub.s32 %v4916, %v4918
      %v4920 = vrot.slane %v4912, %v4919
      %4922 = vset.pattern.permute.xlu0 0
      %4923 = vperm.xlu0 %4922, %v4767
      %v4924 = vpop.permute.xlu0 %4923
      %v4927 = vunpack.c.l.s4 839922192
      %v4928 = vunpack.c.0.s8 %v4927
      %v4929 = vlaneseq
      %v4930 = vshrl.u32 %v4929, 7
      %v4931 = vsub.s32 %v4928, %v4930
      %v4932 = vrot.slane %v4924, %v4931
      %4934 = vset.pattern.permute.xlu0 0
      %4935 = vperm.xlu0 %4934, %v4768
      %v4936 = vpop.permute.xlu0 %4935
      %v4939 = vunpack.c.l.s4 839922192
      %v4940 = vunpack.c.0.s8 %v4939
      %v4941 = vlaneseq
      %v4942 = vshrl.u32 %v4941, 7
      %v4943 = vsub.s32 %v4940, %v4942
      %v4944 = vrot.slane %v4936, %v4943
      %4946 = vset.pattern.permute.xlu0 0
      %4947 = vperm.xlu0 %4946, %v4769
      %v4948 = vpop.permute.xlu0 %4947
      %v4951 = vunpack.c.l.s4 839922192
      %v4952 = vunpack.c.0.s8 %v4951
      %v4953 = vlaneseq
      %v4954 = vshrl.u32 %v4953, 7
      %v4955 = vsub.s32 %v4952, %v4954
      %v4956 = vrot.slane %v4948, %v4955
      %4958 = vset.pattern.permute.xlu0 0
      %4959 = vperm.xlu0 %4958, %v4770
      %v4960 = vpop.permute.xlu0 %4959
      %v4963 = vunpack.c.l.s4 839922192
      %v4964 = vunpack.c.0.s8 %v4963
      %v4965 = vlaneseq
      %v4966 = vshrl.u32 %v4965, 7
      %v4967 = vsub.s32 %v4964, %v4966
      %v4968 = vrot.slane %v4960, %v4967
      %4970 = vset.pattern.permute.xlu0 0
      %4971 = vperm.xlu0 %4970, %v4771
      %v4972 = vpop.permute.xlu0 %4971
      %v4975 = vunpack.c.l.s4 839922192
      %v4976 = vunpack.c.0.s8 %v4975
      %v4977 = vlaneseq
      %v4978 = vshrl.u32 %v4977, 7
      %v4979 = vsub.s32 %v4976, %v4978
      %v4980 = vrot.slane %v4972, %v4979
      %4982 = vset.pattern.permute.xlu0 0
      %4983 = vperm.xlu0 %4982, %v4772
      %v4984 = vpop.permute.xlu0 %4983
      %v4987 = vunpack.c.l.s4 839922192
      %v4988 = vunpack.c.0.s8 %v4987
      %v4989 = vlaneseq
      %v4990 = vshrl.u32 %v4989, 7
      %v4991 = vsub.s32 %v4988, %v4990
      %v4992 = vrot.slane %v4984, %v4991
      %4994 = vset.pattern.permute.xlu0 0
      %4995 = vperm.xlu0 %4994, %v4773
      %v4996 = vpop.permute.xlu0 %4995
      %v4999 = vunpack.c.l.s4 839922192
      %v5000 = vunpack.c.0.s8 %v4999
      %v5001 = vlaneseq
      %v5002 = vshrl.u32 %v5001, 7
      %v5003 = vsub.s32 %v5000, %v5002
      %v5004 = vrot.slane %v4996, %v5003
      %5006 = vset.pattern.permute.xlu0 0
      %5007 = vperm.xlu0 %5006, %v4774
      %v5008 = vpop.permute.xlu0 %5007
      %v5011 = vunpack.c.l.s4 839922192
      %v5012 = vunpack.c.0.s8 %v5011
      %v5013 = vlaneseq
      %v5014 = vshrl.u32 %v5013, 7
      %v5015 = vsub.s32 %v5012, %v5014
      %v5016 = vrot.slane %v5008, %v5015
      %5018 = vset.pattern.permute.xlu0 0
      %5019 = vperm.xlu0 %5018, %v4775
      %v5020 = vpop.permute.xlu0 %5019
      %v5023 = vunpack.c.l.s4 839922192
      %v5024 = vunpack.c.0.s8 %v5023
      %v5025 = vlaneseq
      %v5026 = vshrl.u32 %v5025, 7
      %v5027 = vsub.s32 %v5024, %v5026
      %v5028 = vrot.slane %v5020, %v5027
      %5030 = vset.pattern.permute.xlu0 0
      %5031 = vperm.xlu0 %5030, %v4776
      %v5032 = vpop.permute.xlu0 %5031
      %v5035 = vunpack.c.l.s4 839922192
      %v5036 = vunpack.c.0.s8 %v5035
      %v5037 = vlaneseq
      %v5038 = vshrl.u32 %v5037, 7
      %v5039 = vsub.s32 %v5036, %v5038
      %v5040 = vrot.slane %v5032, %v5039
      %5042 = vset.pattern.permute.xlu0 0
      %5043 = vperm.xlu0 %5042, %v4777
      %v5044 = vpop.permute.xlu0 %5043
      %v5047 = vunpack.c.l.s4 839922192
      %v5048 = vunpack.c.0.s8 %v5047
      %v5049 = vlaneseq
      %v5050 = vshrl.u32 %v5049, 7
      %v5051 = vsub.s32 %v5048, %v5050
      %v5052 = vrot.slane %v5044, %v5051
      %5054 = vset.pattern.permute.xlu0 0
      %5055 = vperm.xlu0 %5054, %v4778
      %v5056 = vpop.permute.xlu0 %5055
      %v5059 = vunpack.c.l.s4 839922192
      %v5060 = vunpack.c.0.s8 %v5059
      %v5061 = vlaneseq
      %v5062 = vshrl.u32 %v5061, 7
      %v5063 = vsub.s32 %v5060, %v5062
      %v5064 = vrot.slane %v5056, %v5063
      %5066 = vset.pattern.permute.xlu0 0
      %5067 = vperm.xlu0 %5066, %v4779
      %v5068 = vpop.permute.xlu0 %5067
      %v5071 = vunpack.c.l.s4 839922192
      %v5072 = vunpack.c.0.s8 %v5071
      %v5073 = vlaneseq
      %v5074 = vshrl.u32 %v5073, 7
      %v5075 = vsub.s32 %v5072, %v5074
      %v5076 = vrot.slane %v5068, %v5075
      %5078 = vset.pattern.permute.xlu0 0
      %5079 = vperm.xlu0 %5078, %v4780
      %v5080 = vpop.permute.xlu0 %5079
      %v5083 = vunpack.c.l.s4 839922192
      %v5084 = vunpack.c.0.s8 %v5083
      %v5085 = vlaneseq
      %v5086 = vshrl.u32 %v5085, 7
      %v5087 = vsub.s32 %v5084, %v5086
      %v5088 = vrot.slane %v5080, %v5087
      %5090 = vset.pattern.permute.xlu0 0
      %5091 = vperm.xlu0 %5090, %v4781
      %v5092 = vpop.permute.xlu0 %5091
      %v5095 = vunpack.c.l.s4 839922192
      %v5096 = vunpack.c.0.s8 %v5095
      %v5097 = vlaneseq
      %v5098 = vshrl.u32 %v5097, 7
      %v5099 = vsub.s32 %v5096, %v5098
      %v5100 = vrot.slane %v5092, %v5099
      %5102 = vset.pattern.permute.xlu0 0
      %5103 = vperm.xlu0 %5102, %v4782
      %v5104 = vpop.permute.xlu0 %5103
      %v5107 = vunpack.c.l.s4 839922192
      %v5108 = vunpack.c.0.s8 %v5107
      %v5109 = vlaneseq
      %v5110 = vshrl.u32 %v5109, 7
      %v5111 = vsub.s32 %v5108, %v5110
      %v5112 = vrot.slane %v5104, %v5111
      %5114 = vset.pattern.permute.xlu0 0
      %5115 = vperm.xlu0 %5114, %v4783
      %v5116 = vpop.permute.xlu0 %5115
      %v5119 = vunpack.c.l.s4 839922192
      %v5120 = vunpack.c.0.s8 %v5119
      %v5121 = vlaneseq
      %v5122 = vshrl.u32 %v5121, 7
      %v5123 = vsub.s32 %v5120, %v5122
      %v5124 = vrot.slane %v5116, %v5123
      %5126 = vset.pattern.permute.xlu0 0
      %5127 = vperm.xlu0 %5126, %v4784
      %v5128 = vpop.permute.xlu0 %5127
      %v5131 = vunpack.c.l.s4 839922192
      %v5132 = vunpack.c.0.s8 %v5131
      %v5133 = vlaneseq
      %v5134 = vshrl.u32 %v5133, 7
      %v5135 = vsub.s32 %v5132, %v5134
      %v5136 = vrot.slane %v5128, %v5135
      %5138 = vset.pattern.permute.xlu0 0
      %5139 = vperm.xlu0 %5138, %v4785
      %v5140 = vpop.permute.xlu0 %5139
      %v5143 = vunpack.c.l.s4 839922192
      %v5144 = vunpack.c.0.s8 %v5143
      %v5145 = vlaneseq
      %v5146 = vshrl.u32 %v5145, 7
      %v5147 = vsub.s32 %v5144, %v5146
      %v5148 = vrot.slane %v5140, %v5147
      %5150 = vset.pattern.permute.xlu0 0
      %5151 = vperm.xlu0 %5150, %v4786
      %v5152 = vpop.permute.xlu0 %5151
      %v5155 = vunpack.c.l.s4 839922192
      %v5156 = vunpack.c.0.s8 %v5155
      %v5157 = vlaneseq
      %v5158 = vshrl.u32 %v5157, 7
      %v5159 = vsub.s32 %v5156, %v5158
      %v5160 = vrot.slane %v5152, %v5159
      %5162 = vset.pattern.permute.xlu0 0
      %5163 = vperm.xlu0 %5162, %v4787
      %v5164 = vpop.permute.xlu0 %5163
      %v5167 = vunpack.c.l.s4 839922192
      %v5168 = vunpack.c.0.s8 %v5167
      %v5169 = vlaneseq
      %v5170 = vshrl.u32 %v5169, 7
      %v5171 = vsub.s32 %v5168, %v5170
      %v5172 = vrot.slane %v5164, %v5171
      %5174 = vset.pattern.permute.xlu0 0
      %5175 = vperm.xlu0 %5174, %v4788
      %v5176 = vpop.permute.xlu0 %5175
      %v5179 = vunpack.c.l.s4 839922192
      %v5180 = vunpack.c.0.s8 %v5179
      %v5181 = vlaneseq
      %v5182 = vshrl.u32 %v5181, 7
      %v5183 = vsub.s32 %v5180, %v5182
      %v5184 = vrot.slane %v5176, %v5183
      %v5185 = vmul.bf16 %v4755, %v4800
      %v5186 = vmul.bf16 %v4234, %v4812
      %v5187 = vmul.bf16 %v4235, %v4824
      %v5188 = vmul.bf16 %v4236, %v4836
      %v5189 = vmul.bf16 %v4237, %v4848
      %v5190 = vmul.bf16 %v4238, %v4860
      %v5191 = vmul.bf16 %v4239, %v4872
      %v5192 = vmul.bf16 %v4240, %v4884
      %v5193 = vmul.bf16 %v4241, %v4896
      %v5194 = vmul.bf16 %v4242, %v4908
      %v5195 = vmul.bf16 %v4243, %v4920
      %v5196 = vmul.bf16 %v4244, %v4932
      %v5197 = vmul.bf16 %v4245, %v4944
      %v5198 = vmul.bf16 %v4246, %v4956
      %v5199 = vmul.bf16 %v4247, %v4968
      %v5200 = vmul.bf16 %v4248, %v4980
      %v5201 = vmul.bf16 %v4249, %v4992
      %v5202 = vmul.bf16 %v4250, %v5004
      %v5203 = vmul.bf16 %v4251, %v5016
      %v5204 = vmul.bf16 %v4252, %v5028
      %v5205 = vmul.bf16 %v4253, %v5040
      %v5206 = vmul.bf16 %v4254, %v5052
      %v5207 = vmul.bf16 %v4255, %v5064
      %v5208 = vmul.bf16 %v4256, %v5076
      %v5209 = vmul.bf16 %v4257, %v5088
      %v5210 = vmul.bf16 %v4258, %v5100
      %v5211 = vmul.bf16 %v4259, %v5112
      %v5212 = vmul.bf16 %v4260, %v5124
      %v5213 = vmul.bf16 %v4261, %v5136
      %v5214 = vmul.bf16 %v4262, %v5148
      %v5215 = vmul.bf16 %v4263, %v5160
      %v5216 = vmul.bf16 %v4264, %v5172
      %v5217 = vmul.bf16 %v4265, %v5184
      %s5218 = scalar_lea.vmem %s2, 224
      %v5219 = vld [vmem:[%s5218] sm:$0xf]
      %v5220 = vld [vmem:[%s5218 + $0x4] sm:$0xf]
      %v5221 = vld [vmem:[%s5218 + $0x8] sm:$0xf]
      %v5222 = vld [vmem:[%s5218 + $0xc] sm:$0xf]
      %v5223 = vld [vmem:[%s5218 + $0x10] sm:$0xf]
      %v5224 = vld [vmem:[%s5218 + $0x14] sm:$0xf]
      %v5225 = vld [vmem:[%s5218 + $0x18] sm:$0xf]
      %v5226 = vld [vmem:[%s5218 + $0x1c] sm:$0xf]
      %v5260 = vunpack.c.l.b16 %v5185
      %v5261 = vunpack.c.l.b16 %v5186
      %v5262 = vunpack.c.l.b16 %v5187
      %v5263 = vunpack.c.l.b16 %v5188
      %v5264 = vunpack.c.l.b16 %v5189
      %v5265 = vunpack.c.l.b16 %v5190
      %v5266 = vunpack.c.l.b16 %v5191
      %v5267 = vunpack.c.l.b16 %v5192
      %v5268 = vunpack.c.l.b16 %v5193
      %v5269 = vunpack.c.l.b16 %v5194
      %v5270 = vunpack.c.l.b16 %v5195
      %v5271 = vunpack.c.l.b16 %v5196
      %v5272 = vunpack.c.l.b16 %v5197
      %v5273 = vunpack.c.l.b16 %v5198
      %v5274 = vunpack.c.l.b16 %v5199
      %v5275 = vunpack.c.l.b16 %v5200
      %v5276 = vunpack.c.l.b16 %v5201
      %v5277 = vunpack.c.l.b16 %v5202
      %v5278 = vunpack.c.l.b16 %v5203
      %v5279 = vunpack.c.l.b16 %v5204
      %v5280 = vunpack.c.l.b16 %v5205
      %v5281 = vunpack.c.l.b16 %v5206
      %v5282 = vunpack.c.l.b16 %v5207
      %v5283 = vunpack.c.l.b16 %v5208
      %v5284 = vunpack.c.l.b16 %v5209
      %v5285 = vunpack.c.l.b16 %v5210
      %v5286 = vunpack.c.l.b16 %v5211
      %v5287 = vunpack.c.l.b16 %v5212
      %v5288 = vunpack.c.l.b16 %v5213
      %v5289 = vunpack.c.l.b16 %v5214
      %v5290 = vunpack.c.l.b16 %v5215
      %v5291 = vunpack.c.l.b16 %v5216
      %v5292 = vunpack.c.l.b16 %v5217
      %v5293 = vpack.c.b16 %v5261, %v5260
      %v5294 = vpack.c.b16 %v5263, %v5262
      %v5295 = vpack.c.b16 %v5265, %v5264
      %v5296 = vpack.c.b16 %v5267, %v5266
      %v5297 = vpack.c.b16 %v5269, %v5268
      %v5298 = vpack.c.b16 %v5271, %v5270
      %v5299 = vpack.c.b16 %v5273, %v5272
      %v5300 = vpack.c.b16 %v5275, %v5274
      %v5301 = vpack.c.b16 %v5277, %v5276
      %v5302 = vpack.c.b16 %v5279, %v5278
      %v5303 = vpack.c.b16 %v5281, %v5280
      %v5304 = vpack.c.b16 %v5283, %v5282
      %v5305 = vpack.c.b16 %v5285, %v5284
      %v5306 = vpack.c.b16 %v5287, %v5286
      %v5307 = vpack.c.b16 %v5289, %v5288
      %v5308 = vpack.c.b16 %v5291, %v5290
      %v5309 = vpack.c.b16 %v5292, %v5292
      %v5310 = vrot.slane %v5293, 1
      %v5311 = vrot.slane %v5294, 1
      %v5312 = vsel %vm3518, %v5310, %v5311
      %v5313 = vrot.slane %v5295, 1
      %v5314 = vsel %vm3518, %v5311, %v5313
      %v5315 = vrot.slane %v5296, 1
      %v5316 = vsel %vm3518, %v5313, %v5315
      %v5317 = vrot.slane %v5297, 1
      %v5318 = vsel %vm3518, %v5315, %v5317
      %v5319 = vrot.slane %v5298, 1
      %v5320 = vsel %vm3518, %v5317, %v5319
      %v5321 = vrot.slane %v5299, 1
      %v5322 = vsel %vm3518, %v5319, %v5321
      %v5323 = vrot.slane %v5300, 1
      %v5324 = vsel %vm3518, %v5321, %v5323
      %v5325 = vrot.slane %v5301, 1
      %v5326 = vsel %vm3518, %v5323, %v5325
      %v5327 = vrot.slane %v5302, 1
      %v5328 = vsel %vm3518, %v5325, %v5327
      %v5329 = vrot.slane %v5303, 1
      %v5330 = vsel %vm3518, %v5327, %v5329
      %v5331 = vrot.slane %v5304, 1
      %v5332 = vsel %vm3518, %v5329, %v5331
      %v5333 = vrot.slane %v5305, 1
      %v5334 = vsel %vm3518, %v5331, %v5333
      %v5335 = vrot.slane %v5306, 1
      %v5336 = vsel %vm3518, %v5333, %v5335
      %v5337 = vrot.slane %v5307, 1
      %v5338 = vsel %vm3518, %v5335, %v5337
      %v5339 = vrot.slane %v5308, 1
      %v5340 = vsel %vm3518, %v5337, %v5339
      %v5341 = vrot.slane %v5309, 1
      %v5342 = vsel %vm3518, %v5339, %v5341
      %v5351 = vunpack.c.l.b16 %v5219
      %v5352 = vunpack.c.l.b16 %v5220
      %v5353 = vunpack.c.l.b16 %v5221
      %v5354 = vunpack.c.l.b16 %v5222
      %v5355 = vunpack.c.l.b16 %v5223
      %v5356 = vunpack.c.l.b16 %v5224
      %v5357 = vunpack.c.l.b16 %v5225
      %v5358 = vunpack.c.l.b16 %v5226
      %v5359 = vpack.c.b16 %v5352, %v5351
      %v5360 = vpack.c.b16 %v5354, %v5353
      %v5361 = vpack.c.b16 %v5356, %v5355
      %v5362 = vpack.c.b16 %v5358, %v5357
      %v5368 = vsel %vm970, %v5312, 0
      %v5371 = vsel %vm970, %v5314, 0
      %v5374 = vsel %vm970, %v5316, 0
      %v5377 = vsel %vm970, %v5318, 0
      %v5380 = vsel %vm970, %v5320, 0
      %v5383 = vsel %vm970, %v5322, 0
      %v5386 = vsel %vm970, %v5324, 0
      %v5389 = vsel %vm970, %v5326, 0
      %v5392 = vsel %vm970, %v5328, 0
      %v5395 = vsel %vm970, %v5330, 0
      %v5398 = vsel %vm970, %v5332, 0
      %v5401 = vsel %vm970, %v5334, 0
      %v5404 = vsel %vm970, %v5336, 0
      %v5407 = vsel %vm970, %v5338, 0
      %v5410 = vsel %vm970, %v5340, 0
      %v5413 = vsel %vm970, %v5342, 0
      %5415 = vmatprep.subr.bf16.mxu0 0
      %5416 = vmatpush1.bf16.msra.mxu0 0
      %5417 = vmatprep.subr.bf16.mxu0 0
      %5418 = vmatpush1.bf16.msra.mxu0 0
      %5419 = vmatprep.subr.bf16.mxu0 0
      %5420 = vmatpush1.bf16.msra.mxu0 0
      %5421 = vmatprep.subr.bf16.mxu0 0
      %5422 = vmatpush1.bf16.msra.mxu0 0
      %5423 = vmatprep.subr.bf16.mxu0 0
      %5424 = vmatpush1.bf16.msra.mxu0 %v5362
      %5425 = vmatprep.subr.bf16.mxu0 0
      %5426 = vmatpush1.bf16.msra.mxu0 %v5361
      %5427 = vmatprep.subr.bf16.mxu0 0
      %5428 = vmatpush1.bf16.msra.mxu0 %v5360
      %5429 = vmatprep.subr.bf16.mxu0 0
      %5430 = vmatpush1.bf16.msra.mxu0 %v5359
      %5431 = vmatprep.subr.bf16.mxu0 0
      %5432 = vmatpush2.bf16.msra.mxu0 0
      %5433 = vmatprep.subr.bf16.mxu0 0
      %5434 = vmatpush2.bf16.msra.mxu0 0
      %5435 = vmatprep.subr.bf16.mxu0 0
      %5436 = vmatpush2.bf16.msra.mxu0 0
      %5437 = vmatprep.subr.bf16.mxu0 0
      %5438 = vmatpush2.bf16.msra.mxu0 0
      %5439 = vmatprep.subr.bf16.mxu0 0
      %5440 = vmatpush2.bf16.msra.mxu0 0
      %5441 = vmatprep.subr.bf16.mxu0 0
      %5442 = vmatpush2.bf16.msra.mxu0 0
      %5443 = vmatprep.subr.bf16.mxu0 0
      %5444 = vmatpush2.bf16.msra.mxu0 0
      %5445 = vmatprep.subr.bf16.mxu0 0
      %5446 = vmatpush2.bf16.msra.mxu0 0
      %5447 = vmatprep.mubr.bf16.mxu0 0
      %5448 = vmatmul.mubr.bf16.gmra.mxu0 %v5368
      %v5449 = vpop.f32.mrf.mxu0
      %v5450 = vadd.f32 0.0, %v5449
      %v5451 = vpop.f32.mrf.mxu0
      %v5452 = vpop.f32.mrf.mxu0
      %v5453 = vadd.f32 0.0, %v5452
      %v5454 = vpop.f32.mrf.mxu0
      %5455 = vmatprep.mubr.bf16.mxu0 0
      %5456 = vmatmul.mubr.bf16.gmra.mxu0 %v5371
      %v5457 = vpop.f32.mrf.mxu0
      %v5458 = vadd.f32 0.0, %v5457
      %v5459 = vpop.f32.mrf.mxu0
      %v5460 = vpop.f32.mrf.mxu0
      %v5461 = vadd.f32 0.0, %v5460
      %v5462 = vpop.f32.mrf.mxu0
      %5463 = vmatprep.mubr.bf16.mxu0 0
      %5464 = vmatmul.mubr.bf16.gmra.mxu0 %v5374
      %v5465 = vpop.f32.mrf.mxu0
      %v5466 = vadd.f32 0.0, %v5465
      %v5467 = vpop.f32.mrf.mxu0
      %v5468 = vpop.f32.mrf.mxu0
      %v5469 = vadd.f32 0.0, %v5468
      %v5470 = vpop.f32.mrf.mxu0
      %5471 = vmatprep.mubr.bf16.mxu0 0
      %5472 = vmatmul.mubr.bf16.gmra.mxu0 %v5377
      %v5473 = vpop.f32.mrf.mxu0
      %v5474 = vadd.f32 0.0, %v5473
      %v5475 = vpop.f32.mrf.mxu0
      %v5476 = vpop.f32.mrf.mxu0
      %v5477 = vadd.f32 0.0, %v5476
      %v5478 = vpop.f32.mrf.mxu0
      %5479 = vmatprep.mubr.bf16.mxu0 0
      %5480 = vmatmul.mubr.bf16.gmra.mxu0 %v5380
      %v5481 = vpop.f32.mrf.mxu0
      %v5482 = vadd.f32 0.0, %v5481
      %v5483 = vpop.f32.mrf.mxu0
      %v5484 = vpop.f32.mrf.mxu0
      %v5485 = vadd.f32 0.0, %v5484
      %v5486 = vpop.f32.mrf.mxu0
      %5487 = vmatprep.mubr.bf16.mxu0 0
      %5488 = vmatmul.mubr.bf16.gmra.mxu0 %v5383
      %v5489 = vpop.f32.mrf.mxu0
      %v5490 = vadd.f32 0.0, %v5489
      %v5491 = vpop.f32.mrf.mxu0
      %v5492 = vpop.f32.mrf.mxu0
      %v5493 = vadd.f32 0.0, %v5492
      %v5494 = vpop.f32.mrf.mxu0
      %5495 = vmatprep.mubr.bf16.mxu0 0
      %5496 = vmatmul.mubr.bf16.gmra.mxu0 %v5386
      %v5497 = vpop.f32.mrf.mxu0
      %v5498 = vadd.f32 0.0, %v5497
      %v5499 = vpop.f32.mrf.mxu0
      %v5500 = vpop.f32.mrf.mxu0
      %v5501 = vadd.f32 0.0, %v5500
      %v5502 = vpop.f32.mrf.mxu0
      %5503 = vmatprep.mubr.bf16.mxu0 0
      %5504 = vmatmul.mubr.bf16.gmra.mxu0 %v5389
      %v5505 = vpop.f32.mrf.mxu0
      %v5506 = vadd.f32 0.0, %v5505
      %v5507 = vpop.f32.mrf.mxu0
      %v5508 = vpop.f32.mrf.mxu0
      %v5509 = vadd.f32 0.0, %v5508
      %v5510 = vpop.f32.mrf.mxu0
      %5511 = vmatprep.mubr.bf16.mxu0 0
      %5512 = vmatmul.mubr.bf16.gmra.mxu0 %v5392
      %v5513 = vpop.f32.mrf.mxu0
      %v5514 = vadd.f32 0.0, %v5513
      %v5515 = vpop.f32.mrf.mxu0
      %v5516 = vpop.f32.mrf.mxu0
      %v5517 = vadd.f32 0.0, %v5516
      %v5518 = vpop.f32.mrf.mxu0
      %5519 = vmatprep.mubr.bf16.mxu0 0
      %5520 = vmatmul.mubr.bf16.gmra.mxu0 %v5395
      %v5521 = vpop.f32.mrf.mxu0
      %v5522 = vadd.f32 0.0, %v5521
      %v5523 = vpop.f32.mrf.mxu0
      %v5524 = vpop.f32.mrf.mxu0
      %v5525 = vadd.f32 0.0, %v5524
      %v5526 = vpop.f32.mrf.mxu0
      %5527 = vmatprep.mubr.bf16.mxu0 0
      %5528 = vmatmul.mubr.bf16.gmra.mxu0 %v5398
      %v5529 = vpop.f32.mrf.mxu0
      %v5530 = vadd.f32 0.0, %v5529
      %v5531 = vpop.f32.mrf.mxu0
      %v5532 = vpop.f32.mrf.mxu0
      %v5533 = vadd.f32 0.0, %v5532
      %v5534 = vpop.f32.mrf.mxu0
      %5535 = vmatprep.mubr.bf16.mxu0 0
      %5536 = vmatmul.mubr.bf16.gmra.mxu0 %v5401
      %v5537 = vpop.f32.mrf.mxu0
      %v5538 = vadd.f32 0.0, %v5537
      %v5539 = vpop.f32.mrf.mxu0
      %v5540 = vpop.f32.mrf.mxu0
      %v5541 = vadd.f32 0.0, %v5540
      %v5542 = vpop.f32.mrf.mxu0
      %5543 = vmatprep.mubr.bf16.mxu0 0
      %5544 = vmatmul.mubr.bf16.gmra.mxu0 %v5404
      %v5545 = vpop.f32.mrf.mxu0
      %v5546 = vadd.f32 0.0, %v5545
      %v5547 = vpop.f32.mrf.mxu0
      %v5548 = vpop.f32.mrf.mxu0
      %v5549 = vadd.f32 0.0, %v5548
      %v5550 = vpop.f32.mrf.mxu0
      %5551 = vmatprep.mubr.bf16.mxu0 0
      %5552 = vmatmul.mubr.bf16.gmra.mxu0 %v5407
      %v5553 = vpop.f32.mrf.mxu0
      %v5554 = vadd.f32 0.0, %v5553
      %v5555 = vpop.f32.mrf.mxu0
      %v5556 = vpop.f32.mrf.mxu0
      %v5557 = vadd.f32 0.0, %v5556
      %v5558 = vpop.f32.mrf.mxu0
      %5559 = vmatprep.mubr.bf16.mxu0 0
      %5560 = vmatmul.mubr.bf16.gmra.mxu0 %v5410
      %v5561 = vpop.f32.mrf.mxu0
      %v5562 = vadd.f32 0.0, %v5561
      %v5563 = vpop.f32.mrf.mxu0
      %v5564 = vpop.f32.mrf.mxu0
      %v5565 = vadd.f32 0.0, %v5564
      %v5566 = vpop.f32.mrf.mxu0
      %5567 = vmatprep.mubr.bf16.mxu0 0
      %5568 = vmatmul.mubr.bf16.gmra.mxu0 %v5413
      %v5569 = vpop.f32.mrf.mxu0
      %v5570 = vadd.f32 0.0, %v5569
      %v5571 = vpop.f32.mrf.mxu0
      %v5572 = vpop.f32.mrf.mxu0
      %v5573 = vadd.f32 0.0, %v5572
      %v5574 = vpop.f32.mrf.mxu0
      %5575 = vdwg.mxu0
      %v5576 = vadd.f32 %v4723, %v5450
      %v5577 = vadd.f32 %v4724, %v5453
      %v5578 = vadd.f32 %v4725, %v5458
      %v5579 = vadd.f32 %v4726, %v5461
      %v5580 = vadd.f32 %v4727, %v5466
      %v5581 = vadd.f32 %v4728, %v5469
      %v5582 = vadd.f32 %v4729, %v5474
      %v5583 = vadd.f32 %v4730, %v5477
      %v5584 = vadd.f32 %v4731, %v5482
      %v5585 = vadd.f32 %v4732, %v5485
      %v5586 = vadd.f32 %v4733, %v5490
      %v5587 = vadd.f32 %v4734, %v5493
      %v5588 = vadd.f32 %v4735, %v5498
      %v5589 = vadd.f32 %v4736, %v5501
      %v5590 = vadd.f32 %v4737, %v5506
      %v5591 = vadd.f32 %v4738, %v5509
      %v5592 = vadd.f32 %v4739, %v5514
      %v5593 = vadd.f32 %v4740, %v5517
      %v5594 = vadd.f32 %v4741, %v5522
      %v5595 = vadd.f32 %v4742, %v5525
      %v5596 = vadd.f32 %v4743, %v5530
      %v5597 = vadd.f32 %v4744, %v5533
      %v5598 = vadd.f32 %v4745, %v5538
      %v5599 = vadd.f32 %v4746, %v5541
      %v5600 = vadd.f32 %v4747, %v5546
      %v5601 = vadd.f32 %v4748, %v5549
      %v5602 = vadd.f32 %v4749, %v5554
      %v5603 = vadd.f32 %v4750, %v5557
      %v5604 = vadd.f32 %v4751, %v5562
      %v5605 = vadd.f32 %v4752, %v5565
      %v5606 = vadd.f32 %v4753, %v5570
      %v5607 = vadd.f32 %v4754, %v5573
      %v5608 = vadd.f32 %v5576, %v2853
      %v5609 = vadd.f32 %v5577, %v2853
      %v5610 = vadd.f32 %v5578, %v2853
      %v5611 = vadd.f32 %v5579, %v2853
      %v5612 = vadd.f32 %v5580, %v2853
      %v5613 = vadd.f32 %v5581, %v2853
      %v5614 = vadd.f32 %v5582, %v2853
      %v5615 = vadd.f32 %v5583, %v2853
      %v5616 = vadd.f32 %v5584, %v2853
      %v5617 = vadd.f32 %v5585, %v2853
      %v5618 = vadd.f32 %v5586, %v2853
      %v5619 = vadd.f32 %v5587, %v2853
      %v5620 = vadd.f32 %v5588, %v2853
      %v5621 = vadd.f32 %v5589, %v2853
      %v5622 = vadd.f32 %v5590, %v2853
      %v5623 = vadd.f32 %v5591, %v2853
      %v5624 = vadd.f32 %v5592, %v2853
      %v5625 = vadd.f32 %v5593, %v2853
      %v5626 = vadd.f32 %v5594, %v2853
      %v5627 = vadd.f32 %v5595, %v2853
      %v5628 = vadd.f32 %v5596, %v2853
      %v5629 = vadd.f32 %v5597, %v2853
      %v5630 = vadd.f32 %v5598, %v2853
      %v5631 = vadd.f32 %v5599, %v2853
      %v5632 = vadd.f32 %v5600, %v2853
      %v5633 = vadd.f32 %v5601, %v2853
      %v5634 = vadd.f32 %v5602, %v2853
      %v5635 = vadd.f32 %v5603, %v2853
      %v5636 = vadd.f32 %v5604, %v2853
      %v5637 = vadd.f32 %v5605, %v2853
      %v5638 = vadd.f32 %v5606, %v2853
      %v5639 = vadd.f32 %v5607, %v2853
      %s5640 = scalar_lea.vmem %s197, 256
      %5641 = vst.msk [vmem:[%s5640] sm:$0xff] %vm2887, %v5608
      %5642 = vst.msk [vmem:[%s5640 + $0x8] sm:$0xff] %vm2887, %v5609
      %5643 = vst.msk [vmem:[%s5640 + $0x10] sm:$0xff] %vm2887, %v5610
      %5644 = vst.msk [vmem:[%s5640 + $0x18] sm:$0xff] %vm2887, %v5611
      %5645 = vst.msk [vmem:[%s5640 + $0x20] sm:$0xff] %vm2887, %v5612
      %5646 = vst.msk [vmem:[%s5640 + $0x28] sm:$0xff] %vm2887, %v5613
      %5647 = vst.msk [vmem:[%s5640 + $0x30] sm:$0xff] %vm2887, %v5614
      %5648 = vst.msk [vmem:[%s5640 + $0x38] sm:$0xff] %vm2887, %v5615
      %5649 = vst.msk [vmem:[%s5640 + $0x40] sm:$0xff] %vm2887, %v5616
      %5650 = vst.msk [vmem:[%s5640 + $0x48] sm:$0xff] %vm2887, %v5617
      %5651 = vst.msk [vmem:[%s5640 + $0x50] sm:$0xff] %vm2887, %v5618
      %5652 = vst.msk [vmem:[%s5640 + $0x58] sm:$0xff] %vm2887, %v5619
      %5653 = vst.msk [vmem:[%s5640 + $0x60] sm:$0xff] %vm2887, %v5620
      %5654 = vst.msk [vmem:[%s5640 + $0x68] sm:$0xff] %vm2887, %v5621
      %5655 = vst.msk [vmem:[%s5640 + $0x70] sm:$0xff] %vm2887, %v5622
      %5656 = vst.msk [vmem:[%s5640 + $0x78] sm:$0xff] %vm2887, %v5623
      %5657 = vst.msk [vmem:[%s5640 + $0x80] sm:$0xff] %vm2887, %v5624
      %5658 = vst.msk [vmem:[%s5640 + $0x88] sm:$0xff] %vm2887, %v5625
      %5659 = vst.msk [vmem:[%s5640 + $0x90] sm:$0xff] %vm2887, %v5626
      %5660 = vst.msk [vmem:[%s5640 + $0x98] sm:$0xff] %vm2887, %v5627
      %5661 = vst.msk [vmem:[%s5640 + $0xa0] sm:$0xff] %vm2887, %v5628
      %5662 = vst.msk [vmem:[%s5640 + $0xa8] sm:$0xff] %vm2887, %v5629
      %5663 = vst.msk [vmem:[%s5640 + $0xb0] sm:$0xff] %vm2887, %v5630
      %5664 = vst.msk [vmem:[%s5640 + $0xb8] sm:$0xff] %vm2887, %v5631
      %5665 = vst.msk [vmem:[%s5640 + $0xc0] sm:$0xff] %vm2887, %v5632
      %5666 = vst.msk [vmem:[%s5640 + $0xc8] sm:$0xff] %vm2887, %v5633
      %5667 = vst.msk [vmem:[%s5640 + $0xd0] sm:$0xff] %vm2887, %v5634
      %5668 = vst.msk [vmem:[%s5640 + $0xd8] sm:$0xff] %vm2887, %v5635
      %5669 = vst.msk [vmem:[%s5640 + $0xe0] sm:$0xff] %vm2887, %v5636
      %5670 = vst.msk [vmem:[%s5640 + $0xe8] sm:$0xff] %vm2887, %v5637
      %5671 = vst.msk [vmem:[%s5640 + $0xf0] sm:$0xff] %vm2887, %v5638
      %5672 = vst.msk [vmem:[%s5640 + $0xf8] sm:$0xff] %vm2887, %v5639
      %v5673 = vld [vmem:[%s192 + $0x8] sm:$0xf]
      %v5674 = vld [vmem:[%s192 + $0xc] sm:$0xf]
      %v5675 = vld [vmem:[%s192 + $0x10] sm:$0xf]
      %v5676 = vld [vmem:[%s192 + $0x14] sm:$0xf]
      %v5677 = vld [vmem:[%s192 + $0x18] sm:$0xf]
      %v5678 = vld [vmem:[%s192 + $0x1c] sm:$0xf]
      %v5679 = vld [vmem:[%s192 + $0x20] sm:$0xf]
      %v5680 = vld [vmem:[%s192 + $0x24] sm:$0xf]
      %v5681 = vld [vmem:[%s192 + $0x28] sm:$0xf]
      %v5682 = vld [vmem:[%s192 + $0x2c] sm:$0xf]
      %v5683 = vld [vmem:[%s192 + $0x30] sm:$0xf]
      %v5684 = vld [vmem:[%s192 + $0x34] sm:$0xf]
      %v5685 = vld [vmem:[%s192 + $0x38] sm:$0xf]
      %v5686 = vld [vmem:[%s192 + $0x3c] sm:$0xf]
      %v5687 = vld [vmem:[%s192 + $0x40] sm:$0xf]
      %v5688 = vld [vmem:[%s192 + $0x44] sm:$0xf]
      %v5689 = vld [vmem:[%s192 + $0x48] sm:$0xf]
      %v5690 = vld [vmem:[%s192 + $0x4c] sm:$0xf]
      %v5691 = vld [vmem:[%s192 + $0x50] sm:$0xf]
      %v5692 = vld [vmem:[%s192 + $0x54] sm:$0xf]
      %v5693 = vld [vmem:[%s192 + $0x58] sm:$0xf]
      %v5694 = vld [vmem:[%s192 + $0x5c] sm:$0xf]
      %v5695 = vld [vmem:[%s192 + $0x60] sm:$0xf]
      %v5696 = vld [vmem:[%s192 + $0x64] sm:$0xf]
      %v5697 = vld [vmem:[%s192 + $0x68] sm:$0xf]
      %v5698 = vld [vmem:[%s192 + $0x6c] sm:$0xf]
      %v5699 = vld [vmem:[%s192 + $0x70] sm:$0xf]
      %v5700 = vld [vmem:[%s192 + $0x74] sm:$0xf]
      %v5701 = vld [vmem:[%s192 + $0x78] sm:$0xf]
      %v5702 = vld [vmem:[%s192 + $0x7c] sm:$0xf]
      %v5703 = vld [vmem:[%s192 + $0x80] sm:$0xf]
      %v5704 = vld [vmem:[%s192 + $0x84] sm:$0xf]
      %v5705 = vld [vmem:[%s1 + $0x8] sm:$0xf]
      %v5706 = vld [vmem:[%s1 + $0xc] sm:$0xf]
      %v5707 = vld [vmem:[%s1 + $0x10] sm:$0xf]
      %v5708 = vld [vmem:[%s1 + $0x14] sm:$0xf]
      %v5709 = vld [vmem:[%s1 + $0x18] sm:$0xf]
      %v5710 = vld [vmem:[%s1 + $0x1c] sm:$0xf]
      %v5711 = vld [vmem:[%s1 + $0x20] sm:$0xf]
      %v5712 = vld [vmem:[%s1 + $0x24] sm:$0xf]
      %v5713 = vld [vmem:[%s1 + $0x28] sm:$0xf]
      %v5714 = vld [vmem:[%s1 + $0x2c] sm:$0xf]
      %v5715 = vld [vmem:[%s1 + $0x30] sm:$0xf]
      %v5716 = vld [vmem:[%s1 + $0x34] sm:$0xf]
      %v5717 = vld [vmem:[%s1 + $0x38] sm:$0xf]
      %v5718 = vld [vmem:[%s1 + $0x3c] sm:$0xf]
      %v5719 = vld [vmem:[%s1 + $0x40] sm:$0xf]
      %v5720 = vld [vmem:[%s1 + $0x44] sm:$0xf]
      %v5721 = vld [vmem:[%s1 + $0x48] sm:$0xf]
      %v5722 = vld [vmem:[%s1 + $0x4c] sm:$0xf]
      %v5723 = vld [vmem:[%s1 + $0x50] sm:$0xf]
      %v5724 = vld [vmem:[%s1 + $0x54] sm:$0xf]
      %v5725 = vld [vmem:[%s1 + $0x58] sm:$0xf]
      %v5726 = vld [vmem:[%s1 + $0x5c] sm:$0xf]
      %v5727 = vld [vmem:[%s1 + $0x60] sm:$0xf]
      %v5728 = vld [vmem:[%s1 + $0x64] sm:$0xf]
      %v5729 = vld [vmem:[%s1 + $0x68] sm:$0xf]
      %v5730 = vld [vmem:[%s1 + $0x6c] sm:$0xf]
      %v5731 = vld [vmem:[%s1 + $0x70] sm:$0xf]
      %v5732 = vld [vmem:[%s1 + $0x74] sm:$0xf]
      %v5733 = vld [vmem:[%s1 + $0x78] sm:$0xf]
      %v5734 = vld [vmem:[%s1 + $0x7c] sm:$0xf]
      %v5735 = vld [vmem:[%s1 + $0x80] sm:$0xf]
      %v5736 = vld [vmem:[%s1 + $0x84] sm:$0xf]
      %5738 = vset.pattern.permute.xlu0 0
      %5739 = vperm.xlu0 %5738, %v5705
      %v5740 = vpop.permute.xlu0 %5739
      %v5743 = vunpack.c.l.s4 839922192
      %v5744 = vunpack.c.0.s8 %v5743
      %v5745 = vlaneseq
      %v5746 = vshrl.u32 %v5745, 7
      %v5747 = vsub.s32 %v5744, %v5746
      %v5748 = vrot.slane %v5740, %v5747
      %5750 = vset.pattern.permute.xlu0 0
      %5751 = vperm.xlu0 %5750, %v5706
      %v5752 = vpop.permute.xlu0 %5751
      %v5755 = vunpack.c.l.s4 839922192
      %v5756 = vunpack.c.0.s8 %v5755
      %v5757 = vlaneseq
      %v5758 = vshrl.u32 %v5757, 7
      %v5759 = vsub.s32 %v5756, %v5758
      %v5760 = vrot.slane %v5752, %v5759
      %5762 = vset.pattern.permute.xlu0 0
      %5763 = vperm.xlu0 %5762, %v5707
      %v5764 = vpop.permute.xlu0 %5763
      %v5767 = vunpack.c.l.s4 839922192
      %v5768 = vunpack.c.0.s8 %v5767
      %v5769 = vlaneseq
      %v5770 = vshrl.u32 %v5769, 7
      %v5771 = vsub.s32 %v5768, %v5770
      %v5772 = vrot.slane %v5764, %v5771
      %5774 = vset.pattern.permute.xlu0 0
      %5775 = vperm.xlu0 %5774, %v5708
      %v5776 = vpop.permute.xlu0 %5775
      %v5779 = vunpack.c.l.s4 839922192
      %v5780 = vunpack.c.0.s8 %v5779
      %v5781 = vlaneseq
      %v5782 = vshrl.u32 %v5781, 7
      %v5783 = vsub.s32 %v5780, %v5782
      %v5784 = vrot.slane %v5776, %v5783
      %5786 = vset.pattern.permute.xlu0 0
      %5787 = vperm.xlu0 %5786, %v5709
      %v5788 = vpop.permute.xlu0 %5787
      %v5791 = vunpack.c.l.s4 839922192
      %v5792 = vunpack.c.0.s8 %v5791
      %v5793 = vlaneseq
      %v5794 = vshrl.u32 %v5793, 7
      %v5795 = vsub.s32 %v5792, %v5794
      %v5796 = vrot.slane %v5788, %v5795
      %5798 = vset.pattern.permute.xlu0 0
      %5799 = vperm.xlu0 %5798, %v5710
      %v5800 = vpop.permute.xlu0 %5799
      %v5803 = vunpack.c.l.s4 839922192
      %v5804 = vunpack.c.0.s8 %v5803
      %v5805 = vlaneseq
      %v5806 = vshrl.u32 %v5805, 7
      %v5807 = vsub.s32 %v5804, %v5806
      %v5808 = vrot.slane %v5800, %v5807
      %5810 = vset.pattern.permute.xlu0 0
      %5811 = vperm.xlu0 %5810, %v5711
      %v5812 = vpop.permute.xlu0 %5811
      %v5815 = vunpack.c.l.s4 839922192
      %v5816 = vunpack.c.0.s8 %v5815
      %v5817 = vlaneseq
      %v5818 = vshrl.u32 %v5817, 7
      %v5819 = vsub.s32 %v5816, %v5818
      %v5820 = vrot.slane %v5812, %v5819
      %5822 = vset.pattern.permute.xlu0 0
      %5823 = vperm.xlu0 %5822, %v5712
      %v5824 = vpop.permute.xlu0 %5823
      %v5827 = vunpack.c.l.s4 839922192
      %v5828 = vunpack.c.0.s8 %v5827
      %v5829 = vlaneseq
      %v5830 = vshrl.u32 %v5829, 7
      %v5831 = vsub.s32 %v5828, %v5830
      %v5832 = vrot.slane %v5824, %v5831
      %5834 = vset.pattern.permute.xlu0 0
      %5835 = vperm.xlu0 %5834, %v5713
      %v5836 = vpop.permute.xlu0 %5835
      %v5839 = vunpack.c.l.s4 839922192
      %v5840 = vunpack.c.0.s8 %v5839
      %v5841 = vlaneseq
      %v5842 = vshrl.u32 %v5841, 7
      %v5843 = vsub.s32 %v5840, %v5842
      %v5844 = vrot.slane %v5836, %v5843
      %5846 = vset.pattern.permute.xlu0 0
      %5847 = vperm.xlu0 %5846, %v5714
      %v5848 = vpop.permute.xlu0 %5847
      %v5851 = vunpack.c.l.s4 839922192
      %v5852 = vunpack.c.0.s8 %v5851
      %v5853 = vlaneseq
      %v5854 = vshrl.u32 %v5853, 7
      %v5855 = vsub.s32 %v5852, %v5854
      %v5856 = vrot.slane %v5848, %v5855
      %5858 = vset.pattern.permute.xlu0 0
      %5859 = vperm.xlu0 %5858, %v5715
      %v5860 = vpop.permute.xlu0 %5859
      %v5863 = vunpack.c.l.s4 839922192
      %v5864 = vunpack.c.0.s8 %v5863
      %v5865 = vlaneseq
      %v5866 = vshrl.u32 %v5865, 7
      %v5867 = vsub.s32 %v5864, %v5866
      %v5868 = vrot.slane %v5860, %v5867
      %5870 = vset.pattern.permute.xlu0 0
      %5871 = vperm.xlu0 %5870, %v5716
      %v5872 = vpop.permute.xlu0 %5871
      %v5875 = vunpack.c.l.s4 839922192
      %v5876 = vunpack.c.0.s8 %v5875
      %v5877 = vlaneseq
      %v5878 = vshrl.u32 %v5877, 7
      %v5879 = vsub.s32 %v5876, %v5878
      %v5880 = vrot.slane %v5872, %v5879
      %5882 = vset.pattern.permute.xlu0 0
      %5883 = vperm.xlu0 %5882, %v5717
      %v5884 = vpop.permute.xlu0 %5883
      %v5887 = vunpack.c.l.s4 839922192
      %v5888 = vunpack.c.0.s8 %v5887
      %v5889 = vlaneseq
      %v5890 = vshrl.u32 %v5889, 7
      %v5891 = vsub.s32 %v5888, %v5890
      %v5892 = vrot.slane %v5884, %v5891
      %5894 = vset.pattern.permute.xlu0 0
      %5895 = vperm.xlu0 %5894, %v5718
      %v5896 = vpop.permute.xlu0 %5895
      %v5899 = vunpack.c.l.s4 839922192
      %v5900 = vunpack.c.0.s8 %v5899
      %v5901 = vlaneseq
      %v5902 = vshrl.u32 %v5901, 7
      %v5903 = vsub.s32 %v5900, %v5902
      %v5904 = vrot.slane %v5896, %v5903
      %5906 = vset.pattern.permute.xlu0 0
      %5907 = vperm.xlu0 %5906, %v5719
      %v5908 = vpop.permute.xlu0 %5907
      %v5911 = vunpack.c.l.s4 839922192
      %v5912 = vunpack.c.0.s8 %v5911
      %v5913 = vlaneseq
      %v5914 = vshrl.u32 %v5913, 7
      %v5915 = vsub.s32 %v5912, %v5914
      %v5916 = vrot.slane %v5908, %v5915
      %5918 = vset.pattern.permute.xlu0 0
      %5919 = vperm.xlu0 %5918, %v5720
      %v5920 = vpop.permute.xlu0 %5919
      %v5923 = vunpack.c.l.s4 839922192
      %v5924 = vunpack.c.0.s8 %v5923
      %v5925 = vlaneseq
      %v5926 = vshrl.u32 %v5925, 7
      %v5927 = vsub.s32 %v5924, %v5926
      %v5928 = vrot.slane %v5920, %v5927
      %5930 = vset.pattern.permute.xlu0 0
      %5931 = vperm.xlu0 %5930, %v5721
      %v5932 = vpop.permute.xlu0 %5931
      %v5935 = vunpack.c.l.s4 839922192
      %v5936 = vunpack.c.0.s8 %v5935
      %v5937 = vlaneseq
      %v5938 = vshrl.u32 %v5937, 7
      %v5939 = vsub.s32 %v5936, %v5938
      %v5940 = vrot.slane %v5932, %v5939
      %5942 = vset.pattern.permute.xlu0 0
      %5943 = vperm.xlu0 %5942, %v5722
      %v5944 = vpop.permute.xlu0 %5943
      %v5947 = vunpack.c.l.s4 839922192
      %v5948 = vunpack.c.0.s8 %v5947
      %v5949 = vlaneseq
      %v5950 = vshrl.u32 %v5949, 7
      %v5951 = vsub.s32 %v5948, %v5950
      %v5952 = vrot.slane %v5944, %v5951
      %5954 = vset.pattern.permute.xlu0 0
      %5955 = vperm.xlu0 %5954, %v5723
      %v5956 = vpop.permute.xlu0 %5955
      %v5959 = vunpack.c.l.s4 839922192
      %v5960 = vunpack.c.0.s8 %v5959
      %v5961 = vlaneseq
      %v5962 = vshrl.u32 %v5961, 7
      %v5963 = vsub.s32 %v5960, %v5962
      %v5964 = vrot.slane %v5956, %v5963
      %5966 = vset.pattern.permute.xlu0 0
      %5967 = vperm.xlu0 %5966, %v5724
      %v5968 = vpop.permute.xlu0 %5967
      %v5971 = vunpack.c.l.s4 839922192
      %v5972 = vunpack.c.0.s8 %v5971
      %v5973 = vlaneseq
      %v5974 = vshrl.u32 %v5973, 7
      %v5975 = vsub.s32 %v5972, %v5974
      %v5976 = vrot.slane %v5968, %v5975
      %5978 = vset.pattern.permute.xlu0 0
      %5979 = vperm.xlu0 %5978, %v5725
      %v5980 = vpop.permute.xlu0 %5979
      %v5983 = vunpack.c.l.s4 839922192
      %v5984 = vunpack.c.0.s8 %v5983
      %v5985 = vlaneseq
      %v5986 = vshrl.u32 %v5985, 7
      %v5987 = vsub.s32 %v5984, %v5986
      %v5988 = vrot.slane %v5980, %v5987
      %5990 = vset.pattern.permute.xlu0 0
      %5991 = vperm.xlu0 %5990, %v5726
      %v5992 = vpop.permute.xlu0 %5991
      %v5995 = vunpack.c.l.s4 839922192
      %v5996 = vunpack.c.0.s8 %v5995
      %v5997 = vlaneseq
      %v5998 = vshrl.u32 %v5997, 7
      %v5999 = vsub.s32 %v5996, %v5998
      %v6000 = vrot.slane %v5992, %v5999
      %6002 = vset.pattern.permute.xlu0 0
      %6003 = vperm.xlu0 %6002, %v5727
      %v6004 = vpop.permute.xlu0 %6003
      %v6007 = vunpack.c.l.s4 839922192
      %v6008 = vunpack.c.0.s8 %v6007
      %v6009 = vlaneseq
      %v6010 = vshrl.u32 %v6009, 7
      %v6011 = vsub.s32 %v6008, %v6010
      %v6012 = vrot.slane %v6004, %v6011
      %6014 = vset.pattern.permute.xlu0 0
      %6015 = vperm.xlu0 %6014, %v5728
      %v6016 = vpop.permute.xlu0 %6015
      %v6019 = vunpack.c.l.s4 839922192
      %v6020 = vunpack.c.0.s8 %v6019
      %v6021 = vlaneseq
      %v6022 = vshrl.u32 %v6021, 7
      %v6023 = vsub.s32 %v6020, %v6022
      %v6024 = vrot.slane %v6016, %v6023
      %6026 = vset.pattern.permute.xlu0 0
      %6027 = vperm.xlu0 %6026, %v5729
      %v6028 = vpop.permute.xlu0 %6027
      %v6031 = vunpack.c.l.s4 839922192
      %v6032 = vunpack.c.0.s8 %v6031
      %v6033 = vlaneseq
      %v6034 = vshrl.u32 %v6033, 7
      %v6035 = vsub.s32 %v6032, %v6034
      %v6036 = vrot.slane %v6028, %v6035
      %6038 = vset.pattern.permute.xlu0 0
      %6039 = vperm.xlu0 %6038, %v5730
      %v6040 = vpop.permute.xlu0 %6039
      %v6043 = vunpack.c.l.s4 839922192
      %v6044 = vunpack.c.0.s8 %v6043
      %v6045 = vlaneseq
      %v6046 = vshrl.u32 %v6045, 7
      %v6047 = vsub.s32 %v6044, %v6046
      %v6048 = vrot.slane %v6040, %v6047
      %6050 = vset.pattern.permute.xlu0 0
      %6051 = vperm.xlu0 %6050, %v5731
      %v6052 = vpop.permute.xlu0 %6051
      %v6055 = vunpack.c.l.s4 839922192
      %v6056 = vunpack.c.0.s8 %v6055
      %v6057 = vlaneseq
      %v6058 = vshrl.u32 %v6057, 7
      %v6059 = vsub.s32 %v6056, %v6058
      %v6060 = vrot.slane %v6052, %v6059
      %6062 = vset.pattern.permute.xlu0 0
      %6063 = vperm.xlu0 %6062, %v5732
      %v6064 = vpop.permute.xlu0 %6063
      %v6067 = vunpack.c.l.s4 839922192
      %v6068 = vunpack.c.0.s8 %v6067
      %v6069 = vlaneseq
      %v6070 = vshrl.u32 %v6069, 7
      %v6071 = vsub.s32 %v6068, %v6070
      %v6072 = vrot.slane %v6064, %v6071
      %6074 = vset.pattern.permute.xlu0 0
      %6075 = vperm.xlu0 %6074, %v5733
      %v6076 = vpop.permute.xlu0 %6075
      %v6079 = vunpack.c.l.s4 839922192
      %v6080 = vunpack.c.0.s8 %v6079
      %v6081 = vlaneseq
      %v6082 = vshrl.u32 %v6081, 7
      %v6083 = vsub.s32 %v6080, %v6082
      %v6084 = vrot.slane %v6076, %v6083
      %6086 = vset.pattern.permute.xlu0 0
      %6087 = vperm.xlu0 %6086, %v5734
      %v6088 = vpop.permute.xlu0 %6087
      %v6091 = vunpack.c.l.s4 839922192
      %v6092 = vunpack.c.0.s8 %v6091
      %v6093 = vlaneseq
      %v6094 = vshrl.u32 %v6093, 7
      %v6095 = vsub.s32 %v6092, %v6094
      %v6096 = vrot.slane %v6088, %v6095
      %6098 = vset.pattern.permute.xlu0 0
      %6099 = vperm.xlu0 %6098, %v5735
      %v6100 = vpop.permute.xlu0 %6099
      %v6103 = vunpack.c.l.s4 839922192
      %v6104 = vunpack.c.0.s8 %v6103
      %v6105 = vlaneseq
      %v6106 = vshrl.u32 %v6105, 7
      %v6107 = vsub.s32 %v6104, %v6106
      %v6108 = vrot.slane %v6100, %v6107
      %6110 = vset.pattern.permute.xlu0 0
      %6111 = vperm.xlu0 %6110, %v5736
      %v6112 = vpop.permute.xlu0 %6111
      %v6115 = vunpack.c.l.s4 839922192
      %v6116 = vunpack.c.0.s8 %v6115
      %v6117 = vlaneseq
      %v6118 = vshrl.u32 %v6117, 7
      %v6119 = vsub.s32 %v6116, %v6118
      %v6120 = vrot.slane %v6112, %v6119
      %v6121 = vmul.bf16 %v5673, %v5748
      %v6122 = vmul.bf16 %v5674, %v5760
      %v6123 = vmul.bf16 %v5675, %v5772
      %v6124 = vmul.bf16 %v5676, %v5784
      %v6125 = vmul.bf16 %v5677, %v5796
      %v6126 = vmul.bf16 %v5678, %v5808
      %v6127 = vmul.bf16 %v5679, %v5820
      %v6128 = vmul.bf16 %v5680, %v5832
      %v6129 = vmul.bf16 %v5681, %v5844
      %v6130 = vmul.bf16 %v5682, %v5856
      %v6131 = vmul.bf16 %v5683, %v5868
      %v6132 = vmul.bf16 %v5684, %v5880
      %v6133 = vmul.bf16 %v5685, %v5892
      %v6134 = vmul.bf16 %v5686, %v5904
      %v6135 = vmul.bf16 %v5687, %v5916
      %v6136 = vmul.bf16 %v5688, %v5928
      %v6137 = vmul.bf16 %v5689, %v5940
      %v6138 = vmul.bf16 %v5690, %v5952
      %v6139 = vmul.bf16 %v5691, %v5964
      %v6140 = vmul.bf16 %v5692, %v5976
      %v6141 = vmul.bf16 %v5693, %v5988
      %v6142 = vmul.bf16 %v5694, %v6000
      %v6143 = vmul.bf16 %v5695, %v6012
      %v6144 = vmul.bf16 %v5696, %v6024
      %v6145 = vmul.bf16 %v5697, %v6036
      %v6146 = vmul.bf16 %v5698, %v6048
      %v6147 = vmul.bf16 %v5699, %v6060
      %v6148 = vmul.bf16 %v5700, %v6072
      %v6149 = vmul.bf16 %v5701, %v6084
      %v6150 = vmul.bf16 %v5702, %v6096
      %v6151 = vmul.bf16 %v5703, %v6108
      %v6152 = vmul.bf16 %v5704, %v6120
      %s6153 = scalar_lea.vmem %s2, 256
      %v6154 = vld [vmem:[%s6153] sm:$0xf]
      %v6155 = vld [vmem:[%s6153 + $0x4] sm:$0xf]
      %v6156 = vld [vmem:[%s6153 + $0x8] sm:$0xf]
      %v6157 = vld [vmem:[%s6153 + $0xc] sm:$0xf]
      %v6158 = vld [vmem:[%s6153 + $0x10] sm:$0xf]
      %v6159 = vld [vmem:[%s6153 + $0x14] sm:$0xf]
      %v6160 = vld [vmem:[%s6153 + $0x18] sm:$0xf]
      %v6161 = vld [vmem:[%s6153 + $0x1c] sm:$0xf]
      %v6162 = vld [vmem:[%s192 + $0x8] sm:$0xf]
      %v6163 = vld [vmem:[%s192 + $0xc] sm:$0xf]
      %v6164 = vld [vmem:[%s192 + $0x10] sm:$0xf]
      %v6165 = vld [vmem:[%s192 + $0x14] sm:$0xf]
      %v6166 = vld [vmem:[%s192 + $0x18] sm:$0xf]
      %v6167 = vld [vmem:[%s192 + $0x1c] sm:$0xf]
      %v6168 = vld [vmem:[%s192 + $0x20] sm:$0xf]
      %v6169 = vld [vmem:[%s192 + $0x24] sm:$0xf]
      %v6170 = vld [vmem:[%s192 + $0x28] sm:$0xf]
      %v6171 = vld [vmem:[%s192 + $0x2c] sm:$0xf]
      %v6172 = vld [vmem:[%s192 + $0x30] sm:$0xf]
      %v6173 = vld [vmem:[%s192 + $0x34] sm:$0xf]
      %v6174 = vld [vmem:[%s192 + $0x38] sm:$0xf]
      %v6175 = vld [vmem:[%s192 + $0x3c] sm:$0xf]
      %v6176 = vld [vmem:[%s192 + $0x40] sm:$0xf]
      %v6177 = vld [vmem:[%s192 + $0x44] sm:$0xf]
      %v6178 = vld [vmem:[%s192 + $0x48] sm:$0xf]
      %v6179 = vld [vmem:[%s192 + $0x4c] sm:$0xf]
      %v6180 = vld [vmem:[%s192 + $0x50] sm:$0xf]
      %v6181 = vld [vmem:[%s192 + $0x54] sm:$0xf]
      %v6182 = vld [vmem:[%s192 + $0x58] sm:$0xf]
      %v6183 = vld [vmem:[%s192 + $0x5c] sm:$0xf]
      %v6184 = vld [vmem:[%s192 + $0x60] sm:$0xf]
      %v6185 = vld [vmem:[%s192 + $0x64] sm:$0xf]
      %v6186 = vld [vmem:[%s192 + $0x68] sm:$0xf]
      %v6187 = vld [vmem:[%s192 + $0x6c] sm:$0xf]
      %v6188 = vld [vmem:[%s192 + $0x70] sm:$0xf]
      %v6189 = vld [vmem:[%s192 + $0x74] sm:$0xf]
      %v6190 = vld [vmem:[%s192 + $0x78] sm:$0xf]
      %v6191 = vld [vmem:[%s192 + $0x7c] sm:$0xf]
      %v6192 = vld [vmem:[%s192 + $0x80] sm:$0xf]
      %v6193 = vld [vmem:[%s192 + $0x84] sm:$0xf]
      %v6194 = vld [vmem:[%s192 + $0x88] sm:$0x1]
      %s6195 = scalar_lea.vmem %s2, 288
      %v6196 = vld [vmem:[%s6195] sm:$0xf]
      %v6197 = vld [vmem:[%s6195 + $0x4] sm:$0xf]
      %v6198 = vld [vmem:[%s6195 + $0x8] sm:$0xf]
      %v6199 = vld [vmem:[%s6195 + $0xc] sm:$0xf]
      %v6200 = vld [vmem:[%s6195 + $0x10] sm:$0xf]
      %v6201 = vld [vmem:[%s6195 + $0x14] sm:$0xf]
      %v6202 = vld [vmem:[%s6195 + $0x18] sm:$0xf]
      %v6203 = vld [vmem:[%s6195 + $0x1c] sm:$0xf]
      %v6237 = vunpack.c.l.b16 %v6162
      %v6238 = vunpack.c.l.b16 %v6163
      %v6239 = vunpack.c.l.b16 %v6164
      %v6240 = vunpack.c.l.b16 %v6165
      %v6241 = vunpack.c.l.b16 %v6166
      %v6242 = vunpack.c.l.b16 %v6167
      %v6243 = vunpack.c.l.b16 %v6168
      %v6244 = vunpack.c.l.b16 %v6169
      %v6245 = vunpack.c.l.b16 %v6170
      %v6246 = vunpack.c.l.b16 %v6171
      %v6247 = vunpack.c.l.b16 %v6172
      %v6248 = vunpack.c.l.b16 %v6173
      %v6249 = vunpack.c.l.b16 %v6174
      %v6250 = vunpack.c.l.b16 %v6175
      %v6251 = vunpack.c.l.b16 %v6176
      %v6252 = vunpack.c.l.b16 %v6177
      %v6253 = vunpack.c.l.b16 %v6178
      %v6254 = vunpack.c.l.b16 %v6179
      %v6255 = vunpack.c.l.b16 %v6180
      %v6256 = vunpack.c.l.b16 %v6181
      %v6257 = vunpack.c.l.b16 %v6182
      %v6258 = vunpack.c.l.b16 %v6183
      %v6259 = vunpack.c.l.b16 %v6184
      %v6260 = vunpack.c.l.b16 %v6185
      %v6261 = vunpack.c.l.b16 %v6186
      %v6262 = vunpack.c.l.b16 %v6187
      %v6263 = vunpack.c.l.b16 %v6188
      %v6264 = vunpack.c.l.b16 %v6189
      %v6265 = vunpack.c.l.b16 %v6190
      %v6266 = vunpack.c.l.b16 %v6191
      %v6267 = vunpack.c.l.b16 %v6192
      %v6268 = vunpack.c.l.b16 %v6193
      %v6269 = vunpack.c.l.b16 %v6194
      %v6270 = vpack.c.b16 %v6238, %v6237
      %v6271 = vpack.c.b16 %v6240, %v6239
      %v6272 = vpack.c.b16 %v6242, %v6241
      %v6273 = vpack.c.b16 %v6244, %v6243
      %v6274 = vpack.c.b16 %v6246, %v6245
      %v6275 = vpack.c.b16 %v6248, %v6247
      %v6276 = vpack.c.b16 %v6250, %v6249
      %v6277 = vpack.c.b16 %v6252, %v6251
      %v6278 = vpack.c.b16 %v6254, %v6253
      %v6279 = vpack.c.b16 %v6256, %v6255
      %v6280 = vpack.c.b16 %v6258, %v6257
      %v6281 = vpack.c.b16 %v6260, %v6259
      %v6282 = vpack.c.b16 %v6262, %v6261
      %v6283 = vpack.c.b16 %v6264, %v6263
      %v6284 = vpack.c.b16 %v6266, %v6265
      %v6285 = vpack.c.b16 %v6268, %v6267
      %v6286 = vpack.c.b16 %v6269, %v6269
      %v6288 = vshrl.u32 %v6270, 16
      %v6290 = vshll.u32 %v6270, 16
      %v6292 = vrot.slane %v6290, 1
      %v6293 = vor.u32 %v6288, %v6292
      %v6295 = vshll.u32 %v6271, 16
      %v6297 = vrot.slane %v6295, 1
      %v6298 = vsel %vm813, %v6293, %v6297
      %v6299 = vshrl.u32 %v6271, 16
      %v6301 = vor.u32 %v6299, %v6297
      %v6303 = vshll.u32 %v6272, 16
      %v6305 = vrot.slane %v6303, 1
      %v6306 = vsel %vm813, %v6301, %v6305
      %v6307 = vshrl.u32 %v6272, 16
      %v6309 = vor.u32 %v6307, %v6305
      %v6311 = vshll.u32 %v6273, 16
      %v6313 = vrot.slane %v6311, 1
      %v6314 = vsel %vm813, %v6309, %v6313
      %v6315 = vshrl.u32 %v6273, 16
      %v6317 = vor.u32 %v6315, %v6313
      %v6319 = vshll.u32 %v6274, 16
      %v6321 = vrot.slane %v6319, 1
      %v6322 = vsel %vm813, %v6317, %v6321
      %v6323 = vshrl.u32 %v6274, 16
      %v6325 = vor.u32 %v6323, %v6321
      %v6327 = vshll.u32 %v6275, 16
      %v6329 = vrot.slane %v6327, 1
      %v6330 = vsel %vm813, %v6325, %v6329
      %v6331 = vshrl.u32 %v6275, 16
      %v6333 = vor.u32 %v6331, %v6329
      %v6335 = vshll.u32 %v6276, 16
      %v6337 = vrot.slane %v6335, 1
      %v6338 = vsel %vm813, %v6333, %v6337
      %v6339 = vshrl.u32 %v6276, 16
      %v6341 = vor.u32 %v6339, %v6337
      %v6343 = vshll.u32 %v6277, 16
      %v6345 = vrot.slane %v6343, 1
      %v6346 = vsel %vm813, %v6341, %v6345
      %v6347 = vshrl.u32 %v6277, 16
      %v6349 = vor.u32 %v6347, %v6345
      %v6351 = vshll.u32 %v6278, 16
      %v6353 = vrot.slane %v6351, 1
      %v6354 = vsel %vm813, %v6349, %v6353
      %v6355 = vshrl.u32 %v6278, 16
      %v6357 = vor.u32 %v6355, %v6353
      %v6359 = vshll.u32 %v6279, 16
      %v6361 = vrot.slane %v6359, 1
      %v6362 = vsel %vm813, %v6357, %v6361
      %v6363 = vshrl.u32 %v6279, 16
      %v6365 = vor.u32 %v6363, %v6361
      %v6367 = vshll.u32 %v6280, 16
      %v6369 = vrot.slane %v6367, 1
      %v6370 = vsel %vm813, %v6365, %v6369
      %v6371 = vshrl.u32 %v6280, 16
      %v6373 = vor.u32 %v6371, %v6369
      %v6375 = vshll.u32 %v6281, 16
      %v6377 = vrot.slane %v6375, 1
      %v6378 = vsel %vm813, %v6373, %v6377
      %v6379 = vshrl.u32 %v6281, 16
      %v6381 = vor.u32 %v6379, %v6377
      %v6383 = vshll.u32 %v6282, 16
      %v6385 = vrot.slane %v6383, 1
      %v6386 = vsel %vm813, %v6381, %v6385
      %v6387 = vshrl.u32 %v6282, 16
      %v6389 = vor.u32 %v6387, %v6385
      %v6391 = vshll.u32 %v6283, 16
      %v6393 = vrot.slane %v6391, 1
      %v6394 = vsel %vm813, %v6389, %v6393
      %v6395 = vshrl.u32 %v6283, 16
      %v6397 = vor.u32 %v6395, %v6393
      %v6399 = vshll.u32 %v6284, 16
      %v6401 = vrot.slane %v6399, 1
      %v6402 = vsel %vm813, %v6397, %v6401
      %v6403 = vshrl.u32 %v6284, 16
      %v6405 = vor.u32 %v6403, %v6401
      %v6407 = vshll.u32 %v6285, 16
      %v6409 = vrot.slane %v6407, 1
      %v6410 = vsel %vm813, %v6405, %v6409
      %v6411 = vshrl.u32 %v6285, 16
      %v6413 = vor.u32 %v6411, %v6409
      %v6415 = vshll.u32 %v6286, 16
      %v6417 = vrot.slane %v6415, 1
      %v6418 = vsel %vm813, %v6413, %v6417
      %v6427 = vunpack.c.l.b16 %v6196
      %v6428 = vunpack.c.l.b16 %v6197
      %v6429 = vunpack.c.l.b16 %v6198
      %v6430 = vunpack.c.l.b16 %v6199
      %v6431 = vunpack.c.l.b16 %v6200
      %v6432 = vunpack.c.l.b16 %v6201
      %v6433 = vunpack.c.l.b16 %v6202
      %v6434 = vunpack.c.l.b16 %v6203
      %v6435 = vpack.c.b16 %v6428, %v6427
      %v6436 = vpack.c.b16 %v6430, %v6429
      %v6437 = vpack.c.b16 %v6432, %v6431
      %v6438 = vpack.c.b16 %v6434, %v6433
      %v6444 = vsel %vm970, %v6298, 0
      %v6447 = vsel %vm970, %v6306, 0
      %v6450 = vsel %vm970, %v6314, 0
      %v6453 = vsel %vm970, %v6322, 0
      %v6456 = vsel %vm970, %v6330, 0
      %v6459 = vsel %vm970, %v6338, 0
      %v6462 = vsel %vm970, %v6346, 0
      %v6465 = vsel %vm970, %v6354, 0
      %v6468 = vsel %vm970, %v6362, 0
      %v6471 = vsel %vm970, %v6370, 0
      %v6474 = vsel %vm970, %v6378, 0
      %v6477 = vsel %vm970, %v6386, 0
      %v6480 = vsel %vm970, %v6394, 0
      %v6483 = vsel %vm970, %v6402, 0
      %v6486 = vsel %vm970, %v6410, 0
      %v6489 = vsel %vm970, %v6418, 0
      %6491 = vmatprep.subr.bf16.mxu0 0
      %6492 = vmatpush1.bf16.msra.mxu0 0
      %6493 = vmatprep.subr.bf16.mxu0 0
      %6494 = vmatpush1.bf16.msra.mxu0 0
      %6495 = vmatprep.subr.bf16.mxu0 0
      %6496 = vmatpush1.bf16.msra.mxu0 0
      %6497 = vmatprep.subr.bf16.mxu0 0
      %6498 = vmatpush1.bf16.msra.mxu0 0
      %6499 = vmatprep.subr.bf16.mxu0 0
      %6500 = vmatpush1.bf16.msra.mxu0 %v6438
      %6501 = vmatprep.subr.bf16.mxu0 0
      %6502 = vmatpush1.bf16.msra.mxu0 %v6437
      %6503 = vmatprep.subr.bf16.mxu0 0
      %6504 = vmatpush1.bf16.msra.mxu0 %v6436
      %6505 = vmatprep.subr.bf16.mxu0 0
      %6506 = vmatpush1.bf16.msra.mxu0 %v6435
      %6507 = vmatprep.subr.bf16.mxu0 0
      %6508 = vmatpush2.bf16.msra.mxu0 0
      %6509 = vmatprep.subr.bf16.mxu0 0
      %6510 = vmatpush2.bf16.msra.mxu0 0
      %6511 = vmatprep.subr.bf16.mxu0 0
      %6512 = vmatpush2.bf16.msra.mxu0 0
      %6513 = vmatprep.subr.bf16.mxu0 0
      %6514 = vmatpush2.bf16.msra.mxu0 0
      %6515 = vmatprep.subr.bf16.mxu0 0
      %6516 = vmatpush2.bf16.msra.mxu0 0
      %6517 = vmatprep.subr.bf16.mxu0 0
      %6518 = vmatpush2.bf16.msra.mxu0 0
      %6519 = vmatprep.subr.bf16.mxu0 0
      %6520 = vmatpush2.bf16.msra.mxu0 0
      %6521 = vmatprep.subr.bf16.mxu0 0
      %6522 = vmatpush2.bf16.msra.mxu0 0
      %6523 = vmatprep.mubr.bf16.mxu0 0
      %6524 = vmatmul.mubr.bf16.gmra.mxu0 %v6444
      %v6525 = vpop.f32.mrf.mxu0
      %v6526 = vadd.f32 0.0, %v6525
      %v6527 = vpop.f32.mrf.mxu0
      %v6528 = vpop.f32.mrf.mxu0
      %v6529 = vadd.f32 0.0, %v6528
      %v6530 = vpop.f32.mrf.mxu0
      %6531 = vmatprep.mubr.bf16.mxu0 0
      %6532 = vmatmul.mubr.bf16.gmra.mxu0 %v6447
      %v6533 = vpop.f32.mrf.mxu0
      %v6534 = vadd.f32 0.0, %v6533
      %v6535 = vpop.f32.mrf.mxu0
      %v6536 = vpop.f32.mrf.mxu0
      %v6537 = vadd.f32 0.0, %v6536
      %v6538 = vpop.f32.mrf.mxu0
      %6539 = vmatprep.mubr.bf16.mxu0 0
      %6540 = vmatmul.mubr.bf16.gmra.mxu0 %v6450
      %v6541 = vpop.f32.mrf.mxu0
      %v6542 = vadd.f32 0.0, %v6541
      %v6543 = vpop.f32.mrf.mxu0
      %v6544 = vpop.f32.mrf.mxu0
      %v6545 = vadd.f32 0.0, %v6544
      %v6546 = vpop.f32.mrf.mxu0
      %6547 = vmatprep.mubr.bf16.mxu0 0
      %6548 = vmatmul.mubr.bf16.gmra.mxu0 %v6453
      %v6549 = vpop.f32.mrf.mxu0
      %v6550 = vadd.f32 0.0, %v6549
      %v6551 = vpop.f32.mrf.mxu0
      %v6552 = vpop.f32.mrf.mxu0
      %v6553 = vadd.f32 0.0, %v6552
      %v6554 = vpop.f32.mrf.mxu0
      %6555 = vmatprep.mubr.bf16.mxu0 0
      %6556 = vmatmul.mubr.bf16.gmra.mxu0 %v6456
      %v6557 = vpop.f32.mrf.mxu0
      %v6558 = vadd.f32 0.0, %v6557
      %v6559 = vpop.f32.mrf.mxu0
      %v6560 = vpop.f32.mrf.mxu0
      %v6561 = vadd.f32 0.0, %v6560
      %v6562 = vpop.f32.mrf.mxu0
      %6563 = vmatprep.mubr.bf16.mxu0 0
      %6564 = vmatmul.mubr.bf16.gmra.mxu0 %v6459
      %v6565 = vpop.f32.mrf.mxu0
      %v6566 = vadd.f32 0.0, %v6565
      %v6567 = vpop.f32.mrf.mxu0
      %v6568 = vpop.f32.mrf.mxu0
      %v6569 = vadd.f32 0.0, %v6568
      %v6570 = vpop.f32.mrf.mxu0
      %6571 = vmatprep.mubr.bf16.mxu0 0
      %6572 = vmatmul.mubr.bf16.gmra.mxu0 %v6462
      %v6573 = vpop.f32.mrf.mxu0
      %v6574 = vadd.f32 0.0, %v6573
      %v6575 = vpop.f32.mrf.mxu0
      %v6576 = vpop.f32.mrf.mxu0
      %v6577 = vadd.f32 0.0, %v6576
      %v6578 = vpop.f32.mrf.mxu0
      %6579 = vmatprep.mubr.bf16.mxu0 0
      %6580 = vmatmul.mubr.bf16.gmra.mxu0 %v6465
      %v6581 = vpop.f32.mrf.mxu0
      %v6582 = vadd.f32 0.0, %v6581
      %v6583 = vpop.f32.mrf.mxu0
      %v6584 = vpop.f32.mrf.mxu0
      %v6585 = vadd.f32 0.0, %v6584
      %v6586 = vpop.f32.mrf.mxu0
      %6587 = vmatprep.mubr.bf16.mxu0 0
      %6588 = vmatmul.mubr.bf16.gmra.mxu0 %v6468
      %v6589 = vpop.f32.mrf.mxu0
      %v6590 = vadd.f32 0.0, %v6589
      %v6591 = vpop.f32.mrf.mxu0
      %v6592 = vpop.f32.mrf.mxu0
      %v6593 = vadd.f32 0.0, %v6592
      %v6594 = vpop.f32.mrf.mxu0
      %6595 = vmatprep.mubr.bf16.mxu0 0
      %6596 = vmatmul.mubr.bf16.gmra.mxu0 %v6471
      %v6597 = vpop.f32.mrf.mxu0
      %v6598 = vadd.f32 0.0, %v6597
      %v6599 = vpop.f32.mrf.mxu0
      %v6600 = vpop.f32.mrf.mxu0
      %v6601 = vadd.f32 0.0, %v6600
      %v6602 = vpop.f32.mrf.mxu0
      %6603 = vmatprep.mubr.bf16.mxu0 0
      %6604 = vmatmul.mubr.bf16.gmra.mxu0 %v6474
      %v6605 = vpop.f32.mrf.mxu0
      %v6606 = vadd.f32 0.0, %v6605
      %v6607 = vpop.f32.mrf.mxu0
      %v6608 = vpop.f32.mrf.mxu0
      %v6609 = vadd.f32 0.0, %v6608
      %v6610 = vpop.f32.mrf.mxu0
      %6611 = vmatprep.mubr.bf16.mxu0 0
      %6612 = vmatmul.mubr.bf16.gmra.mxu0 %v6477
      %v6613 = vpop.f32.mrf.mxu0
      %v6614 = vadd.f32 0.0, %v6613
      %v6615 = vpop.f32.mrf.mxu0
      %v6616 = vpop.f32.mrf.mxu0
      %v6617 = vadd.f32 0.0, %v6616
      %v6618 = vpop.f32.mrf.mxu0
      %6619 = vmatprep.mubr.bf16.mxu0 0
      %6620 = vmatmul.mubr.bf16.gmra.mxu0 %v6480
      %v6621 = vpop.f32.mrf.mxu0
      %v6622 = vadd.f32 0.0, %v6621
      %v6623 = vpop.f32.mrf.mxu0
      %v6624 = vpop.f32.mrf.mxu0
      %v6625 = vadd.f32 0.0, %v6624
      %v6626 = vpop.f32.mrf.mxu0
      %6627 = vmatprep.mubr.bf16.mxu0 0
      %6628 = vmatmul.mubr.bf16.gmra.mxu0 %v6483
      %v6629 = vpop.f32.mrf.mxu0
      %v6630 = vadd.f32 0.0, %v6629
      %v6631 = vpop.f32.mrf.mxu0
      %v6632 = vpop.f32.mrf.mxu0
      %v6633 = vadd.f32 0.0, %v6632
      %v6634 = vpop.f32.mrf.mxu0
      %6635 = vmatprep.mubr.bf16.mxu0 0
      %6636 = vmatmul.mubr.bf16.gmra.mxu0 %v6486
      %v6637 = vpop.f32.mrf.mxu0
      %v6638 = vadd.f32 0.0, %v6637
      %v6639 = vpop.f32.mrf.mxu0
      %v6640 = vpop.f32.mrf.mxu0
      %v6641 = vadd.f32 0.0, %v6640
      %v6642 = vpop.f32.mrf.mxu0
      %6643 = vmatprep.mubr.bf16.mxu0 0
      %6644 = vmatmul.mubr.bf16.gmra.mxu0 %v6489
      %v6645 = vpop.f32.mrf.mxu0
      %v6646 = vadd.f32 0.0, %v6645
      %v6647 = vpop.f32.mrf.mxu0
      %v6648 = vpop.f32.mrf.mxu0
      %v6649 = vadd.f32 0.0, %v6648
      %v6650 = vpop.f32.mrf.mxu0
      %6651 = vdwg.mxu0
      %v6684 = vunpack.c.l.b16 %v6121
      %v6685 = vunpack.c.l.b16 %v6122
      %v6686 = vunpack.c.l.b16 %v6123
      %v6687 = vunpack.c.l.b16 %v6124
      %v6688 = vunpack.c.l.b16 %v6125
      %v6689 = vunpack.c.l.b16 %v6126
      %v6690 = vunpack.c.l.b16 %v6127
      %v6691 = vunpack.c.l.b16 %v6128
      %v6692 = vunpack.c.l.b16 %v6129
      %v6693 = vunpack.c.l.b16 %v6130
      %v6694 = vunpack.c.l.b16 %v6131
      %v6695 = vunpack.c.l.b16 %v6132
      %v6696 = vunpack.c.l.b16 %v6133
      %v6697 = vunpack.c.l.b16 %v6134
      %v6698 = vunpack.c.l.b16 %v6135
      %v6699 = vunpack.c.l.b16 %v6136
      %v6700 = vunpack.c.l.b16 %v6137
      %v6701 = vunpack.c.l.b16 %v6138
      %v6702 = vunpack.c.l.b16 %v6139
      %v6703 = vunpack.c.l.b16 %v6140
      %v6704 = vunpack.c.l.b16 %v6141
      %v6705 = vunpack.c.l.b16 %v6142
      %v6706 = vunpack.c.l.b16 %v6143
      %v6707 = vunpack.c.l.b16 %v6144
      %v6708 = vunpack.c.l.b16 %v6145
      %v6709 = vunpack.c.l.b16 %v6146
      %v6710 = vunpack.c.l.b16 %v6147
      %v6711 = vunpack.c.l.b16 %v6148
      %v6712 = vunpack.c.l.b16 %v6149
      %v6713 = vunpack.c.l.b16 %v6150
      %v6714 = vunpack.c.l.b16 %v6151
      %v6715 = vunpack.c.l.b16 %v6152
      %v6716 = vpack.c.b16 %v6685, %v6684
      %v6717 = vpack.c.b16 %v6687, %v6686
      %v6718 = vpack.c.b16 %v6689, %v6688
      %v6719 = vpack.c.b16 %v6691, %v6690
      %v6720 = vpack.c.b16 %v6693, %v6692
      %v6721 = vpack.c.b16 %v6695, %v6694
      %v6722 = vpack.c.b16 %v6697, %v6696
      %v6723 = vpack.c.b16 %v6699, %v6698
      %v6724 = vpack.c.b16 %v6701, %v6700
      %v6725 = vpack.c.b16 %v6703, %v6702
      %v6726 = vpack.c.b16 %v6705, %v6704
      %v6727 = vpack.c.b16 %v6707, %v6706
      %v6728 = vpack.c.b16 %v6709, %v6708
      %v6729 = vpack.c.b16 %v6711, %v6710
      %v6730 = vpack.c.b16 %v6713, %v6712
      %v6731 = vpack.c.b16 %v6715, %v6714
      %v6740 = vunpack.c.l.b16 %v6154
      %v6741 = vunpack.c.l.b16 %v6155
      %v6742 = vunpack.c.l.b16 %v6156
      %v6743 = vunpack.c.l.b16 %v6157
      %v6744 = vunpack.c.l.b16 %v6158
      %v6745 = vunpack.c.l.b16 %v6159
      %v6746 = vunpack.c.l.b16 %v6160
      %v6747 = vunpack.c.l.b16 %v6161
      %v6748 = vpack.c.b16 %v6741, %v6740
      %v6749 = vpack.c.b16 %v6743, %v6742
      %v6750 = vpack.c.b16 %v6745, %v6744
      %v6751 = vpack.c.b16 %v6747, %v6746
      %v6757 = vsel %vm970, %v6716, 0
      %v6760 = vsel %vm970, %v6717, 0
      %v6763 = vsel %vm970, %v6718, 0
      %v6766 = vsel %vm970, %v6719, 0
      %v6769 = vsel %vm970, %v6720, 0
      %v6772 = vsel %vm970, %v6721, 0
      %v6775 = vsel %vm970, %v6722, 0
      %v6778 = vsel %vm970, %v6723, 0
      %v6781 = vsel %vm970, %v6724, 0
      %v6784 = vsel %vm970, %v6725, 0
      %v6787 = vsel %vm970, %v6726, 0
      %v6790 = vsel %vm970, %v6727, 0
      %v6793 = vsel %vm970, %v6728, 0
      %v6796 = vsel %vm970, %v6729, 0
      %v6799 = vsel %vm970, %v6730, 0
      %v6802 = vsel %vm970, %v6731, 0
      %6804 = vmatprep.subr.bf16.mxu0 0
      %6805 = vmatpush1.bf16.msra.mxu0 0
      %6806 = vmatprep.subr.bf16.mxu0 0
      %6807 = vmatpush1.bf16.msra.mxu0 0
      %6808 = vmatprep.subr.bf16.mxu0 0
      %6809 = vmatpush1.bf16.msra.mxu0 0
      %6810 = vmatprep.subr.bf16.mxu0 0
      %6811 = vmatpush1.bf16.msra.mxu0 0
      %6812 = vmatprep.subr.bf16.mxu0 0
      %6813 = vmatpush1.bf16.msra.mxu0 %v6751
      %6814 = vmatprep.subr.bf16.mxu0 0
      %6815 = vmatpush1.bf16.msra.mxu0 %v6750
      %6816 = vmatprep.subr.bf16.mxu0 0
      %6817 = vmatpush1.bf16.msra.mxu0 %v6749
      %6818 = vmatprep.subr.bf16.mxu0 0
      %6819 = vmatpush1.bf16.msra.mxu0 %v6748
      %6820 = vmatprep.subr.bf16.mxu0 0
      %6821 = vmatpush2.bf16.msra.mxu0 0
      %6822 = vmatprep.subr.bf16.mxu0 0
      %6823 = vmatpush2.bf16.msra.mxu0 0
      %6824 = vmatprep.subr.bf16.mxu0 0
      %6825 = vmatpush2.bf16.msra.mxu0 0
      %6826 = vmatprep.subr.bf16.mxu0 0
      %6827 = vmatpush2.bf16.msra.mxu0 0
      %6828 = vmatprep.subr.bf16.mxu0 0
      %6829 = vmatpush2.bf16.msra.mxu0 0
      %6830 = vmatprep.subr.bf16.mxu0 0
      %6831 = vmatpush2.bf16.msra.mxu0 0
      %6832 = vmatprep.subr.bf16.mxu0 0
      %6833 = vmatpush2.bf16.msra.mxu0 0
      %6834 = vmatprep.subr.bf16.mxu0 0
      %6835 = vmatpush2.bf16.msra.mxu0 0
      %6836 = vmatprep.mubr.bf16.mxu0 0
      %6837 = vmatmul.mubr.bf16.gmra.mxu0 %v6757
      %v6838 = vpop.f32.mrf.mxu0
      %v6839 = vadd.f32 %v6526, %v6838
      %v6840 = vpop.f32.mrf.mxu0
      %v6841 = vpop.f32.mrf.mxu0
      %v6842 = vadd.f32 %v6529, %v6841
      %v6843 = vpop.f32.mrf.mxu0
      %6844 = vmatprep.mubr.bf16.mxu0 0
      %6845 = vmatmul.mubr.bf16.gmra.mxu0 %v6760
      %v6846 = vpop.f32.mrf.mxu0
      %v6847 = vadd.f32 %v6534, %v6846
      %v6848 = vpop.f32.mrf.mxu0
      %v6849 = vpop.f32.mrf.mxu0
      %v6850 = vadd.f32 %v6537, %v6849
      %v6851 = vpop.f32.mrf.mxu0
      %6852 = vmatprep.mubr.bf16.mxu0 0
      %6853 = vmatmul.mubr.bf16.gmra.mxu0 %v6763
      %v6854 = vpop.f32.mrf.mxu0
      %v6855 = vadd.f32 %v6542, %v6854
      %v6856 = vpop.f32.mrf.mxu0
      %v6857 = vpop.f32.mrf.mxu0
      %v6858 = vadd.f32 %v6545, %v6857
      %v6859 = vpop.f32.mrf.mxu0
      %6860 = vmatprep.mubr.bf16.mxu0 0
      %6861 = vmatmul.mubr.bf16.gmra.mxu0 %v6766
      %v6862 = vpop.f32.mrf.mxu0
      %v6863 = vadd.f32 %v6550, %v6862
      %v6864 = vpop.f32.mrf.mxu0
      %v6865 = vpop.f32.mrf.mxu0
      %v6866 = vadd.f32 %v6553, %v6865
      %v6867 = vpop.f32.mrf.mxu0
      %6868 = vmatprep.mubr.bf16.mxu0 0
      %6869 = vmatmul.mubr.bf16.gmra.mxu0 %v6769
      %v6870 = vpop.f32.mrf.mxu0
      %v6871 = vadd.f32 %v6558, %v6870
      %v6872 = vpop.f32.mrf.mxu0
      %v6873 = vpop.f32.mrf.mxu0
      %v6874 = vadd.f32 %v6561, %v6873
      %v6875 = vpop.f32.mrf.mxu0
      %6876 = vmatprep.mubr.bf16.mxu0 0
      %6877 = vmatmul.mubr.bf16.gmra.mxu0 %v6772
      %v6878 = vpop.f32.mrf.mxu0
      %v6879 = vadd.f32 %v6566, %v6878
      %v6880 = vpop.f32.mrf.mxu0
      %v6881 = vpop.f32.mrf.mxu0
      %v6882 = vadd.f32 %v6569, %v6881
      %v6883 = vpop.f32.mrf.mxu0
      %6884 = vmatprep.mubr.bf16.mxu0 0
      %6885 = vmatmul.mubr.bf16.gmra.mxu0 %v6775
      %v6886 = vpop.f32.mrf.mxu0
      %v6887 = vadd.f32 %v6574, %v6886
      %v6888 = vpop.f32.mrf.mxu0
      %v6889 = vpop.f32.mrf.mxu0
      %v6890 = vadd.f32 %v6577, %v6889
      %v6891 = vpop.f32.mrf.mxu0
      %6892 = vmatprep.mubr.bf16.mxu0 0
      %6893 = vmatmul.mubr.bf16.gmra.mxu0 %v6778
      %v6894 = vpop.f32.mrf.mxu0
      %v6895 = vadd.f32 %v6582, %v6894
      %v6896 = vpop.f32.mrf.mxu0
      %v6897 = vpop.f32.mrf.mxu0
      %v6898 = vadd.f32 %v6585, %v6897
      %v6899 = vpop.f32.mrf.mxu0
      %6900 = vmatprep.mubr.bf16.mxu0 0
      %6901 = vmatmul.mubr.bf16.gmra.mxu0 %v6781
      %v6902 = vpop.f32.mrf.mxu0
      %v6903 = vadd.f32 %v6590, %v6902
      %v6904 = vpop.f32.mrf.mxu0
      %v6905 = vpop.f32.mrf.mxu0
      %v6906 = vadd.f32 %v6593, %v6905
      %v6907 = vpop.f32.mrf.mxu0
      %6908 = vmatprep.mubr.bf16.mxu0 0
      %6909 = vmatmul.mubr.bf16.gmra.mxu0 %v6784
      %v6910 = vpop.f32.mrf.mxu0
      %v6911 = vadd.f32 %v6598, %v6910
      %v6912 = vpop.f32.mrf.mxu0
      %v6913 = vpop.f32.mrf.mxu0
      %v6914 = vadd.f32 %v6601, %v6913
      %v6915 = vpop.f32.mrf.mxu0
      %6916 = vmatprep.mubr.bf16.mxu0 0
      %6917 = vmatmul.mubr.bf16.gmra.mxu0 %v6787
      %v6918 = vpop.f32.mrf.mxu0
      %v6919 = vadd.f32 %v6606, %v6918
      %v6920 = vpop.f32.mrf.mxu0
      %v6921 = vpop.f32.mrf.mxu0
      %v6922 = vadd.f32 %v6609, %v6921
      %v6923 = vpop.f32.mrf.mxu0
      %6924 = vmatprep.mubr.bf16.mxu0 0
      %6925 = vmatmul.mubr.bf16.gmra.mxu0 %v6790
      %v6926 = vpop.f32.mrf.mxu0
      %v6927 = vadd.f32 %v6614, %v6926
      %v6928 = vpop.f32.mrf.mxu0
      %v6929 = vpop.f32.mrf.mxu0
      %v6930 = vadd.f32 %v6617, %v6929
      %v6931 = vpop.f32.mrf.mxu0
      %6932 = vmatprep.mubr.bf16.mxu0 0
      %6933 = vmatmul.mubr.bf16.gmra.mxu0 %v6793
      %v6934 = vpop.f32.mrf.mxu0
      %v6935 = vadd.f32 %v6622, %v6934
      %v6936 = vpop.f32.mrf.mxu0
      %v6937 = vpop.f32.mrf.mxu0
      %v6938 = vadd.f32 %v6625, %v6937
      %v6939 = vpop.f32.mrf.mxu0
      %6940 = vmatprep.mubr.bf16.mxu0 0
      %6941 = vmatmul.mubr.bf16.gmra.mxu0 %v6796
      %v6942 = vpop.f32.mrf.mxu0
      %v6943 = vadd.f32 %v6630, %v6942
      %v6944 = vpop.f32.mrf.mxu0
      %v6945 = vpop.f32.mrf.mxu0
      %v6946 = vadd.f32 %v6633, %v6945
      %v6947 = vpop.f32.mrf.mxu0
      %6948 = vmatprep.mubr.bf16.mxu0 0
      %6949 = vmatmul.mubr.bf16.gmra.mxu0 %v6799
      %v6950 = vpop.f32.mrf.mxu0
      %v6951 = vadd.f32 %v6638, %v6950
      %v6952 = vpop.f32.mrf.mxu0
      %v6953 = vpop.f32.mrf.mxu0
      %v6954 = vadd.f32 %v6641, %v6953
      %v6955 = vpop.f32.mrf.mxu0
      %6956 = vmatprep.mubr.bf16.mxu0 0
      %6957 = vmatmul.mubr.bf16.gmra.mxu0 %v6802
      %v6958 = vpop.f32.mrf.mxu0
      %v6959 = vadd.f32 %v6646, %v6958
      %v6960 = vpop.f32.mrf.mxu0
      %v6961 = vpop.f32.mrf.mxu0
      %v6962 = vadd.f32 %v6649, %v6961
      %v6963 = vpop.f32.mrf.mxu0
      %6964 = vdwg.mxu0
      %v6965 = vld [vmem:[%s192 + $0x10] sm:$0xf]
      %v6966 = vld [vmem:[%s192 + $0x14] sm:$0xf]
      %v6967 = vld [vmem:[%s192 + $0x18] sm:$0xf]
      %v6968 = vld [vmem:[%s192 + $0x1c] sm:$0xf]
      %v6969 = vld [vmem:[%s192 + $0x20] sm:$0xf]
      %v6970 = vld [vmem:[%s192 + $0x24] sm:$0xf]
      %v6971 = vld [vmem:[%s192 + $0x28] sm:$0xf]
      %v6972 = vld [vmem:[%s192 + $0x2c] sm:$0xf]
      %v6973 = vld [vmem:[%s192 + $0x30] sm:$0xf]
      %v6974 = vld [vmem:[%s192 + $0x34] sm:$0xf]
      %v6975 = vld [vmem:[%s192 + $0x38] sm:$0xf]
      %v6976 = vld [vmem:[%s192 + $0x3c] sm:$0xf]
      %v6977 = vld [vmem:[%s192 + $0x40] sm:$0xf]
      %v6978 = vld [vmem:[%s192 + $0x44] sm:$0xf]
      %v6979 = vld [vmem:[%s192 + $0x48] sm:$0xf]
      %v6980 = vld [vmem:[%s192 + $0x4c] sm:$0xf]
      %v6981 = vld [vmem:[%s192 + $0x50] sm:$0xf]
      %v6982 = vld [vmem:[%s192 + $0x54] sm:$0xf]
      %v6983 = vld [vmem:[%s192 + $0x58] sm:$0xf]
      %v6984 = vld [vmem:[%s192 + $0x5c] sm:$0xf]
      %v6985 = vld [vmem:[%s192 + $0x60] sm:$0xf]
      %v6986 = vld [vmem:[%s192 + $0x64] sm:$0xf]
      %v6987 = vld [vmem:[%s192 + $0x68] sm:$0xf]
      %v6988 = vld [vmem:[%s192 + $0x6c] sm:$0xf]
      %v6989 = vld [vmem:[%s192 + $0x70] sm:$0xf]
      %v6990 = vld [vmem:[%s192 + $0x74] sm:$0xf]
      %v6991 = vld [vmem:[%s192 + $0x78] sm:$0xf]
      %v6992 = vld [vmem:[%s192 + $0x7c] sm:$0xf]
      %v6993 = vld [vmem:[%s192 + $0x80] sm:$0xf]
      %v6994 = vld [vmem:[%s192 + $0x84] sm:$0xf]
      %v6995 = vld [vmem:[%s192 + $0x88] sm:$0xf]
      %v6996 = vld [vmem:[%s192 + $0x8c] sm:$0xf]
      %v6997 = vld [vmem:[%s1 + $0x10] sm:$0xf]
      %v6998 = vld [vmem:[%s1 + $0x14] sm:$0xf]
      %v6999 = vld [vmem:[%s1 + $0x18] sm:$0xf]
      %v7000 = vld [vmem:[%s1 + $0x1c] sm:$0xf]
      %v7001 = vld [vmem:[%s1 + $0x20] sm:$0xf]
      %v7002 = vld [vmem:[%s1 + $0x24] sm:$0xf]
      %v7003 = vld [vmem:[%s1 + $0x28] sm:$0xf]
      %v7004 = vld [vmem:[%s1 + $0x2c] sm:$0xf]
      %v7005 = vld [vmem:[%s1 + $0x30] sm:$0xf]
      %v7006 = vld [vmem:[%s1 + $0x34] sm:$0xf]
      %v7007 = vld [vmem:[%s1 + $0x38] sm:$0xf]
      %v7008 = vld [vmem:[%s1 + $0x3c] sm:$0xf]
      %v7009 = vld [vmem:[%s1 + $0x40] sm:$0xf]
      %v7010 = vld [vmem:[%s1 + $0x44] sm:$0xf]
      %v7011 = vld [vmem:[%s1 + $0x48] sm:$0xf]
      %v7012 = vld [vmem:[%s1 + $0x4c] sm:$0xf]
      %v7013 = vld [vmem:[%s1 + $0x50] sm:$0xf]
      %v7014 = vld [vmem:[%s1 + $0x54] sm:$0xf]
      %v7015 = vld [vmem:[%s1 + $0x58] sm:$0xf]
      %v7016 = vld [vmem:[%s1 + $0x5c] sm:$0xf]
      %v7017 = vld [vmem:[%s1 + $0x60] sm:$0xf]
      %v7018 = vld [vmem:[%s1 + $0x64] sm:$0xf]
      %v7019 = vld [vmem:[%s1 + $0x68] sm:$0xf]
      %v7020 = vld [vmem:[%s1 + $0x6c] sm:$0xf]
      %v7021 = vld [vmem:[%s1 + $0x70] sm:$0xf]
      %v7022 = vld [vmem:[%s1 + $0x74] sm:$0xf]
      %v7023 = vld [vmem:[%s1 + $0x78] sm:$0xf]
      %v7024 = vld [vmem:[%s1 + $0x7c] sm:$0xf]
      %v7025 = vld [vmem:[%s1 + $0x80] sm:$0xf]
      %v7026 = vld [vmem:[%s1 + $0x84] sm:$0xf]
      %v7027 = vld [vmem:[%s1 + $0x88] sm:$0xf]
      %v7028 = vld [vmem:[%s1 + $0x8c] sm:$0xf]
      %7030 = vset.pattern.permute.xlu0 0
      %7031 = vperm.xlu0 %7030, %v6997
      %v7032 = vpop.permute.xlu0 %7031
      %v7035 = vunpack.c.l.s4 839922192
      %v7036 = vunpack.c.0.s8 %v7035
      %v7037 = vlaneseq
      %v7038 = vshrl.u32 %v7037, 7
      %v7039 = vsub.s32 %v7036, %v7038
      %v7040 = vrot.slane %v7032, %v7039
      %7042 = vset.pattern.permute.xlu0 0
      %7043 = vperm.xlu0 %7042, %v6998
      %v7044 = vpop.permute.xlu0 %7043
      %v7047 = vunpack.c.l.s4 839922192
      %v7048 = vunpack.c.0.s8 %v7047
      %v7049 = vlaneseq
      %v7050 = vshrl.u32 %v7049, 7
      %v7051 = vsub.s32 %v7048, %v7050
      %v7052 = vrot.slane %v7044, %v7051
      %7054 = vset.pattern.permute.xlu0 0
      %7055 = vperm.xlu0 %7054, %v6999
      %v7056 = vpop.permute.xlu0 %7055
      %v7059 = vunpack.c.l.s4 839922192
      %v7060 = vunpack.c.0.s8 %v7059
      %v7061 = vlaneseq
      %v7062 = vshrl.u32 %v7061, 7
      %v7063 = vsub.s32 %v7060, %v7062
      %v7064 = vrot.slane %v7056, %v7063
      %7066 = vset.pattern.permute.xlu0 0
      %7067 = vperm.xlu0 %7066, %v7000
      %v7068 = vpop.permute.xlu0 %7067
      %v7071 = vunpack.c.l.s4 839922192
      %v7072 = vunpack.c.0.s8 %v7071
      %v7073 = vlaneseq
      %v7074 = vshrl.u32 %v7073, 7
      %v7075 = vsub.s32 %v7072, %v7074
      %v7076 = vrot.slane %v7068, %v7075
      %7078 = vset.pattern.permute.xlu0 0
      %7079 = vperm.xlu0 %7078, %v7001
      %v7080 = vpop.permute.xlu0 %7079
      %v7083 = vunpack.c.l.s4 839922192
      %v7084 = vunpack.c.0.s8 %v7083
      %v7085 = vlaneseq
      %v7086 = vshrl.u32 %v7085, 7
      %v7087 = vsub.s32 %v7084, %v7086
      %v7088 = vrot.slane %v7080, %v7087
      %7090 = vset.pattern.permute.xlu0 0
      %7091 = vperm.xlu0 %7090, %v7002
      %v7092 = vpop.permute.xlu0 %7091
      %v7095 = vunpack.c.l.s4 839922192
      %v7096 = vunpack.c.0.s8 %v7095
      %v7097 = vlaneseq
      %v7098 = vshrl.u32 %v7097, 7
      %v7099 = vsub.s32 %v7096, %v7098
      %v7100 = vrot.slane %v7092, %v7099
      %7102 = vset.pattern.permute.xlu0 0
      %7103 = vperm.xlu0 %7102, %v7003
      %v7104 = vpop.permute.xlu0 %7103
      %v7107 = vunpack.c.l.s4 839922192
      %v7108 = vunpack.c.0.s8 %v7107
      %v7109 = vlaneseq
      %v7110 = vshrl.u32 %v7109, 7
      %v7111 = vsub.s32 %v7108, %v7110
      %v7112 = vrot.slane %v7104, %v7111
      %7114 = vset.pattern.permute.xlu0 0
      %7115 = vperm.xlu0 %7114, %v7004
      %v7116 = vpop.permute.xlu0 %7115
      %v7119 = vunpack.c.l.s4 839922192
      %v7120 = vunpack.c.0.s8 %v7119
      %v7121 = vlaneseq
      %v7122 = vshrl.u32 %v7121, 7
      %v7123 = vsub.s32 %v7120, %v7122
      %v7124 = vrot.slane %v7116, %v7123
      %7126 = vset.pattern.permute.xlu0 0
      %7127 = vperm.xlu0 %7126, %v7005
      %v7128 = vpop.permute.xlu0 %7127
      %v7131 = vunpack.c.l.s4 839922192
      %v7132 = vunpack.c.0.s8 %v7131
      %v7133 = vlaneseq
      %v7134 = vshrl.u32 %v7133, 7
      %v7135 = vsub.s32 %v7132, %v7134
      %v7136 = vrot.slane %v7128, %v7135
      %7138 = vset.pattern.permute.xlu0 0
      %7139 = vperm.xlu0 %7138, %v7006
      %v7140 = vpop.permute.xlu0 %7139
      %v7143 = vunpack.c.l.s4 839922192
      %v7144 = vunpack.c.0.s8 %v7143
      %v7145 = vlaneseq
      %v7146 = vshrl.u32 %v7145, 7
      %v7147 = vsub.s32 %v7144, %v7146
      %v7148 = vrot.slane %v7140, %v7147
      %7150 = vset.pattern.permute.xlu0 0
      %7151 = vperm.xlu0 %7150, %v7007
      %v7152 = vpop.permute.xlu0 %7151
      %v7155 = vunpack.c.l.s4 839922192
      %v7156 = vunpack.c.0.s8 %v7155
      %v7157 = vlaneseq
      %v7158 = vshrl.u32 %v7157, 7
      %v7159 = vsub.s32 %v7156, %v7158
      %v7160 = vrot.slane %v7152, %v7159
      %7162 = vset.pattern.permute.xlu0 0
      %7163 = vperm.xlu0 %7162, %v7008
      %v7164 = vpop.permute.xlu0 %7163
      %v7167 = vunpack.c.l.s4 839922192
      %v7168 = vunpack.c.0.s8 %v7167
      %v7169 = vlaneseq
      %v7170 = vshrl.u32 %v7169, 7
      %v7171 = vsub.s32 %v7168, %v7170
      %v7172 = vrot.slane %v7164, %v7171
      %7174 = vset.pattern.permute.xlu0 0
      %7175 = vperm.xlu0 %7174, %v7009
      %v7176 = vpop.permute.xlu0 %7175
      %v7179 = vunpack.c.l.s4 839922192
      %v7180 = vunpack.c.0.s8 %v7179
      %v7181 = vlaneseq
      %v7182 = vshrl.u32 %v7181, 7
      %v7183 = vsub.s32 %v7180, %v7182
      %v7184 = vrot.slane %v7176, %v7183
      %7186 = vset.pattern.permute.xlu0 0
      %7187 = vperm.xlu0 %7186, %v7010
      %v7188 = vpop.permute.xlu0 %7187
      %v7191 = vunpack.c.l.s4 839922192
      %v7192 = vunpack.c.0.s8 %v7191
      %v7193 = vlaneseq
      %v7194 = vshrl.u32 %v7193, 7
      %v7195 = vsub.s32 %v7192, %v7194
      %v7196 = vrot.slane %v7188, %v7195
      %7198 = vset.pattern.permute.xlu0 0
      %7199 = vperm.xlu0 %7198, %v7011
      %v7200 = vpop.permute.xlu0 %7199
      %v7203 = vunpack.c.l.s4 839922192
      %v7204 = vunpack.c.0.s8 %v7203
      %v7205 = vlaneseq
      %v7206 = vshrl.u32 %v7205, 7
      %v7207 = vsub.s32 %v7204, %v7206
      %v7208 = vrot.slane %v7200, %v7207
      %7210 = vset.pattern.permute.xlu0 0
      %7211 = vperm.xlu0 %7210, %v7012
      %v7212 = vpop.permute.xlu0 %7211
      %v7215 = vunpack.c.l.s4 839922192
      %v7216 = vunpack.c.0.s8 %v7215
      %v7217 = vlaneseq
      %v7218 = vshrl.u32 %v7217, 7
      %v7219 = vsub.s32 %v7216, %v7218
      %v7220 = vrot.slane %v7212, %v7219
      %7222 = vset.pattern.permute.xlu0 0
      %7223 = vperm.xlu0 %7222, %v7013
      %v7224 = vpop.permute.xlu0 %7223
      %v7227 = vunpack.c.l.s4 839922192
      %v7228 = vunpack.c.0.s8 %v7227
      %v7229 = vlaneseq
      %v7230 = vshrl.u32 %v7229, 7
      %v7231 = vsub.s32 %v7228, %v7230
      %v7232 = vrot.slane %v7224, %v7231
      %7234 = vset.pattern.permute.xlu0 0
      %7235 = vperm.xlu0 %7234, %v7014
      %v7236 = vpop.permute.xlu0 %7235
      %v7239 = vunpack.c.l.s4 839922192
      %v7240 = vunpack.c.0.s8 %v7239
      %v7241 = vlaneseq
      %v7242 = vshrl.u32 %v7241, 7
      %v7243 = vsub.s32 %v7240, %v7242
      %v7244 = vrot.slane %v7236, %v7243
      %7246 = vset.pattern.permute.xlu0 0
      %7247 = vperm.xlu0 %7246, %v7015
      %v7248 = vpop.permute.xlu0 %7247
      %v7251 = vunpack.c.l.s4 839922192
      %v7252 = vunpack.c.0.s8 %v7251
      %v7253 = vlaneseq
      %v7254 = vshrl.u32 %v7253, 7
      %v7255 = vsub.s32 %v7252, %v7254
      %v7256 = vrot.slane %v7248, %v7255
      %7258 = vset.pattern.permute.xlu0 0
      %7259 = vperm.xlu0 %7258, %v7016
      %v7260 = vpop.permute.xlu0 %7259
      %v7263 = vunpack.c.l.s4 839922192
      %v7264 = vunpack.c.0.s8 %v7263
      %v7265 = vlaneseq
      %v7266 = vshrl.u32 %v7265, 7
      %v7267 = vsub.s32 %v7264, %v7266
      %v7268 = vrot.slane %v7260, %v7267
      %7270 = vset.pattern.permute.xlu0 0
      %7271 = vperm.xlu0 %7270, %v7017
      %v7272 = vpop.permute.xlu0 %7271
      %v7275 = vunpack.c.l.s4 839922192
      %v7276 = vunpack.c.0.s8 %v7275
      %v7277 = vlaneseq
      %v7278 = vshrl.u32 %v7277, 7
      %v7279 = vsub.s32 %v7276, %v7278
      %v7280 = vrot.slane %v7272, %v7279
      %7282 = vset.pattern.permute.xlu0 0
      %7283 = vperm.xlu0 %7282, %v7018
      %v7284 = vpop.permute.xlu0 %7283
      %v7287 = vunpack.c.l.s4 839922192
      %v7288 = vunpack.c.0.s8 %v7287
      %v7289 = vlaneseq
      %v7290 = vshrl.u32 %v7289, 7
      %v7291 = vsub.s32 %v7288, %v7290
      %v7292 = vrot.slane %v7284, %v7291
      %7294 = vset.pattern.permute.xlu0 0
      %7295 = vperm.xlu0 %7294, %v7019
      %v7296 = vpop.permute.xlu0 %7295
      %v7299 = vunpack.c.l.s4 839922192
      %v7300 = vunpack.c.0.s8 %v7299
      %v7301 = vlaneseq
      %v7302 = vshrl.u32 %v7301, 7
      %v7303 = vsub.s32 %v7300, %v7302
      %v7304 = vrot.slane %v7296, %v7303
      %7306 = vset.pattern.permute.xlu0 0
      %7307 = vperm.xlu0 %7306, %v7020
      %v7308 = vpop.permute.xlu0 %7307
      %v7311 = vunpack.c.l.s4 839922192
      %v7312 = vunpack.c.0.s8 %v7311
      %v7313 = vlaneseq
      %v7314 = vshrl.u32 %v7313, 7
      %v7315 = vsub.s32 %v7312, %v7314
      %v7316 = vrot.slane %v7308, %v7315
      %7318 = vset.pattern.permute.xlu0 0
      %7319 = vperm.xlu0 %7318, %v7021
      %v7320 = vpop.permute.xlu0 %7319
      %v7323 = vunpack.c.l.s4 839922192
      %v7324 = vunpack.c.0.s8 %v7323
      %v7325 = vlaneseq
      %v7326 = vshrl.u32 %v7325, 7
      %v7327 = vsub.s32 %v7324, %v7326
      %v7328 = vrot.slane %v7320, %v7327
      %7330 = vset.pattern.permute.xlu0 0
      %7331 = vperm.xlu0 %7330, %v7022
      %v7332 = vpop.permute.xlu0 %7331
      %v7335 = vunpack.c.l.s4 839922192
      %v7336 = vunpack.c.0.s8 %v7335
      %v7337 = vlaneseq
      %v7338 = vshrl.u32 %v7337, 7
      %v7339 = vsub.s32 %v7336, %v7338
      %v7340 = vrot.slane %v7332, %v7339
      %7342 = vset.pattern.permute.xlu0 0
      %7343 = vperm.xlu0 %7342, %v7023
      %v7344 = vpop.permute.xlu0 %7343
      %v7347 = vunpack.c.l.s4 839922192
      %v7348 = vunpack.c.0.s8 %v7347
      %v7349 = vlaneseq
      %v7350 = vshrl.u32 %v7349, 7
      %v7351 = vsub.s32 %v7348, %v7350
      %v7352 = vrot.slane %v7344, %v7351
      %7354 = vset.pattern.permute.xlu0 0
      %7355 = vperm.xlu0 %7354, %v7024
      %v7356 = vpop.permute.xlu0 %7355
      %v7359 = vunpack.c.l.s4 839922192
      %v7360 = vunpack.c.0.s8 %v7359
      %v7361 = vlaneseq
      %v7362 = vshrl.u32 %v7361, 7
      %v7363 = vsub.s32 %v7360, %v7362
      %v7364 = vrot.slane %v7356, %v7363
      %7366 = vset.pattern.permute.xlu0 0
      %7367 = vperm.xlu0 %7366, %v7025
      %v7368 = vpop.permute.xlu0 %7367
      %v7371 = vunpack.c.l.s4 839922192
      %v7372 = vunpack.c.0.s8 %v7371
      %v7373 = vlaneseq
      %v7374 = vshrl.u32 %v7373, 7
      %v7375 = vsub.s32 %v7372, %v7374
      %v7376 = vrot.slane %v7368, %v7375
      %7378 = vset.pattern.permute.xlu0 0
      %7379 = vperm.xlu0 %7378, %v7026
      %v7380 = vpop.permute.xlu0 %7379
      %v7383 = vunpack.c.l.s4 839922192
      %v7384 = vunpack.c.0.s8 %v7383
      %v7385 = vlaneseq
      %v7386 = vshrl.u32 %v7385, 7
      %v7387 = vsub.s32 %v7384, %v7386
      %v7388 = vrot.slane %v7380, %v7387
      %7390 = vset.pattern.permute.xlu0 0
      %7391 = vperm.xlu0 %7390, %v7027
      %v7392 = vpop.permute.xlu0 %7391
      %v7395 = vunpack.c.l.s4 839922192
      %v7396 = vunpack.c.0.s8 %v7395
      %v7397 = vlaneseq
      %v7398 = vshrl.u32 %v7397, 7
      %v7399 = vsub.s32 %v7396, %v7398
      %v7400 = vrot.slane %v7392, %v7399
      %7402 = vset.pattern.permute.xlu0 0
      %7403 = vperm.xlu0 %7402, %v7028
      %v7404 = vpop.permute.xlu0 %7403
      %v7407 = vunpack.c.l.s4 839922192
      %v7408 = vunpack.c.0.s8 %v7407
      %v7409 = vlaneseq
      %v7410 = vshrl.u32 %v7409, 7
      %v7411 = vsub.s32 %v7408, %v7410
      %v7412 = vrot.slane %v7404, %v7411
      %v7413 = vmul.bf16 %v6965, %v7040
      %v7414 = vmul.bf16 %v6966, %v7052
      %v7415 = vmul.bf16 %v6967, %v7064
      %v7416 = vmul.bf16 %v6968, %v7076
      %v7417 = vmul.bf16 %v6969, %v7088
      %v7418 = vmul.bf16 %v6970, %v7100
      %v7419 = vmul.bf16 %v6971, %v7112
      %v7420 = vmul.bf16 %v6972, %v7124
      %v7421 = vmul.bf16 %v6973, %v7136
      %v7422 = vmul.bf16 %v6974, %v7148
      %v7423 = vmul.bf16 %v6975, %v7160
      %v7424 = vmul.bf16 %v6976, %v7172
      %v7425 = vmul.bf16 %v6977, %v7184
      %v7426 = vmul.bf16 %v6978, %v7196
      %v7427 = vmul.bf16 %v6979, %v7208
      %v7428 = vmul.bf16 %v6980, %v7220
      %v7429 = vmul.bf16 %v6981, %v7232
      %v7430 = vmul.bf16 %v6982, %v7244
      %v7431 = vmul.bf16 %v6983, %v7256
      %v7432 = vmul.bf16 %v6984, %v7268
      %v7433 = vmul.bf16 %v6985, %v7280
      %v7434 = vmul.bf16 %v6986, %v7292
      %v7435 = vmul.bf16 %v6987, %v7304
      %v7436 = vmul.bf16 %v6988, %v7316
      %v7437 = vmul.bf16 %v6989, %v7328
      %v7438 = vmul.bf16 %v6990, %v7340
      %v7439 = vmul.bf16 %v6991, %v7352
      %v7440 = vmul.bf16 %v6992, %v7364
      %v7441 = vmul.bf16 %v6993, %v7376
      %v7442 = vmul.bf16 %v6994, %v7388
      %v7443 = vmul.bf16 %v6995, %v7400
      %v7444 = vmul.bf16 %v6996, %v7412
      %s7445 = scalar_lea.vmem %s2, 320
      %v7446 = vld [vmem:[%s7445] sm:$0xf]
      %v7447 = vld [vmem:[%s7445 + $0x4] sm:$0xf]
      %v7448 = vld [vmem:[%s7445 + $0x8] sm:$0xf]
      %v7449 = vld [vmem:[%s7445 + $0xc] sm:$0xf]
      %v7450 = vld [vmem:[%s7445 + $0x10] sm:$0xf]
      %v7451 = vld [vmem:[%s7445 + $0x14] sm:$0xf]
      %v7452 = vld [vmem:[%s7445 + $0x18] sm:$0xf]
      %v7453 = vld [vmem:[%s7445 + $0x1c] sm:$0xf]
      %v7486 = vunpack.c.l.b16 %v7413
      %v7487 = vunpack.c.l.b16 %v7414
      %v7488 = vunpack.c.l.b16 %v7415
      %v7489 = vunpack.c.l.b16 %v7416
      %v7490 = vunpack.c.l.b16 %v7417
      %v7491 = vunpack.c.l.b16 %v7418
      %v7492 = vunpack.c.l.b16 %v7419
      %v7493 = vunpack.c.l.b16 %v7420
      %v7494 = vunpack.c.l.b16 %v7421
      %v7495 = vunpack.c.l.b16 %v7422
      %v7496 = vunpack.c.l.b16 %v7423
      %v7497 = vunpack.c.l.b16 %v7424
      %v7498 = vunpack.c.l.b16 %v7425
      %v7499 = vunpack.c.l.b16 %v7426
      %v7500 = vunpack.c.l.b16 %v7427
      %v7501 = vunpack.c.l.b16 %v7428
      %v7502 = vunpack.c.l.b16 %v7429
      %v7503 = vunpack.c.l.b16 %v7430
      %v7504 = vunpack.c.l.b16 %v7431
      %v7505 = vunpack.c.l.b16 %v7432
      %v7506 = vunpack.c.l.b16 %v7433
      %v7507 = vunpack.c.l.b16 %v7434
      %v7508 = vunpack.c.l.b16 %v7435
      %v7509 = vunpack.c.l.b16 %v7436
      %v7510 = vunpack.c.l.b16 %v7437
      %v7511 = vunpack.c.l.b16 %v7438
      %v7512 = vunpack.c.l.b16 %v7439
      %v7513 = vunpack.c.l.b16 %v7440
      %v7514 = vunpack.c.l.b16 %v7441
      %v7515 = vunpack.c.l.b16 %v7442
      %v7516 = vunpack.c.l.b16 %v7443
      %v7517 = vunpack.c.l.b16 %v7444
      %v7518 = vpack.c.b16 %v7487, %v7486
      %v7519 = vpack.c.b16 %v7489, %v7488
      %v7520 = vpack.c.b16 %v7491, %v7490
      %v7521 = vpack.c.b16 %v7493, %v7492
      %v7522 = vpack.c.b16 %v7495, %v7494
      %v7523 = vpack.c.b16 %v7497, %v7496
      %v7524 = vpack.c.b16 %v7499, %v7498
      %v7525 = vpack.c.b16 %v7501, %v7500
      %v7526 = vpack.c.b16 %v7503, %v7502
      %v7527 = vpack.c.b16 %v7505, %v7504
      %v7528 = vpack.c.b16 %v7507, %v7506
      %v7529 = vpack.c.b16 %v7509, %v7508
      %v7530 = vpack.c.b16 %v7511, %v7510
      %v7531 = vpack.c.b16 %v7513, %v7512
      %v7532 = vpack.c.b16 %v7515, %v7514
      %v7533 = vpack.c.b16 %v7517, %v7516
      %v7542 = vunpack.c.l.b16 %v7446
      %v7543 = vunpack.c.l.b16 %v7447
      %v7544 = vunpack.c.l.b16 %v7448
      %v7545 = vunpack.c.l.b16 %v7449
      %v7546 = vunpack.c.l.b16 %v7450
      %v7547 = vunpack.c.l.b16 %v7451
      %v7548 = vunpack.c.l.b16 %v7452
      %v7549 = vunpack.c.l.b16 %v7453
      %v7550 = vpack.c.b16 %v7543, %v7542
      %v7551 = vpack.c.b16 %v7545, %v7544
      %v7552 = vpack.c.b16 %v7547, %v7546
      %v7553 = vpack.c.b16 %v7549, %v7548
      %v7559 = vsel %vm970, %v7518, 0
      %v7562 = vsel %vm970, %v7519, 0
      %v7565 = vsel %vm970, %v7520, 0
      %v7568 = vsel %vm970, %v7521, 0
      %v7571 = vsel %vm970, %v7522, 0
      %v7574 = vsel %vm970, %v7523, 0
      %v7577 = vsel %vm970, %v7524, 0
      %v7580 = vsel %vm970, %v7525, 0
      %v7583 = vsel %vm970, %v7526, 0
      %v7586 = vsel %vm970, %v7527, 0
      %v7589 = vsel %vm970, %v7528, 0
      %v7592 = vsel %vm970, %v7529, 0
      %v7595 = vsel %vm970, %v7530, 0
      %v7598 = vsel %vm970, %v7531, 0
      %v7601 = vsel %vm970, %v7532, 0
      %v7604 = vsel %vm970, %v7533, 0
      %7606 = vmatprep.subr.bf16.mxu0 0
      %7607 = vmatpush1.bf16.msra.mxu0 0
      %7608 = vmatprep.subr.bf16.mxu0 0
      %7609 = vmatpush1.bf16.msra.mxu0 0
      %7610 = vmatprep.subr.bf16.mxu0 0
      %7611 = vmatpush1.bf16.msra.mxu0 0
      %7612 = vmatprep.subr.bf16.mxu0 0
      %7613 = vmatpush1.bf16.msra.mxu0 0
      %7614 = vmatprep.subr.bf16.mxu0 0
      %7615 = vmatpush1.bf16.msra.mxu0 %v7553
      %7616 = vmatprep.subr.bf16.mxu0 0
      %7617 = vmatpush1.bf16.msra.mxu0 %v7552
      %7618 = vmatprep.subr.bf16.mxu0 0
      %7619 = vmatpush1.bf16.msra.mxu0 %v7551
      %7620 = vmatprep.subr.bf16.mxu0 0
      %7621 = vmatpush1.bf16.msra.mxu0 %v7550
      %7622 = vmatprep.subr.bf16.mxu0 0
      %7623 = vmatpush2.bf16.msra.mxu0 0
      %7624 = vmatprep.subr.bf16.mxu0 0
      %7625 = vmatpush2.bf16.msra.mxu0 0
      %7626 = vmatprep.subr.bf16.mxu0 0
      %7627 = vmatpush2.bf16.msra.mxu0 0
      %7628 = vmatprep.subr.bf16.mxu0 0
      %7629 = vmatpush2.bf16.msra.mxu0 0
      %7630 = vmatprep.subr.bf16.mxu0 0
      %7631 = vmatpush2.bf16.msra.mxu0 0
      %7632 = vmatprep.subr.bf16.mxu0 0
      %7633 = vmatpush2.bf16.msra.mxu0 0
      %7634 = vmatprep.subr.bf16.mxu0 0
      %7635 = vmatpush2.bf16.msra.mxu0 0
      %7636 = vmatprep.subr.bf16.mxu0 0
      %7637 = vmatpush2.bf16.msra.mxu0 0
      %7638 = vmatprep.mubr.bf16.mxu0 0
      %7639 = vmatmul.mubr.bf16.gmra.mxu0 %v7559
      %v7640 = vpop.f32.mrf.mxu0
      %v7641 = vadd.f32 0.0, %v7640
      %v7642 = vpop.f32.mrf.mxu0
      %v7643 = vpop.f32.mrf.mxu0
      %v7644 = vadd.f32 0.0, %v7643
      %v7645 = vpop.f32.mrf.mxu0
      %7646 = vmatprep.mubr.bf16.mxu0 0
      %7647 = vmatmul.mubr.bf16.gmra.mxu0 %v7562
      %v7648 = vpop.f32.mrf.mxu0
      %v7649 = vadd.f32 0.0, %v7648
      %v7650 = vpop.f32.mrf.mxu0
      %v7651 = vpop.f32.mrf.mxu0
      %v7652 = vadd.f32 0.0, %v7651
      %v7653 = vpop.f32.mrf.mxu0
      %7654 = vmatprep.mubr.bf16.mxu0 0
      %7655 = vmatmul.mubr.bf16.gmra.mxu0 %v7565
      %v7656 = vpop.f32.mrf.mxu0
      %v7657 = vadd.f32 0.0, %v7656
      %v7658 = vpop.f32.mrf.mxu0
      %v7659 = vpop.f32.mrf.mxu0
      %v7660 = vadd.f32 0.0, %v7659
      %v7661 = vpop.f32.mrf.mxu0
      %7662 = vmatprep.mubr.bf16.mxu0 0
      %7663 = vmatmul.mubr.bf16.gmra.mxu0 %v7568
      %v7664 = vpop.f32.mrf.mxu0
      %v7665 = vadd.f32 0.0, %v7664
      %v7666 = vpop.f32.mrf.mxu0
      %v7667 = vpop.f32.mrf.mxu0
      %v7668 = vadd.f32 0.0, %v7667
      %v7669 = vpop.f32.mrf.mxu0
      %7670 = vmatprep.mubr.bf16.mxu0 0
      %7671 = vmatmul.mubr.bf16.gmra.mxu0 %v7571
      %v7672 = vpop.f32.mrf.mxu0
      %v7673 = vadd.f32 0.0, %v7672
      %v7674 = vpop.f32.mrf.mxu0
      %v7675 = vpop.f32.mrf.mxu0
      %v7676 = vadd.f32 0.0, %v7675
      %v7677 = vpop.f32.mrf.mxu0
      %7678 = vmatprep.mubr.bf16.mxu0 0
      %7679 = vmatmul.mubr.bf16.gmra.mxu0 %v7574
      %v7680 = vpop.f32.mrf.mxu0
      %v7681 = vadd.f32 0.0, %v7680
      %v7682 = vpop.f32.mrf.mxu0
      %v7683 = vpop.f32.mrf.mxu0
      %v7684 = vadd.f32 0.0, %v7683
      %v7685 = vpop.f32.mrf.mxu0
      %7686 = vmatprep.mubr.bf16.mxu0 0
      %7687 = vmatmul.mubr.bf16.gmra.mxu0 %v7577
      %v7688 = vpop.f32.mrf.mxu0
      %v7689 = vadd.f32 0.0, %v7688
      %v7690 = vpop.f32.mrf.mxu0
      %v7691 = vpop.f32.mrf.mxu0
      %v7692 = vadd.f32 0.0, %v7691
      %v7693 = vpop.f32.mrf.mxu0
      %7694 = vmatprep.mubr.bf16.mxu0 0
      %7695 = vmatmul.mubr.bf16.gmra.mxu0 %v7580
      %v7696 = vpop.f32.mrf.mxu0
      %v7697 = vadd.f32 0.0, %v7696
      %v7698 = vpop.f32.mrf.mxu0
      %v7699 = vpop.f32.mrf.mxu0
      %v7700 = vadd.f32 0.0, %v7699
      %v7701 = vpop.f32.mrf.mxu0
      %7702 = vmatprep.mubr.bf16.mxu0 0
      %7703 = vmatmul.mubr.bf16.gmra.mxu0 %v7583
      %v7704 = vpop.f32.mrf.mxu0
      %v7705 = vadd.f32 0.0, %v7704
      %v7706 = vpop.f32.mrf.mxu0
      %v7707 = vpop.f32.mrf.mxu0
      %v7708 = vadd.f32 0.0, %v7707
      %v7709 = vpop.f32.mrf.mxu0
      %7710 = vmatprep.mubr.bf16.mxu0 0
      %7711 = vmatmul.mubr.bf16.gmra.mxu0 %v7586
      %v7712 = vpop.f32.mrf.mxu0
      %v7713 = vadd.f32 0.0, %v7712
      %v7714 = vpop.f32.mrf.mxu0
      %v7715 = vpop.f32.mrf.mxu0
      %v7716 = vadd.f32 0.0, %v7715
      %v7717 = vpop.f32.mrf.mxu0
      %7718 = vmatprep.mubr.bf16.mxu0 0
      %7719 = vmatmul.mubr.bf16.gmra.mxu0 %v7589
      %v7720 = vpop.f32.mrf.mxu0
      %v7721 = vadd.f32 0.0, %v7720
      %v7722 = vpop.f32.mrf.mxu0
      %v7723 = vpop.f32.mrf.mxu0
      %v7724 = vadd.f32 0.0, %v7723
      %v7725 = vpop.f32.mrf.mxu0
      %7726 = vmatprep.mubr.bf16.mxu0 0
      %7727 = vmatmul.mubr.bf16.gmra.mxu0 %v7592
      %v7728 = vpop.f32.mrf.mxu0
      %v7729 = vadd.f32 0.0, %v7728
      %v7730 = vpop.f32.mrf.mxu0
      %v7731 = vpop.f32.mrf.mxu0
      %v7732 = vadd.f32 0.0, %v7731
      %v7733 = vpop.f32.mrf.mxu0
      %7734 = vmatprep.mubr.bf16.mxu0 0
      %7735 = vmatmul.mubr.bf16.gmra.mxu0 %v7595
      %v7736 = vpop.f32.mrf.mxu0
      %v7737 = vadd.f32 0.0, %v7736
      %v7738 = vpop.f32.mrf.mxu0
      %v7739 = vpop.f32.mrf.mxu0
      %v7740 = vadd.f32 0.0, %v7739
      %v7741 = vpop.f32.mrf.mxu0
      %7742 = vmatprep.mubr.bf16.mxu0 0
      %7743 = vmatmul.mubr.bf16.gmra.mxu0 %v7598
      %v7744 = vpop.f32.mrf.mxu0
      %v7745 = vadd.f32 0.0, %v7744
      %v7746 = vpop.f32.mrf.mxu0
      %v7747 = vpop.f32.mrf.mxu0
      %v7748 = vadd.f32 0.0, %v7747
      %v7749 = vpop.f32.mrf.mxu0
      %7750 = vmatprep.mubr.bf16.mxu0 0
      %7751 = vmatmul.mubr.bf16.gmra.mxu0 %v7601
      %v7752 = vpop.f32.mrf.mxu0
      %v7753 = vadd.f32 0.0, %v7752
      %v7754 = vpop.f32.mrf.mxu0
      %v7755 = vpop.f32.mrf.mxu0
      %v7756 = vadd.f32 0.0, %v7755
      %v7757 = vpop.f32.mrf.mxu0
      %7758 = vmatprep.mubr.bf16.mxu0 0
      %7759 = vmatmul.mubr.bf16.gmra.mxu0 %v7604
      %v7760 = vpop.f32.mrf.mxu0
      %v7761 = vadd.f32 0.0, %v7760
      %v7762 = vpop.f32.mrf.mxu0
      %v7763 = vpop.f32.mrf.mxu0
      %v7764 = vadd.f32 0.0, %v7763
      %v7765 = vpop.f32.mrf.mxu0
      %7766 = vdwg.mxu0
      %v7767 = vadd.f32 %v6839, %v7641
      %v7768 = vadd.f32 %v6842, %v7644
      %v7769 = vadd.f32 %v6847, %v7649
      %v7770 = vadd.f32 %v6850, %v7652
      %v7771 = vadd.f32 %v6855, %v7657
      %v7772 = vadd.f32 %v6858, %v7660
      %v7773 = vadd.f32 %v6863, %v7665
      %v7774 = vadd.f32 %v6866, %v7668
      %v7775 = vadd.f32 %v6871, %v7673
      %v7776 = vadd.f32 %v6874, %v7676
      %v7777 = vadd.f32 %v6879, %v7681
      %v7778 = vadd.f32 %v6882, %v7684
      %v7779 = vadd.f32 %v6887, %v7689
      %v7780 = vadd.f32 %v6890, %v7692
      %v7781 = vadd.f32 %v6895, %v7697
      %v7782 = vadd.f32 %v6898, %v7700
      %v7783 = vadd.f32 %v6903, %v7705
      %v7784 = vadd.f32 %v6906, %v7708
      %v7785 = vadd.f32 %v6911, %v7713
      %v7786 = vadd.f32 %v6914, %v7716
      %v7787 = vadd.f32 %v6919, %v7721
      %v7788 = vadd.f32 %v6922, %v7724
      %v7789 = vadd.f32 %v6927, %v7729
      %v7790 = vadd.f32 %v6930, %v7732
      %v7791 = vadd.f32 %v6935, %v7737
      %v7792 = vadd.f32 %v6938, %v7740
      %v7793 = vadd.f32 %v6943, %v7745
      %v7794 = vadd.f32 %v6946, %v7748
      %v7795 = vadd.f32 %v6951, %v7753
      %v7796 = vadd.f32 %v6954, %v7756
      %v7797 = vadd.f32 %v6959, %v7761
      %v7798 = vadd.f32 %v6962, %v7764
      %v7799 = vld [vmem:[%s192 + $0x10] sm:$0xf]
      %v7800 = vld [vmem:[%s192 + $0x14] sm:$0xf]
      %v7801 = vld [vmem:[%s192 + $0x18] sm:$0xf]
      %v7802 = vld [vmem:[%s192 + $0x1c] sm:$0xf]
      %v7803 = vld [vmem:[%s192 + $0x20] sm:$0xf]
      %v7804 = vld [vmem:[%s192 + $0x24] sm:$0xf]
      %v7805 = vld [vmem:[%s192 + $0x28] sm:$0xf]
      %v7806 = vld [vmem:[%s192 + $0x2c] sm:$0xf]
      %v7807 = vld [vmem:[%s192 + $0x30] sm:$0xf]
      %v7808 = vld [vmem:[%s192 + $0x34] sm:$0xf]
      %v7809 = vld [vmem:[%s192 + $0x38] sm:$0xf]
      %v7810 = vld [vmem:[%s192 + $0x3c] sm:$0xf]
      %v7811 = vld [vmem:[%s192 + $0x40] sm:$0xf]
      %v7812 = vld [vmem:[%s192 + $0x44] sm:$0xf]
      %v7813 = vld [vmem:[%s192 + $0x48] sm:$0xf]
      %v7814 = vld [vmem:[%s192 + $0x4c] sm:$0xf]
      %v7815 = vld [vmem:[%s192 + $0x50] sm:$0xf]
      %v7816 = vld [vmem:[%s192 + $0x54] sm:$0xf]
      %v7817 = vld [vmem:[%s192 + $0x58] sm:$0xf]
      %v7818 = vld [vmem:[%s192 + $0x5c] sm:$0xf]
      %v7819 = vld [vmem:[%s192 + $0x60] sm:$0xf]
      %v7820 = vld [vmem:[%s192 + $0x64] sm:$0xf]
      %v7821 = vld [vmem:[%s192 + $0x68] sm:$0xf]
      %v7822 = vld [vmem:[%s192 + $0x6c] sm:$0xf]
      %v7823 = vld [vmem:[%s192 + $0x70] sm:$0xf]
      %v7824 = vld [vmem:[%s192 + $0x74] sm:$0xf]
      %v7825 = vld [vmem:[%s192 + $0x78] sm:$0xf]
      %v7826 = vld [vmem:[%s192 + $0x7c] sm:$0xf]
      %v7827 = vld [vmem:[%s192 + $0x80] sm:$0xf]
      %v7828 = vld [vmem:[%s192 + $0x84] sm:$0xf]
      %v7829 = vld [vmem:[%s192 + $0x88] sm:$0xf]
      %v7830 = vld [vmem:[%s192 + $0x8c] sm:$0xf]
      %v7831 = vld [vmem:[%s192 + $0x90] sm:$0x1]
      %s7832 = scalar_lea.vmem %s2, 352
      %v7833 = vld [vmem:[%s7832] sm:$0xf]
      %v7834 = vld [vmem:[%s7832 + $0x4] sm:$0xf]
      %v7835 = vld [vmem:[%s7832 + $0x8] sm:$0xf]
      %v7836 = vld [vmem:[%s7832 + $0xc] sm:$0xf]
      %v7837 = vld [vmem:[%s7832 + $0x10] sm:$0xf]
      %v7838 = vld [vmem:[%s7832 + $0x14] sm:$0xf]
      %v7839 = vld [vmem:[%s7832 + $0x18] sm:$0xf]
      %v7840 = vld [vmem:[%s7832 + $0x1c] sm:$0xf]
      %v7874 = vunpack.c.l.b16 %v7799
      %v7875 = vunpack.c.l.b16 %v7800
      %v7876 = vunpack.c.l.b16 %v7801
      %v7877 = vunpack.c.l.b16 %v7802
      %v7878 = vunpack.c.l.b16 %v7803
      %v7879 = vunpack.c.l.b16 %v7804
      %v7880 = vunpack.c.l.b16 %v7805
      %v7881 = vunpack.c.l.b16 %v7806
      %v7882 = vunpack.c.l.b16 %v7807
      %v7883 = vunpack.c.l.b16 %v7808
      %v7884 = vunpack.c.l.b16 %v7809
      %v7885 = vunpack.c.l.b16 %v7810
      %v7886 = vunpack.c.l.b16 %v7811
      %v7887 = vunpack.c.l.b16 %v7812
      %v7888 = vunpack.c.l.b16 %v7813
      %v7889 = vunpack.c.l.b16 %v7814
      %v7890 = vunpack.c.l.b16 %v7815
      %v7891 = vunpack.c.l.b16 %v7816
      %v7892 = vunpack.c.l.b16 %v7817
      %v7893 = vunpack.c.l.b16 %v7818
      %v7894 = vunpack.c.l.b16 %v7819
      %v7895 = vunpack.c.l.b16 %v7820
      %v7896 = vunpack.c.l.b16 %v7821
      %v7897 = vunpack.c.l.b16 %v7822
      %v7898 = vunpack.c.l.b16 %v7823
      %v7899 = vunpack.c.l.b16 %v7824
      %v7900 = vunpack.c.l.b16 %v7825
      %v7901 = vunpack.c.l.b16 %v7826
      %v7902 = vunpack.c.l.b16 %v7827
      %v7903 = vunpack.c.l.b16 %v7828
      %v7904 = vunpack.c.l.b16 %v7829
      %v7905 = vunpack.c.l.b16 %v7830
      %v7906 = vunpack.c.l.b16 %v7831
      %v7907 = vpack.c.b16 %v7875, %v7874
      %v7908 = vpack.c.b16 %v7877, %v7876
      %v7909 = vpack.c.b16 %v7879, %v7878
      %v7910 = vpack.c.b16 %v7881, %v7880
      %v7911 = vpack.c.b16 %v7883, %v7882
      %v7912 = vpack.c.b16 %v7885, %v7884
      %v7913 = vpack.c.b16 %v7887, %v7886
      %v7914 = vpack.c.b16 %v7889, %v7888
      %v7915 = vpack.c.b16 %v7891, %v7890
      %v7916 = vpack.c.b16 %v7893, %v7892
      %v7917 = vpack.c.b16 %v7895, %v7894
      %v7918 = vpack.c.b16 %v7897, %v7896
      %v7919 = vpack.c.b16 %v7899, %v7898
      %v7920 = vpack.c.b16 %v7901, %v7900
      %v7921 = vpack.c.b16 %v7903, %v7902
      %v7922 = vpack.c.b16 %v7905, %v7904
      %v7923 = vpack.c.b16 %v7906, %v7906
      %v7925 = vshrl.u32 %v7907, 16
      %v7927 = vshll.u32 %v7907, 16
      %v7929 = vrot.slane %v7927, 1
      %v7930 = vor.u32 %v7925, %v7929
      %v7932 = vshll.u32 %v7908, 16
      %v7934 = vrot.slane %v7932, 1
      %v7935 = vsel %vm813, %v7930, %v7934
      %v7936 = vshrl.u32 %v7908, 16
      %v7938 = vor.u32 %v7936, %v7934
      %v7940 = vshll.u32 %v7909, 16
      %v7942 = vrot.slane %v7940, 1
      %v7943 = vsel %vm813, %v7938, %v7942
      %v7944 = vshrl.u32 %v7909, 16
      %v7946 = vor.u32 %v7944, %v7942
      %v7948 = vshll.u32 %v7910, 16
      %v7950 = vrot.slane %v7948, 1
      %v7951 = vsel %vm813, %v7946, %v7950
      %v7952 = vshrl.u32 %v7910, 16
      %v7954 = vor.u32 %v7952, %v7950
      %v7956 = vshll.u32 %v7911, 16
      %v7958 = vrot.slane %v7956, 1
      %v7959 = vsel %vm813, %v7954, %v7958
      %v7960 = vshrl.u32 %v7911, 16
      %v7962 = vor.u32 %v7960, %v7958
      %v7964 = vshll.u32 %v7912, 16
      %v7966 = vrot.slane %v7964, 1
      %v7967 = vsel %vm813, %v7962, %v7966
      %v7968 = vshrl.u32 %v7912, 16
      %v7970 = vor.u32 %v7968, %v7966
      %v7972 = vshll.u32 %v7913, 16
      %v7974 = vrot.slane %v7972, 1
      %v7975 = vsel %vm813, %v7970, %v7974
      %v7976 = vshrl.u32 %v7913, 16
      %v7978 = vor.u32 %v7976, %v7974
      %v7980 = vshll.u32 %v7914, 16
      %v7982 = vrot.slane %v7980, 1
      %v7983 = vsel %vm813, %v7978, %v7982
      %v7984 = vshrl.u32 %v7914, 16
      %v7986 = vor.u32 %v7984, %v7982
      %v7988 = vshll.u32 %v7915, 16
      %v7990 = vrot.slane %v7988, 1
      %v7991 = vsel %vm813, %v7986, %v7990
      %v7992 = vshrl.u32 %v7915, 16
      %v7994 = vor.u32 %v7992, %v7990
      %v7996 = vshll.u32 %v7916, 16
      %v7998 = vrot.slane %v7996, 1
      %v7999 = vsel %vm813, %v7994, %v7998
      %v8000 = vshrl.u32 %v7916, 16
      %v8002 = vor.u32 %v8000, %v7998
      %v8004 = vshll.u32 %v7917, 16
      %v8006 = vrot.slane %v8004, 1
      %v8007 = vsel %vm813, %v8002, %v8006
      %v8008 = vshrl.u32 %v7917, 16
      %v8010 = vor.u32 %v8008, %v8006
      %v8012 = vshll.u32 %v7918, 16
      %v8014 = vrot.slane %v8012, 1
      %v8015 = vsel %vm813, %v8010, %v8014
      %v8016 = vshrl.u32 %v7918, 16
      %v8018 = vor.u32 %v8016, %v8014
      %v8020 = vshll.u32 %v7919, 16
      %v8022 = vrot.slane %v8020, 1
      %v8023 = vsel %vm813, %v8018, %v8022
      %v8024 = vshrl.u32 %v7919, 16
      %v8026 = vor.u32 %v8024, %v8022
      %v8028 = vshll.u32 %v7920, 16
      %v8030 = vrot.slane %v8028, 1
      %v8031 = vsel %vm813, %v8026, %v8030
      %v8032 = vshrl.u32 %v7920, 16
      %v8034 = vor.u32 %v8032, %v8030
      %v8036 = vshll.u32 %v7921, 16
      %v8038 = vrot.slane %v8036, 1
      %v8039 = vsel %vm813, %v8034, %v8038
      %v8040 = vshrl.u32 %v7921, 16
      %v8042 = vor.u32 %v8040, %v8038
      %v8044 = vshll.u32 %v7922, 16
      %v8046 = vrot.slane %v8044, 1
      %v8047 = vsel %vm813, %v8042, %v8046
      %v8048 = vshrl.u32 %v7922, 16
      %v8050 = vor.u32 %v8048, %v8046
      %v8052 = vshll.u32 %v7923, 16
      %v8054 = vrot.slane %v8052, 1
      %v8055 = vsel %vm813, %v8050, %v8054
      %v8064 = vunpack.c.l.b16 %v7833
      %v8065 = vunpack.c.l.b16 %v7834
      %v8066 = vunpack.c.l.b16 %v7835
      %v8067 = vunpack.c.l.b16 %v7836
      %v8068 = vunpack.c.l.b16 %v7837
      %v8069 = vunpack.c.l.b16 %v7838
      %v8070 = vunpack.c.l.b16 %v7839
      %v8071 = vunpack.c.l.b16 %v7840
      %v8072 = vpack.c.b16 %v8065, %v8064
      %v8073 = vpack.c.b16 %v8067, %v8066
      %v8074 = vpack.c.b16 %v8069, %v8068
      %v8075 = vpack.c.b16 %v8071, %v8070
      %v8081 = vsel %vm970, %v7935, 0
      %v8084 = vsel %vm970, %v7943, 0
      %v8087 = vsel %vm970, %v7951, 0
      %v8090 = vsel %vm970, %v7959, 0
      %v8093 = vsel %vm970, %v7967, 0
      %v8096 = vsel %vm970, %v7975, 0
      %v8099 = vsel %vm970, %v7983, 0
      %v8102 = vsel %vm970, %v7991, 0
      %v8105 = vsel %vm970, %v7999, 0
      %v8108 = vsel %vm970, %v8007, 0
      %v8111 = vsel %vm970, %v8015, 0
      %v8114 = vsel %vm970, %v8023, 0
      %v8117 = vsel %vm970, %v8031, 0
      %v8120 = vsel %vm970, %v8039, 0
      %v8123 = vsel %vm970, %v8047, 0
      %v8126 = vsel %vm970, %v8055, 0
      %8128 = vmatprep.subr.bf16.mxu0 0
      %8129 = vmatpush1.bf16.msra.mxu0 0
      %8130 = vmatprep.subr.bf16.mxu0 0
      %8131 = vmatpush1.bf16.msra.mxu0 0
      %8132 = vmatprep.subr.bf16.mxu0 0
      %8133 = vmatpush1.bf16.msra.mxu0 0
      %8134 = vmatprep.subr.bf16.mxu0 0
      %8135 = vmatpush1.bf16.msra.mxu0 0
      %8136 = vmatprep.subr.bf16.mxu0 0
      %8137 = vmatpush1.bf16.msra.mxu0 %v8075
      %8138 = vmatprep.subr.bf16.mxu0 0
      %8139 = vmatpush1.bf16.msra.mxu0 %v8074
      %8140 = vmatprep.subr.bf16.mxu0 0
      %8141 = vmatpush1.bf16.msra.mxu0 %v8073
      %8142 = vmatprep.subr.bf16.mxu0 0
      %8143 = vmatpush1.bf16.msra.mxu0 %v8072
      %8144 = vmatprep.subr.bf16.mxu0 0
      %8145 = vmatpush2.bf16.msra.mxu0 0
      %8146 = vmatprep.subr.bf16.mxu0 0
      %8147 = vmatpush2.bf16.msra.mxu0 0
      %8148 = vmatprep.subr.bf16.mxu0 0
      %8149 = vmatpush2.bf16.msra.mxu0 0
      %8150 = vmatprep.subr.bf16.mxu0 0
      %8151 = vmatpush2.bf16.msra.mxu0 0
      %8152 = vmatprep.subr.bf16.mxu0 0
      %8153 = vmatpush2.bf16.msra.mxu0 0
      %8154 = vmatprep.subr.bf16.mxu0 0
      %8155 = vmatpush2.bf16.msra.mxu0 0
      %8156 = vmatprep.subr.bf16.mxu0 0
      %8157 = vmatpush2.bf16.msra.mxu0 0
      %8158 = vmatprep.subr.bf16.mxu0 0
      %8159 = vmatpush2.bf16.msra.mxu0 0
      %8160 = vmatprep.mubr.bf16.mxu0 0
      %8161 = vmatmul.mubr.bf16.gmra.mxu0 %v8081
      %v8162 = vpop.f32.mrf.mxu0
      %v8163 = vadd.f32 0.0, %v8162
      %v8164 = vpop.f32.mrf.mxu0
      %v8165 = vpop.f32.mrf.mxu0
      %v8166 = vadd.f32 0.0, %v8165
      %v8167 = vpop.f32.mrf.mxu0
      %8168 = vmatprep.mubr.bf16.mxu0 0
      %8169 = vmatmul.mubr.bf16.gmra.mxu0 %v8084
      %v8170 = vpop.f32.mrf.mxu0
      %v8171 = vadd.f32 0.0, %v8170
      %v8172 = vpop.f32.mrf.mxu0
      %v8173 = vpop.f32.mrf.mxu0
      %v8174 = vadd.f32 0.0, %v8173
      %v8175 = vpop.f32.mrf.mxu0
      %8176 = vmatprep.mubr.bf16.mxu0 0
      %8177 = vmatmul.mubr.bf16.gmra.mxu0 %v8087
      %v8178 = vpop.f32.mrf.mxu0
      %v8179 = vadd.f32 0.0, %v8178
      %v8180 = vpop.f32.mrf.mxu0
      %v8181 = vpop.f32.mrf.mxu0
      %v8182 = vadd.f32 0.0, %v8181
      %v8183 = vpop.f32.mrf.mxu0
      %8184 = vmatprep.mubr.bf16.mxu0 0
      %8185 = vmatmul.mubr.bf16.gmra.mxu0 %v8090
      %v8186 = vpop.f32.mrf.mxu0
      %v8187 = vadd.f32 0.0, %v8186
      %v8188 = vpop.f32.mrf.mxu0
      %v8189 = vpop.f32.mrf.mxu0
      %v8190 = vadd.f32 0.0, %v8189
      %v8191 = vpop.f32.mrf.mxu0
      %8192 = vmatprep.mubr.bf16.mxu0 0
      %8193 = vmatmul.mubr.bf16.gmra.mxu0 %v8093
      %v8194 = vpop.f32.mrf.mxu0
      %v8195 = vadd.f32 0.0, %v8194
      %v8196 = vpop.f32.mrf.mxu0
      %v8197 = vpop.f32.mrf.mxu0
      %v8198 = vadd.f32 0.0, %v8197
      %v8199 = vpop.f32.mrf.mxu0
      %8200 = vmatprep.mubr.bf16.mxu0 0
      %8201 = vmatmul.mubr.bf16.gmra.mxu0 %v8096
      %v8202 = vpop.f32.mrf.mxu0
      %v8203 = vadd.f32 0.0, %v8202
      %v8204 = vpop.f32.mrf.mxu0
      %v8205 = vpop.f32.mrf.mxu0
      %v8206 = vadd.f32 0.0, %v8205
      %v8207 = vpop.f32.mrf.mxu0
      %8208 = vmatprep.mubr.bf16.mxu0 0
      %8209 = vmatmul.mubr.bf16.gmra.mxu0 %v8099
      %v8210 = vpop.f32.mrf.mxu0
      %v8211 = vadd.f32 0.0, %v8210
      %v8212 = vpop.f32.mrf.mxu0
      %v8213 = vpop.f32.mrf.mxu0
      %v8214 = vadd.f32 0.0, %v8213
      %v8215 = vpop.f32.mrf.mxu0
      %8216 = vmatprep.mubr.bf16.mxu0 0
      %8217 = vmatmul.mubr.bf16.gmra.mxu0 %v8102
      %v8218 = vpop.f32.mrf.mxu0
      %v8219 = vadd.f32 0.0, %v8218
      %v8220 = vpop.f32.mrf.mxu0
      %v8221 = vpop.f32.mrf.mxu0
      %v8222 = vadd.f32 0.0, %v8221
      %v8223 = vpop.f32.mrf.mxu0
      %8224 = vmatprep.mubr.bf16.mxu0 0
      %8225 = vmatmul.mubr.bf16.gmra.mxu0 %v8105
      %v8226 = vpop.f32.mrf.mxu0
      %v8227 = vadd.f32 0.0, %v8226
      %v8228 = vpop.f32.mrf.mxu0
      %v8229 = vpop.f32.mrf.mxu0
      %v8230 = vadd.f32 0.0, %v8229
      %v8231 = vpop.f32.mrf.mxu0
      %8232 = vmatprep.mubr.bf16.mxu0 0
      %8233 = vmatmul.mubr.bf16.gmra.mxu0 %v8108
      %v8234 = vpop.f32.mrf.mxu0
      %v8235 = vadd.f32 0.0, %v8234
      %v8236 = vpop.f32.mrf.mxu0
      %v8237 = vpop.f32.mrf.mxu0
      %v8238 = vadd.f32 0.0, %v8237
      %v8239 = vpop.f32.mrf.mxu0
      %8240 = vmatprep.mubr.bf16.mxu0 0
      %8241 = vmatmul.mubr.bf16.gmra.mxu0 %v8111
      %v8242 = vpop.f32.mrf.mxu0
      %v8243 = vadd.f32 0.0, %v8242
      %v8244 = vpop.f32.mrf.mxu0
      %v8245 = vpop.f32.mrf.mxu0
      %v8246 = vadd.f32 0.0, %v8245
      %v8247 = vpop.f32.mrf.mxu0
      %8248 = vmatprep.mubr.bf16.mxu0 0
      %8249 = vmatmul.mubr.bf16.gmra.mxu0 %v8114
      %v8250 = vpop.f32.mrf.mxu0
      %v8251 = vadd.f32 0.0, %v8250
      %v8252 = vpop.f32.mrf.mxu0
      %v8253 = vpop.f32.mrf.mxu0
      %v8254 = vadd.f32 0.0, %v8253
      %v8255 = vpop.f32.mrf.mxu0
      %8256 = vmatprep.mubr.bf16.mxu0 0
      %8257 = vmatmul.mubr.bf16.gmra.mxu0 %v8117
      %v8258 = vpop.f32.mrf.mxu0
      %v8259 = vadd.f32 0.0, %v8258
      %v8260 = vpop.f32.mrf.mxu0
      %v8261 = vpop.f32.mrf.mxu0
      %v8262 = vadd.f32 0.0, %v8261
      %v8263 = vpop.f32.mrf.mxu0
      %8264 = vmatprep.mubr.bf16.mxu0 0
      %8265 = vmatmul.mubr.bf16.gmra.mxu0 %v8120
      %v8266 = vpop.f32.mrf.mxu0
      %v8267 = vadd.f32 0.0, %v8266
      %v8268 = vpop.f32.mrf.mxu0
      %v8269 = vpop.f32.mrf.mxu0
      %v8270 = vadd.f32 0.0, %v8269
      %v8271 = vpop.f32.mrf.mxu0
      %8272 = vmatprep.mubr.bf16.mxu0 0
      %8273 = vmatmul.mubr.bf16.gmra.mxu0 %v8123
      %v8274 = vpop.f32.mrf.mxu0
      %v8275 = vadd.f32 0.0, %v8274
      %v8276 = vpop.f32.mrf.mxu0
      %v8277 = vpop.f32.mrf.mxu0
      %v8278 = vadd.f32 0.0, %v8277
      %v8279 = vpop.f32.mrf.mxu0
      %8280 = vmatprep.mubr.bf16.mxu0 0
      %8281 = vmatmul.mubr.bf16.gmra.mxu0 %v8126
      %v8282 = vpop.f32.mrf.mxu0
      %v8283 = vadd.f32 0.0, %v8282
      %v8284 = vpop.f32.mrf.mxu0
      %v8285 = vpop.f32.mrf.mxu0
      %v8286 = vadd.f32 0.0, %v8285
      %v8287 = vpop.f32.mrf.mxu0
      %8288 = vdwg.mxu0
      %v8289 = vadd.f32 %v7767, %v8163
      %v8290 = vadd.f32 %v7768, %v8166
      %v8291 = vadd.f32 %v7769, %v8171
      %v8292 = vadd.f32 %v7770, %v8174
      %v8293 = vadd.f32 %v7771, %v8179
      %v8294 = vadd.f32 %v7772, %v8182
      %v8295 = vadd.f32 %v7773, %v8187
      %v8296 = vadd.f32 %v7774, %v8190
      %v8297 = vadd.f32 %v7775, %v8195
      %v8298 = vadd.f32 %v7776, %v8198
      %v8299 = vadd.f32 %v7777, %v8203
      %v8300 = vadd.f32 %v7778, %v8206
      %v8301 = vadd.f32 %v7779, %v8211
      %v8302 = vadd.f32 %v7780, %v8214
      %v8303 = vadd.f32 %v7781, %v8219
      %v8304 = vadd.f32 %v7782, %v8222
      %v8305 = vadd.f32 %v7783, %v8227
      %v8306 = vadd.f32 %v7784, %v8230
      %v8307 = vadd.f32 %v7785, %v8235
      %v8308 = vadd.f32 %v7786, %v8238
      %v8309 = vadd.f32 %v7787, %v8243
      %v8310 = vadd.f32 %v7788, %v8246
      %v8311 = vadd.f32 %v7789, %v8251
      %v8312 = vadd.f32 %v7790, %v8254
      %v8313 = vadd.f32 %v7791, %v8259
      %v8314 = vadd.f32 %v7792, %v8262
      %v8315 = vadd.f32 %v7793, %v8267
      %v8316 = vadd.f32 %v7794, %v8270
      %v8317 = vadd.f32 %v7795, %v8275
      %v8318 = vadd.f32 %v7796, %v8278
      %v8319 = vadd.f32 %v7797, %v8283
      %v8320 = vadd.f32 %v7798, %v8286
      %v8321 = vadd.f32 %v8289, %v2853
      %v8322 = vadd.f32 %v8290, %v2853
      %v8323 = vadd.f32 %v8291, %v2853
      %v8324 = vadd.f32 %v8292, %v2853
      %v8325 = vadd.f32 %v8293, %v2853
      %v8326 = vadd.f32 %v8294, %v2853
      %v8327 = vadd.f32 %v8295, %v2853
      %v8328 = vadd.f32 %v8296, %v2853
      %v8329 = vadd.f32 %v8297, %v2853
      %v8330 = vadd.f32 %v8298, %v2853
      %v8331 = vadd.f32 %v8299, %v2853
      %v8332 = vadd.f32 %v8300, %v2853
      %v8333 = vadd.f32 %v8301, %v2853
      %v8334 = vadd.f32 %v8302, %v2853
      %v8335 = vadd.f32 %v8303, %v2853
      %v8336 = vadd.f32 %v8304, %v2853
      %v8337 = vadd.f32 %v8305, %v2853
      %v8338 = vadd.f32 %v8306, %v2853
      %v8339 = vadd.f32 %v8307, %v2853
      %v8340 = vadd.f32 %v8308, %v2853
      %v8341 = vadd.f32 %v8309, %v2853
      %v8342 = vadd.f32 %v8310, %v2853
      %v8343 = vadd.f32 %v8311, %v2853
      %v8344 = vadd.f32 %v8312, %v2853
      %v8345 = vadd.f32 %v8313, %v2853
      %v8346 = vadd.f32 %v8314, %v2853
      %v8347 = vadd.f32 %v8315, %v2853
      %v8348 = vadd.f32 %v8316, %v2853
      %v8349 = vadd.f32 %v8317, %v2853
      %v8350 = vadd.f32 %v8318, %v2853
      %v8351 = vadd.f32 %v8319, %v2853
      %v8352 = vadd.f32 %v8320, %v2853
      %s8353 = scalar_lea.vmem %s197, 512
      %8354 = vst.msk [vmem:[%s8353] sm:$0xff] %vm2887, %v8321
      %8355 = vst.msk [vmem:[%s8353 + $0x8] sm:$0xff] %vm2887, %v8322
      %8356 = vst.msk [vmem:[%s8353 + $0x10] sm:$0xff] %vm2887, %v8323
      %8357 = vst.msk [vmem:[%s8353 + $0x18] sm:$0xff] %vm2887, %v8324
      %8358 = vst.msk [vmem:[%s8353 + $0x20] sm:$0xff] %vm2887, %v8325
      %8359 = vst.msk [vmem:[%s8353 + $0x28] sm:$0xff] %vm2887, %v8326
      %8360 = vst.msk [vmem:[%s8353 + $0x30] sm:$0xff] %vm2887, %v8327
      %8361 = vst.msk [vmem:[%s8353 + $0x38] sm:$0xff] %vm2887, %v8328
      %8362 = vst.msk [vmem:[%s8353 + $0x40] sm:$0xff] %vm2887, %v8329
      %8363 = vst.msk [vmem:[%s8353 + $0x48] sm:$0xff] %vm2887, %v8330
      %8364 = vst.msk [vmem:[%s8353 + $0x50] sm:$0xff] %vm2887, %v8331
      %8365 = vst.msk [vmem:[%s8353 + $0x58] sm:$0xff] %vm2887, %v8332
      %8366 = vst.msk [vmem:[%s8353 + $0x60] sm:$0xff] %vm2887, %v8333
      %8367 = vst.msk [vmem:[%s8353 + $0x68] sm:$0xff] %vm2887, %v8334
      %8368 = vst.msk [vmem:[%s8353 + $0x70] sm:$0xff] %vm2887, %v8335
      %8369 = vst.msk [vmem:[%s8353 + $0x78] sm:$0xff] %vm2887, %v8336
      %8370 = vst.msk [vmem:[%s8353 + $0x80] sm:$0xff] %vm2887, %v8337
      %8371 = vst.msk [vmem:[%s8353 + $0x88] sm:$0xff] %vm2887, %v8338
      %8372 = vst.msk [vmem:[%s8353 + $0x90] sm:$0xff] %vm2887, %v8339
      %8373 = vst.msk [vmem:[%s8353 + $0x98] sm:$0xff] %vm2887, %v8340
      %8374 = vst.msk [vmem:[%s8353 + $0xa0] sm:$0xff] %vm2887, %v8341
      %8375 = vst.msk [vmem:[%s8353 + $0xa8] sm:$0xff] %vm2887, %v8342
      %8376 = vst.msk [vmem:[%s8353 + $0xb0] sm:$0xff] %vm2887, %v8343
      %8377 = vst.msk [vmem:[%s8353 + $0xb8] sm:$0xff] %vm2887, %v8344
      %8378 = vst.msk [vmem:[%s8353 + $0xc0] sm:$0xff] %vm2887, %v8345
      %8379 = vst.msk [vmem:[%s8353 + $0xc8] sm:$0xff] %vm2887, %v8346
      %8380 = vst.msk [vmem:[%s8353 + $0xd0] sm:$0xff] %vm2887, %v8347
      %8381 = vst.msk [vmem:[%s8353 + $0xd8] sm:$0xff] %vm2887, %v8348
      %8382 = vst.msk [vmem:[%s8353 + $0xe0] sm:$0xff] %vm2887, %v8349
      %8383 = vst.msk [vmem:[%s8353 + $0xe8] sm:$0xff] %vm2887, %v8350
      %8384 = vst.msk [vmem:[%s8353 + $0xf0] sm:$0xff] %vm2887, %v8351
      %8385 = vst.msk [vmem:[%s8353 + $0xf8] sm:$0xff] %vm2887, %v8352
      %v8386 = vld [vmem:[%s192 + $0x8] sm:$0xf]
      %v8387 = vld [vmem:[%s192 + $0xc] sm:$0xf]
      %v8388 = vld [vmem:[%s192 + $0x10] sm:$0xf]
      %v8389 = vld [vmem:[%s192 + $0x14] sm:$0xf]
      %v8390 = vld [vmem:[%s192 + $0x18] sm:$0xf]
      %v8391 = vld [vmem:[%s192 + $0x1c] sm:$0xf]
      %v8392 = vld [vmem:[%s192 + $0x20] sm:$0xf]
      %v8393 = vld [vmem:[%s192 + $0x24] sm:$0xf]
      %v8394 = vld [vmem:[%s192 + $0x28] sm:$0xf]
      %v8395 = vld [vmem:[%s192 + $0x2c] sm:$0xf]
      %v8396 = vld [vmem:[%s192 + $0x30] sm:$0xf]
      %v8397 = vld [vmem:[%s192 + $0x34] sm:$0xf]
      %v8398 = vld [vmem:[%s192 + $0x38] sm:$0xf]
      %v8399 = vld [vmem:[%s192 + $0x3c] sm:$0xf]
      %v8400 = vld [vmem:[%s192 + $0x40] sm:$0xf]
      %v8401 = vld [vmem:[%s192 + $0x44] sm:$0xf]
      %v8402 = vld [vmem:[%s192 + $0x48] sm:$0xf]
      %v8403 = vld [vmem:[%s192 + $0x4c] sm:$0xf]
      %v8404 = vld [vmem:[%s192 + $0x50] sm:$0xf]
      %v8405 = vld [vmem:[%s192 + $0x54] sm:$0xf]
      %v8406 = vld [vmem:[%s192 + $0x58] sm:$0xf]
      %v8407 = vld [vmem:[%s192 + $0x5c] sm:$0xf]
      %v8408 = vld [vmem:[%s192 + $0x60] sm:$0xf]
      %v8409 = vld [vmem:[%s192 + $0x64] sm:$0xf]
      %v8410 = vld [vmem:[%s192 + $0x68] sm:$0xf]
      %v8411 = vld [vmem:[%s192 + $0x6c] sm:$0xf]
      %v8412 = vld [vmem:[%s192 + $0x70] sm:$0xf]
      %v8413 = vld [vmem:[%s192 + $0x74] sm:$0xf]
      %v8414 = vld [vmem:[%s192 + $0x78] sm:$0xf]
      %v8415 = vld [vmem:[%s192 + $0x7c] sm:$0xf]
      %v8416 = vld [vmem:[%s192 + $0x80] sm:$0xf]
      %v8417 = vld [vmem:[%s192 + $0x84] sm:$0xf]
      %v8418 = vld [vmem:[%s192 + $0x88] sm:$0x1]
      %s8419 = scalar_lea.vmem %s2, 384
      %v8420 = vld [vmem:[%s8419] sm:$0xf]
      %v8421 = vld [vmem:[%s8419 + $0x4] sm:$0xf]
      %v8422 = vld [vmem:[%s8419 + $0x8] sm:$0xf]
      %v8423 = vld [vmem:[%s8419 + $0xc] sm:$0xf]
      %v8424 = vld [vmem:[%s8419 + $0x10] sm:$0xf]
      %v8425 = vld [vmem:[%s8419 + $0x14] sm:$0xf]
      %v8426 = vld [vmem:[%s8419 + $0x18] sm:$0xf]
      %v8427 = vld [vmem:[%s8419 + $0x1c] sm:$0xf]
      %v8428 = vld [vmem:[%s192 + $0x8] sm:$0xe]
      %v8429 = vld [vmem:[%s2963 + $0x8] sm:$0xe]
      %v8430 = vld [vmem:[%s2963 + $0xc] sm:$0xf]
      %v8431 = vld [vmem:[%s2963 + $0x10] sm:$0xf]
      %v8432 = vld [vmem:[%s2963 + $0x14] sm:$0xf]
      %v8433 = vld [vmem:[%s2963 + $0x18] sm:$0xf]
      %v8434 = vld [vmem:[%s2963 + $0x1c] sm:$0xf]
      %v8435 = vld [vmem:[%s2963 + $0x20] sm:$0xf]
      %v8436 = vld [vmem:[%s2963 + $0x24] sm:$0xf]
      %v8437 = vld [vmem:[%s2963 + $0x28] sm:$0xf]
      %v8438 = vld [vmem:[%s2963 + $0x2c] sm:$0xf]
      %v8439 = vld [vmem:[%s2963 + $0x30] sm:$0xf]
      %v8440 = vld [vmem:[%s2963 + $0x34] sm:$0xf]
      %v8441 = vld [vmem:[%s2963 + $0x38] sm:$0xf]
      %v8442 = vld [vmem:[%s2963 + $0x3c] sm:$0xf]
      %v8443 = vld [vmem:[%s2963 + $0x40] sm:$0xf]
      %v8444 = vld [vmem:[%s2963 + $0x44] sm:$0xf]
      %v8445 = vld [vmem:[%s2963 + $0x48] sm:$0xf]
      %v8446 = vld [vmem:[%s2963 + $0x4c] sm:$0xf]
      %v8447 = vld [vmem:[%s2963 + $0x50] sm:$0xf]
      %v8448 = vld [vmem:[%s2963 + $0x54] sm:$0xf]
      %v8449 = vld [vmem:[%s2963 + $0x58] sm:$0xf]
      %v8450 = vld [vmem:[%s2963 + $0x5c] sm:$0xf]
      %v8451 = vld [vmem:[%s2963 + $0x60] sm:$0xf]
      %v8452 = vld [vmem:[%s2963 + $0x64] sm:$0xf]
      %v8453 = vld [vmem:[%s2963 + $0x68] sm:$0xf]
      %v8454 = vld [vmem:[%s2963 + $0x6c] sm:$0xf]
      %v8455 = vld [vmem:[%s2963 + $0x70] sm:$0xf]
      %v8456 = vld [vmem:[%s2963 + $0x74] sm:$0xf]
      %v8457 = vld [vmem:[%s2963 + $0x78] sm:$0xf]
      %v8458 = vld [vmem:[%s2963 + $0x7c] sm:$0xf]
      %v8459 = vld [vmem:[%s2963 + $0x80] sm:$0xf]
      %v8460 = vld [vmem:[%s2963 + $0x84] sm:$0xf]
      %v8461 = vld [vmem:[%s2963 + $0x88] sm:$0x1]
      %8463 = vset.pattern.permute.xlu0 0
      %8464 = vperm.xlu0 %8463, %v8429
      %v8465 = vpop.permute.xlu0 %8464
      %v8468 = vunpack.c.l.s4 839922192
      %v8469 = vunpack.c.0.s8 %v8468
      %v8470 = vlaneseq
      %v8471 = vshrl.u32 %v8470, 7
      %v8472 = vsub.s32 %v8469, %v8471
      %v8473 = vrot.slane %v8465, %v8472
      %8475 = vset.pattern.permute.xlu0 0
      %8476 = vperm.xlu0 %8475, %v8430
      %v8477 = vpop.permute.xlu0 %8476
      %v8480 = vunpack.c.l.s4 839922192
      %v8481 = vunpack.c.0.s8 %v8480
      %v8482 = vlaneseq
      %v8483 = vshrl.u32 %v8482, 7
      %v8484 = vsub.s32 %v8481, %v8483
      %v8485 = vrot.slane %v8477, %v8484
      %8487 = vset.pattern.permute.xlu0 0
      %8488 = vperm.xlu0 %8487, %v8431
      %v8489 = vpop.permute.xlu0 %8488
      %v8492 = vunpack.c.l.s4 839922192
      %v8493 = vunpack.c.0.s8 %v8492
      %v8494 = vlaneseq
      %v8495 = vshrl.u32 %v8494, 7
      %v8496 = vsub.s32 %v8493, %v8495
      %v8497 = vrot.slane %v8489, %v8496
      %8499 = vset.pattern.permute.xlu0 0
      %8500 = vperm.xlu0 %8499, %v8432
      %v8501 = vpop.permute.xlu0 %8500
      %v8504 = vunpack.c.l.s4 839922192
      %v8505 = vunpack.c.0.s8 %v8504
      %v8506 = vlaneseq
      %v8507 = vshrl.u32 %v8506, 7
      %v8508 = vsub.s32 %v8505, %v8507
      %v8509 = vrot.slane %v8501, %v8508
      %8511 = vset.pattern.permute.xlu0 0
      %8512 = vperm.xlu0 %8511, %v8433
      %v8513 = vpop.permute.xlu0 %8512
      %v8516 = vunpack.c.l.s4 839922192
      %v8517 = vunpack.c.0.s8 %v8516
      %v8518 = vlaneseq
      %v8519 = vshrl.u32 %v8518, 7
      %v8520 = vsub.s32 %v8517, %v8519
      %v8521 = vrot.slane %v8513, %v8520
      %8523 = vset.pattern.permute.xlu0 0
      %8524 = vperm.xlu0 %8523, %v8434
      %v8525 = vpop.permute.xlu0 %8524
      %v8528 = vunpack.c.l.s4 839922192
      %v8529 = vunpack.c.0.s8 %v8528
      %v8530 = vlaneseq
      %v8531 = vshrl.u32 %v8530, 7
      %v8532 = vsub.s32 %v8529, %v8531
      %v8533 = vrot.slane %v8525, %v8532
      %8535 = vset.pattern.permute.xlu0 0
      %8536 = vperm.xlu0 %8535, %v8435
      %v8537 = vpop.permute.xlu0 %8536
      %v8540 = vunpack.c.l.s4 839922192
      %v8541 = vunpack.c.0.s8 %v8540
      %v8542 = vlaneseq
      %v8543 = vshrl.u32 %v8542, 7
      %v8544 = vsub.s32 %v8541, %v8543
      %v8545 = vrot.slane %v8537, %v8544
      %8547 = vset.pattern.permute.xlu0 0
      %8548 = vperm.xlu0 %8547, %v8436
      %v8549 = vpop.permute.xlu0 %8548
      %v8552 = vunpack.c.l.s4 839922192
      %v8553 = vunpack.c.0.s8 %v8552
      %v8554 = vlaneseq
      %v8555 = vshrl.u32 %v8554, 7
      %v8556 = vsub.s32 %v8553, %v8555
      %v8557 = vrot.slane %v8549, %v8556
      %8559 = vset.pattern.permute.xlu0 0
      %8560 = vperm.xlu0 %8559, %v8437
      %v8561 = vpop.permute.xlu0 %8560
      %v8564 = vunpack.c.l.s4 839922192
      %v8565 = vunpack.c.0.s8 %v8564
      %v8566 = vlaneseq
      %v8567 = vshrl.u32 %v8566, 7
      %v8568 = vsub.s32 %v8565, %v8567
      %v8569 = vrot.slane %v8561, %v8568
      %8571 = vset.pattern.permute.xlu0 0
      %8572 = vperm.xlu0 %8571, %v8438
      %v8573 = vpop.permute.xlu0 %8572
      %v8576 = vunpack.c.l.s4 839922192
      %v8577 = vunpack.c.0.s8 %v8576
      %v8578 = vlaneseq
      %v8579 = vshrl.u32 %v8578, 7
      %v8580 = vsub.s32 %v8577, %v8579
      %v8581 = vrot.slane %v8573, %v8580
      %8583 = vset.pattern.permute.xlu0 0
      %8584 = vperm.xlu0 %8583, %v8439
      %v8585 = vpop.permute.xlu0 %8584
      %v8588 = vunpack.c.l.s4 839922192
      %v8589 = vunpack.c.0.s8 %v8588
      %v8590 = vlaneseq
      %v8591 = vshrl.u32 %v8590, 7
      %v8592 = vsub.s32 %v8589, %v8591
      %v8593 = vrot.slane %v8585, %v8592
      %8595 = vset.pattern.permute.xlu0 0
      %8596 = vperm.xlu0 %8595, %v8440
      %v8597 = vpop.permute.xlu0 %8596
      %v8600 = vunpack.c.l.s4 839922192
      %v8601 = vunpack.c.0.s8 %v8600
      %v8602 = vlaneseq
      %v8603 = vshrl.u32 %v8602, 7
      %v8604 = vsub.s32 %v8601, %v8603
      %v8605 = vrot.slane %v8597, %v8604
      %8607 = vset.pattern.permute.xlu0 0
      %8608 = vperm.xlu0 %8607, %v8441
      %v8609 = vpop.permute.xlu0 %8608
      %v8612 = vunpack.c.l.s4 839922192
      %v8613 = vunpack.c.0.s8 %v8612
      %v8614 = vlaneseq
      %v8615 = vshrl.u32 %v8614, 7
      %v8616 = vsub.s32 %v8613, %v8615
      %v8617 = vrot.slane %v8609, %v8616
      %8619 = vset.pattern.permute.xlu0 0
      %8620 = vperm.xlu0 %8619, %v8442
      %v8621 = vpop.permute.xlu0 %8620
      %v8624 = vunpack.c.l.s4 839922192
      %v8625 = vunpack.c.0.s8 %v8624
      %v8626 = vlaneseq
      %v8627 = vshrl.u32 %v8626, 7
      %v8628 = vsub.s32 %v8625, %v8627
      %v8629 = vrot.slane %v8621, %v8628
      %8631 = vset.pattern.permute.xlu0 0
      %8632 = vperm.xlu0 %8631, %v8443
      %v8633 = vpop.permute.xlu0 %8632
      %v8636 = vunpack.c.l.s4 839922192
      %v8637 = vunpack.c.0.s8 %v8636
      %v8638 = vlaneseq
      %v8639 = vshrl.u32 %v8638, 7
      %v8640 = vsub.s32 %v8637, %v8639
      %v8641 = vrot.slane %v8633, %v8640
      %8643 = vset.pattern.permute.xlu0 0
      %8644 = vperm.xlu0 %8643, %v8444
      %v8645 = vpop.permute.xlu0 %8644
      %v8648 = vunpack.c.l.s4 839922192
      %v8649 = vunpack.c.0.s8 %v8648
      %v8650 = vlaneseq
      %v8651 = vshrl.u32 %v8650, 7
      %v8652 = vsub.s32 %v8649, %v8651
      %v8653 = vrot.slane %v8645, %v8652
      %8655 = vset.pattern.permute.xlu0 0
      %8656 = vperm.xlu0 %8655, %v8445
      %v8657 = vpop.permute.xlu0 %8656
      %v8660 = vunpack.c.l.s4 839922192
      %v8661 = vunpack.c.0.s8 %v8660
      %v8662 = vlaneseq
      %v8663 = vshrl.u32 %v8662, 7
      %v8664 = vsub.s32 %v8661, %v8663
      %v8665 = vrot.slane %v8657, %v8664
      %8667 = vset.pattern.permute.xlu0 0
      %8668 = vperm.xlu0 %8667, %v8446
      %v8669 = vpop.permute.xlu0 %8668
      %v8672 = vunpack.c.l.s4 839922192
      %v8673 = vunpack.c.0.s8 %v8672
      %v8674 = vlaneseq
      %v8675 = vshrl.u32 %v8674, 7
      %v8676 = vsub.s32 %v8673, %v8675
      %v8677 = vrot.slane %v8669, %v8676
      %8679 = vset.pattern.permute.xlu0 0
      %8680 = vperm.xlu0 %8679, %v8447
      %v8681 = vpop.permute.xlu0 %8680
      %v8684 = vunpack.c.l.s4 839922192
      %v8685 = vunpack.c.0.s8 %v8684
      %v8686 = vlaneseq
      %v8687 = vshrl.u32 %v8686, 7
      %v8688 = vsub.s32 %v8685, %v8687
      %v8689 = vrot.slane %v8681, %v8688
      %8691 = vset.pattern.permute.xlu0 0
      %8692 = vperm.xlu0 %8691, %v8448
      %v8693 = vpop.permute.xlu0 %8692
      %v8696 = vunpack.c.l.s4 839922192
      %v8697 = vunpack.c.0.s8 %v8696
      %v8698 = vlaneseq
      %v8699 = vshrl.u32 %v8698, 7
      %v8700 = vsub.s32 %v8697, %v8699
      %v8701 = vrot.slane %v8693, %v8700
      %8703 = vset.pattern.permute.xlu0 0
      %8704 = vperm.xlu0 %8703, %v8449
      %v8705 = vpop.permute.xlu0 %8704
      %v8708 = vunpack.c.l.s4 839922192
      %v8709 = vunpack.c.0.s8 %v8708
      %v8710 = vlaneseq
      %v8711 = vshrl.u32 %v8710, 7
      %v8712 = vsub.s32 %v8709, %v8711
      %v8713 = vrot.slane %v8705, %v8712
      %8715 = vset.pattern.permute.xlu0 0
      %8716 = vperm.xlu0 %8715, %v8450
      %v8717 = vpop.permute.xlu0 %8716
      %v8720 = vunpack.c.l.s4 839922192
      %v8721 = vunpack.c.0.s8 %v8720
      %v8722 = vlaneseq
      %v8723 = vshrl.u32 %v8722, 7
      %v8724 = vsub.s32 %v8721, %v8723
      %v8725 = vrot.slane %v8717, %v8724
      %8727 = vset.pattern.permute.xlu0 0
      %8728 = vperm.xlu0 %8727, %v8451
      %v8729 = vpop.permute.xlu0 %8728
      %v8732 = vunpack.c.l.s4 839922192
      %v8733 = vunpack.c.0.s8 %v8732
      %v8734 = vlaneseq
      %v8735 = vshrl.u32 %v8734, 7
      %v8736 = vsub.s32 %v8733, %v8735
      %v8737 = vrot.slane %v8729, %v8736
      %8739 = vset.pattern.permute.xlu0 0
      %8740 = vperm.xlu0 %8739, %v8452
      %v8741 = vpop.permute.xlu0 %8740
      %v8744 = vunpack.c.l.s4 839922192
      %v8745 = vunpack.c.0.s8 %v8744
      %v8746 = vlaneseq
      %v8747 = vshrl.u32 %v8746, 7
      %v8748 = vsub.s32 %v8745, %v8747
      %v8749 = vrot.slane %v8741, %v8748
      %8751 = vset.pattern.permute.xlu0 0
      %8752 = vperm.xlu0 %8751, %v8453
      %v8753 = vpop.permute.xlu0 %8752
      %v8756 = vunpack.c.l.s4 839922192
      %v8757 = vunpack.c.0.s8 %v8756
      %v8758 = vlaneseq
      %v8759 = vshrl.u32 %v8758, 7
      %v8760 = vsub.s32 %v8757, %v8759
      %v8761 = vrot.slane %v8753, %v8760
      %8763 = vset.pattern.permute.xlu0 0
      %8764 = vperm.xlu0 %8763, %v8454
      %v8765 = vpop.permute.xlu0 %8764
      %v8768 = vunpack.c.l.s4 839922192
      %v8769 = vunpack.c.0.s8 %v8768
      %v8770 = vlaneseq
      %v8771 = vshrl.u32 %v8770, 7
      %v8772 = vsub.s32 %v8769, %v8771
      %v8773 = vrot.slane %v8765, %v8772
      %8775 = vset.pattern.permute.xlu0 0
      %8776 = vperm.xlu0 %8775, %v8455
      %v8777 = vpop.permute.xlu0 %8776
      %v8780 = vunpack.c.l.s4 839922192
      %v8781 = vunpack.c.0.s8 %v8780
      %v8782 = vlaneseq
      %v8783 = vshrl.u32 %v8782, 7
      %v8784 = vsub.s32 %v8781, %v8783
      %v8785 = vrot.slane %v8777, %v8784
      %8787 = vset.pattern.permute.xlu0 0
      %8788 = vperm.xlu0 %8787, %v8456
      %v8789 = vpop.permute.xlu0 %8788
      %v8792 = vunpack.c.l.s4 839922192
      %v8793 = vunpack.c.0.s8 %v8792
      %v8794 = vlaneseq
      %v8795 = vshrl.u32 %v8794, 7
      %v8796 = vsub.s32 %v8793, %v8795
      %v8797 = vrot.slane %v8789, %v8796
      %8799 = vset.pattern.permute.xlu0 0
      %8800 = vperm.xlu0 %8799, %v8457
      %v8801 = vpop.permute.xlu0 %8800
      %v8804 = vunpack.c.l.s4 839922192
      %v8805 = vunpack.c.0.s8 %v8804
      %v8806 = vlaneseq
      %v8807 = vshrl.u32 %v8806, 7
      %v8808 = vsub.s32 %v8805, %v8807
      %v8809 = vrot.slane %v8801, %v8808
      %8811 = vset.pattern.permute.xlu0 0
      %8812 = vperm.xlu0 %8811, %v8458
      %v8813 = vpop.permute.xlu0 %8812
      %v8816 = vunpack.c.l.s4 839922192
      %v8817 = vunpack.c.0.s8 %v8816
      %v8818 = vlaneseq
      %v8819 = vshrl.u32 %v8818, 7
      %v8820 = vsub.s32 %v8817, %v8819
      %v8821 = vrot.slane %v8813, %v8820
      %8823 = vset.pattern.permute.xlu0 0
      %8824 = vperm.xlu0 %8823, %v8459
      %v8825 = vpop.permute.xlu0 %8824
      %v8828 = vunpack.c.l.s4 839922192
      %v8829 = vunpack.c.0.s8 %v8828
      %v8830 = vlaneseq
      %v8831 = vshrl.u32 %v8830, 7
      %v8832 = vsub.s32 %v8829, %v8831
      %v8833 = vrot.slane %v8825, %v8832
      %8835 = vset.pattern.permute.xlu0 0
      %8836 = vperm.xlu0 %8835, %v8460
      %v8837 = vpop.permute.xlu0 %8836
      %v8840 = vunpack.c.l.s4 839922192
      %v8841 = vunpack.c.0.s8 %v8840
      %v8842 = vlaneseq
      %v8843 = vshrl.u32 %v8842, 7
      %v8844 = vsub.s32 %v8841, %v8843
      %v8845 = vrot.slane %v8837, %v8844
      %8847 = vset.pattern.permute.xlu0 0
      %8848 = vperm.xlu0 %8847, %v8461
      %v8849 = vpop.permute.xlu0 %8848
      %v8852 = vunpack.c.l.s4 839922192
      %v8853 = vunpack.c.0.s8 %v8852
      %v8854 = vlaneseq
      %v8855 = vshrl.u32 %v8854, 7
      %v8856 = vsub.s32 %v8853, %v8855
      %v8857 = vrot.slane %v8849, %v8856
      %v8858 = vmul.bf16 %v8428, %v8473
      %v8859 = vmul.bf16 %v8387, %v8485
      %v8860 = vmul.bf16 %v8388, %v8497
      %v8861 = vmul.bf16 %v8389, %v8509
      %v8862 = vmul.bf16 %v8390, %v8521
      %v8863 = vmul.bf16 %v8391, %v8533
      %v8864 = vmul.bf16 %v8392, %v8545
      %v8865 = vmul.bf16 %v8393, %v8557
      %v8866 = vmul.bf16 %v8394, %v8569
      %v8867 = vmul.bf16 %v8395, %v8581
      %v8868 = vmul.bf16 %v8396, %v8593
      %v8869 = vmul.bf16 %v8397, %v8605
      %v8870 = vmul.bf16 %v8398, %v8617
      %v8871 = vmul.bf16 %v8399, %v8629
      %v8872 = vmul.bf16 %v8400, %v8641
      %v8873 = vmul.bf16 %v8401, %v8653
      %v8874 = vmul.bf16 %v8402, %v8665
      %v8875 = vmul.bf16 %v8403, %v8677
      %v8876 = vmul.bf16 %v8404, %v8689
      %v8877 = vmul.bf16 %v8405, %v8701
      %v8878 = vmul.bf16 %v8406, %v8713
      %v8879 = vmul.bf16 %v8407, %v8725
      %v8880 = vmul.bf16 %v8408, %v8737
      %v8881 = vmul.bf16 %v8409, %v8749
      %v8882 = vmul.bf16 %v8410, %v8761
      %v8883 = vmul.bf16 %v8411, %v8773
      %v8884 = vmul.bf16 %v8412, %v8785
      %v8885 = vmul.bf16 %v8413, %v8797
      %v8886 = vmul.bf16 %v8414, %v8809
      %v8887 = vmul.bf16 %v8415, %v8821
      %v8888 = vmul.bf16 %v8416, %v8833
      %v8889 = vmul.bf16 %v8417, %v8845
      %v8890 = vmul.bf16 %v8418, %v8857
      %s8891 = scalar_lea.vmem %s2, 416
      %v8892 = vld [vmem:[%s8891] sm:$0xf]
      %v8893 = vld [vmem:[%s8891 + $0x4] sm:$0xf]
      %v8894 = vld [vmem:[%s8891 + $0x8] sm:$0xf]
      %v8895 = vld [vmem:[%s8891 + $0xc] sm:$0xf]
      %v8896 = vld [vmem:[%s8891 + $0x10] sm:$0xf]
      %v8897 = vld [vmem:[%s8891 + $0x14] sm:$0xf]
      %v8898 = vld [vmem:[%s8891 + $0x18] sm:$0xf]
      %v8899 = vld [vmem:[%s8891 + $0x1c] sm:$0xf]
      %v8933 = vunpack.c.l.b16 %v8858
      %v8934 = vunpack.c.l.b16 %v8859
      %v8935 = vunpack.c.l.b16 %v8860
      %v8936 = vunpack.c.l.b16 %v8861
      %v8937 = vunpack.c.l.b16 %v8862
      %v8938 = vunpack.c.l.b16 %v8863
      %v8939 = vunpack.c.l.b16 %v8864
      %v8940 = vunpack.c.l.b16 %v8865
      %v8941 = vunpack.c.l.b16 %v8866
      %v8942 = vunpack.c.l.b16 %v8867
      %v8943 = vunpack.c.l.b16 %v8868
      %v8944 = vunpack.c.l.b16 %v8869
      %v8945 = vunpack.c.l.b16 %v8870
      %v8946 = vunpack.c.l.b16 %v8871
      %v8947 = vunpack.c.l.b16 %v8872
      %v8948 = vunpack.c.l.b16 %v8873
      %v8949 = vunpack.c.l.b16 %v8874
      %v8950 = vunpack.c.l.b16 %v8875
      %v8951 = vunpack.c.l.b16 %v8876
      %v8952 = vunpack.c.l.b16 %v8877
      %v8953 = vunpack.c.l.b16 %v8878
      %v8954 = vunpack.c.l.b16 %v8879
      %v8955 = vunpack.c.l.b16 %v8880
      %v8956 = vunpack.c.l.b16 %v8881
      %v8957 = vunpack.c.l.b16 %v8882
      %v8958 = vunpack.c.l.b16 %v8883
      %v8959 = vunpack.c.l.b16 %v8884
      %v8960 = vunpack.c.l.b16 %v8885
      %v8961 = vunpack.c.l.b16 %v8886
      %v8962 = vunpack.c.l.b16 %v8887
      %v8963 = vunpack.c.l.b16 %v8888
      %v8964 = vunpack.c.l.b16 %v8889
      %v8965 = vunpack.c.l.b16 %v8890
      %v8966 = vpack.c.b16 %v8934, %v8933
      %v8967 = vpack.c.b16 %v8936, %v8935
      %v8968 = vpack.c.b16 %v8938, %v8937
      %v8969 = vpack.c.b16 %v8940, %v8939
      %v8970 = vpack.c.b16 %v8942, %v8941
      %v8971 = vpack.c.b16 %v8944, %v8943
      %v8972 = vpack.c.b16 %v8946, %v8945
      %v8973 = vpack.c.b16 %v8948, %v8947
      %v8974 = vpack.c.b16 %v8950, %v8949
      %v8975 = vpack.c.b16 %v8952, %v8951
      %v8976 = vpack.c.b16 %v8954, %v8953
      %v8977 = vpack.c.b16 %v8956, %v8955
      %v8978 = vpack.c.b16 %v8958, %v8957
      %v8979 = vpack.c.b16 %v8960, %v8959
      %v8980 = vpack.c.b16 %v8962, %v8961
      %v8981 = vpack.c.b16 %v8964, %v8963
      %v8982 = vpack.c.b16 %v8965, %v8965
      %v8983 = vrot.slane %v8966, 1
      %v8984 = vrot.slane %v8967, 1
      %v8985 = vsel %vm3518, %v8983, %v8984
      %v8986 = vrot.slane %v8968, 1
      %v8987 = vsel %vm3518, %v8984, %v8986
      %v8988 = vrot.slane %v8969, 1
      %v8989 = vsel %vm3518, %v8986, %v8988
      %v8990 = vrot.slane %v8970, 1
      %v8991 = vsel %vm3518, %v8988, %v8990
      %v8992 = vrot.slane %v8971, 1
      %v8993 = vsel %vm3518, %v8990, %v8992
      %v8994 = vrot.slane %v8972, 1
      %v8995 = vsel %vm3518, %v8992, %v8994
      %v8996 = vrot.slane %v8973, 1
      %v8997 = vsel %vm3518, %v8994, %v8996
      %v8998 = vrot.slane %v8974, 1
      %v8999 = vsel %vm3518, %v8996, %v8998
      %v9000 = vrot.slane %v8975, 1
      %v9001 = vsel %vm3518, %v8998, %v9000
      %v9002 = vrot.slane %v8976, 1
      %v9003 = vsel %vm3518, %v9000, %v9002
      %v9004 = vrot.slane %v8977, 1
      %v9005 = vsel %vm3518, %v9002, %v9004
      %v9006 = vrot.slane %v8978, 1
      %v9007 = vsel %vm3518, %v9004, %v9006
      %v9008 = vrot.slane %v8979, 1
      %v9009 = vsel %vm3518, %v9006, %v9008
      %v9010 = vrot.slane %v8980, 1
      %v9011 = vsel %vm3518, %v9008, %v9010
      %v9012 = vrot.slane %v8981, 1
      %v9013 = vsel %vm3518, %v9010, %v9012
      %v9014 = vrot.slane %v8982, 1
      %v9015 = vsel %vm3518, %v9012, %v9014
      %v9024 = vunpack.c.l.b16 %v8892
      %v9025 = vunpack.c.l.b16 %v8893
      %v9026 = vunpack.c.l.b16 %v8894
      %v9027 = vunpack.c.l.b16 %v8895
      %v9028 = vunpack.c.l.b16 %v8896
      %v9029 = vunpack.c.l.b16 %v8897
      %v9030 = vunpack.c.l.b16 %v8898
      %v9031 = vunpack.c.l.b16 %v8899
      %v9032 = vpack.c.b16 %v9025, %v9024
      %v9033 = vpack.c.b16 %v9027, %v9026
      %v9034 = vpack.c.b16 %v9029, %v9028
      %v9035 = vpack.c.b16 %v9031, %v9030
      %v9041 = vsel %vm970, %v8985, 0
      %v9044 = vsel %vm970, %v8987, 0
      %v9047 = vsel %vm970, %v8989, 0
      %v9050 = vsel %vm970, %v8991, 0
      %v9053 = vsel %vm970, %v8993, 0
      %v9056 = vsel %vm970, %v8995, 0
      %v9059 = vsel %vm970, %v8997, 0
      %v9062 = vsel %vm970, %v8999, 0
      %v9065 = vsel %vm970, %v9001, 0
      %v9068 = vsel %vm970, %v9003, 0
      %v9071 = vsel %vm970, %v9005, 0
      %v9074 = vsel %vm970, %v9007, 0
      %v9077 = vsel %vm970, %v9009, 0
      %v9080 = vsel %vm970, %v9011, 0
      %v9083 = vsel %vm970, %v9013, 0
      %v9086 = vsel %vm970, %v9015, 0
      %9088 = vmatprep.subr.bf16.mxu0 0
      %9089 = vmatpush1.bf16.msra.mxu0 0
      %9090 = vmatprep.subr.bf16.mxu0 0
      %9091 = vmatpush1.bf16.msra.mxu0 0
      %9092 = vmatprep.subr.bf16.mxu0 0
      %9093 = vmatpush1.bf16.msra.mxu0 0
      %9094 = vmatprep.subr.bf16.mxu0 0
      %9095 = vmatpush1.bf16.msra.mxu0 0
      %9096 = vmatprep.subr.bf16.mxu0 0
      %9097 = vmatpush1.bf16.msra.mxu0 %v9035
      %9098 = vmatprep.subr.bf16.mxu0 0
      %9099 = vmatpush1.bf16.msra.mxu0 %v9034
      %9100 = vmatprep.subr.bf16.mxu0 0
      %9101 = vmatpush1.bf16.msra.mxu0 %v9033
      %9102 = vmatprep.subr.bf16.mxu0 0
      %9103 = vmatpush1.bf16.msra.mxu0 %v9032
      %9104 = vmatprep.subr.bf16.mxu0 0
      %9105 = vmatpush2.bf16.msra.mxu0 0
      %9106 = vmatprep.subr.bf16.mxu0 0
      %9107 = vmatpush2.bf16.msra.mxu0 0
      %9108 = vmatprep.subr.bf16.mxu0 0
      %9109 = vmatpush2.bf16.msra.mxu0 0
      %9110 = vmatprep.subr.bf16.mxu0 0
      %9111 = vmatpush2.bf16.msra.mxu0 0
      %9112 = vmatprep.subr.bf16.mxu0 0
      %9113 = vmatpush2.bf16.msra.mxu0 0
      %9114 = vmatprep.subr.bf16.mxu0 0
      %9115 = vmatpush2.bf16.msra.mxu0 0
      %9116 = vmatprep.subr.bf16.mxu0 0
      %9117 = vmatpush2.bf16.msra.mxu0 0
      %9118 = vmatprep.subr.bf16.mxu0 0
      %9119 = vmatpush2.bf16.msra.mxu0 0
      %9120 = vmatprep.mubr.bf16.mxu0 0
      %9121 = vmatmul.mubr.bf16.gmra.mxu0 %v9041
      %v9122 = vpop.f32.mrf.mxu0
      %v9123 = vadd.f32 0.0, %v9122
      %v9124 = vpop.f32.mrf.mxu0
      %v9125 = vpop.f32.mrf.mxu0
      %v9126 = vadd.f32 0.0, %v9125
      %v9127 = vpop.f32.mrf.mxu0
      %9128 = vmatprep.mubr.bf16.mxu0 0
      %9129 = vmatmul.mubr.bf16.gmra.mxu0 %v9044
      %v9130 = vpop.f32.mrf.mxu0
      %v9131 = vadd.f32 0.0, %v9130
      %v9132 = vpop.f32.mrf.mxu0
      %v9133 = vpop.f32.mrf.mxu0
      %v9134 = vadd.f32 0.0, %v9133
      %v9135 = vpop.f32.mrf.mxu0
      %9136 = vmatprep.mubr.bf16.mxu0 0
      %9137 = vmatmul.mubr.bf16.gmra.mxu0 %v9047
      %v9138 = vpop.f32.mrf.mxu0
      %v9139 = vadd.f32 0.0, %v9138
      %v9140 = vpop.f32.mrf.mxu0
      %v9141 = vpop.f32.mrf.mxu0
      %v9142 = vadd.f32 0.0, %v9141
      %v9143 = vpop.f32.mrf.mxu0
      %9144 = vmatprep.mubr.bf16.mxu0 0
      %9145 = vmatmul.mubr.bf16.gmra.mxu0 %v9050
      %v9146 = vpop.f32.mrf.mxu0
      %v9147 = vadd.f32 0.0, %v9146
      %v9148 = vpop.f32.mrf.mxu0
      %v9149 = vpop.f32.mrf.mxu0
      %v9150 = vadd.f32 0.0, %v9149
      %v9151 = vpop.f32.mrf.mxu0
      %9152 = vmatprep.mubr.bf16.mxu0 0
      %9153 = vmatmul.mubr.bf16.gmra.mxu0 %v9053
      %v9154 = vpop.f32.mrf.mxu0
      %v9155 = vadd.f32 0.0, %v9154
      %v9156 = vpop.f32.mrf.mxu0
      %v9157 = vpop.f32.mrf.mxu0
      %v9158 = vadd.f32 0.0, %v9157
      %v9159 = vpop.f32.mrf.mxu0
      %9160 = vmatprep.mubr.bf16.mxu0 0
      %9161 = vmatmul.mubr.bf16.gmra.mxu0 %v9056
      %v9162 = vpop.f32.mrf.mxu0
      %v9163 = vadd.f32 0.0, %v9162
      %v9164 = vpop.f32.mrf.mxu0
      %v9165 = vpop.f32.mrf.mxu0
      %v9166 = vadd.f32 0.0, %v9165
      %v9167 = vpop.f32.mrf.mxu0
      %9168 = vmatprep.mubr.bf16.mxu0 0
      %9169 = vmatmul.mubr.bf16.gmra.mxu0 %v9059
      %v9170 = vpop.f32.mrf.mxu0
      %v9171 = vadd.f32 0.0, %v9170
      %v9172 = vpop.f32.mrf.mxu0
      %v9173 = vpop.f32.mrf.mxu0
      %v9174 = vadd.f32 0.0, %v9173
      %v9175 = vpop.f32.mrf.mxu0
      %9176 = vmatprep.mubr.bf16.mxu0 0
      %9177 = vmatmul.mubr.bf16.gmra.mxu0 %v9062
      %v9178 = vpop.f32.mrf.mxu0
      %v9179 = vadd.f32 0.0, %v9178
      %v9180 = vpop.f32.mrf.mxu0
      %v9181 = vpop.f32.mrf.mxu0
      %v9182 = vadd.f32 0.0, %v9181
      %v9183 = vpop.f32.mrf.mxu0
      %9184 = vmatprep.mubr.bf16.mxu0 0
      %9185 = vmatmul.mubr.bf16.gmra.mxu0 %v9065
      %v9186 = vpop.f32.mrf.mxu0
      %v9187 = vadd.f32 0.0, %v9186
      %v9188 = vpop.f32.mrf.mxu0
      %v9189 = vpop.f32.mrf.mxu0
      %v9190 = vadd.f32 0.0, %v9189
      %v9191 = vpop.f32.mrf.mxu0
      %9192 = vmatprep.mubr.bf16.mxu0 0
      %9193 = vmatmul.mubr.bf16.gmra.mxu0 %v9068
      %v9194 = vpop.f32.mrf.mxu0
      %v9195 = vadd.f32 0.0, %v9194
      %v9196 = vpop.f32.mrf.mxu0
      %v9197 = vpop.f32.mrf.mxu0
      %v9198 = vadd.f32 0.0, %v9197
      %v9199 = vpop.f32.mrf.mxu0
      %9200 = vmatprep.mubr.bf16.mxu0 0
      %9201 = vmatmul.mubr.bf16.gmra.mxu0 %v9071
      %v9202 = vpop.f32.mrf.mxu0
      %v9203 = vadd.f32 0.0, %v9202
      %v9204 = vpop.f32.mrf.mxu0
      %v9205 = vpop.f32.mrf.mxu0
      %v9206 = vadd.f32 0.0, %v9205
      %v9207 = vpop.f32.mrf.mxu0
      %9208 = vmatprep.mubr.bf16.mxu0 0
      %9209 = vmatmul.mubr.bf16.gmra.mxu0 %v9074
      %v9210 = vpop.f32.mrf.mxu0
      %v9211 = vadd.f32 0.0, %v9210
      %v9212 = vpop.f32.mrf.mxu0
      %v9213 = vpop.f32.mrf.mxu0
      %v9214 = vadd.f32 0.0, %v9213
      %v9215 = vpop.f32.mrf.mxu0
      %9216 = vmatprep.mubr.bf16.mxu0 0
      %9217 = vmatmul.mubr.bf16.gmra.mxu0 %v9077
      %v9218 = vpop.f32.mrf.mxu0
      %v9219 = vadd.f32 0.0, %v9218
      %v9220 = vpop.f32.mrf.mxu0
      %v9221 = vpop.f32.mrf.mxu0
      %v9222 = vadd.f32 0.0, %v9221
      %v9223 = vpop.f32.mrf.mxu0
      %9224 = vmatprep.mubr.bf16.mxu0 0
      %9225 = vmatmul.mubr.bf16.gmra.mxu0 %v9080
      %v9226 = vpop.f32.mrf.mxu0
      %v9227 = vadd.f32 0.0, %v9226
      %v9228 = vpop.f32.mrf.mxu0
      %v9229 = vpop.f32.mrf.mxu0
      %v9230 = vadd.f32 0.0, %v9229
      %v9231 = vpop.f32.mrf.mxu0
      %9232 = vmatprep.mubr.bf16.mxu0 0
      %9233 = vmatmul.mubr.bf16.gmra.mxu0 %v9083
      %v9234 = vpop.f32.mrf.mxu0
      %v9235 = vadd.f32 0.0, %v9234
      %v9236 = vpop.f32.mrf.mxu0
      %v9237 = vpop.f32.mrf.mxu0
      %v9238 = vadd.f32 0.0, %v9237
      %v9239 = vpop.f32.mrf.mxu0
      %9240 = vmatprep.mubr.bf16.mxu0 0
      %9241 = vmatmul.mubr.bf16.gmra.mxu0 %v9086
      %v9242 = vpop.f32.mrf.mxu0
      %v9243 = vadd.f32 0.0, %v9242
      %v9244 = vpop.f32.mrf.mxu0
      %v9245 = vpop.f32.mrf.mxu0
      %v9246 = vadd.f32 0.0, %v9245
      %v9247 = vpop.f32.mrf.mxu0
      %9248 = vdwg.mxu0
      %v9282 = vunpack.c.l.b16 %v8386
      %v9283 = vunpack.c.l.b16 %v8387
      %v9284 = vunpack.c.l.b16 %v8388
      %v9285 = vunpack.c.l.b16 %v8389
      %v9286 = vunpack.c.l.b16 %v8390
      %v9287 = vunpack.c.l.b16 %v8391
      %v9288 = vunpack.c.l.b16 %v8392
      %v9289 = vunpack.c.l.b16 %v8393
      %v9290 = vunpack.c.l.b16 %v8394
      %v9291 = vunpack.c.l.b16 %v8395
      %v9292 = vunpack.c.l.b16 %v8396
      %v9293 = vunpack.c.l.b16 %v8397
      %v9294 = vunpack.c.l.b16 %v8398
      %v9295 = vunpack.c.l.b16 %v8399
      %v9296 = vunpack.c.l.b16 %v8400
      %v9297 = vunpack.c.l.b16 %v8401
      %v9298 = vunpack.c.l.b16 %v8402
      %v9299 = vunpack.c.l.b16 %v8403
      %v9300 = vunpack.c.l.b16 %v8404
      %v9301 = vunpack.c.l.b16 %v8405
      %v9302 = vunpack.c.l.b16 %v8406
      %v9303 = vunpack.c.l.b16 %v8407
      %v9304 = vunpack.c.l.b16 %v8408
      %v9305 = vunpack.c.l.b16 %v8409
      %v9306 = vunpack.c.l.b16 %v8410
      %v9307 = vunpack.c.l.b16 %v8411
      %v9308 = vunpack.c.l.b16 %v8412
      %v9309 = vunpack.c.l.b16 %v8413
      %v9310 = vunpack.c.l.b16 %v8414
      %v9311 = vunpack.c.l.b16 %v8415
      %v9312 = vunpack.c.l.b16 %v8416
      %v9313 = vunpack.c.l.b16 %v8417
      %v9314 = vunpack.c.l.b16 %v8418
      %v9315 = vpack.c.b16 %v9283, %v9282
      %v9316 = vpack.c.b16 %v9285, %v9284
      %v9317 = vpack.c.b16 %v9287, %v9286
      %v9318 = vpack.c.b16 %v9289, %v9288
      %v9319 = vpack.c.b16 %v9291, %v9290
      %v9320 = vpack.c.b16 %v9293, %v9292
      %v9321 = vpack.c.b16 %v9295, %v9294
      %v9322 = vpack.c.b16 %v9297, %v9296
      %v9323 = vpack.c.b16 %v9299, %v9298
      %v9324 = vpack.c.b16 %v9301, %v9300
      %v9325 = vpack.c.b16 %v9303, %v9302
      %v9326 = vpack.c.b16 %v9305, %v9304
      %v9327 = vpack.c.b16 %v9307, %v9306
      %v9328 = vpack.c.b16 %v9309, %v9308
      %v9329 = vpack.c.b16 %v9311, %v9310
      %v9330 = vpack.c.b16 %v9313, %v9312
      %v9331 = vpack.c.b16 %v9314, %v9314
      %v9333 = vshrl.u32 %v9315, 16
      %v9335 = vshll.u32 %v9315, 16
      %v9337 = vrot.slane %v9335, 1
      %v9338 = vor.u32 %v9333, %v9337
      %v9340 = vshll.u32 %v9316, 16
      %v9342 = vrot.slane %v9340, 1
      %v9343 = vsel %vm813, %v9338, %v9342
      %v9344 = vshrl.u32 %v9316, 16
      %v9346 = vor.u32 %v9344, %v9342
      %v9348 = vshll.u32 %v9317, 16
      %v9350 = vrot.slane %v9348, 1
      %v9351 = vsel %vm813, %v9346, %v9350
      %v9352 = vshrl.u32 %v9317, 16
      %v9354 = vor.u32 %v9352, %v9350
      %v9356 = vshll.u32 %v9318, 16
      %v9358 = vrot.slane %v9356, 1
      %v9359 = vsel %vm813, %v9354, %v9358
      %v9360 = vshrl.u32 %v9318, 16
      %v9362 = vor.u32 %v9360, %v9358
      %v9364 = vshll.u32 %v9319, 16
      %v9366 = vrot.slane %v9364, 1
      %v9367 = vsel %vm813, %v9362, %v9366
      %v9368 = vshrl.u32 %v9319, 16
      %v9370 = vor.u32 %v9368, %v9366
      %v9372 = vshll.u32 %v9320, 16
      %v9374 = vrot.slane %v9372, 1
      %v9375 = vsel %vm813, %v9370, %v9374
      %v9376 = vshrl.u32 %v9320, 16
      %v9378 = vor.u32 %v9376, %v9374
      %v9380 = vshll.u32 %v9321, 16
      %v9382 = vrot.slane %v9380, 1
      %v9383 = vsel %vm813, %v9378, %v9382
      %v9384 = vshrl.u32 %v9321, 16
      %v9386 = vor.u32 %v9384, %v9382
      %v9388 = vshll.u32 %v9322, 16
      %v9390 = vrot.slane %v9388, 1
      %v9391 = vsel %vm813, %v9386, %v9390
      %v9392 = vshrl.u32 %v9322, 16
      %v9394 = vor.u32 %v9392, %v9390
      %v9396 = vshll.u32 %v9323, 16
      %v9398 = vrot.slane %v9396, 1
      %v9399 = vsel %vm813, %v9394, %v9398
      %v9400 = vshrl.u32 %v9323, 16
      %v9402 = vor.u32 %v9400, %v9398
      %v9404 = vshll.u32 %v9324, 16
      %v9406 = vrot.slane %v9404, 1
      %v9407 = vsel %vm813, %v9402, %v9406
      %v9408 = vshrl.u32 %v9324, 16
      %v9410 = vor.u32 %v9408, %v9406
      %v9412 = vshll.u32 %v9325, 16
      %v9414 = vrot.slane %v9412, 1
      %v9415 = vsel %vm813, %v9410, %v9414
      %v9416 = vshrl.u32 %v9325, 16
      %v9418 = vor.u32 %v9416, %v9414
      %v9420 = vshll.u32 %v9326, 16
      %v9422 = vrot.slane %v9420, 1
      %v9423 = vsel %vm813, %v9418, %v9422
      %v9424 = vshrl.u32 %v9326, 16
      %v9426 = vor.u32 %v9424, %v9422
      %v9428 = vshll.u32 %v9327, 16
      %v9430 = vrot.slane %v9428, 1
      %v9431 = vsel %vm813, %v9426, %v9430
      %v9432 = vshrl.u32 %v9327, 16
      %v9434 = vor.u32 %v9432, %v9430
      %v9436 = vshll.u32 %v9328, 16
      %v9438 = vrot.slane %v9436, 1
      %v9439 = vsel %vm813, %v9434, %v9438
      %v9440 = vshrl.u32 %v9328, 16
      %v9442 = vor.u32 %v9440, %v9438
      %v9444 = vshll.u32 %v9329, 16
      %v9446 = vrot.slane %v9444, 1
      %v9447 = vsel %vm813, %v9442, %v9446
      %v9448 = vshrl.u32 %v9329, 16
      %v9450 = vor.u32 %v9448, %v9446
      %v9452 = vshll.u32 %v9330, 16
      %v9454 = vrot.slane %v9452, 1
      %v9455 = vsel %vm813, %v9450, %v9454
      %v9456 = vshrl.u32 %v9330, 16
      %v9458 = vor.u32 %v9456, %v9454
      %v9460 = vshll.u32 %v9331, 16
      %v9462 = vrot.slane %v9460, 1
      %v9463 = vsel %vm813, %v9458, %v9462
      %v9472 = vunpack.c.l.b16 %v8420
      %v9473 = vunpack.c.l.b16 %v8421
      %v9474 = vunpack.c.l.b16 %v8422
      %v9475 = vunpack.c.l.b16 %v8423
      %v9476 = vunpack.c.l.b16 %v8424
      %v9477 = vunpack.c.l.b16 %v8425
      %v9478 = vunpack.c.l.b16 %v8426
      %v9479 = vunpack.c.l.b16 %v8427
      %v9480 = vpack.c.b16 %v9473, %v9472
      %v9481 = vpack.c.b16 %v9475, %v9474
      %v9482 = vpack.c.b16 %v9477, %v9476
      %v9483 = vpack.c.b16 %v9479, %v9478
      %v9489 = vsel %vm970, %v9343, 0
      %v9492 = vsel %vm970, %v9351, 0
      %v9495 = vsel %vm970, %v9359, 0
      %v9498 = vsel %vm970, %v9367, 0
      %v9501 = vsel %vm970, %v9375, 0
      %v9504 = vsel %vm970, %v9383, 0
      %v9507 = vsel %vm970, %v9391, 0
      %v9510 = vsel %vm970, %v9399, 0
      %v9513 = vsel %vm970, %v9407, 0
      %v9516 = vsel %vm970, %v9415, 0
      %v9519 = vsel %vm970, %v9423, 0
      %v9522 = vsel %vm970, %v9431, 0
      %v9525 = vsel %vm970, %v9439, 0
      %v9528 = vsel %vm970, %v9447, 0
      %v9531 = vsel %vm970, %v9455, 0
      %v9534 = vsel %vm970, %v9463, 0
      %9536 = vmatprep.subr.bf16.mxu0 0
      %9537 = vmatpush1.bf16.msra.mxu0 0
      %9538 = vmatprep.subr.bf16.mxu0 0
      %9539 = vmatpush1.bf16.msra.mxu0 0
      %9540 = vmatprep.subr.bf16.mxu0 0
      %9541 = vmatpush1.bf16.msra.mxu0 0
      %9542 = vmatprep.subr.bf16.mxu0 0
      %9543 = vmatpush1.bf16.msra.mxu0 0
      %9544 = vmatprep.subr.bf16.mxu0 0
      %9545 = vmatpush1.bf16.msra.mxu0 %v9483
      %9546 = vmatprep.subr.bf16.mxu0 0
      %9547 = vmatpush1.bf16.msra.mxu0 %v9482
      %9548 = vmatprep.subr.bf16.mxu0 0
      %9549 = vmatpush1.bf16.msra.mxu0 %v9481
      %9550 = vmatprep.subr.bf16.mxu0 0
      %9551 = vmatpush1.bf16.msra.mxu0 %v9480
      %9552 = vmatprep.subr.bf16.mxu0 0
      %9553 = vmatpush2.bf16.msra.mxu0 0
      %9554 = vmatprep.subr.bf16.mxu0 0
      %9555 = vmatpush2.bf16.msra.mxu0 0
      %9556 = vmatprep.subr.bf16.mxu0 0
      %9557 = vmatpush2.bf16.msra.mxu0 0
      %9558 = vmatprep.subr.bf16.mxu0 0
      %9559 = vmatpush2.bf16.msra.mxu0 0
      %9560 = vmatprep.subr.bf16.mxu0 0
      %9561 = vmatpush2.bf16.msra.mxu0 0
      %9562 = vmatprep.subr.bf16.mxu0 0
      %9563 = vmatpush2.bf16.msra.mxu0 0
      %9564 = vmatprep.subr.bf16.mxu0 0
      %9565 = vmatpush2.bf16.msra.mxu0 0
      %9566 = vmatprep.subr.bf16.mxu0 0
      %9567 = vmatpush2.bf16.msra.mxu0 0
      %9568 = vmatprep.mubr.bf16.mxu0 0
      %9569 = vmatmul.mubr.bf16.gmra.mxu0 %v9489
      %v9570 = vpop.f32.mrf.mxu0
      %v9571 = vadd.f32 %v9123, %v9570
      %v9572 = vpop.f32.mrf.mxu0
      %v9573 = vpop.f32.mrf.mxu0
      %v9574 = vadd.f32 %v9126, %v9573
      %v9575 = vpop.f32.mrf.mxu0
      %9576 = vmatprep.mubr.bf16.mxu0 0
      %9577 = vmatmul.mubr.bf16.gmra.mxu0 %v9492
      %v9578 = vpop.f32.mrf.mxu0
      %v9579 = vadd.f32 %v9131, %v9578
      %v9580 = vpop.f32.mrf.mxu0
      %v9581 = vpop.f32.mrf.mxu0
      %v9582 = vadd.f32 %v9134, %v9581
      %v9583 = vpop.f32.mrf.mxu0
      %9584 = vmatprep.mubr.bf16.mxu0 0
      %9585 = vmatmul.mubr.bf16.gmra.mxu0 %v9495
      %v9586 = vpop.f32.mrf.mxu0
      %v9587 = vadd.f32 %v9139, %v9586
      %v9588 = vpop.f32.mrf.mxu0
      %v9589 = vpop.f32.mrf.mxu0
      %v9590 = vadd.f32 %v9142, %v9589
      %v9591 = vpop.f32.mrf.mxu0
      %9592 = vmatprep.mubr.bf16.mxu0 0
      %9593 = vmatmul.mubr.bf16.gmra.mxu0 %v9498
      %v9594 = vpop.f32.mrf.mxu0
      %v9595 = vadd.f32 %v9147, %v9594
      %v9596 = vpop.f32.mrf.mxu0
      %v9597 = vpop.f32.mrf.mxu0
      %v9598 = vadd.f32 %v9150, %v9597
      %v9599 = vpop.f32.mrf.mxu0
      %9600 = vmatprep.mubr.bf16.mxu0 0
      %9601 = vmatmul.mubr.bf16.gmra.mxu0 %v9501
      %v9602 = vpop.f32.mrf.mxu0
      %v9603 = vadd.f32 %v9155, %v9602
      %v9604 = vpop.f32.mrf.mxu0
      %v9605 = vpop.f32.mrf.mxu0
      %v9606 = vadd.f32 %v9158, %v9605
      %v9607 = vpop.f32.mrf.mxu0
      %9608 = vmatprep.mubr.bf16.mxu0 0
      %9609 = vmatmul.mubr.bf16.gmra.mxu0 %v9504
      %v9610 = vpop.f32.mrf.mxu0
      %v9611 = vadd.f32 %v9163, %v9610
      %v9612 = vpop.f32.mrf.mxu0
      %v9613 = vpop.f32.mrf.mxu0
      %v9614 = vadd.f32 %v9166, %v9613
      %v9615 = vpop.f32.mrf.mxu0
      %9616 = vmatprep.mubr.bf16.mxu0 0
      %9617 = vmatmul.mubr.bf16.gmra.mxu0 %v9507
      %v9618 = vpop.f32.mrf.mxu0
      %v9619 = vadd.f32 %v9171, %v9618
      %v9620 = vpop.f32.mrf.mxu0
      %v9621 = vpop.f32.mrf.mxu0
      %v9622 = vadd.f32 %v9174, %v9621
      %v9623 = vpop.f32.mrf.mxu0
      %9624 = vmatprep.mubr.bf16.mxu0 0
      %9625 = vmatmul.mubr.bf16.gmra.mxu0 %v9510
      %v9626 = vpop.f32.mrf.mxu0
      %v9627 = vadd.f32 %v9179, %v9626
      %v9628 = vpop.f32.mrf.mxu0
      %v9629 = vpop.f32.mrf.mxu0
      %v9630 = vadd.f32 %v9182, %v9629
      %v9631 = vpop.f32.mrf.mxu0
      %9632 = vmatprep.mubr.bf16.mxu0 0
      %9633 = vmatmul.mubr.bf16.gmra.mxu0 %v9513
      %v9634 = vpop.f32.mrf.mxu0
      %v9635 = vadd.f32 %v9187, %v9634
      %v9636 = vpop.f32.mrf.mxu0
      %v9637 = vpop.f32.mrf.mxu0
      %v9638 = vadd.f32 %v9190, %v9637
      %v9639 = vpop.f32.mrf.mxu0
      %9640 = vmatprep.mubr.bf16.mxu0 0
      %9641 = vmatmul.mubr.bf16.gmra.mxu0 %v9516
      %v9642 = vpop.f32.mrf.mxu0
      %v9643 = vadd.f32 %v9195, %v9642
      %v9644 = vpop.f32.mrf.mxu0
      %v9645 = vpop.f32.mrf.mxu0
      %v9646 = vadd.f32 %v9198, %v9645
      %v9647 = vpop.f32.mrf.mxu0
      %9648 = vmatprep.mubr.bf16.mxu0 0
      %9649 = vmatmul.mubr.bf16.gmra.mxu0 %v9519
      %v9650 = vpop.f32.mrf.mxu0
      %v9651 = vadd.f32 %v9203, %v9650
      %v9652 = vpop.f32.mrf.mxu0
      %v9653 = vpop.f32.mrf.mxu0
      %v9654 = vadd.f32 %v9206, %v9653
      %v9655 = vpop.f32.mrf.mxu0
      %9656 = vmatprep.mubr.bf16.mxu0 0
      %9657 = vmatmul.mubr.bf16.gmra.mxu0 %v9522
      %v9658 = vpop.f32.mrf.mxu0
      %v9659 = vadd.f32 %v9211, %v9658
      %v9660 = vpop.f32.mrf.mxu0
      %v9661 = vpop.f32.mrf.mxu0
      %v9662 = vadd.f32 %v9214, %v9661
      %v9663 = vpop.f32.mrf.mxu0
      %9664 = vmatprep.mubr.bf16.mxu0 0
      %9665 = vmatmul.mubr.bf16.gmra.mxu0 %v9525
      %v9666 = vpop.f32.mrf.mxu0
      %v9667 = vadd.f32 %v9219, %v9666
      %v9668 = vpop.f32.mrf.mxu0
      %v9669 = vpop.f32.mrf.mxu0
      %v9670 = vadd.f32 %v9222, %v9669
      %v9671 = vpop.f32.mrf.mxu0
      %9672 = vmatprep.mubr.bf16.mxu0 0
      %9673 = vmatmul.mubr.bf16.gmra.mxu0 %v9528
      %v9674 = vpop.f32.mrf.mxu0
      %v9675 = vadd.f32 %v9227, %v9674
      %v9676 = vpop.f32.mrf.mxu0
      %v9677 = vpop.f32.mrf.mxu0
      %v9678 = vadd.f32 %v9230, %v9677
      %v9679 = vpop.f32.mrf.mxu0
      %9680 = vmatprep.mubr.bf16.mxu0 0
      %9681 = vmatmul.mubr.bf16.gmra.mxu0 %v9531
      %v9682 = vpop.f32.mrf.mxu0
      %v9683 = vadd.f32 %v9235, %v9682
      %v9684 = vpop.f32.mrf.mxu0
      %v9685 = vpop.f32.mrf.mxu0
      %v9686 = vadd.f32 %v9238, %v9685
      %v9687 = vpop.f32.mrf.mxu0
      %9688 = vmatprep.mubr.bf16.mxu0 0
      %9689 = vmatmul.mubr.bf16.gmra.mxu0 %v9534
      %v9690 = vpop.f32.mrf.mxu0
      %v9691 = vadd.f32 %v9243, %v9690
      %v9692 = vpop.f32.mrf.mxu0
      %v9693 = vpop.f32.mrf.mxu0
      %v9694 = vadd.f32 %v9246, %v9693
      %v9695 = vpop.f32.mrf.mxu0
      %9696 = vdwg.mxu0
      %v9697 = vld [vmem:[%s192 + $0x10] sm:$0xf]
      %v9698 = vld [vmem:[%s192 + $0x14] sm:$0xf]
      %v9699 = vld [vmem:[%s192 + $0x18] sm:$0xf]
      %v9700 = vld [vmem:[%s192 + $0x1c] sm:$0xf]
      %v9701 = vld [vmem:[%s192 + $0x20] sm:$0xf]
      %v9702 = vld [vmem:[%s192 + $0x24] sm:$0xf]
      %v9703 = vld [vmem:[%s192 + $0x28] sm:$0xf]
      %v9704 = vld [vmem:[%s192 + $0x2c] sm:$0xf]
      %v9705 = vld [vmem:[%s192 + $0x30] sm:$0xf]
      %v9706 = vld [vmem:[%s192 + $0x34] sm:$0xf]
      %v9707 = vld [vmem:[%s192 + $0x38] sm:$0xf]
      %v9708 = vld [vmem:[%s192 + $0x3c] sm:$0xf]
      %v9709 = vld [vmem:[%s192 + $0x40] sm:$0xf]
      %v9710 = vld [vmem:[%s192 + $0x44] sm:$0xf]
      %v9711 = vld [vmem:[%s192 + $0x48] sm:$0xf]
      %v9712 = vld [vmem:[%s192 + $0x4c] sm:$0xf]
      %v9713 = vld [vmem:[%s192 + $0x50] sm:$0xf]
      %v9714 = vld [vmem:[%s192 + $0x54] sm:$0xf]
      %v9715 = vld [vmem:[%s192 + $0x58] sm:$0xf]
      %v9716 = vld [vmem:[%s192 + $0x5c] sm:$0xf]
      %v9717 = vld [vmem:[%s192 + $0x60] sm:$0xf]
      %v9718 = vld [vmem:[%s192 + $0x64] sm:$0xf]
      %v9719 = vld [vmem:[%s192 + $0x68] sm:$0xf]
      %v9720 = vld [vmem:[%s192 + $0x6c] sm:$0xf]
      %v9721 = vld [vmem:[%s192 + $0x70] sm:$0xf]
      %v9722 = vld [vmem:[%s192 + $0x74] sm:$0xf]
      %v9723 = vld [vmem:[%s192 + $0x78] sm:$0xf]
      %v9724 = vld [vmem:[%s192 + $0x7c] sm:$0xf]
      %v9725 = vld [vmem:[%s192 + $0x80] sm:$0xf]
      %v9726 = vld [vmem:[%s192 + $0x84] sm:$0xf]
      %v9727 = vld [vmem:[%s192 + $0x88] sm:$0xf]
      %v9728 = vld [vmem:[%s192 + $0x8c] sm:$0xf]
      %v9729 = vld [vmem:[%s192 + $0x90] sm:$0x1]
      %s9730 = scalar_lea.vmem %s2, 448
      %v9731 = vld [vmem:[%s9730] sm:$0xf]
      %v9732 = vld [vmem:[%s9730 + $0x4] sm:$0xf]
      %v9733 = vld [vmem:[%s9730 + $0x8] sm:$0xf]
      %v9734 = vld [vmem:[%s9730 + $0xc] sm:$0xf]
      %v9735 = vld [vmem:[%s9730 + $0x10] sm:$0xf]
      %v9736 = vld [vmem:[%s9730 + $0x14] sm:$0xf]
      %v9737 = vld [vmem:[%s9730 + $0x18] sm:$0xf]
      %v9738 = vld [vmem:[%s9730 + $0x1c] sm:$0xf]
      %v9772 = vunpack.c.l.b16 %v9697
      %v9773 = vunpack.c.l.b16 %v9698
      %v9774 = vunpack.c.l.b16 %v9699
      %v9775 = vunpack.c.l.b16 %v9700
      %v9776 = vunpack.c.l.b16 %v9701
      %v9777 = vunpack.c.l.b16 %v9702
      %v9778 = vunpack.c.l.b16 %v9703
      %v9779 = vunpack.c.l.b16 %v9704
      %v9780 = vunpack.c.l.b16 %v9705
      %v9781 = vunpack.c.l.b16 %v9706
      %v9782 = vunpack.c.l.b16 %v9707
      %v9783 = vunpack.c.l.b16 %v9708
      %v9784 = vunpack.c.l.b16 %v9709
      %v9785 = vunpack.c.l.b16 %v9710
      %v9786 = vunpack.c.l.b16 %v9711
      %v9787 = vunpack.c.l.b16 %v9712
      %v9788 = vunpack.c.l.b16 %v9713
      %v9789 = vunpack.c.l.b16 %v9714
      %v9790 = vunpack.c.l.b16 %v9715
      %v9791 = vunpack.c.l.b16 %v9716
      %v9792 = vunpack.c.l.b16 %v9717
      %v9793 = vunpack.c.l.b16 %v9718
      %v9794 = vunpack.c.l.b16 %v9719
      %v9795 = vunpack.c.l.b16 %v9720
      %v9796 = vunpack.c.l.b16 %v9721
      %v9797 = vunpack.c.l.b16 %v9722
      %v9798 = vunpack.c.l.b16 %v9723
      %v9799 = vunpack.c.l.b16 %v9724
      %v9800 = vunpack.c.l.b16 %v9725
      %v9801 = vunpack.c.l.b16 %v9726
      %v9802 = vunpack.c.l.b16 %v9727
      %v9803 = vunpack.c.l.b16 %v9728
      %v9804 = vunpack.c.l.b16 %v9729
      %v9805 = vpack.c.b16 %v9773, %v9772
      %v9806 = vpack.c.b16 %v9775, %v9774
      %v9807 = vpack.c.b16 %v9777, %v9776
      %v9808 = vpack.c.b16 %v9779, %v9778
      %v9809 = vpack.c.b16 %v9781, %v9780
      %v9810 = vpack.c.b16 %v9783, %v9782
      %v9811 = vpack.c.b16 %v9785, %v9784
      %v9812 = vpack.c.b16 %v9787, %v9786
      %v9813 = vpack.c.b16 %v9789, %v9788
      %v9814 = vpack.c.b16 %v9791, %v9790
      %v9815 = vpack.c.b16 %v9793, %v9792
      %v9816 = vpack.c.b16 %v9795, %v9794
      %v9817 = vpack.c.b16 %v9797, %v9796
      %v9818 = vpack.c.b16 %v9799, %v9798
      %v9819 = vpack.c.b16 %v9801, %v9800
      %v9820 = vpack.c.b16 %v9803, %v9802
      %v9821 = vpack.c.b16 %v9804, %v9804
      %v9823 = vshrl.u32 %v9805, 16
      %v9825 = vshll.u32 %v9805, 16
      %v9827 = vrot.slane %v9825, 1
      %v9828 = vor.u32 %v9823, %v9827
      %v9830 = vshll.u32 %v9806, 16
      %v9832 = vrot.slane %v9830, 1
      %v9833 = vsel %vm813, %v9828, %v9832
      %v9834 = vshrl.u32 %v9806, 16
      %v9836 = vor.u32 %v9834, %v9832
      %v9838 = vshll.u32 %v9807, 16
      %v9840 = vrot.slane %v9838, 1
      %v9841 = vsel %vm813, %v9836, %v9840
      %v9842 = vshrl.u32 %v9807, 16
      %v9844 = vor.u32 %v9842, %v9840
      %v9846 = vshll.u32 %v9808, 16
      %v9848 = vrot.slane %v9846, 1
      %v9849 = vsel %vm813, %v9844, %v9848
      %v9850 = vshrl.u32 %v9808, 16
      %v9852 = vor.u32 %v9850, %v9848
      %v9854 = vshll.u32 %v9809, 16
      %v9856 = vrot.slane %v9854, 1
      %v9857 = vsel %vm813, %v9852, %v9856
      %v9858 = vshrl.u32 %v9809, 16
      %v9860 = vor.u32 %v9858, %v9856
      %v9862 = vshll.u32 %v9810, 16
      %v9864 = vrot.slane %v9862, 1
      %v9865 = vsel %vm813, %v9860, %v9864
      %v9866 = vshrl.u32 %v9810, 16
      %v9868 = vor.u32 %v9866, %v9864
      %v9870 = vshll.u32 %v9811, 16
      %v9872 = vrot.slane %v9870, 1
      %v9873 = vsel %vm813, %v9868, %v9872
      %v9874 = vshrl.u32 %v9811, 16
      %v9876 = vor.u32 %v9874, %v9872
      %v9878 = vshll.u32 %v9812, 16
      %v9880 = vrot.slane %v9878, 1
      %v9881 = vsel %vm813, %v9876, %v9880
      %v9882 = vshrl.u32 %v9812, 16
      %v9884 = vor.u32 %v9882, %v9880
      %v9886 = vshll.u32 %v9813, 16
      %v9888 = vrot.slane %v9886, 1
      %v9889 = vsel %vm813, %v9884, %v9888
      %v9890 = vshrl.u32 %v9813, 16
      %v9892 = vor.u32 %v9890, %v9888
      %v9894 = vshll.u32 %v9814, 16
      %v9896 = vrot.slane %v9894, 1
      %v9897 = vsel %vm813, %v9892, %v9896
      %v9898 = vshrl.u32 %v9814, 16
      %v9900 = vor.u32 %v9898, %v9896
      %v9902 = vshll.u32 %v9815, 16
      %v9904 = vrot.slane %v9902, 1
      %v9905 = vsel %vm813, %v9900, %v9904
      %v9906 = vshrl.u32 %v9815, 16
      %v9908 = vor.u32 %v9906, %v9904
      %v9910 = vshll.u32 %v9816, 16
      %v9912 = vrot.slane %v9910, 1
      %v9913 = vsel %vm813, %v9908, %v9912
      %v9914 = vshrl.u32 %v9816, 16
      %v9916 = vor.u32 %v9914, %v9912
      %v9918 = vshll.u32 %v9817, 16
      %v9920 = vrot.slane %v9918, 1
      %v9921 = vsel %vm813, %v9916, %v9920
      %v9922 = vshrl.u32 %v9817, 16
      %v9924 = vor.u32 %v9922, %v9920
      %v9926 = vshll.u32 %v9818, 16
      %v9928 = vrot.slane %v9926, 1
      %v9929 = vsel %vm813, %v9924, %v9928
      %v9930 = vshrl.u32 %v9818, 16
      %v9932 = vor.u32 %v9930, %v9928
      %v9934 = vshll.u32 %v9819, 16
      %v9936 = vrot.slane %v9934, 1
      %v9937 = vsel %vm813, %v9932, %v9936
      %v9938 = vshrl.u32 %v9819, 16
      %v9940 = vor.u32 %v9938, %v9936
      %v9942 = vshll.u32 %v9820, 16
      %v9944 = vrot.slane %v9942, 1
      %v9945 = vsel %vm813, %v9940, %v9944
      %v9946 = vshrl.u32 %v9820, 16
      %v9948 = vor.u32 %v9946, %v9944
      %v9950 = vshll.u32 %v9821, 16
      %v9952 = vrot.slane %v9950, 1
      %v9953 = vsel %vm813, %v9948, %v9952
      %v9962 = vunpack.c.l.b16 %v9731
      %v9963 = vunpack.c.l.b16 %v9732
      %v9964 = vunpack.c.l.b16 %v9733
      %v9965 = vunpack.c.l.b16 %v9734
      %v9966 = vunpack.c.l.b16 %v9735
      %v9967 = vunpack.c.l.b16 %v9736
      %v9968 = vunpack.c.l.b16 %v9737
      %v9969 = vunpack.c.l.b16 %v9738
      %v9970 = vpack.c.b16 %v9963, %v9962
      %v9971 = vpack.c.b16 %v9965, %v9964
      %v9972 = vpack.c.b16 %v9967, %v9966
      %v9973 = vpack.c.b16 %v9969, %v9968
      %v9979 = vsel %vm970, %v9833, 0
      %v9982 = vsel %vm970, %v9841, 0
      %v9985 = vsel %vm970, %v9849, 0
      %v9988 = vsel %vm970, %v9857, 0
      %v9991 = vsel %vm970, %v9865, 0
      %v9994 = vsel %vm970, %v9873, 0
      %v9997 = vsel %vm970, %v9881, 0
      %v10000 = vsel %vm970, %v9889, 0
      %v10003 = vsel %vm970, %v9897, 0
      %v10006 = vsel %vm970, %v9905, 0
      %v10009 = vsel %vm970, %v9913, 0
      %v10012 = vsel %vm970, %v9921, 0
      %v10015 = vsel %vm970, %v9929, 0
      %v10018 = vsel %vm970, %v9937, 0
      %v10021 = vsel %vm970, %v9945, 0
      %v10024 = vsel %vm970, %v9953, 0
      %10026 = vmatprep.subr.bf16.mxu0 0
      %10027 = vmatpush1.bf16.msra.mxu0 0
      %10028 = vmatprep.subr.bf16.mxu0 0
      %10029 = vmatpush1.bf16.msra.mxu0 0
      %10030 = vmatprep.subr.bf16.mxu0 0
      %10031 = vmatpush1.bf16.msra.mxu0 0
      %10032 = vmatprep.subr.bf16.mxu0 0
      %10033 = vmatpush1.bf16.msra.mxu0 0
      %10034 = vmatprep.subr.bf16.mxu0 0
      %10035 = vmatpush1.bf16.msra.mxu0 %v9973
      %10036 = vmatprep.subr.bf16.mxu0 0
      %10037 = vmatpush1.bf16.msra.mxu0 %v9972
      %10038 = vmatprep.subr.bf16.mxu0 0
      %10039 = vmatpush1.bf16.msra.mxu0 %v9971
      %10040 = vmatprep.subr.bf16.mxu0 0
      %10041 = vmatpush1.bf16.msra.mxu0 %v9970
      %10042 = vmatprep.subr.bf16.mxu0 0
      %10043 = vmatpush2.bf16.msra.mxu0 0
      %10044 = vmatprep.subr.bf16.mxu0 0
      %10045 = vmatpush2.bf16.msra.mxu0 0
      %10046 = vmatprep.subr.bf16.mxu0 0
      %10047 = vmatpush2.bf16.msra.mxu0 0
      %10048 = vmatprep.subr.bf16.mxu0 0
      %10049 = vmatpush2.bf16.msra.mxu0 0
      %10050 = vmatprep.subr.bf16.mxu0 0
      %10051 = vmatpush2.bf16.msra.mxu0 0
      %10052 = vmatprep.subr.bf16.mxu0 0
      %10053 = vmatpush2.bf16.msra.mxu0 0
      %10054 = vmatprep.subr.bf16.mxu0 0
      %10055 = vmatpush2.bf16.msra.mxu0 0
      %10056 = vmatprep.subr.bf16.mxu0 0
      %10057 = vmatpush2.bf16.msra.mxu0 0
      %10058 = vmatprep.mubr.bf16.mxu0 0
      %10059 = vmatmul.mubr.bf16.gmra.mxu0 %v9979
      %v10060 = vpop.f32.mrf.mxu0
      %v10061 = vadd.f32 0.0, %v10060
      %v10062 = vpop.f32.mrf.mxu0
      %v10063 = vpop.f32.mrf.mxu0
      %v10064 = vadd.f32 0.0, %v10063
      %v10065 = vpop.f32.mrf.mxu0
      %10066 = vmatprep.mubr.bf16.mxu0 0
      %10067 = vmatmul.mubr.bf16.gmra.mxu0 %v9982
      %v10068 = vpop.f32.mrf.mxu0
      %v10069 = vadd.f32 0.0, %v10068
      %v10070 = vpop.f32.mrf.mxu0
      %v10071 = vpop.f32.mrf.mxu0
      %v10072 = vadd.f32 0.0, %v10071
      %v10073 = vpop.f32.mrf.mxu0
      %10074 = vmatprep.mubr.bf16.mxu0 0
      %10075 = vmatmul.mubr.bf16.gmra.mxu0 %v9985
      %v10076 = vpop.f32.mrf.mxu0
      %v10077 = vadd.f32 0.0, %v10076
      %v10078 = vpop.f32.mrf.mxu0
      %v10079 = vpop.f32.mrf.mxu0
      %v10080 = vadd.f32 0.0, %v10079
      %v10081 = vpop.f32.mrf.mxu0
      %10082 = vmatprep.mubr.bf16.mxu0 0
      %10083 = vmatmul.mubr.bf16.gmra.mxu0 %v9988
      %v10084 = vpop.f32.mrf.mxu0
      %v10085 = vadd.f32 0.0, %v10084
      %v10086 = vpop.f32.mrf.mxu0
      %v10087 = vpop.f32.mrf.mxu0
      %v10088 = vadd.f32 0.0, %v10087
      %v10089 = vpop.f32.mrf.mxu0
      %10090 = vmatprep.mubr.bf16.mxu0 0
      %10091 = vmatmul.mubr.bf16.gmra.mxu0 %v9991
      %v10092 = vpop.f32.mrf.mxu0
      %v10093 = vadd.f32 0.0, %v10092
      %v10094 = vpop.f32.mrf.mxu0
      %v10095 = vpop.f32.mrf.mxu0
      %v10096 = vadd.f32 0.0, %v10095
      %v10097 = vpop.f32.mrf.mxu0
      %10098 = vmatprep.mubr.bf16.mxu0 0
      %10099 = vmatmul.mubr.bf16.gmra.mxu0 %v9994
      %v10100 = vpop.f32.mrf.mxu0
      %v10101 = vadd.f32 0.0, %v10100
      %v10102 = vpop.f32.mrf.mxu0
      %v10103 = vpop.f32.mrf.mxu0
      %v10104 = vadd.f32 0.0, %v10103
      %v10105 = vpop.f32.mrf.mxu0
      %10106 = vmatprep.mubr.bf16.mxu0 0
      %10107 = vmatmul.mubr.bf16.gmra.mxu0 %v9997
      %v10108 = vpop.f32.mrf.mxu0
      %v10109 = vadd.f32 0.0, %v10108
      %v10110 = vpop.f32.mrf.mxu0
      %v10111 = vpop.f32.mrf.mxu0
      %v10112 = vadd.f32 0.0, %v10111
      %v10113 = vpop.f32.mrf.mxu0
      %10114 = vmatprep.mubr.bf16.mxu0 0
      %10115 = vmatmul.mubr.bf16.gmra.mxu0 %v10000
      %v10116 = vpop.f32.mrf.mxu0
      %v10117 = vadd.f32 0.0, %v10116
      %v10118 = vpop.f32.mrf.mxu0
      %v10119 = vpop.f32.mrf.mxu0
      %v10120 = vadd.f32 0.0, %v10119
      %v10121 = vpop.f32.mrf.mxu0
      %10122 = vmatprep.mubr.bf16.mxu0 0
      %10123 = vmatmul.mubr.bf16.gmra.mxu0 %v10003
      %v10124 = vpop.f32.mrf.mxu0
      %v10125 = vadd.f32 0.0, %v10124
      %v10126 = vpop.f32.mrf.mxu0
      %v10127 = vpop.f32.mrf.mxu0
      %v10128 = vadd.f32 0.0, %v10127
      %v10129 = vpop.f32.mrf.mxu0
      %10130 = vmatprep.mubr.bf16.mxu0 0
      %10131 = vmatmul.mubr.bf16.gmra.mxu0 %v10006
      %v10132 = vpop.f32.mrf.mxu0
      %v10133 = vadd.f32 0.0, %v10132
      %v10134 = vpop.f32.mrf.mxu0
      %v10135 = vpop.f32.mrf.mxu0
      %v10136 = vadd.f32 0.0, %v10135
      %v10137 = vpop.f32.mrf.mxu0
      %10138 = vmatprep.mubr.bf16.mxu0 0
      %10139 = vmatmul.mubr.bf16.gmra.mxu0 %v10009
      %v10140 = vpop.f32.mrf.mxu0
      %v10141 = vadd.f32 0.0, %v10140
      %v10142 = vpop.f32.mrf.mxu0
      %v10143 = vpop.f32.mrf.mxu0
      %v10144 = vadd.f32 0.0, %v10143
      %v10145 = vpop.f32.mrf.mxu0
      %10146 = vmatprep.mubr.bf16.mxu0 0
      %10147 = vmatmul.mubr.bf16.gmra.mxu0 %v10012
      %v10148 = vpop.f32.mrf.mxu0
      %v10149 = vadd.f32 0.0, %v10148
      %v10150 = vpop.f32.mrf.mxu0
      %v10151 = vpop.f32.mrf.mxu0
      %v10152 = vadd.f32 0.0, %v10151
      %v10153 = vpop.f32.mrf.mxu0
      %10154 = vmatprep.mubr.bf16.mxu0 0
      %10155 = vmatmul.mubr.bf16.gmra.mxu0 %v10015
      %v10156 = vpop.f32.mrf.mxu0
      %v10157 = vadd.f32 0.0, %v10156
      %v10158 = vpop.f32.mrf.mxu0
      %v10159 = vpop.f32.mrf.mxu0
      %v10160 = vadd.f32 0.0, %v10159
      %v10161 = vpop.f32.mrf.mxu0
      %10162 = vmatprep.mubr.bf16.mxu0 0
      %10163 = vmatmul.mubr.bf16.gmra.mxu0 %v10018
      %v10164 = vpop.f32.mrf.mxu0
      %v10165 = vadd.f32 0.0, %v10164
      %v10166 = vpop.f32.mrf.mxu0
      %v10167 = vpop.f32.mrf.mxu0
      %v10168 = vadd.f32 0.0, %v10167
      %v10169 = vpop.f32.mrf.mxu0
      %10170 = vmatprep.mubr.bf16.mxu0 0
      %10171 = vmatmul.mubr.bf16.gmra.mxu0 %v10021
      %v10172 = vpop.f32.mrf.mxu0
      %v10173 = vadd.f32 0.0, %v10172
      %v10174 = vpop.f32.mrf.mxu0
      %v10175 = vpop.f32.mrf.mxu0
      %v10176 = vadd.f32 0.0, %v10175
      %v10177 = vpop.f32.mrf.mxu0
      %10178 = vmatprep.mubr.bf16.mxu0 0
      %10179 = vmatmul.mubr.bf16.gmra.mxu0 %v10024
      %v10180 = vpop.f32.mrf.mxu0
      %v10181 = vadd.f32 0.0, %v10180
      %v10182 = vpop.f32.mrf.mxu0
      %v10183 = vpop.f32.mrf.mxu0
      %v10184 = vadd.f32 0.0, %v10183
      %v10185 = vpop.f32.mrf.mxu0
      %10186 = vdwg.mxu0
      %v10187 = vadd.f32 %v9571, %v10061
      %v10188 = vadd.f32 %v9574, %v10064
      %v10189 = vadd.f32 %v9579, %v10069
      %v10190 = vadd.f32 %v9582, %v10072
      %v10191 = vadd.f32 %v9587, %v10077
      %v10192 = vadd.f32 %v9590, %v10080
      %v10193 = vadd.f32 %v9595, %v10085
      %v10194 = vadd.f32 %v9598, %v10088
      %v10195 = vadd.f32 %v9603, %v10093
      %v10196 = vadd.f32 %v9606, %v10096
      %v10197 = vadd.f32 %v9611, %v10101
      %v10198 = vadd.f32 %v9614, %v10104
      %v10199 = vadd.f32 %v9619, %v10109
      %v10200 = vadd.f32 %v9622, %v10112
      %v10201 = vadd.f32 %v9627, %v10117
      %v10202 = vadd.f32 %v9630, %v10120
      %v10203 = vadd.f32 %v9635, %v10125
      %v10204 = vadd.f32 %v9638, %v10128
      %v10205 = vadd.f32 %v9643, %v10133
      %v10206 = vadd.f32 %v9646, %v10136
      %v10207 = vadd.f32 %v9651, %v10141
      %v10208 = vadd.f32 %v9654, %v10144
      %v10209 = vadd.f32 %v9659, %v10149
      %v10210 = vadd.f32 %v9662, %v10152
      %v10211 = vadd.f32 %v9667, %v10157
      %v10212 = vadd.f32 %v9670, %v10160
      %v10213 = vadd.f32 %v9675, %v10165
      %v10214 = vadd.f32 %v9678, %v10168
      %v10215 = vadd.f32 %v9683, %v10173
      %v10216 = vadd.f32 %v9686, %v10176
      %v10217 = vadd.f32 %v9691, %v10181
      %v10218 = vadd.f32 %v9694, %v10184
      %v10219 = vld [vmem:[%s192 + $0x10] sm:$0xe]
      %v10220 = vld [vmem:[%s2963 + $0x10] sm:$0xe]
      %v10221 = vld [vmem:[%s2963 + $0x14] sm:$0xf]
      %v10222 = vld [vmem:[%s2963 + $0x18] sm:$0xf]
      %v10223 = vld [vmem:[%s2963 + $0x1c] sm:$0xf]
      %v10224 = vld [vmem:[%s2963 + $0x20] sm:$0xf]
      %v10225 = vld [vmem:[%s2963 + $0x24] sm:$0xf]
      %v10226 = vld [vmem:[%s2963 + $0x28] sm:$0xf]
      %v10227 = vld [vmem:[%s2963 + $0x2c] sm:$0xf]
      %v10228 = vld [vmem:[%s2963 + $0x30] sm:$0xf]
      %v10229 = vld [vmem:[%s2963 + $0x34] sm:$0xf]
      %v10230 = vld [vmem:[%s2963 + $0x38] sm:$0xf]
      %v10231 = vld [vmem:[%s2963 + $0x3c] sm:$0xf]
      %v10232 = vld [vmem:[%s2963 + $0x40] sm:$0xf]
      %v10233 = vld [vmem:[%s2963 + $0x44] sm:$0xf]
      %v10234 = vld [vmem:[%s2963 + $0x48] sm:$0xf]
      %v10235 = vld [vmem:[%s2963 + $0x4c] sm:$0xf]
      %v10236 = vld [vmem:[%s2963 + $0x50] sm:$0xf]
      %v10237 = vld [vmem:[%s2963 + $0x54] sm:$0xf]
      %v10238 = vld [vmem:[%s2963 + $0x58] sm:$0xf]
      %v10239 = vld [vmem:[%s2963 + $0x5c] sm:$0xf]
      %v10240 = vld [vmem:[%s2963 + $0x60] sm:$0xf]
      %v10241 = vld [vmem:[%s2963 + $0x64] sm:$0xf]
      %v10242 = vld [vmem:[%s2963 + $0x68] sm:$0xf]
      %v10243 = vld [vmem:[%s2963 + $0x6c] sm:$0xf]
      %v10244 = vld [vmem:[%s2963 + $0x70] sm:$0xf]
      %v10245 = vld [vmem:[%s2963 + $0x74] sm:$0xf]
      %v10246 = vld [vmem:[%s2963 + $0x78] sm:$0xf]
      %v10247 = vld [vmem:[%s2963 + $0x7c] sm:$0xf]
      %v10248 = vld [vmem:[%s2963 + $0x80] sm:$0xf]
      %v10249 = vld [vmem:[%s2963 + $0x84] sm:$0xf]
      %v10250 = vld [vmem:[%s2963 + $0x88] sm:$0xf]
      %v10251 = vld [vmem:[%s2963 + $0x8c] sm:$0xf]
      %v10252 = vld [vmem:[%s2963 + $0x90] sm:$0x1]
      %10254 = vset.pattern.permute.xlu0 0
      %10255 = vperm.xlu0 %10254, %v10220
      %v10256 = vpop.permute.xlu0 %10255
      %v10259 = vunpack.c.l.s4 839922192
      %v10260 = vunpack.c.0.s8 %v10259
      %v10261 = vlaneseq
      %v10262 = vshrl.u32 %v10261, 7
      %v10263 = vsub.s32 %v10260, %v10262
      %v10264 = vrot.slane %v10256, %v10263
      %10266 = vset.pattern.permute.xlu0 0
      %10267 = vperm.xlu0 %10266, %v10221
      %v10268 = vpop.permute.xlu0 %10267
      %v10271 = vunpack.c.l.s4 839922192
      %v10272 = vunpack.c.0.s8 %v10271
      %v10273 = vlaneseq
      %v10274 = vshrl.u32 %v10273, 7
      %v10275 = vsub.s32 %v10272, %v10274
      %v10276 = vrot.slane %v10268, %v10275
      %10278 = vset.pattern.permute.xlu0 0
      %10279 = vperm.xlu0 %10278, %v10222
      %v10280 = vpop.permute.xlu0 %10279
      %v10283 = vunpack.c.l.s4 839922192
      %v10284 = vunpack.c.0.s8 %v10283
      %v10285 = vlaneseq
      %v10286 = vshrl.u32 %v10285, 7
      %v10287 = vsub.s32 %v10284, %v10286
      %v10288 = vrot.slane %v10280, %v10287
      %10290 = vset.pattern.permute.xlu0 0
      %10291 = vperm.xlu0 %10290, %v10223
      %v10292 = vpop.permute.xlu0 %10291
      %v10295 = vunpack.c.l.s4 839922192
      %v10296 = vunpack.c.0.s8 %v10295
      %v10297 = vlaneseq
      %v10298 = vshrl.u32 %v10297, 7
      %v10299 = vsub.s32 %v10296, %v10298
      %v10300 = vrot.slane %v10292, %v10299
      %10302 = vset.pattern.permute.xlu0 0
      %10303 = vperm.xlu0 %10302, %v10224
      %v10304 = vpop.permute.xlu0 %10303
      %v10307 = vunpack.c.l.s4 839922192
      %v10308 = vunpack.c.0.s8 %v10307
      %v10309 = vlaneseq
      %v10310 = vshrl.u32 %v10309, 7
      %v10311 = vsub.s32 %v10308, %v10310
      %v10312 = vrot.slane %v10304, %v10311
      %10314 = vset.pattern.permute.xlu0 0
      %10315 = vperm.xlu0 %10314, %v10225
      %v10316 = vpop.permute.xlu0 %10315
      %v10319 = vunpack.c.l.s4 839922192
      %v10320 = vunpack.c.0.s8 %v10319
      %v10321 = vlaneseq
      %v10322 = vshrl.u32 %v10321, 7
      %v10323 = vsub.s32 %v10320, %v10322
      %v10324 = vrot.slane %v10316, %v10323
      %10326 = vset.pattern.permute.xlu0 0
      %10327 = vperm.xlu0 %10326, %v10226
      %v10328 = vpop.permute.xlu0 %10327
      %v10331 = vunpack.c.l.s4 839922192
      %v10332 = vunpack.c.0.s8 %v10331
      %v10333 = vlaneseq
      %v10334 = vshrl.u32 %v10333, 7
      %v10335 = vsub.s32 %v10332, %v10334
      %v10336 = vrot.slane %v10328, %v10335
      %10338 = vset.pattern.permute.xlu0 0
      %10339 = vperm.xlu0 %10338, %v10227
      %v10340 = vpop.permute.xlu0 %10339
      %v10343 = vunpack.c.l.s4 839922192
      %v10344 = vunpack.c.0.s8 %v10343
      %v10345 = vlaneseq
      %v10346 = vshrl.u32 %v10345, 7
      %v10347 = vsub.s32 %v10344, %v10346
      %v10348 = vrot.slane %v10340, %v10347
      %10350 = vset.pattern.permute.xlu0 0
      %10351 = vperm.xlu0 %10350, %v10228
      %v10352 = vpop.permute.xlu0 %10351
      %v10355 = vunpack.c.l.s4 839922192
      %v10356 = vunpack.c.0.s8 %v10355
      %v10357 = vlaneseq
      %v10358 = vshrl.u32 %v10357, 7
      %v10359 = vsub.s32 %v10356, %v10358
      %v10360 = vrot.slane %v10352, %v10359
      %10362 = vset.pattern.permute.xlu0 0
      %10363 = vperm.xlu0 %10362, %v10229
      %v10364 = vpop.permute.xlu0 %10363
      %v10367 = vunpack.c.l.s4 839922192
      %v10368 = vunpack.c.0.s8 %v10367
      %v10369 = vlaneseq
      %v10370 = vshrl.u32 %v10369, 7
      %v10371 = vsub.s32 %v10368, %v10370
      %v10372 = vrot.slane %v10364, %v10371
      %10374 = vset.pattern.permute.xlu0 0
      %10375 = vperm.xlu0 %10374, %v10230
      %v10376 = vpop.permute.xlu0 %10375
      %v10379 = vunpack.c.l.s4 839922192
      %v10380 = vunpack.c.0.s8 %v10379
      %v10381 = vlaneseq
      %v10382 = vshrl.u32 %v10381, 7
      %v10383 = vsub.s32 %v10380, %v10382
      %v10384 = vrot.slane %v10376, %v10383
      %10386 = vset.pattern.permute.xlu0 0
      %10387 = vperm.xlu0 %10386, %v10231
      %v10388 = vpop.permute.xlu0 %10387
      %v10391 = vunpack.c.l.s4 839922192
      %v10392 = vunpack.c.0.s8 %v10391
      %v10393 = vlaneseq
      %v10394 = vshrl.u32 %v10393, 7
      %v10395 = vsub.s32 %v10392, %v10394
      %v10396 = vrot.slane %v10388, %v10395
      %10398 = vset.pattern.permute.xlu0 0
      %10399 = vperm.xlu0 %10398, %v10232
      %v10400 = vpop.permute.xlu0 %10399
      %v10403 = vunpack.c.l.s4 839922192
      %v10404 = vunpack.c.0.s8 %v10403
      %v10405 = vlaneseq
      %v10406 = vshrl.u32 %v10405, 7
      %v10407 = vsub.s32 %v10404, %v10406
      %v10408 = vrot.slane %v10400, %v10407
      %10410 = vset.pattern.permute.xlu0 0
      %10411 = vperm.xlu0 %10410, %v10233
      %v10412 = vpop.permute.xlu0 %10411
      %v10415 = vunpack.c.l.s4 839922192
      %v10416 = vunpack.c.0.s8 %v10415
      %v10417 = vlaneseq
      %v10418 = vshrl.u32 %v10417, 7
      %v10419 = vsub.s32 %v10416, %v10418
      %v10420 = vrot.slane %v10412, %v10419
      %10422 = vset.pattern.permute.xlu0 0
      %10423 = vperm.xlu0 %10422, %v10234
      %v10424 = vpop.permute.xlu0 %10423
      %v10427 = vunpack.c.l.s4 839922192
      %v10428 = vunpack.c.0.s8 %v10427
      %v10429 = vlaneseq
      %v10430 = vshrl.u32 %v10429, 7
      %v10431 = vsub.s32 %v10428, %v10430
      %v10432 = vrot.slane %v10424, %v10431
      %10434 = vset.pattern.permute.xlu0 0
      %10435 = vperm.xlu0 %10434, %v10235
      %v10436 = vpop.permute.xlu0 %10435
      %v10439 = vunpack.c.l.s4 839922192
      %v10440 = vunpack.c.0.s8 %v10439
      %v10441 = vlaneseq
      %v10442 = vshrl.u32 %v10441, 7
      %v10443 = vsub.s32 %v10440, %v10442
      %v10444 = vrot.slane %v10436, %v10443
      %10446 = vset.pattern.permute.xlu0 0
      %10447 = vperm.xlu0 %10446, %v10236
      %v10448 = vpop.permute.xlu0 %10447
      %v10451 = vunpack.c.l.s4 839922192
      %v10452 = vunpack.c.0.s8 %v10451
      %v10453 = vlaneseq
      %v10454 = vshrl.u32 %v10453, 7
      %v10455 = vsub.s32 %v10452, %v10454
      %v10456 = vrot.slane %v10448, %v10455
      %10458 = vset.pattern.permute.xlu0 0
      %10459 = vperm.xlu0 %10458, %v10237
      %v10460 = vpop.permute.xlu0 %10459
      %v10463 = vunpack.c.l.s4 839922192
      %v10464 = vunpack.c.0.s8 %v10463
      %v10465 = vlaneseq
      %v10466 = vshrl.u32 %v10465, 7
      %v10467 = vsub.s32 %v10464, %v10466
      %v10468 = vrot.slane %v10460, %v10467
      %10470 = vset.pattern.permute.xlu0 0
      %10471 = vperm.xlu0 %10470, %v10238
      %v10472 = vpop.permute.xlu0 %10471
      %v10475 = vunpack.c.l.s4 839922192
      %v10476 = vunpack.c.0.s8 %v10475
      %v10477 = vlaneseq
      %v10478 = vshrl.u32 %v10477, 7
      %v10479 = vsub.s32 %v10476, %v10478
      %v10480 = vrot.slane %v10472, %v10479
      %10482 = vset.pattern.permute.xlu0 0
      %10483 = vperm.xlu0 %10482, %v10239
      %v10484 = vpop.permute.xlu0 %10483
      %v10487 = vunpack.c.l.s4 839922192
      %v10488 = vunpack.c.0.s8 %v10487
      %v10489 = vlaneseq
      %v10490 = vshrl.u32 %v10489, 7
      %v10491 = vsub.s32 %v10488, %v10490
      %v10492 = vrot.slane %v10484, %v10491
      %10494 = vset.pattern.permute.xlu0 0
      %10495 = vperm.xlu0 %10494, %v10240
      %v10496 = vpop.permute.xlu0 %10495
      %v10499 = vunpack.c.l.s4 839922192
      %v10500 = vunpack.c.0.s8 %v10499
      %v10501 = vlaneseq
      %v10502 = vshrl.u32 %v10501, 7
      %v10503 = vsub.s32 %v10500, %v10502
      %v10504 = vrot.slane %v10496, %v10503
      %10506 = vset.pattern.permute.xlu0 0
      %10507 = vperm.xlu0 %10506, %v10241
      %v10508 = vpop.permute.xlu0 %10507
      %v10511 = vunpack.c.l.s4 839922192
      %v10512 = vunpack.c.0.s8 %v10511
      %v10513 = vlaneseq
      %v10514 = vshrl.u32 %v10513, 7
      %v10515 = vsub.s32 %v10512, %v10514
      %v10516 = vrot.slane %v10508, %v10515
      %10518 = vset.pattern.permute.xlu0 0
      %10519 = vperm.xlu0 %10518, %v10242
      %v10520 = vpop.permute.xlu0 %10519
      %v10523 = vunpack.c.l.s4 839922192
      %v10524 = vunpack.c.0.s8 %v10523
      %v10525 = vlaneseq
      %v10526 = vshrl.u32 %v10525, 7
      %v10527 = vsub.s32 %v10524, %v10526
      %v10528 = vrot.slane %v10520, %v10527
      %10530 = vset.pattern.permute.xlu0 0
      %10531 = vperm.xlu0 %10530, %v10243
      %v10532 = vpop.permute.xlu0 %10531
      %v10535 = vunpack.c.l.s4 839922192
      %v10536 = vunpack.c.0.s8 %v10535
      %v10537 = vlaneseq
      %v10538 = vshrl.u32 %v10537, 7
      %v10539 = vsub.s32 %v10536, %v10538
      %v10540 = vrot.slane %v10532, %v10539
      %10542 = vset.pattern.permute.xlu0 0
      %10543 = vperm.xlu0 %10542, %v10244
      %v10544 = vpop.permute.xlu0 %10543
      %v10547 = vunpack.c.l.s4 839922192
      %v10548 = vunpack.c.0.s8 %v10547
      %v10549 = vlaneseq
      %v10550 = vshrl.u32 %v10549, 7
      %v10551 = vsub.s32 %v10548, %v10550
      %v10552 = vrot.slane %v10544, %v10551
      %10554 = vset.pattern.permute.xlu0 0
      %10555 = vperm.xlu0 %10554, %v10245
      %v10556 = vpop.permute.xlu0 %10555
      %v10559 = vunpack.c.l.s4 839922192
      %v10560 = vunpack.c.0.s8 %v10559
      %v10561 = vlaneseq
      %v10562 = vshrl.u32 %v10561, 7
      %v10563 = vsub.s32 %v10560, %v10562
      %v10564 = vrot.slane %v10556, %v10563
      %10566 = vset.pattern.permute.xlu0 0
      %10567 = vperm.xlu0 %10566, %v10246
      %v10568 = vpop.permute.xlu0 %10567
      %v10571 = vunpack.c.l.s4 839922192
      %v10572 = vunpack.c.0.s8 %v10571
      %v10573 = vlaneseq
      %v10574 = vshrl.u32 %v10573, 7
      %v10575 = vsub.s32 %v10572, %v10574
      %v10576 = vrot.slane %v10568, %v10575
      %10578 = vset.pattern.permute.xlu0 0
      %10579 = vperm.xlu0 %10578, %v10247
      %v10580 = vpop.permute.xlu0 %10579
      %v10583 = vunpack.c.l.s4 839922192
      %v10584 = vunpack.c.0.s8 %v10583
      %v10585 = vlaneseq
      %v10586 = vshrl.u32 %v10585, 7
      %v10587 = vsub.s32 %v10584, %v10586
      %v10588 = vrot.slane %v10580, %v10587
      %10590 = vset.pattern.permute.xlu0 0
      %10591 = vperm.xlu0 %10590, %v10248
      %v10592 = vpop.permute.xlu0 %10591
      %v10595 = vunpack.c.l.s4 839922192
      %v10596 = vunpack.c.0.s8 %v10595
      %v10597 = vlaneseq
      %v10598 = vshrl.u32 %v10597, 7
      %v10599 = vsub.s32 %v10596, %v10598
      %v10600 = vrot.slane %v10592, %v10599
      %10602 = vset.pattern.permute.xlu0 0
      %10603 = vperm.xlu0 %10602, %v10249
      %v10604 = vpop.permute.xlu0 %10603
      %v10607 = vunpack.c.l.s4 839922192
      %v10608 = vunpack.c.0.s8 %v10607
      %v10609 = vlaneseq
      %v10610 = vshrl.u32 %v10609, 7
      %v10611 = vsub.s32 %v10608, %v10610
      %v10612 = vrot.slane %v10604, %v10611
      %10614 = vset.pattern.permute.xlu0 0
      %10615 = vperm.xlu0 %10614, %v10250
      %v10616 = vpop.permute.xlu0 %10615
      %v10619 = vunpack.c.l.s4 839922192
      %v10620 = vunpack.c.0.s8 %v10619
      %v10621 = vlaneseq
      %v10622 = vshrl.u32 %v10621, 7
      %v10623 = vsub.s32 %v10620, %v10622
      %v10624 = vrot.slane %v10616, %v10623
      %10626 = vset.pattern.permute.xlu0 0
      %10627 = vperm.xlu0 %10626, %v10251
      %v10628 = vpop.permute.xlu0 %10627
      %v10631 = vunpack.c.l.s4 839922192
      %v10632 = vunpack.c.0.s8 %v10631
      %v10633 = vlaneseq
      %v10634 = vshrl.u32 %v10633, 7
      %v10635 = vsub.s32 %v10632, %v10634
      %v10636 = vrot.slane %v10628, %v10635
      %10638 = vset.pattern.permute.xlu0 0
      %10639 = vperm.xlu0 %10638, %v10252
      %v10640 = vpop.permute.xlu0 %10639
      %v10643 = vunpack.c.l.s4 839922192
      %v10644 = vunpack.c.0.s8 %v10643
      %v10645 = vlaneseq
      %v10646 = vshrl.u32 %v10645, 7
      %v10647 = vsub.s32 %v10644, %v10646
      %v10648 = vrot.slane %v10640, %v10647
      %v10649 = vmul.bf16 %v10219, %v10264
      %v10650 = vmul.bf16 %v9698, %v10276
      %v10651 = vmul.bf16 %v9699, %v10288
      %v10652 = vmul.bf16 %v9700, %v10300
      %v10653 = vmul.bf16 %v9701, %v10312
      %v10654 = vmul.bf16 %v9702, %v10324
      %v10655 = vmul.bf16 %v9703, %v10336
      %v10656 = vmul.bf16 %v9704, %v10348
      %v10657 = vmul.bf16 %v9705, %v10360
      %v10658 = vmul.bf16 %v9706, %v10372
      %v10659 = vmul.bf16 %v9707, %v10384
      %v10660 = vmul.bf16 %v9708, %v10396
      %v10661 = vmul.bf16 %v9709, %v10408
      %v10662 = vmul.bf16 %v9710, %v10420
      %v10663 = vmul.bf16 %v9711, %v10432
      %v10664 = vmul.bf16 %v9712, %v10444
      %v10665 = vmul.bf16 %v9713, %v10456
      %v10666 = vmul.bf16 %v9714, %v10468
      %v10667 = vmul.bf16 %v9715, %v10480
      %v10668 = vmul.bf16 %v9716, %v10492
      %v10669 = vmul.bf16 %v9717, %v10504
      %v10670 = vmul.bf16 %v9718, %v10516
      %v10671 = vmul.bf16 %v9719, %v10528
      %v10672 = vmul.bf16 %v9720, %v10540
      %v10673 = vmul.bf16 %v9721, %v10552
      %v10674 = vmul.bf16 %v9722, %v10564
      %v10675 = vmul.bf16 %v9723, %v10576
      %v10676 = vmul.bf16 %v9724, %v10588
      %v10677 = vmul.bf16 %v9725, %v10600
      %v10678 = vmul.bf16 %v9726, %v10612
      %v10679 = vmul.bf16 %v9727, %v10624
      %v10680 = vmul.bf16 %v9728, %v10636
      %v10681 = vmul.bf16 %v9729, %v10648
      %s10682 = scalar_lea.vmem %s2, 480
      %v10683 = vld [vmem:[%s10682] sm:$0xf]
      %v10684 = vld [vmem:[%s10682 + $0x4] sm:$0xf]
      %v10685 = vld [vmem:[%s10682 + $0x8] sm:$0xf]
      %v10686 = vld [vmem:[%s10682 + $0xc] sm:$0xf]
      %v10687 = vld [vmem:[%s10682 + $0x10] sm:$0xf]
      %v10688 = vld [vmem:[%s10682 + $0x14] sm:$0xf]
      %v10689 = vld [vmem:[%s10682 + $0x18] sm:$0xf]
      %v10690 = vld [vmem:[%s10682 + $0x1c] sm:$0xf]
      %v10724 = vunpack.c.l.b16 %v10649
      %v10725 = vunpack.c.l.b16 %v10650
      %v10726 = vunpack.c.l.b16 %v10651
      %v10727 = vunpack.c.l.b16 %v10652
      %v10728 = vunpack.c.l.b16 %v10653
      %v10729 = vunpack.c.l.b16 %v10654
      %v10730 = vunpack.c.l.b16 %v10655
      %v10731 = vunpack.c.l.b16 %v10656
      %v10732 = vunpack.c.l.b16 %v10657
      %v10733 = vunpack.c.l.b16 %v10658
      %v10734 = vunpack.c.l.b16 %v10659
      %v10735 = vunpack.c.l.b16 %v10660
      %v10736 = vunpack.c.l.b16 %v10661
      %v10737 = vunpack.c.l.b16 %v10662
      %v10738 = vunpack.c.l.b16 %v10663
      %v10739 = vunpack.c.l.b16 %v10664
      %v10740 = vunpack.c.l.b16 %v10665
      %v10741 = vunpack.c.l.b16 %v10666
      %v10742 = vunpack.c.l.b16 %v10667
      %v10743 = vunpack.c.l.b16 %v10668
      %v10744 = vunpack.c.l.b16 %v10669
      %v10745 = vunpack.c.l.b16 %v10670
      %v10746 = vunpack.c.l.b16 %v10671
      %v10747 = vunpack.c.l.b16 %v10672
      %v10748 = vunpack.c.l.b16 %v10673
      %v10749 = vunpack.c.l.b16 %v10674
      %v10750 = vunpack.c.l.b16 %v10675
      %v10751 = vunpack.c.l.b16 %v10676
      %v10752 = vunpack.c.l.b16 %v10677
      %v10753 = vunpack.c.l.b16 %v10678
      %v10754 = vunpack.c.l.b16 %v10679
      %v10755 = vunpack.c.l.b16 %v10680
      %v10756 = vunpack.c.l.b16 %v10681
      %v10757 = vpack.c.b16 %v10725, %v10724
      %v10758 = vpack.c.b16 %v10727, %v10726
      %v10759 = vpack.c.b16 %v10729, %v10728
      %v10760 = vpack.c.b16 %v10731, %v10730
      %v10761 = vpack.c.b16 %v10733, %v10732
      %v10762 = vpack.c.b16 %v10735, %v10734
      %v10763 = vpack.c.b16 %v10737, %v10736
      %v10764 = vpack.c.b16 %v10739, %v10738
      %v10765 = vpack.c.b16 %v10741, %v10740
      %v10766 = vpack.c.b16 %v10743, %v10742
      %v10767 = vpack.c.b16 %v10745, %v10744
      %v10768 = vpack.c.b16 %v10747, %v10746
      %v10769 = vpack.c.b16 %v10749, %v10748
      %v10770 = vpack.c.b16 %v10751, %v10750
      %v10771 = vpack.c.b16 %v10753, %v10752
      %v10772 = vpack.c.b16 %v10755, %v10754
      %v10773 = vpack.c.b16 %v10756, %v10756
      %v10774 = vrot.slane %v10757, 1
      %v10775 = vrot.slane %v10758, 1
      %v10776 = vsel %vm3518, %v10774, %v10775
      %v10777 = vrot.slane %v10759, 1
      %v10778 = vsel %vm3518, %v10775, %v10777
      %v10779 = vrot.slane %v10760, 1
      %v10780 = vsel %vm3518, %v10777, %v10779
      %v10781 = vrot.slane %v10761, 1
      %v10782 = vsel %vm3518, %v10779, %v10781
      %v10783 = vrot.slane %v10762, 1
      %v10784 = vsel %vm3518, %v10781, %v10783
      %v10785 = vrot.slane %v10763, 1
      %v10786 = vsel %vm3518, %v10783, %v10785
      %v10787 = vrot.slane %v10764, 1
      %v10788 = vsel %vm3518, %v10785, %v10787
      %v10789 = vrot.slane %v10765, 1
      %v10790 = vsel %vm3518, %v10787, %v10789
      %v10791 = vrot.slane %v10766, 1
      %v10792 = vsel %vm3518, %v10789, %v10791
      %v10793 = vrot.slane %v10767, 1
      %v10794 = vsel %vm3518, %v10791, %v10793
      %v10795 = vrot.slane %v10768, 1
      %v10796 = vsel %vm3518, %v10793, %v10795
      %v10797 = vrot.slane %v10769, 1
      %v10798 = vsel %vm3518, %v10795, %v10797
      %v10799 = vrot.slane %v10770, 1
      %v10800 = vsel %vm3518, %v10797, %v10799
      %v10801 = vrot.slane %v10771, 1
      %v10802 = vsel %vm3518, %v10799, %v10801
      %v10803 = vrot.slane %v10772, 1
      %v10804 = vsel %vm3518, %v10801, %v10803
      %v10805 = vrot.slane %v10773, 1
      %v10806 = vsel %vm3518, %v10803, %v10805
      %v10815 = vunpack.c.l.b16 %v10683
      %v10816 = vunpack.c.l.b16 %v10684
      %v10817 = vunpack.c.l.b16 %v10685
      %v10818 = vunpack.c.l.b16 %v10686
      %v10819 = vunpack.c.l.b16 %v10687
      %v10820 = vunpack.c.l.b16 %v10688
      %v10821 = vunpack.c.l.b16 %v10689
      %v10822 = vunpack.c.l.b16 %v10690
      %v10823 = vpack.c.b16 %v10816, %v10815
      %v10824 = vpack.c.b16 %v10818, %v10817
      %v10825 = vpack.c.b16 %v10820, %v10819
      %v10826 = vpack.c.b16 %v10822, %v10821
      %v10832 = vsel %vm970, %v10776, 0
      %v10835 = vsel %vm970, %v10778, 0
      %v10838 = vsel %vm970, %v10780, 0
      %v10841 = vsel %vm970, %v10782, 0
      %v10844 = vsel %vm970, %v10784, 0
      %v10847 = vsel %vm970, %v10786, 0
      %v10850 = vsel %vm970, %v10788, 0
      %v10853 = vsel %vm970, %v10790, 0
      %v10856 = vsel %vm970, %v10792, 0
      %v10859 = vsel %vm970, %v10794, 0
      %v10862 = vsel %vm970, %v10796, 0
      %v10865 = vsel %vm970, %v10798, 0
      %v10868 = vsel %vm970, %v10800, 0
      %v10871 = vsel %vm970, %v10802, 0
      %v10874 = vsel %vm970, %v10804, 0
      %v10877 = vsel %vm970, %v10806, 0
      %10879 = vmatprep.subr.bf16.mxu0 0
      %10880 = vmatpush1.bf16.msra.mxu0 0
      %10881 = vmatprep.subr.bf16.mxu0 0
      %10882 = vmatpush1.bf16.msra.mxu0 0
      %10883 = vmatprep.subr.bf16.mxu0 0
      %10884 = vmatpush1.bf16.msra.mxu0 0
      %10885 = vmatprep.subr.bf16.mxu0 0
      %10886 = vmatpush1.bf16.msra.mxu0 0
      %10887 = vmatprep.subr.bf16.mxu0 0
      %10888 = vmatpush1.bf16.msra.mxu0 %v10826
      %10889 = vmatprep.subr.bf16.mxu0 0
      %10890 = vmatpush1.bf16.msra.mxu0 %v10825
      %10891 = vmatprep.subr.bf16.mxu0 0
      %10892 = vmatpush1.bf16.msra.mxu0 %v10824
      %10893 = vmatprep.subr.bf16.mxu0 0
      %10894 = vmatpush1.bf16.msra.mxu0 %v10823
      %10895 = vmatprep.subr.bf16.mxu0 0
      %10896 = vmatpush2.bf16.msra.mxu0 0
      %10897 = vmatprep.subr.bf16.mxu0 0
      %10898 = vmatpush2.bf16.msra.mxu0 0
      %10899 = vmatprep.subr.bf16.mxu0 0
      %10900 = vmatpush2.bf16.msra.mxu0 0
      %10901 = vmatprep.subr.bf16.mxu0 0
      %10902 = vmatpush2.bf16.msra.mxu0 0
      %10903 = vmatprep.subr.bf16.mxu0 0
      %10904 = vmatpush2.bf16.msra.mxu0 0
      %10905 = vmatprep.subr.bf16.mxu0 0
      %10906 = vmatpush2.bf16.msra.mxu0 0
      %10907 = vmatprep.subr.bf16.mxu0 0
      %10908 = vmatpush2.bf16.msra.mxu0 0
      %10909 = vmatprep.subr.bf16.mxu0 0
      %10910 = vmatpush2.bf16.msra.mxu0 0
      %10911 = vmatprep.mubr.bf16.mxu0 0
      %10912 = vmatmul.mubr.bf16.gmra.mxu0 %v10832
      %v10913 = vpop.f32.mrf.mxu0
      %v10914 = vadd.f32 0.0, %v10913
      %v10915 = vpop.f32.mrf.mxu0
      %v10916 = vpop.f32.mrf.mxu0
      %v10917 = vadd.f32 0.0, %v10916
      %v10918 = vpop.f32.mrf.mxu0
      %10919 = vmatprep.mubr.bf16.mxu0 0
      %10920 = vmatmul.mubr.bf16.gmra.mxu0 %v10835
      %v10921 = vpop.f32.mrf.mxu0
      %v10922 = vadd.f32 0.0, %v10921
      %v10923 = vpop.f32.mrf.mxu0
      %v10924 = vpop.f32.mrf.mxu0
      %v10925 = vadd.f32 0.0, %v10924
      %v10926 = vpop.f32.mrf.mxu0
      %10927 = vmatprep.mubr.bf16.mxu0 0
      %10928 = vmatmul.mubr.bf16.gmra.mxu0 %v10838
      %v10929 = vpop.f32.mrf.mxu0
      %v10930 = vadd.f32 0.0, %v10929
      %v10931 = vpop.f32.mrf.mxu0
      %v10932 = vpop.f32.mrf.mxu0
      %v10933 = vadd.f32 0.0, %v10932
      %v10934 = vpop.f32.mrf.mxu0
      %10935 = vmatprep.mubr.bf16.mxu0 0
      %10936 = vmatmul.mubr.bf16.gmra.mxu0 %v10841
      %v10937 = vpop.f32.mrf.mxu0
      %v10938 = vadd.f32 0.0, %v10937
      %v10939 = vpop.f32.mrf.mxu0
      %v10940 = vpop.f32.mrf.mxu0
      %v10941 = vadd.f32 0.0, %v10940
      %v10942 = vpop.f32.mrf.mxu0
      %10943 = vmatprep.mubr.bf16.mxu0 0
      %10944 = vmatmul.mubr.bf16.gmra.mxu0 %v10844
      %v10945 = vpop.f32.mrf.mxu0
      %v10946 = vadd.f32 0.0, %v10945
      %v10947 = vpop.f32.mrf.mxu0
      %v10948 = vpop.f32.mrf.mxu0
      %v10949 = vadd.f32 0.0, %v10948
      %v10950 = vpop.f32.mrf.mxu0
      %10951 = vmatprep.mubr.bf16.mxu0 0
      %10952 = vmatmul.mubr.bf16.gmra.mxu0 %v10847
      %v10953 = vpop.f32.mrf.mxu0
      %v10954 = vadd.f32 0.0, %v10953
      %v10955 = vpop.f32.mrf.mxu0
      %v10956 = vpop.f32.mrf.mxu0
      %v10957 = vadd.f32 0.0, %v10956
      %v10958 = vpop.f32.mrf.mxu0
      %10959 = vmatprep.mubr.bf16.mxu0 0
      %10960 = vmatmul.mubr.bf16.gmra.mxu0 %v10850
      %v10961 = vpop.f32.mrf.mxu0
      %v10962 = vadd.f32 0.0, %v10961
      %v10963 = vpop.f32.mrf.mxu0
      %v10964 = vpop.f32.mrf.mxu0
      %v10965 = vadd.f32 0.0, %v10964
      %v10966 = vpop.f32.mrf.mxu0
      %10967 = vmatprep.mubr.bf16.mxu0 0
      %10968 = vmatmul.mubr.bf16.gmra.mxu0 %v10853
      %v10969 = vpop.f32.mrf.mxu0
      %v10970 = vadd.f32 0.0, %v10969
      %v10971 = vpop.f32.mrf.mxu0
      %v10972 = vpop.f32.mrf.mxu0
      %v10973 = vadd.f32 0.0, %v10972
      %v10974 = vpop.f32.mrf.mxu0
      %10975 = vmatprep.mubr.bf16.mxu0 0
      %10976 = vmatmul.mubr.bf16.gmra.mxu0 %v10856
      %v10977 = vpop.f32.mrf.mxu0
      %v10978 = vadd.f32 0.0, %v10977
      %v10979 = vpop.f32.mrf.mxu0
      %v10980 = vpop.f32.mrf.mxu0
      %v10981 = vadd.f32 0.0, %v10980
      %v10982 = vpop.f32.mrf.mxu0
      %10983 = vmatprep.mubr.bf16.mxu0 0
      %10984 = vmatmul.mubr.bf16.gmra.mxu0 %v10859
      %v10985 = vpop.f32.mrf.mxu0
      %v10986 = vadd.f32 0.0, %v10985
      %v10987 = vpop.f32.mrf.mxu0
      %v10988 = vpop.f32.mrf.mxu0
      %v10989 = vadd.f32 0.0, %v10988
      %v10990 = vpop.f32.mrf.mxu0
      %10991 = vmatprep.mubr.bf16.mxu0 0
      %10992 = vmatmul.mubr.bf16.gmra.mxu0 %v10862
      %v10993 = vpop.f32.mrf.mxu0
      %v10994 = vadd.f32 0.0, %v10993
      %v10995 = vpop.f32.mrf.mxu0
      %v10996 = vpop.f32.mrf.mxu0
      %v10997 = vadd.f32 0.0, %v10996
      %v10998 = vpop.f32.mrf.mxu0
      %10999 = vmatprep.mubr.bf16.mxu0 0
      %11000 = vmatmul.mubr.bf16.gmra.mxu0 %v10865
      %v11001 = vpop.f32.mrf.mxu0
      %v11002 = vadd.f32 0.0, %v11001
      %v11003 = vpop.f32.mrf.mxu0
      %v11004 = vpop.f32.mrf.mxu0
      %v11005 = vadd.f32 0.0, %v11004
      %v11006 = vpop.f32.mrf.mxu0
      %11007 = vmatprep.mubr.bf16.mxu0 0
      %11008 = vmatmul.mubr.bf16.gmra.mxu0 %v10868
      %v11009 = vpop.f32.mrf.mxu0
      %v11010 = vadd.f32 0.0, %v11009
      %v11011 = vpop.f32.mrf.mxu0
      %v11012 = vpop.f32.mrf.mxu0
      %v11013 = vadd.f32 0.0, %v11012
      %v11014 = vpop.f32.mrf.mxu0
      %11015 = vmatprep.mubr.bf16.mxu0 0
      %11016 = vmatmul.mubr.bf16.gmra.mxu0 %v10871
      %v11017 = vpop.f32.mrf.mxu0
      %v11018 = vadd.f32 0.0, %v11017
      %v11019 = vpop.f32.mrf.mxu0
      %v11020 = vpop.f32.mrf.mxu0
      %v11021 = vadd.f32 0.0, %v11020
      %v11022 = vpop.f32.mrf.mxu0
      %11023 = vmatprep.mubr.bf16.mxu0 0
      %11024 = vmatmul.mubr.bf16.gmra.mxu0 %v10874
      %v11025 = vpop.f32.mrf.mxu0
      %v11026 = vadd.f32 0.0, %v11025
      %v11027 = vpop.f32.mrf.mxu0
      %v11028 = vpop.f32.mrf.mxu0
      %v11029 = vadd.f32 0.0, %v11028
      %v11030 = vpop.f32.mrf.mxu0
      %11031 = vmatprep.mubr.bf16.mxu0 0
      %11032 = vmatmul.mubr.bf16.gmra.mxu0 %v10877
      %v11033 = vpop.f32.mrf.mxu0
      %v11034 = vadd.f32 0.0, %v11033
      %v11035 = vpop.f32.mrf.mxu0
      %v11036 = vpop.f32.mrf.mxu0
      %v11037 = vadd.f32 0.0, %v11036
      %v11038 = vpop.f32.mrf.mxu0
      %11039 = vdwg.mxu0
      %v11040 = vadd.f32 %v10187, %v10914
      %v11041 = vadd.f32 %v10188, %v10917
      %v11042 = vadd.f32 %v10189, %v10922
      %v11043 = vadd.f32 %v10190, %v10925
      %v11044 = vadd.f32 %v10191, %v10930
      %v11045 = vadd.f32 %v10192, %v10933
      %v11046 = vadd.f32 %v10193, %v10938
      %v11047 = vadd.f32 %v10194, %v10941
      %v11048 = vadd.f32 %v10195, %v10946
      %v11049 = vadd.f32 %v10196, %v10949
      %v11050 = vadd.f32 %v10197, %v10954
      %v11051 = vadd.f32 %v10198, %v10957
      %v11052 = vadd.f32 %v10199, %v10962
      %v11053 = vadd.f32 %v10200, %v10965
      %v11054 = vadd.f32 %v10201, %v10970
      %v11055 = vadd.f32 %v10202, %v10973
      %v11056 = vadd.f32 %v10203, %v10978
      %v11057 = vadd.f32 %v10204, %v10981
      %v11058 = vadd.f32 %v10205, %v10986
      %v11059 = vadd.f32 %v10206, %v10989
      %v11060 = vadd.f32 %v10207, %v10994
      %v11061 = vadd.f32 %v10208, %v10997
      %v11062 = vadd.f32 %v10209, %v11002
      %v11063 = vadd.f32 %v10210, %v11005
      %v11064 = vadd.f32 %v10211, %v11010
      %v11065 = vadd.f32 %v10212, %v11013
      %v11066 = vadd.f32 %v10213, %v11018
      %v11067 = vadd.f32 %v10214, %v11021
      %v11068 = vadd.f32 %v10215, %v11026
      %v11069 = vadd.f32 %v10216, %v11029
      %v11070 = vadd.f32 %v10217, %v11034
      %v11071 = vadd.f32 %v10218, %v11037
      %v11072 = vadd.f32 %v11040, %v2853
      %v11073 = vadd.f32 %v11041, %v2853
      %v11074 = vadd.f32 %v11042, %v2853
      %v11075 = vadd.f32 %v11043, %v2853
      %v11076 = vadd.f32 %v11044, %v2853
      %v11077 = vadd.f32 %v11045, %v2853
      %v11078 = vadd.f32 %v11046, %v2853
      %v11079 = vadd.f32 %v11047, %v2853
      %v11080 = vadd.f32 %v11048, %v2853
      %v11081 = vadd.f32 %v11049, %v2853
      %v11082 = vadd.f32 %v11050, %v2853
      %v11083 = vadd.f32 %v11051, %v2853
      %v11084 = vadd.f32 %v11052, %v2853
      %v11085 = vadd.f32 %v11053, %v2853
      %v11086 = vadd.f32 %v11054, %v2853
      %v11087 = vadd.f32 %v11055, %v2853
      %v11088 = vadd.f32 %v11056, %v2853
      %v11089 = vadd.f32 %v11057, %v2853
      %v11090 = vadd.f32 %v11058, %v2853
      %v11091 = vadd.f32 %v11059, %v2853
      %v11092 = vadd.f32 %v11060, %v2853
      %v11093 = vadd.f32 %v11061, %v2853
      %v11094 = vadd.f32 %v11062, %v2853
      %v11095 = vadd.f32 %v11063, %v2853
      %v11096 = vadd.f32 %v11064, %v2853
      %v11097 = vadd.f32 %v11065, %v2853
      %v11098 = vadd.f32 %v11066, %v2853
      %v11099 = vadd.f32 %v11067, %v2853
      %v11100 = vadd.f32 %v11068, %v2853
      %v11101 = vadd.f32 %v11069, %v2853
      %v11102 = vadd.f32 %v11070, %v2853
      %v11103 = vadd.f32 %v11071, %v2853
      %s11104 = scalar_lea.vmem %s197, 768
      %11105 = vst.msk [vmem:[%s11104] sm:$0xff] %vm2887, %v11072
      %11106 = vst.msk [vmem:[%s11104 + $0x8] sm:$0xff] %vm2887, %v11073
      %11107 = vst.msk [vmem:[%s11104 + $0x10] sm:$0xff] %vm2887, %v11074
      %11108 = vst.msk [vmem:[%s11104 + $0x18] sm:$0xff] %vm2887, %v11075
      %11109 = vst.msk [vmem:[%s11104 + $0x20] sm:$0xff] %vm2887, %v11076
      %11110 = vst.msk [vmem:[%s11104 + $0x28] sm:$0xff] %vm2887, %v11077
      %11111 = vst.msk [vmem:[%s11104 + $0x30] sm:$0xff] %vm2887, %v11078
      %11112 = vst.msk [vmem:[%s11104 + $0x38] sm:$0xff] %vm2887, %v11079
      %11113 = vst.msk [vmem:[%s11104 + $0x40] sm:$0xff] %vm2887, %v11080
      %11114 = vst.msk [vmem:[%s11104 + $0x48] sm:$0xff] %vm2887, %v11081
      %11115 = vst.msk [vmem:[%s11104 + $0x50] sm:$0xff] %vm2887, %v11082
      %11116 = vst.msk [vmem:[%s11104 + $0x58] sm:$0xff] %vm2887, %v11083
      %11117 = vst.msk [vmem:[%s11104 + $0x60] sm:$0xff] %vm2887, %v11084
      %11118 = vst.msk [vmem:[%s11104 + $0x68] sm:$0xff] %vm2887, %v11085
      %11119 = vst.msk [vmem:[%s11104 + $0x70] sm:$0xff] %vm2887, %v11086
      %11120 = vst.msk [vmem:[%s11104 + $0x78] sm:$0xff] %vm2887, %v11087
      %11121 = vst.msk [vmem:[%s11104 + $0x80] sm:$0xff] %vm2887, %v11088
      %11122 = vst.msk [vmem:[%s11104 + $0x88] sm:$0xff] %vm2887, %v11089
      %11123 = vst.msk [vmem:[%s11104 + $0x90] sm:$0xff] %vm2887, %v11090
      %11124 = vst.msk [vmem:[%s11104 + $0x98] sm:$0xff] %vm2887, %v11091
      %11125 = vst.msk [vmem:[%s11104 + $0xa0] sm:$0xff] %vm2887, %v11092
      %11126 = vst.msk [vmem:[%s11104 + $0xa8] sm:$0xff] %vm2887, %v11093
      %11127 = vst.msk [vmem:[%s11104 + $0xb0] sm:$0xff] %vm2887, %v11094
      %11128 = vst.msk [vmem:[%s11104 + $0xb8] sm:$0xff] %vm2887, %v11095
      %11129 = vst.msk [vmem:[%s11104 + $0xc0] sm:$0xff] %vm2887, %v11096
      %11130 = vst.msk [vmem:[%s11104 + $0xc8] sm:$0xff] %vm2887, %v11097
      %11131 = vst.msk [vmem:[%s11104 + $0xd0] sm:$0xff] %vm2887, %v11098
      %11132 = vst.msk [vmem:[%s11104 + $0xd8] sm:$0xff] %vm2887, %v11099
      %11133 = vst.msk [vmem:[%s11104 + $0xe0] sm:$0xff] %vm2887, %v11100
      %11134 = vst.msk [vmem:[%s11104 + $0xe8] sm:$0xff] %vm2887, %v11101
      %11135 = vst.msk [vmem:[%s11104 + $0xf0] sm:$0xff] %vm2887, %v11102
      %11136 = vst.msk [vmem:[%s11104 + $0xf8] sm:$0xff] %vm2887, %v11103
      %p11137 = scmp.lt.s32.totalorder %s15, 1
      %s11138 = scalar_select %p11137, %s15, 1
      %s11139 = smul.addr %s11138, 128
      %s11140 = smul.addr %s11139, 8
      %s11141 = scalar_lea.vmem %s4, %s11140
      // Predicated region
      $region37: #{resize_conv2d.1} parent=35 // pred_check
        %p11142 = pneg %p122
      $region38: #{resize_conv2d.1} parent=35 // pred_check_branch
        %11144 = sbr.rel (%p11142) target = $region40
      $region39: #{resize_conv2d.1} parent=35 // pred_region
        _
      $region40: #{resize_conv2d.1} parent=35 // pred_fallthru
        _
    $region36: #{resize_conv2d.1} parent=5 // pred_fallthru
      _
    %p11145 = scmp.le.s32.totalorder 2, %s10
    // Predicated region
    $region41: #{resize_conv2d.1} parent=5 // pred_check
      %p11146 = pneg %p11145
    $region42: #{resize_conv2d.1} parent=5 // pred_check_branch
      %11148 = sbr.rel (%p11146) target = $region44
    $region43: #{resize_conv2d.1} parent=5 // pred_region
      %s11149 = ssub.s32 %s10, 2
      // Predicated region
      $region45: #{resize_conv2d.1} parent=43 // pred_check
        %p11150 = pneg %p128
      $region46: #{resize_conv2d.1} parent=43 // pred_check_branch
        %11152 = sbr.rel (%p11150) target = $region48
      $region47: #{resize_conv2d.1} parent=43 // pred_region
        %p11153 = scmp.lt.s32.totalorder %s16, 1
        %s11154 = scalar_select %p11153, %s16, 1
        %s11155 = smul.addr %s11154, 128
        %s11156 = smul.addr %s11155, 8
        %s11157 = scalar_lea.vmem %s4, %s11156
      $region48: #{resize_conv2d.1} parent=43 // pred_fallthru
        _
    $region44: #{resize_conv2d.1} parent=5 // pred_fallthru
      _
  $region6: #{resize_conv2d.1} parent=0 // loop_footer
    %s14 = sadd.s32 1, %s10
  $region7: #{resize_conv2d.1} parent=0 // loop_footer_branch
    %9 = sbr.rel target = $region3
  $region8: #{resize_conv2d.1} parent=0 // loop_exit
    _

</llo_original>
